<compile_context>
chip_gen: v6e
topology: v6e:2x2x1
jax: 0.10.0
libtpu: 0.0.40
codegen_flags: <defaults>
</compile_context>

<pallas_src>
import jax
import jax.numpy as jnp
from jax import lax
from jax.experimental import pallas as pl
from jax.experimental.pallas import tpu as pltpu


# ----------------------------- Pallas kernel ---------------------------------
def _seq2seq_atten_kernel(
    x_ref,                          # (S, Bp, E)  time-major embedded input (f32)
    wi_f_ref, wi_b_ref,             # (E, 3Hp)    input->gate weights (gate order r,z,n)
    bi_f_ref, bi_b_ref,             # (1, 3Hp)
    wh_f_ref, wh_b_ref,             # (Hp, 3Hp)   hidden->gate weights
    bh_f_ref, bh_b_ref,             # (1, 3Hp)
    wfc_ref, bfc_ref,               # (4Hp, Lp), (1, Lp)
    out_ref,                        # (Bp, Lp)
    gi_f_scr, gi_b_scr,             # VMEM scratch (S, Bp, 3Hp)
    fwd_scr, bwd_scr,               # VMEM scratch (S, Bp, Hp)
):
  S, Bp, E = x_ref.shape
  Hp = wh_f_ref.shape[0]
  H3 = 3 * Hp

  # ---- (1) hoisted input projections: one big MXU matmul per direction ------
  x2d = x_ref[...].reshape(S * Bp, E)           # free reshape (Bp multiple of 8)
  gi_f_scr[...] = (jnp.dot(x2d, wi_f_ref[...], preferred_element_type=jnp.float32)
                   + bi_f_ref[...]).reshape(S, Bp, H3)
  gi_b_scr[...] = (jnp.dot(x2d, wi_b_ref[...], preferred_element_type=jnp.float32)
                   + bi_b_ref[...]).reshape(S, Bp, H3)

  # ---- (2) fused bidirectional recurrence ------------------------------------
  wh_f = wh_f_ref[...]
  wh_b = wh_b_ref[...]
  bh_f = jnp.broadcast_to(bh_f_ref[...], (Bp, H3))   # hoisted broadcasts
  bh_b = jnp.broadcast_to(bh_b_ref[...], (Bp, H3))

  def gru_gates(gi, gh, h_prev):
    # lane-aligned gate slices (Hp is a multiple of 128)
    r = jax.nn.sigmoid(gi[:, 0:Hp] + gh[:, 0:Hp])
    z = jax.nn.sigmoid(gi[:, Hp:2 * Hp] + gh[:, Hp:2 * Hp])
    n = jnp.tanh(gi[:, 2 * Hp:3 * Hp] + r * gh[:, 2 * Hp:3 * Hp])
    return (1.0 - z) * n + z * h_prev

  h0 = jnp.zeros((Bp, Hp), jnp.float32)

  def body(t, carry):
    h_f, h_b = carry
    s = S - 1 - t
    # two independent directions per iteration -> latencies overlap
    gh_f = jnp.dot(h_f, wh_f, preferred_element_type=jnp.float32) + bh_f
    gh_b = jnp.dot(h_b, wh_b, preferred_element_type=jnp.float32) + bh_b
    h_f_new = gru_gates(gi_f_scr[t], gh_f, h_f)
    h_b_new = gru_gates(gi_b_scr[s], gh_b, h_b)
    fwd_scr[t] = h_f_new
    bwd_scr[s] = h_b_new
    return (h_f_new, h_b_new)

  unroll = True if S <= 32 else 2
  h_f, h_b = lax.fori_loop(0, S, body, (h0, h0), unroll=unroll)

  # ---- (3) attention: MXU batched matmuls, lane-dense softmax ---------------
  fwd_t = jnp.transpose(fwd_scr[...], (1, 0, 2))    # (Bp, S, Hp)
  bwd_t = jnp.transpose(bwd_scr[...], (1, 0, 2))

  sc = (jnp.einsum('bsh,bhk->bsk', fwd_t, h_f[:, :, None],
                   preferred_element_type=jnp.float32)
        + jnp.einsum('bsh,bhk->bsk', bwd_t, h_b[:, :, None],
                     preferred_element_type=jnp.float32))[:, :, 0]   # (Bp, S)

  m = jnp.max(sc, axis=-1, keepdims=True)
  e = jnp.exp(sc - m)
  denom = jnp.sum(e, axis=-1, keepdims=True)
  w = e * pl.reciprocal(denom, approx=True)          # softmax over seq (lane axis)

  w3 = w[:, None, :]                                 # (Bp, 1, S)
  attn_f = jnp.einsum('bks,bsh->bkh', w3, fwd_t,
                      preferred_element_type=jnp.float32)[:, 0, :]   # (Bp, Hp)
  attn_b = jnp.einsum('bks,bsh->bkh', w3, bwd_t,
                      preferred_element_type=jnp.float32)[:, 0, :]

  # ---- (4) classifier + sigmoid ----------------------------------------------
  feat = jnp.concatenate([h_f, h_b, attn_f, attn_b], axis=-1)        # (Bp, 4Hp)
  logits = (jnp.dot(feat, wfc_ref[...], preferred_element_type=jnp.float32)
            + bfc_ref[...])
  out_ref[...] = jax.nn.sigmoid(logits)              # lane-dense (Bp, Lp) store


# ----------------------------- wrapper ----------------------------------------
def _round_up(x, m):
  return (x + m - 1) // m * m


def seq2seq_atten2_forward(x_tokens, params):
  """x_tokens: (B, S) int32 indices. Returns (B, num_label) float32 sigmoid probs."""
  emb = params["emb"]                                   # (V+1, E), row 0 = padding
  B, S = x_tokens.shape
  E = emb.shape[1]
  H = params["w_hh_f"].shape[1]
  L = params["fc_w"].shape[0]

  Bp = _round_up(B, 8)        # sublane height
  Hp = _round_up(H, 128)      # lane width (per gate / per feature block)
  Lp = _round_up(L, 128)      # lane-dense output

  # Pad batch with padding tokens (id 0 -> zero embedding row); fuse the (B,S)->(S,B)
  # transpose into the gather itself (no separate HBM round trip of the embedded tensor).
  tok = jnp.zeros((Bp, S), x_tokens.dtype).at[:B].set(x_tokens)
  x_emb = emb[tok.T].astype(jnp.float32)                # (S, Bp, E)

  def pad_gate_rows(w, h, hp):
    # (3h, ...) -> (3hp, ...), padding each of the r/z/n blocks separately with zeros.
    out = jnp.zeros((3 * hp,) + w.shape[1:], jnp.float32)
    for g in range(3):
      out = out.at[g * hp:g * hp + h].set(w[g * h:(g + 1) * h].astype(jnp.float32))
    return out

  def prep_dir(w_ih, w_hh, b_ih, b_hh):
    wi = pad_gate_rows(w_ih, H, Hp)                             # (3Hp, E)
    wh = pad_gate_rows(w_hh, H, Hp)                             # (3Hp, H)
    wh = jnp.zeros((3 * Hp, Hp), jnp.float32).at[:, :H].set(wh)  # (3Hp, Hp)
    bi = pad_gate_rows(b_ih, H, Hp)                             # (3Hp,)
    bh = pad_gate_rows(b_hh, H, Hp)                             # (3Hp,)
    return wi.T, wh.T, bi[None, :], bh[None, :]   # (E,3Hp) (Hp,3Hp) (1,3Hp) (1,3Hp)

  wi_f, wh_f, bi_f, bh_f = prep_dir(params["w_ih_f"], params["w_hh_f"],
                                    params["b_ih_f"], params["b_hh_f"])
  wi_b, wh_b, bi_b, bh_b = prep_dir(params["w_ih_b"], params["w_hh_b"],
                                    params["b_ih_b"], params["b_hh_b"])

  # FC: feature layout is [h_f | h_b | attn_f | attn_b], each block padded H -> Hp.
  fc_w = params["fc_w"].astype(jnp.float32)             # (L, 4H)
  fc_wp = jnp.zeros((L, 4 * Hp), jnp.float32)
  for g in range(4):
    fc_wp = fc_wp.at[:, g * Hp:g * Hp + H].set(fc_w[:, g * H:(g + 1) * H])
  fc_wp = jnp.zeros((Lp, 4 * Hp), jnp.float32).at[:L].set(fc_wp)   # (Lp, 4Hp)
  fc_bp = jnp.zeros((Lp,), jnp.float32).at[:L].set(params["fc_b"].astype(jnp.float32))
  wfc = fc_wp.T                                          # (4Hp, Lp)
  bfc = fc_bp[None, :]                                   # (1, Lp)

  args = (x_emb,
          wi_f, wi_b, bi_f, bi_b,
          wh_f, wh_b, bh_f, bh_b,
          wfc, bfc)

  # Explicit VMEM budget with headroom (inputs + scratch + temporaries).
  n_f32 = (x_emb.size
           + 2 * (E * 3 * Hp) + 2 * (Hp * 3 * Hp) + 4 * (3 * Hp)
           + 4 * Hp * Lp + Lp + Bp * Lp
           + 2 * S * Bp * 3 * Hp + 2 * S * Bp * Hp)
  vmem_limit = int(min(64 * 1024 * 1024, max(8 * n_f32, 16 * 1024 * 1024)))

  out = pl.pallas_call(
      _seq2seq_atten_kernel,
      out_shape=jax.ShapeDtypeStruct((Bp, Lp), jnp.float32),
      in_specs=[pl.BlockSpec(memory_space=pltpu.MemorySpace.VMEM)] * len(args),
      out_specs=pl.BlockSpec(memory_space=pltpu.MemorySpace.VMEM),
      scratch_shapes=[
          pltpu.VMEM((S, Bp, 3 * Hp), jnp.float32),   # gi forward
          pltpu.VMEM((S, Bp, 3 * Hp), jnp.float32),   # gi backward
          pltpu.VMEM((S, Bp, Hp), jnp.float32),       # forward hidden states
          pltpu.VMEM((S, Bp, Hp), jnp.float32),       # backward hidden states
      ],
      compiler_params=pltpu.CompilerParams(vmem_limit_bytes=vmem_limit),
  )(*args)

  return out[:B, :L]


# ----------------------------- pure-JAX reference ------------------------------
def reference_forward(x_tokens, params):
  emb = params["emb"]
  xe = emb[x_tokens].astype(jnp.float32)      # (B, S, E)
  B, S, E = xe.shape
  H = params["w_hh_f"].shape[1]
  xs = jnp.transpose(xe, (1, 0, 2))           # (S, B, E)

  def gru_dir(seq, w_ih, w_hh, b_ih, b_hh):
    def cell(h, x_t):
      gi = x_t @ w_ih.T + b_ih
      gh = h @ w_hh.T + b_hh
      r = jax.nn.sigmoid(gi[:, :H] + gh[:, :H])
      z = jax.nn.sigmoid(gi[:, H:2 * H] + gh[:, H:2 * H])
      n = jnp.tanh(gi[:, 2 * H:] + r * gh[:, 2 * H:])
      h_new = (1.0 - z) * n + z * h
      return h_new, h_new
    h0 = jnp.zeros((B, H), jnp.float32)
    return lax.scan(cell, h0, seq)

  h_f, hs_f = gru_dir(xs, params["w_ih_f"], params["w_hh_f"],
                      params["b_ih_f"], params["b_hh_f"])
  h_b, hs_b_rev = gru_dir(xs[::-1], params["w_ih_b"], params["w_hh_b"],
                          params["b_ih_b"], params["b_hh_b"])
  hs_b = hs_b_rev[::-1]

  rnn = jnp.concatenate([hs_f, hs_b], axis=-1)          # (S, B, 2H)
  fh = jnp.concatenate([h_f, h_b], axis=-1)             # (B, 2H)
  scores = jnp.einsum('sbd,bd->bs', rnn, fh)            # (B, S)
  w = jax.nn.softmax(scores, axis=1)
  attn = jnp.einsum('bs,sbd->bd', w, rnn)               # (B, 2H)
  feat = jnp.concatenate([fh, attn], axis=-1)           # (B, 4H)
  return jax.nn.sigmoid(feat @ params["fc_w"].T + params["fc_b"])


# ----------------------------- param init & main -------------------------------
def init_params(key, vocab, emb_size, h_size, num_label):
  # TODO(synk): the original loads a pretrained word2vec table from file; a random
  # table (with zeroed padding row 0) is used here instead.
  ks = jax.random.split(key, 12)
  def norm(k, shape, scale=0.1):
    return (scale * jax.random.normal(k, shape)).astype(jnp.float32)
  emb_table = norm(ks[0], (vocab + 1, emb_size))
  emb_table = emb_table.at[0].set(0.0)                  # padding_idx=0
  return {
      "emb": emb_table,
      "w_ih_f": norm(ks[1], (3 * h_size, emb_size)),
      "w_hh_f": norm(ks[2], (3 * h_size, h_size)),
      "b_ih_f": norm(ks[3], (3 * h_size,)),
      "b_hh_f": norm(ks[4], (3 * h_size,)),
      "w_ih_b": norm(ks[5], (3 * h_size, emb_size)),
      "w_hh_b": norm(ks[6], (3 * h_size, h_size)),
      "b_ih_b": norm(ks[7], (3 * h_size,)),
      "b_hh_b": norm(ks[8], (3 * h_size,)),
      "fc_w": norm(ks[9], (num_label, 4 * h_size)),
      "fc_b": norm(ks[10], (num_label,)),
  }


if __name__ == "__main__":
  B, S = 2, 8
  VOCAB, EMB, H, NUM_LABEL = 20, 32, 32, 4

  key = jax.random.PRNGKey(0)
  k_param, k_tok = jax.random.split(key)
  params = init_params(k_param, VOCAB, EMB, H, NUM_LABEL)
  x_tokens = jax.random.randint(k_tok, (B, S), 0, VOCAB + 1, dtype=jnp.int32)

  out = seq2seq_atten2_forward(x_tokens, params)
  out = jax.block_until_ready(out)

  ref = jax.block_until_ready(reference_forward(x_tokens, params))
  assert out.shape == (B, NUM_LABEL)
  assert jnp.allclose(out, ref, atol=1e-2, rtol=1e-2), (out, ref)

  print("KERNEL_OK")
</pallas_src>

<mosaic_0001>
module attributes {stable_mosaic.version = 11 : i64} {
  func.func @_seq2seq_atten_kernel(%arg0: memref<8x8x32xf32, #tpu.memory_space<vmem>>, %arg1: memref<32x384xf32, #tpu.memory_space<vmem>>, %arg2: memref<32x384xf32, #tpu.memory_space<vmem>>, %arg3: memref<1x384xf32, #tpu.memory_space<vmem>>, %arg4: memref<1x384xf32, #tpu.memory_space<vmem>>, %arg5: memref<128x384xf32, #tpu.memory_space<vmem>>, %arg6: memref<128x384xf32, #tpu.memory_space<vmem>>, %arg7: memref<1x384xf32, #tpu.memory_space<vmem>>, %arg8: memref<1x384xf32, #tpu.memory_space<vmem>>, %arg9: memref<512x128xf32, #tpu.memory_space<vmem>>, %arg10: memref<1x128xf32, #tpu.memory_space<vmem>>, %arg11: memref<8x128xf32, #tpu.memory_space<vmem>>, %arg12: memref<8x8x384xf32, #tpu.memory_space<vmem>>, %arg13: memref<8x8x384xf32, #tpu.memory_space<vmem>>, %arg14: memref<8x8x128xf32, #tpu.memory_space<vmem>>, %arg15: memref<8x8x128xf32, #tpu.memory_space<vmem>>) attributes {dimension_semantics = [], scalar_prefetch = 0 : i64, scratch_operands = 4 : i64, tpu.core_type = #tpu.core_type<tc>} {
    %c0 = arith.constant 0 : index
    %c0_0 = arith.constant 0 : index
    %c0_1 = arith.constant 0 : index
    %0 = vector.load %arg0[%c0, %c0_0, %c0_1] : memref<8x8x32xf32, #tpu.memory_space<vmem>>, vector<8x8x32xf32>
    %1 = vector.shape_cast %0 : vector<8x8x32xf32> to vector<64x32xf32>
    %c0_2 = arith.constant 0 : index
    %c0_3 = arith.constant 0 : index
    %2 = vector.load %arg1[%c0_2, %c0_3] : memref<32x384xf32, #tpu.memory_space<vmem>>, vector<32x384xf32>
    %cst = arith.constant dense<0.000000e+00> : vector<64x384xf32>
    %3 = tpu.matmul %1, %2, %cst {dimension_numbers = #tpu.dot_dimension_numbers<[1], [0], [0], [1], [0, 0, 1, 1], [], []>} : vector<64x32xf32>, vector<32x384xf32>, vector<64x384xf32> -> vector<64x384xf32>
    %c0_4 = arith.constant 0 : index
    %c0_5 = arith.constant 0 : index
    %4 = vector.load %arg3[%c0_4, %c0_5] : memref<1x384xf32, #tpu.memory_space<vmem>>, vector<1x384xf32>
    %5 = vector.broadcast %4 : vector<1x384xf32> to vector<64x384xf32>
    %6 = arith.addf %3, %5 : vector<64x384xf32>
    %7 = vector.shape_cast %6 : vector<64x384xf32> to vector<8x8x384xf32>
    %c0_6 = arith.constant 0 : index
    %c0_7 = arith.constant 0 : index
    %c0_8 = arith.constant 0 : index
    %8 = vector.load %arg12[%c0_6, %c0_7, %c0_8] : memref<8x8x384xf32, #tpu.memory_space<vmem>>, vector<8x8x384xf32>
    tpu.vector_store %arg12[%c0_6, %c0_7, %c0_8], %7 {strides = array<i32>} : memref<8x8x384xf32, #tpu.memory_space<vmem>>, vector<8x8x384xf32>,
    %c0_9 = arith.constant 0 : index
    %c0_10 = arith.constant 0 : index
    %9 = vector.load %arg2[%c0_9, %c0_10] : memref<32x384xf32, #tpu.memory_space<vmem>>, vector<32x384xf32>
    %cst_11 = arith.constant dense<0.000000e+00> : vector<64x384xf32>
    %10 = tpu.matmul %1, %9, %cst_11 {dimension_numbers = #tpu.dot_dimension_numbers<[1], [0], [0], [1], [0, 0, 1, 1], [], []>} : vector<64x32xf32>, vector<32x384xf32>, vector<64x384xf32> -> vector<64x384xf32>
    %c0_12 = arith.constant 0 : index
    %c0_13 = arith.constant 0 : index
    %11 = vector.load %arg4[%c0_12, %c0_13] : memref<1x384xf32, #tpu.memory_space<vmem>>, vector<1x384xf32>
    %12 = vector.broadcast %11 : vector<1x384xf32> to vector<64x384xf32>
    %13 = arith.addf %10, %12 : vector<64x384xf32>
    %14 = vector.shape_cast %13 : vector<64x384xf32> to vector<8x8x384xf32>
    %c0_14 = arith.constant 0 : index
    %c0_15 = arith.constant 0 : index
    %c0_16 = arith.constant 0 : index
    %15 = vector.load %arg13[%c0_14, %c0_15, %c0_16] : memref<8x8x384xf32, #tpu.memory_space<vmem>>, vector<8x8x384xf32>
    tpu.vector_store %arg13[%c0_14, %c0_15, %c0_16], %14 {strides = array<i32>} : memref<8x8x384xf32, #tpu.memory_space<vmem>>, vector<8x8x384xf32>,
    %c0_17 = arith.constant 0 : index
    %c0_18 = arith.constant 0 : index
    %16 = vector.load %arg5[%c0_17, %c0_18] : memref<128x384xf32, #tpu.memory_space<vmem>>, vector<128x384xf32>
    %c0_19 = arith.constant 0 : index
    %c0_20 = arith.constant 0 : index
    %17 = vector.load %arg6[%c0_19, %c0_20] : memref<128x384xf32, #tpu.memory_space<vmem>>, vector<128x384xf32>
    %c0_21 = arith.constant 0 : index
    %c0_22 = arith.constant 0 : index
    %18 = vector.load %arg7[%c0_21, %c0_22] : memref<1x384xf32, #tpu.memory_space<vmem>>, vector<1x384xf32>
    %19 = vector.shape_cast %18 : vector<1x384xf32> to vector<1x384xf32>
    %20 = vector.broadcast %19 : vector<1x384xf32> to vector<8x384xf32>
    %c0_23 = arith.constant 0 : index
    %c0_24 = arith.constant 0 : index
    %21 = vector.load %arg8[%c0_23, %c0_24] : memref<1x384xf32, #tpu.memory_space<vmem>>, vector<1x384xf32>
    %22 = vector.shape_cast %21 : vector<1x384xf32> to vector<1x384xf32>
    %23 = vector.broadcast %22 : vector<1x384xf32> to vector<8x384xf32>
    %cst_25 = arith.constant 0.000000e+00 : f32
    %24 = vector.broadcast %cst_25 : f32 to vector<8x128xf32>
    %c0_i32 = arith.constant 0 : i32
    %c7_i32 = arith.constant 7 : i32
    %25 = arith.subi %c7_i32, %c0_i32 : i32
    %cst_26 = arith.constant dense<0.000000e+00> : vector<8x384xf32>
    %26 = tpu.matmul %24, %16, %cst_26 {dimension_numbers = #tpu.dot_dimension_numbers<[1], [0], [0], [1], [0, 0, 1, 1], [], []>} : vector<8x128xf32>, vector<128x384xf32>, vector<8x384xf32> -> vector<8x384xf32>
    %27 = arith.addf %26, %20 : vector<8x384xf32>
    %cst_27 = arith.constant dense<0.000000e+00> : vector<8x384xf32>
    %28 = tpu.matmul %24, %17, %cst_27 {dimension_numbers = #tpu.dot_dimension_numbers<[1], [0], [0], [1], [0, 0, 1, 1], [], []>} : vector<8x128xf32>, vector<128x384xf32>, vector<8x384xf32> -> vector<8x384xf32>
    %29 = arith.addf %28, %23 : vector<8x384xf32>
    %30 = arith.index_cast %c0_i32 : i32 to index
    %c0_28 = arith.constant 0 : index
    %c0_29 = arith.constant 0 : index
    %31 = vector.load %arg12[%30, %c0_28, %c0_29] : memref<8x8x384xf32, #tpu.memory_space<vmem>>, vector<1x8x384xf32>
    %32 = vector.shape_cast %31 : vector<1x8x384xf32> to vector<8x384xf32>
    %33 = vector.extract_strided_slice %32 {offsets = [0, 0], sizes = [8, 128], strides = [1, 1]} : vector<8x384xf32> to vector<8x128xf32>
    %34 = vector.extract_strided_slice %27 {offsets = [0, 0], sizes = [8, 128], strides = [1, 1]} : vector<8x384xf32> to vector<8x128xf32>
    %35 = arith.addf %33, %34 : vector<8x128xf32>
    %36 = arith.negf %35 : vector<8x128xf32>
    %37 = math.exp %36 : vector<8x128xf32>
    %cst_30 = arith.constant 1.000000e+00 : f32
    %38 = vector.broadcast %cst_30 : f32 to vector<8x128xf32>
    %39 = arith.addf %38, %37 : vector<8x128xf32>
    %40 = arith.divf %38, %39 : vector<8x128xf32>
    %41 = vector.extract_strided_slice %32 {offsets = [0, 128], sizes = [8, 128], strides = [1, 1]} : vector<8x384xf32> to vector<8x128xf32>
    %42 = vector.extract_strided_slice %27 {offsets = [0, 128], sizes = [8, 128], strides = [1, 1]} : vector<8x384xf32> to vector<8x128xf32>
    %43 = arith.addf %41, %42 : vector<8x128xf32>
    %44 = arith.negf %43 : vector<8x128xf32>
    %45 = math.exp %44 : vector<8x128xf32>
    %cst_31 = arith.constant 1.000000e+00 : f32
    %46 = vector.broadcast %cst_31 : f32 to vector<8x128xf32>
    %47 = arith.addf %46, %45 : vector<8x128xf32>
    %48 = arith.divf %46, %47 : vector<8x128xf32>
    %49 = vector.extract_strided_slice %32 {offsets = [0, 256], sizes = [8, 128], strides = [1, 1]} : vector<8x384xf32> to vector<8x128xf32>
    %50 = vector.extract_strided_slice %27 {offsets = [0, 256], sizes = [8, 128], strides = [1, 1]} : vector<8x384xf32> to vector<8x128xf32>
    %51 = arith.mulf %40, %50 : vector<8x128xf32>
    %52 = arith.addf %49, %51 : vector<8x128xf32>
    %53 = math.tanh %52 : vector<8x128xf32>
    %cst_32 = arith.constant 1.000000e+00 : f32
    %54 = vector.broadcast %cst_32 : f32 to vector<8x128xf32>
    %55 = arith.subf %54, %48 : vector<8x128xf32>
    %56 = arith.mulf %55, %53 : vector<8x128xf32>
    %57 = arith.mulf %48, %24 : vector<8x128xf32>
    %58 = arith.addf %56, %57 : vector<8x128xf32>
    %59 = arith.index_cast %25 : i32 to index
    %c0_33 = arith.constant 0 : index
    %c0_34 = arith.constant 0 : index
    %60 = vector.load %arg13[%59, %c0_33, %c0_34] : memref<8x8x384xf32, #tpu.memory_space<vmem>>, vector<1x8x384xf32>
    %61 = vector.shape_cast %60 : vector<1x8x384xf32> to vector<8x384xf32>
    %62 = vector.extract_strided_slice %61 {offsets = [0, 0], sizes = [8, 128], strides = [1, 1]} : vector<8x384xf32> to vector<8x128xf32>
    %63 = vector.extract_strided_slice %29 {offsets = [0, 0], sizes = [8, 128], strides = [1, 1]} : vector<8x384xf32> to vector<8x128xf32>
    %64 = arith.addf %62, %63 : vector<8x128xf32>
    %65 = arith.negf %64 : vector<8x128xf32>
    %66 = math.exp %65 : vector<8x128xf32>
    %cst_35 = arith.constant 1.000000e+00 : f32
    %67 = vector.broadcast %cst_35 : f32 to vector<8x128xf32>
    %68 = arith.addf %67, %66 : vector<8x128xf32>
    %69 = arith.divf %67, %68 : vector<8x128xf32>
    %70 = vector.extract_strided_slice %61 {offsets = [0, 128], sizes = [8, 128], strides = [1, 1]} : vector<8x384xf32> to vector<8x128xf32>
    %71 = vector.extract_strided_slice %29 {offsets = [0, 128], sizes = [8, 128], strides = [1, 1]} : vector<8x384xf32> to vector<8x128xf32>
    %72 = arith.addf %70, %71 : vector<8x128xf32>
    %73 = arith.negf %72 : vector<8x128xf32>
    %74 = math.exp %73 : vector<8x128xf32>
    %cst_36 = arith.constant 1.000000e+00 : f32
    %75 = vector.broadcast %cst_36 : f32 to vector<8x128xf32>
    %76 = arith.addf %75, %74 : vector<8x128xf32>
    %77 = arith.divf %75, %76 : vector<8x128xf32>
    %78 = vector.extract_strided_slice %61 {offsets = [0, 256], sizes = [8, 128], strides = [1, 1]} : vector<8x384xf32> to vector<8x128xf32>
    %79 = vector.extract_strided_slice %29 {offsets = [0, 256], sizes = [8, 128], strides = [1, 1]} : vector<8x384xf32> to vector<8x128xf32>
    %80 = arith.mulf %69, %79 : vector<8x128xf32>
    %81 = arith.addf %78, %80 : vector<8x128xf32>
    %82 = math.tanh %81 : vector<8x128xf32>
    %cst_37 = arith.constant 1.000000e+00 : f32
    %83 = vector.broadcast %cst_37 : f32 to vector<8x128xf32>
    %84 = arith.subf %83, %77 : vector<8x128xf32>
    %85 = arith.mulf %84, %82 : vector<8x128xf32>
    %86 = arith.mulf %77, %24 : vector<8x128xf32>
    %87 = arith.addf %85, %86 : vector<8x128xf32>
    %88 = arith.index_cast %c0_i32 : i32 to index
    %c0_38 = arith.constant 0 : index
    %c0_39 = arith.constant 0 : index
    %89 = vector.load %arg14[%88, %c0_38, %c0_39] : memref<8x8x128xf32, #tpu.memory_space<vmem>>, vector<1x8x128xf32>
    %90 = vector.shape_cast %89 : vector<1x8x128xf32> to vector<8x128xf32>
    %91 = vector.shape_cast %58 : vector<8x128xf32> to vector<1x8x128xf32>
    tpu.vector_store %arg14[%88, %c0_38, %c0_39], %91 {strides = array<i32>} : memref<8x8x128xf32, #tpu.memory_space<vmem>>, vector<1x8x128xf32>,
    %92 = arith.index_cast %25 : i32 to index
    %c0_40 = arith.constant 0 : index
    %c0_41 = arith.constant 0 : index
    %93 = vector.load %arg15[%92, %c0_40, %c0_41] : memref<8x8x128xf32, #tpu.memory_space<vmem>>, vector<1x8x128xf32>
    %94 = vector.shape_cast %93 : vector<1x8x128xf32> to vector<8x128xf32>
    %95 = vector.shape_cast %87 : vector<8x128xf32> to vector<1x8x128xf32>
    tpu.vector_store %arg15[%92, %c0_40, %c0_41], %95 {strides = array<i32>} : memref<8x8x128xf32, #tpu.memory_space<vmem>>, vector<1x8x128xf32>,
    %c1_i32 = arith.constant 1 : i32
    %c7_i32_42 = arith.constant 7 : i32
    %96 = arith.subi %c7_i32_42, %c1_i32 : i32
    %cst_43 = arith.constant dense<0.000000e+00> : vector<8x384xf32>
    %97 = tpu.matmul %58, %16, %cst_43 {dimension_numbers = #tpu.dot_dimension_numbers<[1], [0], [0], [1], [0, 0, 1, 1], [], []>} : vector<8x128xf32>, vector<128x384xf32>, vector<8x384xf32> -> vector<8x384xf32>
    %98 = arith.addf %97, %20 : vector<8x384xf32>
    %cst_44 = arith.constant dense<0.000000e+00> : vector<8x384xf32>
    %99 = tpu.matmul %87, %17, %cst_44 {dimension_numbers = #tpu.dot_dimension_numbers<[1], [0], [0], [1], [0, 0, 1, 1], [], []>} : vector<8x128xf32>, vector<128x384xf32>, vector<8x384xf32> -> vector<8x384xf32>
    %100 = arith.addf %99, %23 : vector<8x384xf32>
    %101 = arith.index_cast %c1_i32 : i32 to index
    %c0_45 = arith.constant 0 : index
    %c0_46 = arith.constant 0 : index
    %102 = vector.load %arg12[%101, %c0_45, %c0_46] : memref<8x8x384xf32, #tpu.memory_space<vmem>>, vector<1x8x384xf32>
    %103 = vector.shape_cast %102 : vector<1x8x384xf32> to vector<8x384xf32>
    %104 = vector.extract_strided_slice %103 {offsets = [0, 0], sizes = [8, 128], strides = [1, 1]} : vector<8x384xf32> to vector<8x128xf32>
    %105 = vector.extract_strided_slice %98 {offsets = [0, 0], sizes = [8, 128], strides = [1, 1]} : vector<8x384xf32> to vector<8x128xf32>
    %106 = arith.addf %104, %105 : vector<8x128xf32>
    %107 = arith.negf %106 : vector<8x128xf32>
    %108 = math.exp %107 : vector<8x128xf32>
    %cst_47 = arith.constant 1.000000e+00 : f32
    %109 = vector.broadcast %cst_47 : f32 to vector<8x128xf32>
    %110 = arith.addf %109, %108 : vector<8x128xf32>
    %111 = arith.divf %109, %110 : vector<8x128xf32>
    %112 = vector.extract_strided_slice %103 {offsets = [0, 128], sizes = [8, 128], strides = [1, 1]} : vector<8x384xf32> to vector<8x128xf32>
    %113 = vector.extract_strided_slice %98 {offsets = [0, 128], sizes = [8, 128], strides = [1, 1]} : vector<8x384xf32> to vector<8x128xf32>
    %114 = arith.addf %112, %113 : vector<8x128xf32>
    %115 = arith.negf %114 : vector<8x128xf32>
    %116 = math.exp %115 : vector<8x128xf32>
    %cst_48 = arith.constant 1.000000e+00 : f32
    %117 = vector.broadcast %cst_48 : f32 to vector<8x128xf32>
    %118 = arith.addf %117, %116 : vector<8x128xf32>
    %119 = arith.divf %117, %118 : vector<8x128xf32>
    %120 = vector.extract_strided_slice %103 {offsets = [0, 256], sizes = [8, 128], strides = [1, 1]} : vector<8x384xf32> to vector<8x128xf32>
    %121 = vector.extract_strided_slice %98 {offsets = [0, 256], sizes = [8, 128], strides = [1, 1]} : vector<8x384xf32> to vector<8x128xf32>
    %122 = arith.mulf %111, %121 : vector<8x128xf32>
    %123 = arith.addf %120, %122 : vector<8x128xf32>
    %124 = math.tanh %123 : vector<8x128xf32>
    %cst_49 = arith.constant 1.000000e+00 : f32
    %125 = vector.broadcast %cst_49 : f32 to vector<8x128xf32>
    %126 = arith.subf %125, %119 : vector<8x128xf32>
    %127 = arith.mulf %126, %124 : vector<8x128xf32>
    %128 = arith.mulf %119, %58 : vector<8x128xf32>
    %129 = arith.addf %127, %128 : vector<8x128xf32>
    %130 = arith.index_cast %96 : i32 to index
    %c0_50 = arith.constant 0 : index
    %c0_51 = arith.constant 0 : index
    %131 = vector.load %arg13[%130, %c0_50, %c0_51] : memref<8x8x384xf32, #tpu.memory_space<vmem>>, vector<1x8x384xf32>
    %132 = vector.shape_cast %131 : vector<1x8x384xf32> to vector<8x384xf32>
    %133 = vector.extract_strided_slice %132 {offsets = [0, 0], sizes = [8, 128], strides = [1, 1]} : vector<8x384xf32> to vector<8x128xf32>
    %134 = vector.extract_strided_slice %100 {offsets = [0, 0], sizes = [8, 128], strides = [1, 1]} : vector<8x384xf32> to vector<8x128xf32>
    %135 = arith.addf %133, %134 : vector<8x128xf32>
    %136 = arith.negf %135 : vector<8x128xf32>
    %137 = math.exp %136 : vector<8x128xf32>
    %cst_52 = arith.constant 1.000000e+00 : f32
    %138 = vector.broadcast %cst_52 : f32 to vector<8x128xf32>
    %139 = arith.addf %138, %137 : vector<8x128xf32>
    %140 = arith.divf %138, %139 : vector<8x128xf32>
    %141 = vector.extract_strided_slice %132 {offsets = [0, 128], sizes = [8, 128], strides = [1, 1]} : vector<8x384xf32> to vector<8x128xf32>
    %142 = vector.extract_strided_slice %100 {offsets = [0, 128], sizes = [8, 128], strides = [1, 1]} : vector<8x384xf32> to vector<8x128xf32>
    %143 = arith.addf %141, %142 : vector<8x128xf32>
    %144 = arith.negf %143 : vector<8x128xf32>
    %145 = math.exp %144 : vector<8x128xf32>
    %cst_53 = arith.constant 1.000000e+00 : f32
    %146 = vector.broadcast %cst_53 : f32 to vector<8x128xf32>
    %147 = arith.addf %146, %145 : vector<8x128xf32>
    %148 = arith.divf %146, %147 : vector<8x128xf32>
    %149 = vector.extract_strided_slice %132 {offsets = [0, 256], sizes = [8, 128], strides = [1, 1]} : vector<8x384xf32> to vector<8x128xf32>
    %150 = vector.extract_strided_slice %100 {offsets = [0, 256], sizes = [8, 128], strides = [1, 1]} : vector<8x384xf32> to vector<8x128xf32>
    %151 = arith.mulf %140, %150 : vector<8x128xf32>
    %152 = arith.addf %149, %151 : vector<8x128xf32>
    %153 = math.tanh %152 : vector<8x128xf32>
    %cst_54 = arith.constant 1.000000e+00 : f32
    %154 = vector.broadcast %cst_54 : f32 to vector<8x128xf32>
    %155 = arith.subf %154, %148 : vector<8x128xf32>
    %156 = arith.mulf %155, %153 : vector<8x128xf32>
    %157 = arith.mulf %148, %87 : vector<8x128xf32>
    %158 = arith.addf %156, %157 : vector<8x128xf32>
    %159 = arith.index_cast %c1_i32 : i32 to index
    %c0_55 = arith.constant 0 : index
    %c0_56 = arith.constant 0 : index
    %160 = vector.load %arg14[%159, %c0_55, %c0_56] : memref<8x8x128xf32, #tpu.memory_space<vmem>>, vector<1x8x128xf32>
    %161 = vector.shape_cast %160 : vector<1x8x128xf32> to vector<8x128xf32>
    %162 = vector.shape_cast %129 : vector<8x128xf32> to vector<1x8x128xf32>
    tpu.vector_store %arg14[%159, %c0_55, %c0_56], %162 {strides = array<i32>} : memref<8x8x128xf32, #tpu.memory_space<vmem>>, vector<1x8x128xf32>,
    %163 = arith.index_cast %96 : i32 to index
    %c0_57 = arith.constant 0 : index
    %c0_58 = arith.constant 0 : index
    %164 = vector.load %arg15[%163, %c0_57, %c0_58] : memref<8x8x128xf32, #tpu.memory_space<vmem>>, vector<1x8x128xf32>
    %165 = vector.shape_cast %164 : vector<1x8x128xf32> to vector<8x128xf32>
    %166 = vector.shape_cast %158 : vector<8x128xf32> to vector<1x8x128xf32>
    tpu.vector_store %arg15[%163, %c0_57, %c0_58], %166 {strides = array<i32>} : memref<8x8x128xf32, #tpu.memory_space<vmem>>, vector<1x8x128xf32>,
    %c2_i32 = arith.constant 2 : i32
    %c7_i32_59 = arith.constant 7 : i32
    %167 = arith.subi %c7_i32_59, %c2_i32 : i32
    %cst_60 = arith.constant dense<0.000000e+00> : vector<8x384xf32>
    %168 = tpu.matmul %129, %16, %cst_60 {dimension_numbers = #tpu.dot_dimension_numbers<[1], [0], [0], [1], [0, 0, 1, 1], [], []>} : vector<8x128xf32>, vector<128x384xf32>, vector<8x384xf32> -> vector<8x384xf32>
    %169 = arith.addf %168, %20 : vector<8x384xf32>
    %cst_61 = arith.constant dense<0.000000e+00> : vector<8x384xf32>
    %170 = tpu.matmul %158, %17, %cst_61 {dimension_numbers = #tpu.dot_dimension_numbers<[1], [0], [0], [1], [0, 0, 1, 1], [], []>} : vector<8x128xf32>, vector<128x384xf32>, vector<8x384xf32> -> vector<8x384xf32>
    %171 = arith.addf %170, %23 : vector<8x384xf32>
    %172 = arith.index_cast %c2_i32 : i32 to index
    %c0_62 = arith.constant 0 : index
    %c0_63 = arith.constant 0 : index
    %173 = vector.load %arg12[%172, %c0_62, %c0_63] : memref<8x8x384xf32, #tpu.memory_space<vmem>>, vector<1x8x384xf32>
    %174 = vector.shape_cast %173 : vector<1x8x384xf32> to vector<8x384xf32>
    %175 = vector.extract_strided_slice %174 {offsets = [0, 0], sizes = [8, 128], strides = [1, 1]} : vector<8x384xf32> to vector<8x128xf32>
    %176 = vector.extract_strided_slice %169 {offsets = [0, 0], sizes = [8, 128], strides = [1, 1]} : vector<8x384xf32> to vector<8x128xf32>
    %177 = arith.addf %175, %176 : vector<8x128xf32>
    %178 = arith.negf %177 : vector<8x128xf32>
    %179 = math.exp %178 : vector<8x128xf32>
    %cst_64 = arith.constant 1.000000e+00 : f32
    %180 = vector.broadcast %cst_64 : f32 to vector<8x128xf32>
    %181 = arith.addf %180, %179 : vector<8x128xf32>
    %182 = arith.divf %180, %181 : vector<8x128xf32>
    %183 = vector.extract_strided_slice %174 {offsets = [0, 128], sizes = [8, 128], strides = [1, 1]} : vector<8x384xf32> to vector<8x128xf32>
    %184 = vector.extract_strided_slice %169 {offsets = [0, 128], sizes = [8, 128], strides = [1, 1]} : vector<8x384xf32> to vector<8x128xf32>
    %185 = arith.addf %183, %184 : vector<8x128xf32>
    %186 = arith.negf %185 : vector<8x128xf32>
    %187 = math.exp %186 : vector<8x128xf32>
    %cst_65 = arith.constant 1.000000e+00 : f32
    %188 = vector.broadcast %cst_65 : f32 to vector<8x128xf32>
    %189 = arith.addf %188, %187 : vector<8x128xf32>
    %190 = arith.divf %188, %189 : vector<8x128xf32>
    %191 = vector.extract_strided_slice %174 {offsets = [0, 256], sizes = [8, 128], strides = [1, 1]} : vector<8x384xf32> to vector<8x128xf32>
    %192 = vector.extract_strided_slice %169 {offsets = [0, 256], sizes = [8, 128], strides = [1, 1]} : vector<8x384xf32> to vector<8x128xf32>
    %193 = arith.mulf %182, %192 : vector<8x128xf32>
    %194 = arith.addf %191, %193 : vector<8x128xf32>
    %195 = math.tanh %194 : vector<8x128xf32>
    %cst_66 = arith.constant 1.000000e+00 : f32
    %196 = vector.broadcast %cst_66 : f32 to vector<8x128xf32>
    %197 = arith.subf %196, %190 : vector<8x128xf32>
    %198 = arith.mulf %197, %195 : vector<8x128xf32>
    %199 = arith.mulf %190, %129 : vector<8x128xf32>
    %200 = arith.addf %198, %199 : vector<8x128xf32>
    %201 = arith.index_cast %167 : i32 to index
    %c0_67 = arith.constant 0 : index
    %c0_68 = arith.constant 0 : index
    %202 = vector.load %arg13[%201, %c0_67, %c0_68] : memref<8x8x384xf32, #tpu.memory_space<vmem>>, vector<1x8x384xf32>
    %203 = vector.shape_cast %202 : vector<1x8x384xf32> to vector<8x384xf32>
    %204 = vector.extract_strided_slice %203 {offsets = [0, 0], sizes = [8, 128], strides = [1, 1]} : vector<8x384xf32> to vector<8x128xf32>
    %205 = vector.extract_strided_slice %171 {offsets = [0, 0], sizes = [8, 128], strides = [1, 1]} : vector<8x384xf32> to vector<8x128xf32>
    %206 = arith.addf %204, %205 : vector<8x128xf32>
    %207 = arith.negf %206 : vector<8x128xf32>
    %208 = math.exp %207 : vector<8x128xf32>
    %cst_69 = arith.constant 1.000000e+00 : f32
    %209 = vector.broadcast %cst_69 : f32 to vector<8x128xf32>
    %210 = arith.addf %209, %208 : vector<8x128xf32>
    %211 = arith.divf %209, %210 : vector<8x128xf32>
    %212 = vector.extract_strided_slice %203 {offsets = [0, 128], sizes = [8, 128], strides = [1, 1]} : vector<8x384xf32> to vector<8x128xf32>
    %213 = vector.extract_strided_slice %171 {offsets = [0, 128], sizes = [8, 128], strides = [1, 1]} : vector<8x384xf32> to vector<8x128xf32>
    %214 = arith.addf %212, %213 : vector<8x128xf32>
    %215 = arith.negf %214 : vector<8x128xf32>
    %216 = math.exp %215 : vector<8x128xf32>
    %cst_70 = arith.constant 1.000000e+00 : f32
    %217 = vector.broadcast %cst_70 : f32 to vector<8x128xf32>
    %218 = arith.addf %217, %216 : vector<8x128xf32>
    %219 = arith.divf %217, %218 : vector<8x128xf32>
    %220 = vector.extract_strided_slice %203 {offsets = [0, 256], sizes = [8, 128], strides = [1, 1]} : vector<8x384xf32> to vector<8x128xf32>
    %221 = vector.extract_strided_slice %171 {offsets = [0, 256], sizes = [8, 128], strides = [1, 1]} : vector<8x384xf32> to vector<8x128xf32>
    %222 = arith.mulf %211, %221 : vector<8x128xf32>
    %223 = arith.addf %220, %222 : vector<8x128xf32>
    %224 = math.tanh %223 : vector<8x128xf32>
    %cst_71 = arith.constant 1.000000e+00 : f32
    %225 = vector.broadcast %cst_71 : f32 to vector<8x128xf32>
    %226 = arith.subf %225, %219 : vector<8x128xf32>
    %227 = arith.mulf %226, %224 : vector<8x128xf32>
    %228 = arith.mulf %219, %158 : vector<8x128xf32>
    %229 = arith.addf %227, %228 : vector<8x128xf32>
    %230 = arith.index_cast %c2_i32 : i32 to index
    %c0_72 = arith.constant 0 : index
    %c0_73 = arith.constant 0 : index
    %231 = vector.load %arg14[%230, %c0_72, %c0_73] : memref<8x8x128xf32, #tpu.memory_space<vmem>>, vector<1x8x128xf32>
    %232 = vector.shape_cast %231 : vector<1x8x128xf32> to vector<8x128xf32>
    %233 = vector.shape_cast %200 : vector<8x128xf32> to vector<1x8x128xf32>
    tpu.vector_store %arg14[%230, %c0_72, %c0_73], %233 {strides = array<i32>} : memref<8x8x128xf32, #tpu.memory_space<vmem>>, vector<1x8x128xf32>,
    %234 = arith.index_cast %167 : i32 to index
    %c0_74 = arith.constant 0 : index
    %c0_75 = arith.constant 0 : index
    %235 = vector.load %arg15[%234, %c0_74, %c0_75] : memref<8x8x128xf32, #tpu.memory_space<vmem>>, vector<1x8x128xf32>
    %236 = vector.shape_cast %235 : vector<1x8x128xf32> to vector<8x128xf32>
    %237 = vector.shape_cast %229 : vector<8x128xf32> to vector<1x8x128xf32>
    tpu.vector_store %arg15[%234, %c0_74, %c0_75], %237 {strides = array<i32>} : memref<8x8x128xf32, #tpu.memory_space<vmem>>, vector<1x8x128xf32>,
    %c3_i32 = arith.constant 3 : i32
    %c7_i32_76 = arith.constant 7 : i32
    %238 = arith.subi %c7_i32_76, %c3_i32 : i32
    %cst_77 = arith.constant dense<0.000000e+00> : vector<8x384xf32>
    %239 = tpu.matmul %200, %16, %cst_77 {dimension_numbers = #tpu.dot_dimension_numbers<[1], [0], [0], [1], [0, 0, 1, 1], [], []>} : vector<8x128xf32>, vector<128x384xf32>, vector<8x384xf32> -> vector<8x384xf32>
    %240 = arith.addf %239, %20 : vector<8x384xf32>
    %cst_78 = arith.constant dense<0.000000e+00> : vector<8x384xf32>
    %241 = tpu.matmul %229, %17, %cst_78 {dimension_numbers = #tpu.dot_dimension_numbers<[1], [0], [0], [1], [0, 0, 1, 1], [], []>} : vector<8x128xf32>, vector<128x384xf32>, vector<8x384xf32> -> vector<8x384xf32>
    %242 = arith.addf %241, %23 : vector<8x384xf32>
    %243 = arith.index_cast %c3_i32 : i32 to index
    %c0_79 = arith.constant 0 : index
    %c0_80 = arith.constant 0 : index
    %244 = vector.load %arg12[%243, %c0_79, %c0_80] : memref<8x8x384xf32, #tpu.memory_space<vmem>>, vector<1x8x384xf32>
    %245 = vector.shape_cast %244 : vector<1x8x384xf32> to vector<8x384xf32>
    %246 = vector.extract_strided_slice %245 {offsets = [0, 0], sizes = [8, 128], strides = [1, 1]} : vector<8x384xf32> to vector<8x128xf32>
    %247 = vector.extract_strided_slice %240 {offsets = [0, 0], sizes = [8, 128], strides = [1, 1]} : vector<8x384xf32> to vector<8x128xf32>
    %248 = arith.addf %246, %247 : vector<8x128xf32>
    %249 = arith.negf %248 : vector<8x128xf32>
    %250 = math.exp %249 : vector<8x128xf32>
    %cst_81 = arith.constant 1.000000e+00 : f32
    %251 = vector.broadcast %cst_81 : f32 to vector<8x128xf32>
    %252 = arith.addf %251, %250 : vector<8x128xf32>
    %253 = arith.divf %251, %252 : vector<8x128xf32>
    %254 = vector.extract_strided_slice %245 {offsets = [0, 128], sizes = [8, 128], strides = [1, 1]} : vector<8x384xf32> to vector<8x128xf32>
    %255 = vector.extract_strided_slice %240 {offsets = [0, 128], sizes = [8, 128], strides = [1, 1]} : vector<8x384xf32> to vector<8x128xf32>
    %256 = arith.addf %254, %255 : vector<8x128xf32>
    %257 = arith.negf %256 : vector<8x128xf32>
    %258 = math.exp %257 : vector<8x128xf32>
    %cst_82 = arith.constant 1.000000e+00 : f32
    %259 = vector.broadcast %cst_82 : f32 to vector<8x128xf32>
    %260 = arith.addf %259, %258 : vector<8x128xf32>
    %261 = arith.divf %259, %260 : vector<8x128xf32>
    %262 = vector.extract_strided_slice %245 {offsets = [0, 256], sizes = [8, 128], strides = [1, 1]} : vector<8x384xf32> to vector<8x128xf32>
    %263 = vector.extract_strided_slice %240 {offsets = [0, 256], sizes = [8, 128], strides = [1, 1]} : vector<8x384xf32> to vector<8x128xf32>
    %264 = arith.mulf %253, %263 : vector<8x128xf32>
    %265 = arith.addf %262, %264 : vector<8x128xf32>
    %266 = math.tanh %265 : vector<8x128xf32>
    %cst_83 = arith.constant 1.000000e+00 : f32
    %267 = vector.broadcast %cst_83 : f32 to vector<8x128xf32>
    %268 = arith.subf %267, %261 : vector<8x128xf32>
    %269 = arith.mulf %268, %266 : vector<8x128xf32>
    %270 = arith.mulf %261, %200 : vector<8x128xf32>
    %271 = arith.addf %269, %270 : vector<8x128xf32>
    %272 = arith.index_cast %238 : i32 to index
    %c0_84 = arith.constant 0 : index
    %c0_85 = arith.constant 0 : index
    %273 = vector.load %arg13[%272, %c0_84, %c0_85] : memref<8x8x384xf32, #tpu.memory_space<vmem>>, vector<1x8x384xf32>
    %274 = vector.shape_cast %273 : vector<1x8x384xf32> to vector<8x384xf32>
    %275 = vector.extract_strided_slice %274 {offsets = [0, 0], sizes = [8, 128], strides = [1, 1]} : vector<8x384xf32> to vector<8x128xf32>
    %276 = vector.extract_strided_slice %242 {offsets = [0, 0], sizes = [8, 128], strides = [1, 1]} : vector<8x384xf32> to vector<8x128xf32>
    %277 = arith.addf %275, %276 : vector<8x128xf32>
    %278 = arith.negf %277 : vector<8x128xf32>
    %279 = math.exp %278 : vector<8x128xf32>
    %cst_86 = arith.constant 1.000000e+00 : f32
    %280 = vector.broadcast %cst_86 : f32 to vector<8x128xf32>
    %281 = arith.addf %280, %279 : vector<8x128xf32>
    %282 = arith.divf %280, %281 : vector<8x128xf32>
    %283 = vector.extract_strided_slice %274 {offsets = [0, 128], sizes = [8, 128], strides = [1, 1]} : vector<8x384xf32> to vector<8x128xf32>
    %284 = vector.extract_strided_slice %242 {offsets = [0, 128], sizes = [8, 128], strides = [1, 1]} : vector<8x384xf32> to vector<8x128xf32>
    %285 = arith.addf %283, %284 : vector<8x128xf32>
    %286 = arith.negf %285 : vector<8x128xf32>
    %287 = math.exp %286 : vector<8x128xf32>
    %cst_87 = arith.constant 1.000000e+00 : f32
    %288 = vector.broadcast %cst_87 : f32 to vector<8x128xf32>
    %289 = arith.addf %288, %287 : vector<8x128xf32>
    %290 = arith.divf %288, %289 : vector<8x128xf32>
    %291 = vector.extract_strided_slice %274 {offsets = [0, 256], sizes = [8, 128], strides = [1, 1]} : vector<8x384xf32> to vector<8x128xf32>
    %292 = vector.extract_strided_slice %242 {offsets = [0, 256], sizes = [8, 128], strides = [1, 1]} : vector<8x384xf32> to vector<8x128xf32>
    %293 = arith.mulf %282, %292 : vector<8x128xf32>
    %294 = arith.addf %291, %293 : vector<8x128xf32>
    %295 = math.tanh %294 : vector<8x128xf32>
    %cst_88 = arith.constant 1.000000e+00 : f32
    %296 = vector.broadcast %cst_88 : f32 to vector<8x128xf32>
    %297 = arith.subf %296, %290 : vector<8x128xf32>
    %298 = arith.mulf %297, %295 : vector<8x128xf32>
    %299 = arith.mulf %290, %229 : vector<8x128xf32>
    %300 = arith.addf %298, %299 : vector<8x128xf32>
    %301 = arith.index_cast %c3_i32 : i32 to index
    %c0_89 = arith.constant 0 : index
    %c0_90 = arith.constant 0 : index
    %302 = vector.load %arg14[%301, %c0_89, %c0_90] : memref<8x8x128xf32, #tpu.memory_space<vmem>>, vector<1x8x128xf32>
    %303 = vector.shape_cast %302 : vector<1x8x128xf32> to vector<8x128xf32>
    %304 = vector.shape_cast %271 : vector<8x128xf32> to vector<1x8x128xf32>
    tpu.vector_store %arg14[%301, %c0_89, %c0_90], %304 {strides = array<i32>} : memref<8x8x128xf32, #tpu.memory_space<vmem>>, vector<1x8x128xf32>,
    %305 = arith.index_cast %238 : i32 to index
    %c0_91 = arith.constant 0 : index
    %c0_92 = arith.constant 0 : index
    %306 = vector.load %arg15[%305, %c0_91, %c0_92] : memref<8x8x128xf32, #tpu.memory_space<vmem>>, vector<1x8x128xf32>
    %307 = vector.shape_cast %306 : vector<1x8x128xf32> to vector<8x128xf32>
    %308 = vector.shape_cast %300 : vector<8x128xf32> to vector<1x8x128xf32>
    tpu.vector_store %arg15[%305, %c0_91, %c0_92], %308 {strides = array<i32>} : memref<8x8x128xf32, #tpu.memory_space<vmem>>, vector<1x8x128xf32>,
    %c4_i32 = arith.constant 4 : i32
    %c7_i32_93 = arith.constant 7 : i32
    %309 = arith.subi %c7_i32_93, %c4_i32 : i32
    %cst_94 = arith.constant dense<0.000000e+00> : vector<8x384xf32>
    %310 = tpu.matmul %271, %16, %cst_94 {dimension_numbers = #tpu.dot_dimension_numbers<[1], [0], [0], [1], [0, 0, 1, 1], [], []>} : vector<8x128xf32>, vector<128x384xf32>, vector<8x384xf32> -> vector<8x384xf32>
    %311 = arith.addf %310, %20 : vector<8x384xf32>
    %cst_95 = arith.constant dense<0.000000e+00> : vector<8x384xf32>
    %312 = tpu.matmul %300, %17, %cst_95 {dimension_numbers = #tpu.dot_dimension_numbers<[1], [0], [0], [1], [0, 0, 1, 1], [], []>} : vector<8x128xf32>, vector<128x384xf32>, vector<8x384xf32> -> vector<8x384xf32>
    %313 = arith.addf %312, %23 : vector<8x384xf32>
    %314 = arith.index_cast %c4_i32 : i32 to index
    %c0_96 = arith.constant 0 : index
    %c0_97 = arith.constant 0 : index
    %315 = vector.load %arg12[%314, %c0_96, %c0_97] : memref<8x8x384xf32, #tpu.memory_space<vmem>>, vector<1x8x384xf32>
    %316 = vector.shape_cast %315 : vector<1x8x384xf32> to vector<8x384xf32>
    %317 = vector.extract_strided_slice %316 {offsets = [0, 0], sizes = [8, 128], strides = [1, 1]} : vector<8x384xf32> to vector<8x128xf32>
    %318 = vector.extract_strided_slice %311 {offsets = [0, 0], sizes = [8, 128], strides = [1, 1]} : vector<8x384xf32> to vector<8x128xf32>
    %319 = arith.addf %317, %318 : vector<8x128xf32>
    %320 = arith.negf %319 : vector<8x128xf32>
    %321 = math.exp %320 : vector<8x128xf32>
    %cst_98 = arith.constant 1.000000e+00 : f32
    %322 = vector.broadcast %cst_98 : f32 to vector<8x128xf32>
    %323 = arith.addf %322, %321 : vector<8x128xf32>
    %324 = arith.divf %322, %323 : vector<8x128xf32>
    %325 = vector.extract_strided_slice %316 {offsets = [0, 128], sizes = [8, 128], strides = [1, 1]} : vector<8x384xf32> to vector<8x128xf32>
    %326 = vector.extract_strided_slice %311 {offsets = [0, 128], sizes = [8, 128], strides = [1, 1]} : vector<8x384xf32> to vector<8x128xf32>
    %327 = arith.addf %325, %326 : vector<8x128xf32>
    %328 = arith.negf %327 : vector<8x128xf32>
    %329 = math.exp %328 : vector<8x128xf32>
    %cst_99 = arith.constant 1.000000e+00 : f32
    %330 = vector.broadcast %cst_99 : f32 to vector<8x128xf32>
    %331 = arith.addf %330, %329 : vector<8x128xf32>
    %332 = arith.divf %330, %331 : vector<8x128xf32>
    %333 = vector.extract_strided_slice %316 {offsets = [0, 256], sizes = [8, 128], strides = [1, 1]} : vector<8x384xf32> to vector<8x128xf32>
    %334 = vector.extract_strided_slice %311 {offsets = [0, 256], sizes = [8, 128], strides = [1, 1]} : vector<8x384xf32> to vector<8x128xf32>
    %335 = arith.mulf %324, %334 : vector<8x128xf32>
    %336 = arith.addf %333, %335 : vector<8x128xf32>
    %337 = math.tanh %336 : vector<8x128xf32>
    %cst_100 = arith.constant 1.000000e+00 : f32
    %338 = vector.broadcast %cst_100 : f32 to vector<8x128xf32>
    %339 = arith.subf %338, %332 : vector<8x128xf32>
    %340 = arith.mulf %339, %337 : vector<8x128xf32>
    %341 = arith.mulf %332, %271 : vector<8x128xf32>
    %342 = arith.addf %340, %341 : vector<8x128xf32>
    %343 = arith.index_cast %309 : i32 to index
    %c0_101 = arith.constant 0 : index
    %c0_102 = arith.constant 0 : index
    %344 = vector.load %arg13[%343, %c0_101, %c0_102] : memref<8x8x384xf32, #tpu.memory_space<vmem>>, vector<1x8x384xf32>
    %345 = vector.shape_cast %344 : vector<1x8x384xf32> to vector<8x384xf32>
    %346 = vector.extract_strided_slice %345 {offsets = [0, 0], sizes = [8, 128], strides = [1, 1]} : vector<8x384xf32> to vector<8x128xf32>
    %347 = vector.extract_strided_slice %313 {offsets = [0, 0], sizes = [8, 128], strides = [1, 1]} : vector<8x384xf32> to vector<8x128xf32>
    %348 = arith.addf %346, %347 : vector<8x128xf32>
    %349 = arith.negf %348 : vector<8x128xf32>
    %350 = math.exp %349 : vector<8x128xf32>
    %cst_103 = arith.constant 1.000000e+00 : f32
    %351 = vector.broadcast %cst_103 : f32 to vector<8x128xf32>
    %352 = arith.addf %351, %350 : vector<8x128xf32>
    %353 = arith.divf %351, %352 : vector<8x128xf32>
    %354 = vector.extract_strided_slice %345 {offsets = [0, 128], sizes = [8, 128], strides = [1, 1]} : vector<8x384xf32> to vector<8x128xf32>
    %355 = vector.extract_strided_slice %313 {offsets = [0, 128], sizes = [8, 128], strides = [1, 1]} : vector<8x384xf32> to vector<8x128xf32>
    %356 = arith.addf %354, %355 : vector<8x128xf32>
    %357 = arith.negf %356 : vector<8x128xf32>
    %358 = math.exp %357 : vector<8x128xf32>
    %cst_104 = arith.constant 1.000000e+00 : f32
    %359 = vector.broadcast %cst_104 : f32 to vector<8x128xf32>
    %360 = arith.addf %359, %358 : vector<8x128xf32>
    %361 = arith.divf %359, %360 : vector<8x128xf32>
    %362 = vector.extract_strided_slice %345 {offsets = [0, 256], sizes = [8, 128], strides = [1, 1]} : vector<8x384xf32> to vector<8x128xf32>
    %363 = vector.extract_strided_slice %313 {offsets = [0, 256], sizes = [8, 128], strides = [1, 1]} : vector<8x384xf32> to vector<8x128xf32>
    %364 = arith.mulf %353, %363 : vector<8x128xf32>
    %365 = arith.addf %362, %364 : vector<8x128xf32>
    %366 = math.tanh %365 : vector<8x128xf32>
    %cst_105 = arith.constant 1.000000e+00 : f32
    %367 = vector.broadcast %cst_105 : f32 to vector<8x128xf32>
    %368 = arith.subf %367, %361 : vector<8x128xf32>
    %369 = arith.mulf %368, %366 : vector<8x128xf32>
    %370 = arith.mulf %361, %300 : vector<8x128xf32>
    %371 = arith.addf %369, %370 : vector<8x128xf32>
    %372 = arith.index_cast %c4_i32 : i32 to index
    %c0_106 = arith.constant 0 : index
    %c0_107 = arith.constant 0 : index
    %373 = vector.load %arg14[%372, %c0_106, %c0_107] : memref<8x8x128xf32, #tpu.memory_space<vmem>>, vector<1x8x128xf32>
    %374 = vector.shape_cast %373 : vector<1x8x128xf32> to vector<8x128xf32>
    %375 = vector.shape_cast %342 : vector<8x128xf32> to vector<1x8x128xf32>
    tpu.vector_store %arg14[%372, %c0_106, %c0_107], %375 {strides = array<i32>} : memref<8x8x128xf32, #tpu.memory_space<vmem>>, vector<1x8x128xf32>,
    %376 = arith.index_cast %309 : i32 to index
    %c0_108 = arith.constant 0 : index
    %c0_109 = arith.constant 0 : index
    %377 = vector.load %arg15[%376, %c0_108, %c0_109] : memref<8x8x128xf32, #tpu.memory_space<vmem>>, vector<1x8x128xf32>
    %378 = vector.shape_cast %377 : vector<1x8x128xf32> to vector<8x128xf32>
    %379 = vector.shape_cast %371 : vector<8x128xf32> to vector<1x8x128xf32>
    tpu.vector_store %arg15[%376, %c0_108, %c0_109], %379 {strides = array<i32>} : memref<8x8x128xf32, #tpu.memory_space<vmem>>, vector<1x8x128xf32>,
    %c5_i32 = arith.constant 5 : i32
    %c7_i32_110 = arith.constant 7 : i32
    %380 = arith.subi %c7_i32_110, %c5_i32 : i32
    %cst_111 = arith.constant dense<0.000000e+00> : vector<8x384xf32>
    %381 = tpu.matmul %342, %16, %cst_111 {dimension_numbers = #tpu.dot_dimension_numbers<[1], [0], [0], [1], [0, 0, 1, 1], [], []>} : vector<8x128xf32>, vector<128x384xf32>, vector<8x384xf32> -> vector<8x384xf32>
    %382 = arith.addf %381, %20 : vector<8x384xf32>
    %cst_112 = arith.constant dense<0.000000e+00> : vector<8x384xf32>
    %383 = tpu.matmul %371, %17, %cst_112 {dimension_numbers = #tpu.dot_dimension_numbers<[1], [0], [0], [1], [0, 0, 1, 1], [], []>} : vector<8x128xf32>, vector<128x384xf32>, vector<8x384xf32> -> vector<8x384xf32>
    %384 = arith.addf %383, %23 : vector<8x384xf32>
    %385 = arith.index_cast %c5_i32 : i32 to index
    %c0_113 = arith.constant 0 : index
    %c0_114 = arith.constant 0 : index
    %386 = vector.load %arg12[%385, %c0_113, %c0_114] : memref<8x8x384xf32, #tpu.memory_space<vmem>>, vector<1x8x384xf32>
    %387 = vector.shape_cast %386 : vector<1x8x384xf32> to vector<8x384xf32>
    %388 = vector.extract_strided_slice %387 {offsets = [0, 0], sizes = [8, 128], strides = [1, 1]} : vector<8x384xf32> to vector<8x128xf32>
    %389 = vector.extract_strided_slice %382 {offsets = [0, 0], sizes = [8, 128], strides = [1, 1]} : vector<8x384xf32> to vector<8x128xf32>
    %390 = arith.addf %388, %389 : vector<8x128xf32>
    %391 = arith.negf %390 : vector<8x128xf32>
    %392 = math.exp %391 : vector<8x128xf32>
    %cst_115 = arith.constant 1.000000e+00 : f32
    %393 = vector.broadcast %cst_115 : f32 to vector<8x128xf32>
    %394 = arith.addf %393, %392 : vector<8x128xf32>
    %395 = arith.divf %393, %394 : vector<8x128xf32>
    %396 = vector.extract_strided_slice %387 {offsets = [0, 128], sizes = [8, 128], strides = [1, 1]} : vector<8x384xf32> to vector<8x128xf32>
    %397 = vector.extract_strided_slice %382 {offsets = [0, 128], sizes = [8, 128], strides = [1, 1]} : vector<8x384xf32> to vector<8x128xf32>
    %398 = arith.addf %396, %397 : vector<8x128xf32>
    %399 = arith.negf %398 : vector<8x128xf32>
    %400 = math.exp %399 : vector<8x128xf32>
    %cst_116 = arith.constant 1.000000e+00 : f32
    %401 = vector.broadcast %cst_116 : f32 to vector<8x128xf32>
    %402 = arith.addf %401, %400 : vector<8x128xf32>
    %403 = arith.divf %401, %402 : vector<8x128xf32>
    %404 = vector.extract_strided_slice %387 {offsets = [0, 256], sizes = [8, 128], strides = [1, 1]} : vector<8x384xf32> to vector<8x128xf32>
    %405 = vector.extract_strided_slice %382 {offsets = [0, 256], sizes = [8, 128], strides = [1, 1]} : vector<8x384xf32> to vector<8x128xf32>
    %406 = arith.mulf %395, %405 : vector<8x128xf32>
    %407 = arith.addf %404, %406 : vector<8x128xf32>
    %408 = math.tanh %407 : vector<8x128xf32>
    %cst_117 = arith.constant 1.000000e+00 : f32
    %409 = vector.broadcast %cst_117 : f32 to vector<8x128xf32>
    %410 = arith.subf %409, %403 : vector<8x128xf32>
    %411 = arith.mulf %410, %408 : vector<8x128xf32>
    %412 = arith.mulf %403, %342 : vector<8x128xf32>
    %413 = arith.addf %411, %412 : vector<8x128xf32>
    %414 = arith.index_cast %380 : i32 to index
    %c0_118 = arith.constant 0 : index
    %c0_119 = arith.constant 0 : index
    %415 = vector.load %arg13[%414, %c0_118, %c0_119] : memref<8x8x384xf32, #tpu.memory_space<vmem>>, vector<1x8x384xf32>
    %416 = vector.shape_cast %415 : vector<1x8x384xf32> to vector<8x384xf32>
    %417 = vector.extract_strided_slice %416 {offsets = [0, 0], sizes = [8, 128], strides = [1, 1]} : vector<8x384xf32> to vector<8x128xf32>
    %418 = vector.extract_strided_slice %384 {offsets = [0, 0], sizes = [8, 128], strides = [1, 1]} : vector<8x384xf32> to vector<8x128xf32>
    %419 = arith.addf %417, %418 : vector<8x128xf32>
    %420 = arith.negf %419 : vector<8x128xf32>
    %421 = math.exp %420 : vector<8x128xf32>
    %cst_120 = arith.constant 1.000000e+00 : f32
    %422 = vector.broadcast %cst_120 : f32 to vector<8x128xf32>
    %423 = arith.addf %422, %421 : vector<8x128xf32>
    %424 = arith.divf %422, %423 : vector<8x128xf32>
    %425 = vector.extract_strided_slice %416 {offsets = [0, 128], sizes = [8, 128], strides = [1, 1]} : vector<8x384xf32> to vector<8x128xf32>
    %426 = vector.extract_strided_slice %384 {offsets = [0, 128], sizes = [8, 128], strides = [1, 1]} : vector<8x384xf32> to vector<8x128xf32>
    %427 = arith.addf %425, %426 : vector<8x128xf32>
    %428 = arith.negf %427 : vector<8x128xf32>
    %429 = math.exp %428 : vector<8x128xf32>
    %cst_121 = arith.constant 1.000000e+00 : f32
    %430 = vector.broadcast %cst_121 : f32 to vector<8x128xf32>
    %431 = arith.addf %430, %429 : vector<8x128xf32>
    %432 = arith.divf %430, %431 : vector<8x128xf32>
    %433 = vector.extract_strided_slice %416 {offsets = [0, 256], sizes = [8, 128], strides = [1, 1]} : vector<8x384xf32> to vector<8x128xf32>
    %434 = vector.extract_strided_slice %384 {offsets = [0, 256], sizes = [8, 128], strides = [1, 1]} : vector<8x384xf32> to vector<8x128xf32>
    %435 = arith.mulf %424, %434 : vector<8x128xf32>
    %436 = arith.addf %433, %435 : vector<8x128xf32>
    %437 = math.tanh %436 : vector<8x128xf32>
    %cst_122 = arith.constant 1.000000e+00 : f32
    %438 = vector.broadcast %cst_122 : f32 to vector<8x128xf32>
    %439 = arith.subf %438, %432 : vector<8x128xf32>
    %440 = arith.mulf %439, %437 : vector<8x128xf32>
    %441 = arith.mulf %432, %371 : vector<8x128xf32>
    %442 = arith.addf %440, %441 : vector<8x128xf32>
    %443 = arith.index_cast %c5_i32 : i32 to index
    %c0_123 = arith.constant 0 : index
    %c0_124 = arith.constant 0 : index
    %444 = vector.load %arg14[%443, %c0_123, %c0_124] : memref<8x8x128xf32, #tpu.memory_space<vmem>>, vector<1x8x128xf32>
    %445 = vector.shape_cast %444 : vector<1x8x128xf32> to vector<8x128xf32>
    %446 = vector.shape_cast %413 : vector<8x128xf32> to vector<1x8x128xf32>
    tpu.vector_store %arg14[%443, %c0_123, %c0_124], %446 {strides = array<i32>} : memref<8x8x128xf32, #tpu.memory_space<vmem>>, vector<1x8x128xf32>,
    %447 = arith.index_cast %380 : i32 to index
    %c0_125 = arith.constant 0 : index
    %c0_126 = arith.constant 0 : index
    %448 = vector.load %arg15[%447, %c0_125, %c0_126] : memref<8x8x128xf32, #tpu.memory_space<vmem>>, vector<1x8x128xf32>
    %449 = vector.shape_cast %448 : vector<1x8x128xf32> to vector<8x128xf32>
    %450 = vector.shape_cast %442 : vector<8x128xf32> to vector<1x8x128xf32>
    tpu.vector_store %arg15[%447, %c0_125, %c0_126], %450 {strides = array<i32>} : memref<8x8x128xf32, #tpu.memory_space<vmem>>, vector<1x8x128xf32>,
    %c6_i32 = arith.constant 6 : i32
    %c7_i32_127 = arith.constant 7 : i32
    %451 = arith.subi %c7_i32_127, %c6_i32 : i32
    %cst_128 = arith.constant dense<0.000000e+00> : vector<8x384xf32>
    %452 = tpu.matmul %413, %16, %cst_128 {dimension_numbers = #tpu.dot_dimension_numbers<[1], [0], [0], [1], [0, 0, 1, 1], [], []>} : vector<8x128xf32>, vector<128x384xf32>, vector<8x384xf32> -> vector<8x384xf32>
    %453 = arith.addf %452, %20 : vector<8x384xf32>
    %cst_129 = arith.constant dense<0.000000e+00> : vector<8x384xf32>
    %454 = tpu.matmul %442, %17, %cst_129 {dimension_numbers = #tpu.dot_dimension_numbers<[1], [0], [0], [1], [0, 0, 1, 1], [], []>} : vector<8x128xf32>, vector<128x384xf32>, vector<8x384xf32> -> vector<8x384xf32>
    %455 = arith.addf %454, %23 : vector<8x384xf32>
    %456 = arith.index_cast %c6_i32 : i32 to index
    %c0_130 = arith.constant 0 : index
    %c0_131 = arith.constant 0 : index
    %457 = vector.load %arg12[%456, %c0_130, %c0_131] : memref<8x8x384xf32, #tpu.memory_space<vmem>>, vector<1x8x384xf32>
    %458 = vector.shape_cast %457 : vector<1x8x384xf32> to vector<8x384xf32>
    %459 = vector.extract_strided_slice %458 {offsets = [0, 0], sizes = [8, 128], strides = [1, 1]} : vector<8x384xf32> to vector<8x128xf32>
    %460 = vector.extract_strided_slice %453 {offsets = [0, 0], sizes = [8, 128], strides = [1, 1]} : vector<8x384xf32> to vector<8x128xf32>
    %461 = arith.addf %459, %460 : vector<8x128xf32>
    %462 = arith.negf %461 : vector<8x128xf32>
    %463 = math.exp %462 : vector<8x128xf32>
    %cst_132 = arith.constant 1.000000e+00 : f32
    %464 = vector.broadcast %cst_132 : f32 to vector<8x128xf32>
    %465 = arith.addf %464, %463 : vector<8x128xf32>
    %466 = arith.divf %464, %465 : vector<8x128xf32>
    %467 = vector.extract_strided_slice %458 {offsets = [0, 128], sizes = [8, 128], strides = [1, 1]} : vector<8x384xf32> to vector<8x128xf32>
    %468 = vector.extract_strided_slice %453 {offsets = [0, 128], sizes = [8, 128], strides = [1, 1]} : vector<8x384xf32> to vector<8x128xf32>
    %469 = arith.addf %467, %468 : vector<8x128xf32>
    %470 = arith.negf %469 : vector<8x128xf32>
    %471 = math.exp %470 : vector<8x128xf32>
    %cst_133 = arith.constant 1.000000e+00 : f32
    %472 = vector.broadcast %cst_133 : f32 to vector<8x128xf32>
    %473 = arith.addf %472, %471 : vector<8x128xf32>
    %474 = arith.divf %472, %473 : vector<8x128xf32>
    %475 = vector.extract_strided_slice %458 {offsets = [0, 256], sizes = [8, 128], strides = [1, 1]} : vector<8x384xf32> to vector<8x128xf32>
    %476 = vector.extract_strided_slice %453 {offsets = [0, 256], sizes = [8, 128], strides = [1, 1]} : vector<8x384xf32> to vector<8x128xf32>
    %477 = arith.mulf %466, %476 : vector<8x128xf32>
    %478 = arith.addf %475, %477 : vector<8x128xf32>
    %479 = math.tanh %478 : vector<8x128xf32>
    %cst_134 = arith.constant 1.000000e+00 : f32
    %480 = vector.broadcast %cst_134 : f32 to vector<8x128xf32>
    %481 = arith.subf %480, %474 : vector<8x128xf32>
    %482 = arith.mulf %481, %479 : vector<8x128xf32>
    %483 = arith.mulf %474, %413 : vector<8x128xf32>
    %484 = arith.addf %482, %483 : vector<8x128xf32>
    %485 = arith.index_cast %451 : i32 to index
    %c0_135 = arith.constant 0 : index
    %c0_136 = arith.constant 0 : index
    %486 = vector.load %arg13[%485, %c0_135, %c0_136] : memref<8x8x384xf32, #tpu.memory_space<vmem>>, vector<1x8x384xf32>
    %487 = vector.shape_cast %486 : vector<1x8x384xf32> to vector<8x384xf32>
    %488 = vector.extract_strided_slice %487 {offsets = [0, 0], sizes = [8, 128], strides = [1, 1]} : vector<8x384xf32> to vector<8x128xf32>
    %489 = vector.extract_strided_slice %455 {offsets = [0, 0], sizes = [8, 128], strides = [1, 1]} : vector<8x384xf32> to vector<8x128xf32>
    %490 = arith.addf %488, %489 : vector<8x128xf32>
    %491 = arith.negf %490 : vector<8x128xf32>
    %492 = math.exp %491 : vector<8x128xf32>
    %cst_137 = arith.constant 1.000000e+00 : f32
    %493 = vector.broadcast %cst_137 : f32 to vector<8x128xf32>
    %494 = arith.addf %493, %492 : vector<8x128xf32>
    %495 = arith.divf %493, %494 : vector<8x128xf32>
    %496 = vector.extract_strided_slice %487 {offsets = [0, 128], sizes = [8, 128], strides = [1, 1]} : vector<8x384xf32> to vector<8x128xf32>
    %497 = vector.extract_strided_slice %455 {offsets = [0, 128], sizes = [8, 128], strides = [1, 1]} : vector<8x384xf32> to vector<8x128xf32>
    %498 = arith.addf %496, %497 : vector<8x128xf32>
    %499 = arith.negf %498 : vector<8x128xf32>
    %500 = math.exp %499 : vector<8x128xf32>
    %cst_138 = arith.constant 1.000000e+00 : f32
    %501 = vector.broadcast %cst_138 : f32 to vector<8x128xf32>
    %502 = arith.addf %501, %500 : vector<8x128xf32>
    %503 = arith.divf %501, %502 : vector<8x128xf32>
    %504 = vector.extract_strided_slice %487 {offsets = [0, 256], sizes = [8, 128], strides = [1, 1]} : vector<8x384xf32> to vector<8x128xf32>
    %505 = vector.extract_strided_slice %455 {offsets = [0, 256], sizes = [8, 128], strides = [1, 1]} : vector<8x384xf32> to vector<8x128xf32>
    %506 = arith.mulf %495, %505 : vector<8x128xf32>
    %507 = arith.addf %504, %506 : vector<8x128xf32>
    %508 = math.tanh %507 : vector<8x128xf32>
    %cst_139 = arith.constant 1.000000e+00 : f32
    %509 = vector.broadcast %cst_139 : f32 to vector<8x128xf32>
    %510 = arith.subf %509, %503 : vector<8x128xf32>
    %511 = arith.mulf %510, %508 : vector<8x128xf32>
    %512 = arith.mulf %503, %442 : vector<8x128xf32>
    %513 = arith.addf %511, %512 : vector<8x128xf32>
    %514 = arith.index_cast %c6_i32 : i32 to index
    %c0_140 = arith.constant 0 : index
    %c0_141 = arith.constant 0 : index
    %515 = vector.load %arg14[%514, %c0_140, %c0_141] : memref<8x8x128xf32, #tpu.memory_space<vmem>>, vector<1x8x128xf32>
    %516 = vector.shape_cast %515 : vector<1x8x128xf32> to vector<8x128xf32>
    %517 = vector.shape_cast %484 : vector<8x128xf32> to vector<1x8x128xf32>
    tpu.vector_store %arg14[%514, %c0_140, %c0_141], %517 {strides = array<i32>} : memref<8x8x128xf32, #tpu.memory_space<vmem>>, vector<1x8x128xf32>,
    %518 = arith.index_cast %451 : i32 to index
    %c0_142 = arith.constant 0 : index
    %c0_143 = arith.constant 0 : index
    %519 = vector.load %arg15[%518, %c0_142, %c0_143] : memref<8x8x128xf32, #tpu.memory_space<vmem>>, vector<1x8x128xf32>
    %520 = vector.shape_cast %519 : vector<1x8x128xf32> to vector<8x128xf32>
    %521 = vector.shape_cast %513 : vector<8x128xf32> to vector<1x8x128xf32>
    tpu.vector_store %arg15[%518, %c0_142, %c0_143], %521 {strides = array<i32>} : memref<8x8x128xf32, #tpu.memory_space<vmem>>, vector<1x8x128xf32>,
    %c7_i32_144 = arith.constant 7 : i32
    %c7_i32_145 = arith.constant 7 : i32
    %522 = arith.subi %c7_i32_145, %c7_i32_144 : i32
    %cst_146 = arith.constant dense<0.000000e+00> : vector<8x384xf32>
    %523 = tpu.matmul %484, %16, %cst_146 {dimension_numbers = #tpu.dot_dimension_numbers<[1], [0], [0], [1], [0, 0, 1, 1], [], []>} : vector<8x128xf32>, vector<128x384xf32>, vector<8x384xf32> -> vector<8x384xf32>
    %524 = arith.addf %523, %20 : vector<8x384xf32>
    %cst_147 = arith.constant dense<0.000000e+00> : vector<8x384xf32>
    %525 = tpu.matmul %513, %17, %cst_147 {dimension_numbers = #tpu.dot_dimension_numbers<[1], [0], [0], [1], [0, 0, 1, 1], [], []>} : vector<8x128xf32>, vector<128x384xf32>, vector<8x384xf32> -> vector<8x384xf32>
    %526 = arith.addf %525, %23 : vector<8x384xf32>
    %527 = arith.index_cast %c7_i32_144 : i32 to index
    %c0_148 = arith.constant 0 : index
    %c0_149 = arith.constant 0 : index
    %528 = vector.load %arg12[%527, %c0_148, %c0_149] : memref<8x8x384xf32, #tpu.memory_space<vmem>>, vector<1x8x384xf32>
    %529 = vector.shape_cast %528 : vector<1x8x384xf32> to vector<8x384xf32>
    %530 = vector.extract_strided_slice %529 {offsets = [0, 0], sizes = [8, 128], strides = [1, 1]} : vector<8x384xf32> to vector<8x128xf32>
    %531 = vector.extract_strided_slice %524 {offsets = [0, 0], sizes = [8, 128], strides = [1, 1]} : vector<8x384xf32> to vector<8x128xf32>
    %532 = arith.addf %530, %531 : vector<8x128xf32>
    %533 = arith.negf %532 : vector<8x128xf32>
    %534 = math.exp %533 : vector<8x128xf32>
    %cst_150 = arith.constant 1.000000e+00 : f32
    %535 = vector.broadcast %cst_150 : f32 to vector<8x128xf32>
    %536 = arith.addf %535, %534 : vector<8x128xf32>
    %537 = arith.divf %535, %536 : vector<8x128xf32>
    %538 = vector.extract_strided_slice %529 {offsets = [0, 128], sizes = [8, 128], strides = [1, 1]} : vector<8x384xf32> to vector<8x128xf32>
    %539 = vector.extract_strided_slice %524 {offsets = [0, 128], sizes = [8, 128], strides = [1, 1]} : vector<8x384xf32> to vector<8x128xf32>
    %540 = arith.addf %538, %539 : vector<8x128xf32>
    %541 = arith.negf %540 : vector<8x128xf32>
    %542 = math.exp %541 : vector<8x128xf32>
    %cst_151 = arith.constant 1.000000e+00 : f32
    %543 = vector.broadcast %cst_151 : f32 to vector<8x128xf32>
    %544 = arith.addf %543, %542 : vector<8x128xf32>
    %545 = arith.divf %543, %544 : vector<8x128xf32>
    %546 = vector.extract_strided_slice %529 {offsets = [0, 256], sizes = [8, 128], strides = [1, 1]} : vector<8x384xf32> to vector<8x128xf32>
    %547 = vector.extract_strided_slice %524 {offsets = [0, 256], sizes = [8, 128], strides = [1, 1]} : vector<8x384xf32> to vector<8x128xf32>
    %548 = arith.mulf %537, %547 : vector<8x128xf32>
    %549 = arith.addf %546, %548 : vector<8x128xf32>
    %550 = math.tanh %549 : vector<8x128xf32>
    %cst_152 = arith.constant 1.000000e+00 : f32
    %551 = vector.broadcast %cst_152 : f32 to vector<8x128xf32>
    %552 = arith.subf %551, %545 : vector<8x128xf32>
    %553 = arith.mulf %552, %550 : vector<8x128xf32>
    %554 = arith.mulf %545, %484 : vector<8x128xf32>
    %555 = arith.addf %553, %554 : vector<8x128xf32>
    %556 = arith.index_cast %522 : i32 to index
    %c0_153 = arith.constant 0 : index
    %c0_154 = arith.constant 0 : index
    %557 = vector.load %arg13[%556, %c0_153, %c0_154] : memref<8x8x384xf32, #tpu.memory_space<vmem>>, vector<1x8x384xf32>
    %558 = vector.shape_cast %557 : vector<1x8x384xf32> to vector<8x384xf32>
    %559 = vector.extract_strided_slice %558 {offsets = [0, 0], sizes = [8, 128], strides = [1, 1]} : vector<8x384xf32> to vector<8x128xf32>
    %560 = vector.extract_strided_slice %526 {offsets = [0, 0], sizes = [8, 128], strides = [1, 1]} : vector<8x384xf32> to vector<8x128xf32>
    %561 = arith.addf %559, %560 : vector<8x128xf32>
    %562 = arith.negf %561 : vector<8x128xf32>
    %563 = math.exp %562 : vector<8x128xf32>
    %cst_155 = arith.constant 1.000000e+00 : f32
    %564 = vector.broadcast %cst_155 : f32 to vector<8x128xf32>
    %565 = arith.addf %564, %563 : vector<8x128xf32>
    %566 = arith.divf %564, %565 : vector<8x128xf32>
    %567 = vector.extract_strided_slice %558 {offsets = [0, 128], sizes = [8, 128], strides = [1, 1]} : vector<8x384xf32> to vector<8x128xf32>
    %568 = vector.extract_strided_slice %526 {offsets = [0, 128], sizes = [8, 128], strides = [1, 1]} : vector<8x384xf32> to vector<8x128xf32>
    %569 = arith.addf %567, %568 : vector<8x128xf32>
    %570 = arith.negf %569 : vector<8x128xf32>
    %571 = math.exp %570 : vector<8x128xf32>
    %cst_156 = arith.constant 1.000000e+00 : f32
    %572 = vector.broadcast %cst_156 : f32 to vector<8x128xf32>
    %573 = arith.addf %572, %571 : vector<8x128xf32>
    %574 = arith.divf %572, %573 : vector<8x128xf32>
    %575 = vector.extract_strided_slice %558 {offsets = [0, 256], sizes = [8, 128], strides = [1, 1]} : vector<8x384xf32> to vector<8x128xf32>
    %576 = vector.extract_strided_slice %526 {offsets = [0, 256], sizes = [8, 128], strides = [1, 1]} : vector<8x384xf32> to vector<8x128xf32>
    %577 = arith.mulf %566, %576 : vector<8x128xf32>
    %578 = arith.addf %575, %577 : vector<8x128xf32>
    %579 = math.tanh %578 : vector<8x128xf32>
    %cst_157 = arith.constant 1.000000e+00 : f32
    %580 = vector.broadcast %cst_157 : f32 to vector<8x128xf32>
    %581 = arith.subf %580, %574 : vector<8x128xf32>
    %582 = arith.mulf %581, %579 : vector<8x128xf32>
    %583 = arith.mulf %574, %513 : vector<8x128xf32>
    %584 = arith.addf %582, %583 : vector<8x128xf32>
    %585 = arith.index_cast %c7_i32_144 : i32 to index
    %c0_158 = arith.constant 0 : index
    %c0_159 = arith.constant 0 : index
    %586 = vector.load %arg14[%585, %c0_158, %c0_159] : memref<8x8x128xf32, #tpu.memory_space<vmem>>, vector<1x8x128xf32>
    %587 = vector.shape_cast %586 : vector<1x8x128xf32> to vector<8x128xf32>
    %588 = vector.shape_cast %555 : vector<8x128xf32> to vector<1x8x128xf32>
    tpu.vector_store %arg14[%585, %c0_158, %c0_159], %588 {strides = array<i32>} : memref<8x8x128xf32, #tpu.memory_space<vmem>>, vector<1x8x128xf32>,
    %589 = arith.index_cast %522 : i32 to index
    %c0_160 = arith.constant 0 : index
    %c0_161 = arith.constant 0 : index
    %590 = vector.load %arg15[%589, %c0_160, %c0_161] : memref<8x8x128xf32, #tpu.memory_space<vmem>>, vector<1x8x128xf32>
    %591 = vector.shape_cast %590 : vector<1x8x128xf32> to vector<8x128xf32>
    %592 = vector.shape_cast %584 : vector<8x128xf32> to vector<1x8x128xf32>
    tpu.vector_store %arg15[%589, %c0_160, %c0_161], %592 {strides = array<i32>} : memref<8x8x128xf32, #tpu.memory_space<vmem>>, vector<1x8x128xf32>,
    %c8_i32 = arith.constant 8 : i32
    %c0_162 = arith.constant 0 : index
    %c0_163 = arith.constant 0 : index
    %c0_164 = arith.constant 0 : index
    %593 = vector.load %arg14[%c0_162, %c0_163, %c0_164] : memref<8x8x128xf32, #tpu.memory_space<vmem>>, vector<8x8x128xf32>
    %594 = tpu.transpose %593, [1, 0, 2] : vector<8x8x128xf32> -> vector<8x8x128xf32>
    %c0_165 = arith.constant 0 : index
    %c0_166 = arith.constant 0 : index
    %c0_167 = arith.constant 0 : index
    %595 = vector.load %arg15[%c0_165, %c0_166, %c0_167] : memref<8x8x128xf32, #tpu.memory_space<vmem>>, vector<8x8x128xf32>
    %596 = tpu.transpose %595, [1, 0, 2] : vector<8x8x128xf32> -> vector<8x8x128xf32>
    %597 = vector.shape_cast %555 : vector<8x128xf32> to vector<8x128x1xf32>
    "tpu.trace_start"() <{level = 10 : i32, message = "bsh,bhk->bsk"}> : () -> ()
    %cst_168 = arith.constant dense<0.000000e+00> : vector<8x8x1xf32>
    %598 = tpu.matmul %594, %597, %cst_168 {dimension_numbers = #tpu.dot_dimension_numbers<[2], [1], [1], [2], [0, 0, 0, 1, 1, 2], [0], [0]>} : vector<8x8x128xf32>, vector<8x128x1xf32>, vector<8x8x1xf32> -> vector<8x8x1xf32>
    "tpu.trace_stop"() : () -> ()
    %599 = vector.shape_cast %584 : vector<8x128xf32> to vector<8x128x1xf32>
    "tpu.trace_start"() <{level = 10 : i32, message = "bsh,bhk->bsk"}> : () -> ()
    %cst_169 = arith.constant dense<0.000000e+00> : vector<8x8x1xf32>
    %600 = tpu.matmul %596, %599, %cst_169 {dimension_numbers = #tpu.dot_dimension_numbers<[2], [1], [1], [2], [0, 0, 0, 1, 1, 2], [0], [0]>} : vector<8x8x128xf32>, vector<8x128x1xf32>, vector<8x8x1xf32> -> vector<8x8x1xf32>
    "tpu.trace_stop"() : () -> ()
    %601 = arith.addf %598, %600 : vector<8x8x1xf32>
    %602 = vector.shape_cast %601 : vector<8x8x1xf32> to vector<8x8xf32>
    %cst_170 = arith.constant dense<0xFF800000> : vector<8xf32>
    %603 = vector.multi_reduction <maximumf>, %602, %cst_170 [1] : vector<8x8xf32> to vector<8xf32>
    %604 = vector.shape_cast %603 : vector<8xf32> to vector<8x1xf32>
    %605 = vector.broadcast %604 : vector<8x1xf32> to vector<8x8xf32>
    %606 = arith.subf %602, %605 : vector<8x8xf32>
    %607 = math.exp %606 : vector<8x8xf32>
    %cst_171 = arith.constant dense<0.000000e+00> : vector<8xf32>
    %608 = vector.multi_reduction <add>, %607, %cst_171 [1] : vector<8x8xf32> to vector<8xf32>
    %609 = vector.shape_cast %608 : vector<8xf32> to vector<8x1xf32>
    %610 = tpu.reciprocal %609 {approx = true} : vector<8x1xf32> -> vector<8x1xf32>
    %611 = vector.broadcast %610 : vector<8x1xf32> to vector<8x8xf32>
    %612 = arith.mulf %607, %611 : vector<8x8xf32>
    %613 = vector.shape_cast %612 : vector<8x8xf32> to vector<8x1x8xf32>
    "tpu.trace_start"() <{level = 10 : i32, message = "bks,bsh->bkh"}> : () -> ()
    %cst_172 = arith.constant dense<0.000000e+00> : vector<8x1x128xf32>
    %614 = tpu.matmul %613, %594, %cst_172 {dimension_numbers = #tpu.dot_dimension_numbers<[2], [1], [1], [2], [0, 0, 0, 1, 1, 2], [0], [0]>} : vector<8x1x8xf32>, vector<8x8x128xf32>, vector<8x1x128xf32> -> vector<8x1x128xf32>
    "tpu.trace_stop"() : () -> ()
    %615 = vector.shape_cast %614 : vector<8x1x128xf32> to vector<8x128xf32>
    "tpu.trace_start"() <{level = 10 : i32, message = "bks,bsh->bkh"}> : () -> ()
    %cst_173 = arith.constant dense<0.000000e+00> : vector<8x1x128xf32>
    %616 = tpu.matmul %613, %596, %cst_173 {dimension_numbers = #tpu.dot_dimension_numbers<[2], [1], [1], [2], [0, 0, 0, 1, 1, 2], [0], [0]>} : vector<8x1x8xf32>, vector<8x8x128xf32>, vector<8x1x128xf32> -> vector<8x1x128xf32>
    "tpu.trace_stop"() : () -> ()
    %617 = vector.shape_cast %616 : vector<8x1x128xf32> to vector<8x128xf32>
    %618 = tpu.concatenate %555, %584, %615, %617 in 1 : vector<8x128xf32>, vector<8x128xf32>, vector<8x128xf32>, vector<8x128xf32> -> vector<8x512xf32>
    %c0_174 = arith.constant 0 : index
    %c0_175 = arith.constant 0 : index
    %619 = vector.load %arg9[%c0_174, %c0_175] : memref<512x128xf32, #tpu.memory_space<vmem>>, vector<512x128xf32>
    %cst_176 = arith.constant dense<0.000000e+00> : vector<8x128xf32>
    %620 = tpu.matmul %618, %619, %cst_176 {dimension_numbers = #tpu.dot_dimension_numbers<[1], [0], [0], [1], [0, 0, 1, 1], [], []>} : vector<8x512xf32>, vector<512x128xf32>, vector<8x128xf32> -> vector<8x128xf32>
    %c0_177 = arith.constant 0 : index
    %c0_178 = arith.constant 0 : index
    %621 = vector.load %arg10[%c0_177, %c0_178] : memref<1x128xf32, #tpu.memory_space<vmem>>, vector<1x128xf32>
    %622 = vector.broadcast %621 : vector<1x128xf32> to vector<8x128xf32>
    %623 = arith.addf %620, %622 : vector<8x128xf32>
    %624 = arith.negf %623 : vector<8x128xf32>
    %625 = math.exp %624 : vector<8x128xf32>
    %cst_179 = arith.constant 1.000000e+00 : f32
    %626 = vector.broadcast %cst_179 : f32 to vector<8x128xf32>
    %627 = arith.addf %626, %625 : vector<8x128xf32>
    %628 = arith.divf %626, %627 : vector<8x128xf32>
    %c0_180 = arith.constant 0 : index
    %c0_181 = arith.constant 0 : index
    %629 = vector.load %arg11[%c0_180, %c0_181] : memref<8x128xf32, #tpu.memory_space<vmem>>, vector<8x128xf32>
    tpu.vector_store %arg11[%c0_180, %c0_181], %628 {strides = array<i32>} : memref<8x128xf32, #tpu.memory_space<vmem>>, vector<8x128xf32>,
    return
  }
}

</mosaic_0001>

<llo_original>
// kernel: tpu_custom_call.1
$region0: #{tpu_custom_call.1}
  #allocation0 [shape = 'u32[]', space=smem, size = 0x4, offset = 0x4, fixed_abs, tag = 'smem constant byte address 0x4 - core index']
  #allocation1 [shape = 'u32[144,128]{1,0:T(1,128)}', space=vmem, size = 0x12000, scoped, tag = 'internal scratch']
  #allocation2 [shape = 'f32[8,8,384]{2,1,0:T(8,128)}', space=vmem, size = 0x18000, scoped, tag = 'scratch operand']
  #allocation3 [shape = 'f32[8,8,384]{2,1,0:T(8,128)}', space=vmem, size = 0x18000, scoped, tag = 'scratch operand']
  #allocation4 [shape = 'f32[8,8,128]{2,1,0:T(8,128)}', space=vmem, size = 0x8000, scoped, tag = 'scratch operand']
  #allocation5 [shape = 'f32[8,8,128]{2,1,0:T(8,128)}', space=vmem, size = 0x8000, scoped, tag = 'scratch operand']
  %s0 = inlined_call_operand.hbm [shape: f32[8,8,32], index: 0, kind: input, shape index: {}]
  %s1 = inlined_call_operand.hbm [shape: f32[32,384], index: 1, kind: input, shape index: {}]
  %s2 = inlined_call_operand.hbm [shape: f32[32,384], index: 2, kind: input, shape index: {}]
  %s3 = inlined_call_operand.vmem [shape: f32[1,384], index: 3, kind: input, shape index: {}]
  %s4 = inlined_call_operand.vmem [shape: f32[1,384], index: 4, kind: input, shape index: {}]
  %s5 = inlined_call_operand.hbm [shape: f32[128,384], index: 5, kind: input, shape index: {}]
  %s6 = inlined_call_operand.hbm [shape: f32[128,384], index: 6, kind: input, shape index: {}]
  %s7 = inlined_call_operand.vmem [shape: f32[1,384], index: 7, kind: input, shape index: {}]
  %s8 = inlined_call_operand.vmem [shape: f32[1,384], index: 8, kind: input, shape index: {}]
  %s9 = inlined_call_operand.hbm [shape: f32[512,128], index: 9, kind: input, shape index: {}]
  %s10 = inlined_call_operand.vmem [shape: f32[1,128], index: 10, kind: input, shape index: {}]
  %s11 = inlined_call_operand.hbm [shape: f32[8,128], index: 11, kind: output, shape index: {}]
  %s12 = sld [smem:[#allocation0]]
  $region78: #{tpu_custom_call.1} parent=0
    _
  %s14 = ssub.s32 1, %s12
  %s15 = scalar_select 0, %s14, %s12
  $region1: #{tpu_custom_call.1} parent=0
    #allocation6 [shape = 'u8[32768]{0}', space=vmem, size = 0x8000, scoped, tag = 'input window, operand 0, single buffered']
    #allocation7 [shape = 's32[1]{0}', space=sflag, size = 0x4, scoped, tag = 'scoped memory for tpu_custom_call.1']
    #allocation8 [shape = 's32[1]{0}', space=sflag, size = 0x4, scoped, tag = 'scoped memory for tpu_custom_call.1']
    #allocation9 [shape = 'u8[49152]{0}', space=vmem, size = 0xc000, scoped, tag = 'input window, operand 1, single buffered']
    #allocation10 [shape = 's32[1]{0}', space=sflag, size = 0x4, scoped, tag = 'scoped memory for tpu_custom_call.1']
    #allocation11 [shape = 'u8[49152]{0}', space=vmem, size = 0xc000, scoped, tag = 'input window, operand 2, single buffered']
    #allocation12 [shape = 'u8[196608]{0}', space=vmem, size = 0x30000, scoped, tag = 'input window, operand 5, single buffered']
    #allocation13 [shape = 's32[1]{0}', space=sflag, size = 0x4, scoped, tag = 'scoped memory for tpu_custom_call.1']
    #allocation14 [shape = 'u8[196608]{0}', space=vmem, size = 0x30000, scoped, tag = 'input window, operand 6, single buffered']
    #allocation15 [shape = 'u8[262144]{0}', space=vmem, size = 0x40000, scoped, tag = 'input window, operand 9, single buffered']
    #allocation16 [shape = 's32[1]{0}', space=sflag, size = 0x4, scoped, tag = 'scoped memory for tpu_custom_call.1']
    #allocation17 [shape = 'u8[4096]{0}', space=vmem, size = 0x1000, scoped, tag = 'output window, operand 0, single buffered']
    %16 = vsyncpa [#allocation7], 0
    %17 = vsyncpa [#allocation10], 0
    %18 = vsyncpa [#allocation13], 0
    %19 = vsyncpa [#allocation16], 0
    %20 = vsyncpa [#allocation8], 0
    // Predicated region
    $region2: #{tpu_custom_call.1} parent=1 // pred_check
      _
    $region3: #{tpu_custom_call.1} parent=1 // pred_check_branch
      %22 = sbr.rel (0) target = $region5
    $region4: #{tpu_custom_call.1} parent=1 // pred_region
      %s24 = ssub.s32 1024, 1024
      %25 = vsyncadd [#allocation7], %s24
      %s26 = sshll.u32 [#allocation6], 4
      %s27 = int_to_ptr.vmem [resolvable:$true] %s26
      %32 = dma.hbm_to_vmem [thread:$0]  %s0, 1024, %s27, [#allocation7], 128, 128, 8
    $region5: #{tpu_custom_call.1} parent=1 // pred_fallthru
      _
    // Predicated region
    $region6: #{tpu_custom_call.1} parent=1 // pred_check
      _
    $region7: #{tpu_custom_call.1} parent=1 // pred_check_branch
      %34 = sbr.rel (0) target = $region9
    $region8: #{tpu_custom_call.1} parent=1 // pred_region
      %s36 = ssub.s32 1536, 1536
      %37 = vsyncadd [#allocation10], %s36
      %s38 = sshll.u32 [#allocation9], 4
      %s39 = int_to_ptr.vmem [resolvable:$true] %s38
      %44 = dma.hbm_to_vmem [thread:$0]  %s1, 1536, %s39, [#allocation10], 384, 384, 24
    $region9: #{tpu_custom_call.1} parent=1 // pred_fallthru
      _
    // Predicated region
    $region10: #{tpu_custom_call.1} parent=1 // pred_check
      _
    $region11: #{tpu_custom_call.1} parent=1 // pred_check_branch
      %46 = sbr.rel (0) target = $region13
    $region12: #{tpu_custom_call.1} parent=1 // pred_region
      %s48 = ssub.s32 1536, 1536
      %49 = vsyncadd [#allocation10], %s48
      %s50 = sshll.u32 [#allocation11], 4
      %s51 = int_to_ptr.vmem [resolvable:$true] %s50
      %56 = dma.hbm_to_vmem [thread:$0]  %s2, 1536, %s51, [#allocation10], 384, 384, 24
    $region13: #{tpu_custom_call.1} parent=1 // pred_fallthru
      _
    // Predicated region
    $region14: #{tpu_custom_call.1} parent=1 // pred_check
      _
    $region15: #{tpu_custom_call.1} parent=1 // pred_check_branch
      %58 = sbr.rel (0) target = $region17
    $region16: #{tpu_custom_call.1} parent=1 // pred_region
      _
    $region17: #{tpu_custom_call.1} parent=1 // pred_fallthru
      _
    // Predicated region
    $region18: #{tpu_custom_call.1} parent=1 // pred_check
      _
    $region19: #{tpu_custom_call.1} parent=1 // pred_check_branch
      %60 = sbr.rel (0) target = $region21
    $region20: #{tpu_custom_call.1} parent=1 // pred_region
      _
    $region21: #{tpu_custom_call.1} parent=1 // pred_fallthru
      _
    // Predicated region
    $region22: #{tpu_custom_call.1} parent=1 // pred_check
      _
    $region23: #{tpu_custom_call.1} parent=1 // pred_check_branch
      %62 = sbr.rel (0) target = $region25
    $region24: #{tpu_custom_call.1} parent=1 // pred_region
      %s64 = ssub.s32 6144, 6144
      %65 = vsyncadd [#allocation13], %s64
      %s66 = sshll.u32 [#allocation12], 4
      %s67 = int_to_ptr.vmem [resolvable:$true] %s66
      %72 = dma.hbm_to_vmem [thread:$0]  %s5, 6144, %s67, [#allocation13], 384, 384, 24
    $region25: #{tpu_custom_call.1} parent=1 // pred_fallthru
      _
    // Predicated region
    $region26: #{tpu_custom_call.1} parent=1 // pred_check
      _
    $region27: #{tpu_custom_call.1} parent=1 // pred_check_branch
      %74 = sbr.rel (0) target = $region29
    $region28: #{tpu_custom_call.1} parent=1 // pred_region
      %s76 = ssub.s32 6144, 6144
      %77 = vsyncadd [#allocation13], %s76
      %s78 = sshll.u32 [#allocation14], 4
      %s79 = int_to_ptr.vmem [resolvable:$true] %s78
      %84 = dma.hbm_to_vmem [thread:$0]  %s6, 6144, %s79, [#allocation13], 384, 384, 24
    $region29: #{tpu_custom_call.1} parent=1 // pred_fallthru
      _
    // Predicated region
    $region30: #{tpu_custom_call.1} parent=1 // pred_check
      _
    $region31: #{tpu_custom_call.1} parent=1 // pred_check_branch
      %86 = sbr.rel (0) target = $region33
    $region32: #{tpu_custom_call.1} parent=1 // pred_region
      _
    $region33: #{tpu_custom_call.1} parent=1 // pred_fallthru
      _
    // Predicated region
    $region34: #{tpu_custom_call.1} parent=1 // pred_check
      _
    $region35: #{tpu_custom_call.1} parent=1 // pred_check_branch
      %88 = sbr.rel (0) target = $region37
    $region36: #{tpu_custom_call.1} parent=1 // pred_region
      _
    $region37: #{tpu_custom_call.1} parent=1 // pred_fallthru
      _
    // Predicated region
    $region38: #{tpu_custom_call.1} parent=1 // pred_check
      _
    $region39: #{tpu_custom_call.1} parent=1 // pred_check_branch
      %90 = sbr.rel (0) target = $region41
    $region40: #{tpu_custom_call.1} parent=1 // pred_region
      %s92 = ssub.s32 8192, 8192
      %93 = vsyncadd [#allocation16], %s92
      %s94 = sshll.u32 [#allocation15], 4
      %s95 = int_to_ptr.vmem [resolvable:$true] %s94
      %100 = dma.hbm_to_vmem [thread:$0]  %s9, 8192, %s95, [#allocation16], 128, 128, 8
    $region41: #{tpu_custom_call.1} parent=1 // pred_fallthru
      _
    // Predicated region
    $region42: #{tpu_custom_call.1} parent=1 // pred_check
      _
    $region43: #{tpu_custom_call.1} parent=1 // pred_check_branch
      %102 = sbr.rel (0) target = $region45
    $region44: #{tpu_custom_call.1} parent=1 // pred_region
      _
    $region45: #{tpu_custom_call.1} parent=1 // pred_fallthru
      _
    // Predicated region
    $region46: #{tpu_custom_call.1} parent=1 // pred_check
      _
    $region47: #{tpu_custom_call.1} parent=1 // pred_check_branch
      %104 = sbr.rel (0) target = $region49
    $region48: #{tpu_custom_call.1} parent=1 // pred_region
      %105 = dma.done [#allocation7], 1024
    $region49: #{tpu_custom_call.1} parent=1 // pred_fallthru
      _
    // Predicated region
    $region50: #{tpu_custom_call.1} parent=1 // pred_check
      _
    $region51: #{tpu_custom_call.1} parent=1 // pred_check_branch
      %107 = sbr.rel (0) target = $region53
    $region52: #{tpu_custom_call.1} parent=1 // pred_region
      %108 = dma.done [#allocation10], 1536
    $region53: #{tpu_custom_call.1} parent=1 // pred_fallthru
      _
    // Predicated region
    $region54: #{tpu_custom_call.1} parent=1 // pred_check
      _
    $region55: #{tpu_custom_call.1} parent=1 // pred_check_branch
      %110 = sbr.rel (0) target = $region57
    $region56: #{tpu_custom_call.1} parent=1 // pred_region
      %111 = dma.done [#allocation10], 1536
    $region57: #{tpu_custom_call.1} parent=1 // pred_fallthru
      _
    // Predicated region
    $region58: #{tpu_custom_call.1} parent=1 // pred_check
      _
    $region59: #{tpu_custom_call.1} parent=1 // pred_check_branch
      %113 = sbr.rel (0) target = $region61
    $region60: #{tpu_custom_call.1} parent=1 // pred_region
      %114 = dma.done [#allocation13], 6144
    $region61: #{tpu_custom_call.1} parent=1 // pred_fallthru
      _
    // Predicated region
    $region62: #{tpu_custom_call.1} parent=1 // pred_check
      _
    $region63: #{tpu_custom_call.1} parent=1 // pred_check_branch
      %116 = sbr.rel (0) target = $region65
    $region64: #{tpu_custom_call.1} parent=1 // pred_region
      %117 = dma.done [#allocation13], 6144
    $region65: #{tpu_custom_call.1} parent=1 // pred_fallthru
      _
    // Predicated region
    $region66: #{tpu_custom_call.1} parent=1 // pred_check
      _
    $region67: #{tpu_custom_call.1} parent=1 // pred_check_branch
      %119 = sbr.rel (0) target = $region69
    $region68: #{tpu_custom_call.1} parent=1 // pred_region
      %120 = dma.done [#allocation16], 8192
    $region69: #{tpu_custom_call.1} parent=1 // pred_fallthru
      _
    %v121 = vld [vmem:[#allocation6] sm:$0xff]
    %v122 = vld [vmem:[#allocation6 + $0x8] sm:$0xff]
    %v123 = vld [vmem:[#allocation6 + $0x10] sm:$0xff]
    %v124 = vld [vmem:[#allocation6 + $0x18] sm:$0xff]
    %v125 = vld [vmem:[#allocation6 + $0x20] sm:$0xff]
    %v126 = vld [vmem:[#allocation6 + $0x28] sm:$0xff]
    %v127 = vld [vmem:[#allocation6 + $0x30] sm:$0xff]
    %v128 = vld [vmem:[#allocation6 + $0x38] sm:$0xff]
    %v129 = vld [vmem:[#allocation9] sm:$0xff]
    %v130 = vld [vmem:[#allocation9 + $0x8] sm:$0xff]
    %v131 = vld [vmem:[#allocation9 + $0x10] sm:$0xff]
    %v132 = vld [vmem:[#allocation9 + $0x18] sm:$0xff]
    %v133 = vld [vmem:[#allocation9 + $0x20] sm:$0xff]
    %v134 = vld [vmem:[#allocation9 + $0x28] sm:$0xff]
    %v135 = vld [vmem:[#allocation9 + $0x30] sm:$0xff]
    %v136 = vld [vmem:[#allocation9 + $0x38] sm:$0xff]
    %v137 = vld [vmem:[#allocation9 + $0x40] sm:$0xff]
    %v138 = vld [vmem:[#allocation9 + $0x48] sm:$0xff]
    %v139 = vld [vmem:[#allocation9 + $0x50] sm:$0xff]
    %v140 = vld [vmem:[#allocation9 + $0x58] sm:$0xff]
    %v141 = vld [vmem:[%s3] sm:$0x7]
    %v143 = vlaneseq
    %v144 = vshrl.u32 %v143, 7
    %v145 = vsub.s32 0, %v144
    %v146 = vrot.slane %v141, %v145
    %v147 = vlaneseq
    %v148 = vshrl.u32 %v147, 7
    %v149 = vsub.s32 1, %v148
    %v150 = vrot.slane %v141, %v149
    %v151 = vlaneseq
    %v152 = vshrl.u32 %v151, 7
    %v153 = vsub.s32 2, %v152
    %v154 = vrot.slane %v141, %v153
    %vm158 = vcmask 261120
    %v160 = vsel %vm158, %v121, 0
    %v163 = vsel %vm158, %v122, 0
    %v166 = vsel %vm158, %v123, 0
    %v169 = vsel %vm158, %v124, 0
    %v172 = vsel %vm158, %v125, 0
    %v175 = vsel %vm158, %v126, 0
    %v178 = vsel %vm158, %v127, 0
    %v181 = vsel %vm158, %v128, 0
    %183 = vmatprep.subr.mxu0 0.0
    %184 = vmatpush1.msra.mxu0 0.0
    %185 = vmatprep.subr.mxu0 0.0
    %186 = vmatpush1.msra.mxu0 0.0
    %187 = vmatprep.subr.mxu0 0.0
    %188 = vmatpush1.msra.mxu0 0.0
    %189 = vmatprep.subr.mxu0 0.0
    %190 = vmatpush1.msra.mxu0 0.0
    %191 = vmatprep.subr.mxu0 0.0
    %192 = vmatpush1.msra.mxu0 0.0
    %193 = vmatprep.subr.mxu0 0.0
    %194 = vmatpush1.msra.mxu0 0.0
    %195 = vmatprep.subr.mxu0 0.0
    %196 = vmatpush1.msra.mxu0 0.0
    %197 = vmatprep.subr.mxu0 0.0
    %198 = vmatpush1.msra.mxu0 0.0
    %199 = vmatprep.subr.mxu0 0.0
    %200 = vmatpush1.msra.mxu0 0.0
    %201 = vmatprep.subr.mxu0 0.0
    %202 = vmatpush1.msra.mxu0 0.0
    %203 = vmatprep.subr.mxu0 0.0
    %204 = vmatpush1.msra.mxu0 0.0
    %205 = vmatprep.subr.mxu0 0.0
    %206 = vmatpush1.msra.mxu0 0.0
    %207 = vmatprep.subr.mxu0 %v139
    %208 = vmatpush1.msra.mxu0 %v138
    %209 = vmatprep.subr.mxu0 %v136
    %210 = vmatpush1.msra.mxu0 %v135
    %211 = vmatprep.subr.mxu0 %v133
    %212 = vmatpush1.msra.mxu0 %v132
    %213 = vmatprep.subr.mxu0 %v130
    %214 = vmatpush1.msra.mxu0 %v129
    %215 = vmatprep.subr.mxu0 0.0
    %216 = vmatpush2.msra.mxu0 0.0
    %217 = vmatprep.subr.mxu0 0.0
    %218 = vmatpush2.msra.mxu0 0.0
    %219 = vmatprep.subr.mxu0 0.0
    %220 = vmatpush2.msra.mxu0 0.0
    %221 = vmatprep.subr.mxu0 0.0
    %222 = vmatpush2.msra.mxu0 0.0
    %223 = vmatprep.subr.mxu0 0.0
    %224 = vmatpush2.msra.mxu0 0.0
    %225 = vmatprep.subr.mxu0 0.0
    %226 = vmatpush2.msra.mxu0 0.0
    %227 = vmatprep.subr.mxu0 0.0
    %228 = vmatpush2.msra.mxu0 0.0
    %229 = vmatprep.subr.mxu0 0.0
    %230 = vmatpush2.msra.mxu0 0.0
    %231 = vmatprep.subr.mxu0 0.0
    %232 = vmatpush2.msra.mxu0 0.0
    %233 = vmatprep.subr.mxu0 0.0
    %234 = vmatpush2.msra.mxu0 0.0
    %235 = vmatprep.subr.mxu0 0.0
    %236 = vmatpush2.msra.mxu0 0.0
    %237 = vmatprep.subr.mxu0 0.0
    %238 = vmatpush2.msra.mxu0 0.0
    %239 = vmatprep.subr.mxu0 0.0
    %240 = vmatpush2.msra.mxu0 0.0
    %241 = vmatprep.subr.mxu0 0.0
    %242 = vmatpush2.msra.mxu0 0.0
    %243 = vmatprep.subr.mxu0 0.0
    %244 = vmatpush2.msra.mxu0 0.0
    %245 = vmatprep.subr.mxu0 0.0
    %246 = vmatpush2.msra.mxu0 0.0
    %247 = vmatprep.mubr.f32.mxu0 0.0
    %248 = vmatmul.mubr.f32.gmra.mxu0 %v160
    %v249 = vpop.f32.mrf.mxu0
    %v250 = vadd.f32 %v146, %v249
    %v251 = vpop.f32.mrf.mxu0
    %v252 = vadd.f32 %v150, %v251
    %253 = vmatprep.mubr.f32.mxu0 0.0
    %254 = vmatmul.mubr.f32.gmra.mxu0 %v163
    %v255 = vpop.f32.mrf.mxu0
    %v256 = vadd.f32 %v146, %v255
    %v257 = vpop.f32.mrf.mxu0
    %v258 = vadd.f32 %v150, %v257
    %259 = vmatprep.mubr.f32.mxu0 0.0
    %260 = vmatmul.mubr.f32.gmra.mxu0 %v166
    %v261 = vpop.f32.mrf.mxu0
    %v262 = vadd.f32 %v146, %v261
    %v263 = vpop.f32.mrf.mxu0
    %v264 = vadd.f32 %v150, %v263
    %265 = vmatprep.mubr.f32.mxu0 0.0
    %266 = vmatmul.mubr.f32.gmra.mxu0 %v169
    %v267 = vpop.f32.mrf.mxu0
    %v268 = vadd.f32 %v146, %v267
    %v269 = vpop.f32.mrf.mxu0
    %v270 = vadd.f32 %v150, %v269
    %271 = vmatprep.mubr.f32.mxu0 0.0
    %272 = vmatmul.mubr.f32.gmra.mxu0 %v172
    %v273 = vpop.f32.mrf.mxu0
    %v274 = vadd.f32 %v146, %v273
    %v275 = vpop.f32.mrf.mxu0
    %v276 = vadd.f32 %v150, %v275
    %277 = vmatprep.mubr.f32.mxu0 0.0
    %278 = vmatmul.mubr.f32.gmra.mxu0 %v175
    %v279 = vpop.f32.mrf.mxu0
    %v280 = vadd.f32 %v146, %v279
    %v281 = vpop.f32.mrf.mxu0
    %v282 = vadd.f32 %v150, %v281
    %283 = vmatprep.mubr.f32.mxu0 0.0
    %284 = vmatmul.mubr.f32.gmra.mxu0 %v178
    %v285 = vpop.f32.mrf.mxu0
    %v286 = vadd.f32 %v146, %v285
    %v287 = vpop.f32.mrf.mxu0
    %v288 = vadd.f32 %v150, %v287
    %289 = vmatprep.mubr.f32.mxu0 0.0
    %290 = vmatmul.mubr.f32.gmra.mxu0 %v181
    %v291 = vpop.f32.mrf.mxu0
    %v292 = vadd.f32 %v146, %v291
    %v293 = vpop.f32.mrf.mxu0
    %v294 = vadd.f32 %v150, %v293
    %295 = vdwg.mxu0
    %296 = vmatprep.subr.mxu0 0.0
    %297 = vmatpush1.msra.mxu0 0.0
    %298 = vmatprep.subr.mxu0 0.0
    %299 = vmatpush1.msra.mxu0 0.0
    %300 = vmatprep.subr.mxu0 0.0
    %301 = vmatpush1.msra.mxu0 0.0
    %302 = vmatprep.subr.mxu0 0.0
    %303 = vmatpush1.msra.mxu0 0.0
    %304 = vmatprep.subr.mxu0 0.0
    %305 = vmatpush1.msra.mxu0 0.0
    %306 = vmatprep.subr.mxu0 0.0
    %307 = vmatpush1.msra.mxu0 0.0
    %308 = vmatprep.subr.mxu0 0.0
    %309 = vmatpush1.msra.mxu0 0.0
    %310 = vmatprep.subr.mxu0 0.0
    %311 = vmatpush1.msra.mxu0 0.0
    %312 = vmatprep.subr.mxu0 0.0
    %313 = vmatpush1.msra.mxu0 0.0
    %314 = vmatprep.subr.mxu0 0.0
    %315 = vmatpush1.msra.mxu0 0.0
    %316 = vmatprep.subr.mxu0 0.0
    %317 = vmatpush1.msra.mxu0 0.0
    %318 = vmatprep.subr.mxu0 0.0
    %319 = vmatpush1.msra.mxu0 0.0
    %320 = vmatprep.subr.mxu0 0.0
    %321 = vmatpush1.msra.mxu0 %v140
    %322 = vmatprep.subr.mxu0 0.0
    %323 = vmatpush1.msra.mxu0 %v137
    %324 = vmatprep.subr.mxu0 0.0
    %325 = vmatpush1.msra.mxu0 %v134
    %326 = vmatprep.subr.mxu0 0.0
    %327 = vmatpush1.msra.mxu0 %v131
    %328 = vmatprep.subr.mxu0 0.0
    %329 = vmatpush2.msra.mxu0 0.0
    %330 = vmatprep.subr.mxu0 0.0
    %331 = vmatpush2.msra.mxu0 0.0
    %332 = vmatprep.subr.mxu0 0.0
    %333 = vmatpush2.msra.mxu0 0.0
    %334 = vmatprep.subr.mxu0 0.0
    %335 = vmatpush2.msra.mxu0 0.0
    %336 = vmatprep.subr.mxu0 0.0
    %337 = vmatpush2.msra.mxu0 0.0
    %338 = vmatprep.subr.mxu0 0.0
    %339 = vmatpush2.msra.mxu0 0.0
    %340 = vmatprep.subr.mxu0 0.0
    %341 = vmatpush2.msra.mxu0 0.0
    %342 = vmatprep.subr.mxu0 0.0
    %343 = vmatpush2.msra.mxu0 0.0
    %344 = vmatprep.subr.mxu0 0.0
    %345 = vmatpush2.msra.mxu0 0.0
    %346 = vmatprep.subr.mxu0 0.0
    %347 = vmatpush2.msra.mxu0 0.0
    %348 = vmatprep.subr.mxu0 0.0
    %349 = vmatpush2.msra.mxu0 0.0
    %350 = vmatprep.subr.mxu0 0.0
    %351 = vmatpush2.msra.mxu0 0.0
    %352 = vmatprep.subr.mxu0 0.0
    %353 = vmatpush2.msra.mxu0 0.0
    %354 = vmatprep.subr.mxu0 0.0
    %355 = vmatpush2.msra.mxu0 0.0
    %356 = vmatprep.subr.mxu0 0.0
    %357 = vmatpush2.msra.mxu0 0.0
    %358 = vmatprep.subr.mxu0 0.0
    %359 = vmatpush2.msra.mxu0 0.0
    %360 = vmatprep.mubr.f32.mxu0 0.0
    %361 = vmatmul.mubr.f32.gmra.mxu0 %v160
    %v362 = vpop.f32.mrf.mxu0
    %v363 = vadd.f32 %v154, %v362
    %v364 = vpop.f32.mrf.mxu0
    %365 = vmatprep.mubr.f32.mxu0 0.0
    %366 = vmatmul.mubr.f32.gmra.mxu0 %v163
    %v367 = vpop.f32.mrf.mxu0
    %v368 = vadd.f32 %v154, %v367
    %v369 = vpop.f32.mrf.mxu0
    %370 = vmatprep.mubr.f32.mxu0 0.0
    %371 = vmatmul.mubr.f32.gmra.mxu0 %v166
    %v372 = vpop.f32.mrf.mxu0
    %v373 = vadd.f32 %v154, %v372
    %v374 = vpop.f32.mrf.mxu0
    %375 = vmatprep.mubr.f32.mxu0 0.0
    %376 = vmatmul.mubr.f32.gmra.mxu0 %v169
    %v377 = vpop.f32.mrf.mxu0
    %v378 = vadd.f32 %v154, %v377
    %v379 = vpop.f32.mrf.mxu0
    %380 = vmatprep.mubr.f32.mxu0 0.0
    %381 = vmatmul.mubr.f32.gmra.mxu0 %v172
    %v382 = vpop.f32.mrf.mxu0
    %v383 = vadd.f32 %v154, %v382
    %v384 = vpop.f32.mrf.mxu0
    %385 = vmatprep.mubr.f32.mxu0 0.0
    %386 = vmatmul.mubr.f32.gmra.mxu0 %v175
    %v387 = vpop.f32.mrf.mxu0
    %v388 = vadd.f32 %v154, %v387
    %v389 = vpop.f32.mrf.mxu0
    %390 = vmatprep.mubr.f32.mxu0 0.0
    %391 = vmatmul.mubr.f32.gmra.mxu0 %v178
    %v392 = vpop.f32.mrf.mxu0
    %v393 = vadd.f32 %v154, %v392
    %v394 = vpop.f32.mrf.mxu0
    %395 = vmatprep.mubr.f32.mxu0 0.0
    %396 = vmatmul.mubr.f32.gmra.mxu0 %v181
    %v397 = vpop.f32.mrf.mxu0
    %v398 = vadd.f32 %v154, %v397
    %v399 = vpop.f32.mrf.mxu0
    %400 = vdwg.mxu0
    %401 = vst [vmem:[#allocation2] sm:$0xff] %v250
    %402 = vst [vmem:[#allocation2 + $0x8] sm:$0xff] %v252
    %403 = vst [vmem:[#allocation2 + $0x10] sm:$0xff] %v363
    %404 = vst [vmem:[#allocation2 + $0x18] sm:$0xff] %v256
    %405 = vst [vmem:[#allocation2 + $0x20] sm:$0xff] %v258
    %406 = vst [vmem:[#allocation2 + $0x28] sm:$0xff] %v368
    %407 = vst [vmem:[#allocation2 + $0x30] sm:$0xff] %v262
    %408 = vst [vmem:[#allocation2 + $0x38] sm:$0xff] %v264
    %409 = vst [vmem:[#allocation2 + $0x40] sm:$0xff] %v373
    %410 = vst [vmem:[#allocation2 + $0x48] sm:$0xff] %v268
    %411 = vst [vmem:[#allocation2 + $0x50] sm:$0xff] %v270
    %412 = vst [vmem:[#allocation2 + $0x58] sm:$0xff] %v378
    %413 = vst [vmem:[#allocation2 + $0x60] sm:$0xff] %v274
    %414 = vst [vmem:[#allocation2 + $0x68] sm:$0xff] %v276
    %415 = vst [vmem:[#allocation2 + $0x70] sm:$0xff] %v383
    %416 = vst [vmem:[#allocation2 + $0x78] sm:$0xff] %v280
    %417 = vst [vmem:[#allocation2 + $0x80] sm:$0xff] %v282
    %418 = vst [vmem:[#allocation2 + $0x88] sm:$0xff] %v388
    %419 = vst [vmem:[#allocation2 + $0x90] sm:$0xff] %v286
    %420 = vst [vmem:[#allocation2 + $0x98] sm:$0xff] %v288
    %421 = vst [vmem:[#allocation2 + $0xa0] sm:$0xff] %v393
    %422 = vst [vmem:[#allocation2 + $0xa8] sm:$0xff] %v292
    %423 = vst [vmem:[#allocation2 + $0xb0] sm:$0xff] %v294
    %424 = vst [vmem:[#allocation2 + $0xb8] sm:$0xff] %v398
    %v425 = vld [vmem:[#allocation11] sm:$0xff]
    %v426 = vld [vmem:[#allocation11 + $0x8] sm:$0xff]
    %v427 = vld [vmem:[#allocation11 + $0x10] sm:$0xff]
    %v428 = vld [vmem:[#allocation11 + $0x18] sm:$0xff]
    %v429 = vld [vmem:[#allocation11 + $0x20] sm:$0xff]
    %v430 = vld [vmem:[#allocation11 + $0x28] sm:$0xff]
    %v431 = vld [vmem:[#allocation11 + $0x30] sm:$0xff]
    %v432 = vld [vmem:[#allocation11 + $0x38] sm:$0xff]
    %v433 = vld [vmem:[#allocation11 + $0x40] sm:$0xff]
    %v434 = vld [vmem:[#allocation11 + $0x48] sm:$0xff]
    %v435 = vld [vmem:[#allocation11 + $0x50] sm:$0xff]
    %v436 = vld [vmem:[#allocation11 + $0x58] sm:$0xff]
    %v437 = vld [vmem:[%s4] sm:$0x7]
    %v439 = vlaneseq
    %v440 = vshrl.u32 %v439, 7
    %v441 = vsub.s32 0, %v440
    %v442 = vrot.slane %v437, %v441
    %v443 = vlaneseq
    %v444 = vshrl.u32 %v443, 7
    %v445 = vsub.s32 1, %v444
    %v446 = vrot.slane %v437, %v445
    %v447 = vlaneseq
    %v448 = vshrl.u32 %v447, 7
    %v449 = vsub.s32 2, %v448
    %v450 = vrot.slane %v437, %v449
    %454 = vmatprep.subr.mxu0 0.0
    %455 = vmatpush1.msra.mxu0 0.0
    %456 = vmatprep.subr.mxu0 0.0
    %457 = vmatpush1.msra.mxu0 0.0
    %458 = vmatprep.subr.mxu0 0.0
    %459 = vmatpush1.msra.mxu0 0.0
    %460 = vmatprep.subr.mxu0 0.0
    %461 = vmatpush1.msra.mxu0 0.0
    %462 = vmatprep.subr.mxu0 0.0
    %463 = vmatpush1.msra.mxu0 0.0
    %464 = vmatprep.subr.mxu0 0.0
    %465 = vmatpush1.msra.mxu0 0.0
    %466 = vmatprep.subr.mxu0 0.0
    %467 = vmatpush1.msra.mxu0 0.0
    %468 = vmatprep.subr.mxu0 0.0
    %469 = vmatpush1.msra.mxu0 0.0
    %470 = vmatprep.subr.mxu0 0.0
    %471 = vmatpush1.msra.mxu0 0.0
    %472 = vmatprep.subr.mxu0 0.0
    %473 = vmatpush1.msra.mxu0 0.0
    %474 = vmatprep.subr.mxu0 0.0
    %475 = vmatpush1.msra.mxu0 0.0
    %476 = vmatprep.subr.mxu0 0.0
    %477 = vmatpush1.msra.mxu0 0.0
    %478 = vmatprep.subr.mxu0 %v435
    %479 = vmatpush1.msra.mxu0 %v434
    %480 = vmatprep.subr.mxu0 %v432
    %481 = vmatpush1.msra.mxu0 %v431
    %482 = vmatprep.subr.mxu0 %v429
    %483 = vmatpush1.msra.mxu0 %v428
    %484 = vmatprep.subr.mxu0 %v426
    %485 = vmatpush1.msra.mxu0 %v425
    %486 = vmatprep.subr.mxu0 0.0
    %487 = vmatpush2.msra.mxu0 0.0
    %488 = vmatprep.subr.mxu0 0.0
    %489 = vmatpush2.msra.mxu0 0.0
    %490 = vmatprep.subr.mxu0 0.0
    %491 = vmatpush2.msra.mxu0 0.0
    %492 = vmatprep.subr.mxu0 0.0
    %493 = vmatpush2.msra.mxu0 0.0
    %494 = vmatprep.subr.mxu0 0.0
    %495 = vmatpush2.msra.mxu0 0.0
    %496 = vmatprep.subr.mxu0 0.0
    %497 = vmatpush2.msra.mxu0 0.0
    %498 = vmatprep.subr.mxu0 0.0
    %499 = vmatpush2.msra.mxu0 0.0
    %500 = vmatprep.subr.mxu0 0.0
    %501 = vmatpush2.msra.mxu0 0.0
    %502 = vmatprep.subr.mxu0 0.0
    %503 = vmatpush2.msra.mxu0 0.0
    %504 = vmatprep.subr.mxu0 0.0
    %505 = vmatpush2.msra.mxu0 0.0
    %506 = vmatprep.subr.mxu0 0.0
    %507 = vmatpush2.msra.mxu0 0.0
    %508 = vmatprep.subr.mxu0 0.0
    %509 = vmatpush2.msra.mxu0 0.0
    %510 = vmatprep.subr.mxu0 0.0
    %511 = vmatpush2.msra.mxu0 0.0
    %512 = vmatprep.subr.mxu0 0.0
    %513 = vmatpush2.msra.mxu0 0.0
    %514 = vmatprep.subr.mxu0 0.0
    %515 = vmatpush2.msra.mxu0 0.0
    %516 = vmatprep.subr.mxu0 0.0
    %517 = vmatpush2.msra.mxu0 0.0
    %518 = vmatprep.mubr.f32.mxu0 0.0
    %519 = vmatmul.mubr.f32.gmra.mxu0 %v160
    %v520 = vpop.f32.mrf.mxu0
    %v521 = vadd.f32 %v442, %v520
    %v522 = vpop.f32.mrf.mxu0
    %v523 = vadd.f32 %v446, %v522
    %524 = vmatprep.mubr.f32.mxu0 0.0
    %525 = vmatmul.mubr.f32.gmra.mxu0 %v163
    %v526 = vpop.f32.mrf.mxu0
    %v527 = vadd.f32 %v442, %v526
    %v528 = vpop.f32.mrf.mxu0
    %v529 = vadd.f32 %v446, %v528
    %530 = vmatprep.mubr.f32.mxu0 0.0
    %531 = vmatmul.mubr.f32.gmra.mxu0 %v166
    %v532 = vpop.f32.mrf.mxu0
    %v533 = vadd.f32 %v442, %v532
    %v534 = vpop.f32.mrf.mxu0
    %v535 = vadd.f32 %v446, %v534
    %536 = vmatprep.mubr.f32.mxu0 0.0
    %537 = vmatmul.mubr.f32.gmra.mxu0 %v169
    %v538 = vpop.f32.mrf.mxu0
    %v539 = vadd.f32 %v442, %v538
    %v540 = vpop.f32.mrf.mxu0
    %v541 = vadd.f32 %v446, %v540
    %542 = vmatprep.mubr.f32.mxu0 0.0
    %543 = vmatmul.mubr.f32.gmra.mxu0 %v172
    %v544 = vpop.f32.mrf.mxu0
    %v545 = vadd.f32 %v442, %v544
    %v546 = vpop.f32.mrf.mxu0
    %v547 = vadd.f32 %v446, %v546
    %548 = vmatprep.mubr.f32.mxu0 0.0
    %549 = vmatmul.mubr.f32.gmra.mxu0 %v175
    %v550 = vpop.f32.mrf.mxu0
    %v551 = vadd.f32 %v442, %v550
    %v552 = vpop.f32.mrf.mxu0
    %v553 = vadd.f32 %v446, %v552
    %554 = vmatprep.mubr.f32.mxu0 0.0
    %555 = vmatmul.mubr.f32.gmra.mxu0 %v178
    %v556 = vpop.f32.mrf.mxu0
    %v557 = vadd.f32 %v442, %v556
    %v558 = vpop.f32.mrf.mxu0
    %v559 = vadd.f32 %v446, %v558
    %560 = vmatprep.mubr.f32.mxu0 0.0
    %561 = vmatmul.mubr.f32.gmra.mxu0 %v181
    %v562 = vpop.f32.mrf.mxu0
    %v563 = vadd.f32 %v442, %v562
    %v564 = vpop.f32.mrf.mxu0
    %v565 = vadd.f32 %v446, %v564
    %566 = vdwg.mxu0
    %567 = vmatprep.subr.mxu0 0.0
    %568 = vmatpush1.msra.mxu0 0.0
    %569 = vmatprep.subr.mxu0 0.0
    %570 = vmatpush1.msra.mxu0 0.0
    %571 = vmatprep.subr.mxu0 0.0
    %572 = vmatpush1.msra.mxu0 0.0
    %573 = vmatprep.subr.mxu0 0.0
    %574 = vmatpush1.msra.mxu0 0.0
    %575 = vmatprep.subr.mxu0 0.0
    %576 = vmatpush1.msra.mxu0 0.0
    %577 = vmatprep.subr.mxu0 0.0
    %578 = vmatpush1.msra.mxu0 0.0
    %579 = vmatprep.subr.mxu0 0.0
    %580 = vmatpush1.msra.mxu0 0.0
    %581 = vmatprep.subr.mxu0 0.0
    %582 = vmatpush1.msra.mxu0 0.0
    %583 = vmatprep.subr.mxu0 0.0
    %584 = vmatpush1.msra.mxu0 0.0
    %585 = vmatprep.subr.mxu0 0.0
    %586 = vmatpush1.msra.mxu0 0.0
    %587 = vmatprep.subr.mxu0 0.0
    %588 = vmatpush1.msra.mxu0 0.0
    %589 = vmatprep.subr.mxu0 0.0
    %590 = vmatpush1.msra.mxu0 0.0
    %591 = vmatprep.subr.mxu0 0.0
    %592 = vmatpush1.msra.mxu0 %v436
    %593 = vmatprep.subr.mxu0 0.0
    %594 = vmatpush1.msra.mxu0 %v433
    %595 = vmatprep.subr.mxu0 0.0
    %596 = vmatpush1.msra.mxu0 %v430
    %597 = vmatprep.subr.mxu0 0.0
    %598 = vmatpush1.msra.mxu0 %v427
    %599 = vmatprep.subr.mxu0 0.0
    %600 = vmatpush2.msra.mxu0 0.0
    %601 = vmatprep.subr.mxu0 0.0
    %602 = vmatpush2.msra.mxu0 0.0
    %603 = vmatprep.subr.mxu0 0.0
    %604 = vmatpush2.msra.mxu0 0.0
    %605 = vmatprep.subr.mxu0 0.0
    %606 = vmatpush2.msra.mxu0 0.0
    %607 = vmatprep.subr.mxu0 0.0
    %608 = vmatpush2.msra.mxu0 0.0
    %609 = vmatprep.subr.mxu0 0.0
    %610 = vmatpush2.msra.mxu0 0.0
    %611 = vmatprep.subr.mxu0 0.0
    %612 = vmatpush2.msra.mxu0 0.0
    %613 = vmatprep.subr.mxu0 0.0
    %614 = vmatpush2.msra.mxu0 0.0
    %615 = vmatprep.subr.mxu0 0.0
    %616 = vmatpush2.msra.mxu0 0.0
    %617 = vmatprep.subr.mxu0 0.0
    %618 = vmatpush2.msra.mxu0 0.0
    %619 = vmatprep.subr.mxu0 0.0
    %620 = vmatpush2.msra.mxu0 0.0
    %621 = vmatprep.subr.mxu0 0.0
    %622 = vmatpush2.msra.mxu0 0.0
    %623 = vmatprep.subr.mxu0 0.0
    %624 = vmatpush2.msra.mxu0 0.0
    %625 = vmatprep.subr.mxu0 0.0
    %626 = vmatpush2.msra.mxu0 0.0
    %627 = vmatprep.subr.mxu0 0.0
    %628 = vmatpush2.msra.mxu0 0.0
    %629 = vmatprep.subr.mxu0 0.0
    %630 = vmatpush2.msra.mxu0 0.0
    %631 = vmatprep.mubr.f32.mxu0 0.0
    %632 = vmatmul.mubr.f32.gmra.mxu0 %v160
    %v633 = vpop.f32.mrf.mxu0
    %v634 = vadd.f32 %v450, %v633
    %v635 = vpop.f32.mrf.mxu0
    %636 = vmatprep.mubr.f32.mxu0 0.0
    %637 = vmatmul.mubr.f32.gmra.mxu0 %v163
    %v638 = vpop.f32.mrf.mxu0
    %v639 = vadd.f32 %v450, %v638
    %v640 = vpop.f32.mrf.mxu0
    %641 = vmatprep.mubr.f32.mxu0 0.0
    %642 = vmatmul.mubr.f32.gmra.mxu0 %v166
    %v643 = vpop.f32.mrf.mxu0
    %v644 = vadd.f32 %v450, %v643
    %v645 = vpop.f32.mrf.mxu0
    %646 = vmatprep.mubr.f32.mxu0 0.0
    %647 = vmatmul.mubr.f32.gmra.mxu0 %v169
    %v648 = vpop.f32.mrf.mxu0
    %v649 = vadd.f32 %v450, %v648
    %v650 = vpop.f32.mrf.mxu0
    %651 = vmatprep.mubr.f32.mxu0 0.0
    %652 = vmatmul.mubr.f32.gmra.mxu0 %v172
    %v653 = vpop.f32.mrf.mxu0
    %v654 = vadd.f32 %v450, %v653
    %v655 = vpop.f32.mrf.mxu0
    %656 = vmatprep.mubr.f32.mxu0 0.0
    %657 = vmatmul.mubr.f32.gmra.mxu0 %v175
    %v658 = vpop.f32.mrf.mxu0
    %v659 = vadd.f32 %v450, %v658
    %v660 = vpop.f32.mrf.mxu0
    %661 = vmatprep.mubr.f32.mxu0 0.0
    %662 = vmatmul.mubr.f32.gmra.mxu0 %v178
    %v663 = vpop.f32.mrf.mxu0
    %v664 = vadd.f32 %v450, %v663
    %v665 = vpop.f32.mrf.mxu0
    %666 = vmatprep.mubr.f32.mxu0 0.0
    %667 = vmatmul.mubr.f32.gmra.mxu0 %v181
    %v668 = vpop.f32.mrf.mxu0
    %v669 = vadd.f32 %v450, %v668
    %v670 = vpop.f32.mrf.mxu0
    %671 = vdwg.mxu0
    %672 = vst [vmem:[#allocation3] sm:$0xff] %v521
    %673 = vst [vmem:[#allocation3 + $0x8] sm:$0xff] %v523
    %674 = vst [vmem:[#allocation3 + $0x10] sm:$0xff] %v634
    %675 = vst [vmem:[#allocation3 + $0x18] sm:$0xff] %v527
    %676 = vst [vmem:[#allocation3 + $0x20] sm:$0xff] %v529
    %677 = vst [vmem:[#allocation3 + $0x28] sm:$0xff] %v639
    %678 = vst [vmem:[#allocation3 + $0x30] sm:$0xff] %v533
    %679 = vst [vmem:[#allocation3 + $0x38] sm:$0xff] %v535
    %680 = vst [vmem:[#allocation3 + $0x40] sm:$0xff] %v644
    %681 = vst [vmem:[#allocation3 + $0x48] sm:$0xff] %v539
    %682 = vst [vmem:[#allocation3 + $0x50] sm:$0xff] %v541
    %683 = vst [vmem:[#allocation3 + $0x58] sm:$0xff] %v649
    %684 = vst [vmem:[#allocation3 + $0x60] sm:$0xff] %v545
    %685 = vst [vmem:[#allocation3 + $0x68] sm:$0xff] %v547
    %686 = vst [vmem:[#allocation3 + $0x70] sm:$0xff] %v654
    %687 = vst [vmem:[#allocation3 + $0x78] sm:$0xff] %v551
    %688 = vst [vmem:[#allocation3 + $0x80] sm:$0xff] %v553
    %689 = vst [vmem:[#allocation3 + $0x88] sm:$0xff] %v659
    %690 = vst [vmem:[#allocation3 + $0x90] sm:$0xff] %v557
    %691 = vst [vmem:[#allocation3 + $0x98] sm:$0xff] %v559
    %692 = vst [vmem:[#allocation3 + $0xa0] sm:$0xff] %v664
    %693 = vst [vmem:[#allocation3 + $0xa8] sm:$0xff] %v563
    %694 = vst [vmem:[#allocation3 + $0xb0] sm:$0xff] %v565
    %695 = vst [vmem:[#allocation3 + $0xb8] sm:$0xff] %v669
    %v696 = vld [vmem:[#allocation12] sm:$0xff]
    %v697 = vld [vmem:[#allocation12 + $0x8] sm:$0xff]
    %v698 = vld [vmem:[#allocation12 + $0x10] sm:$0xff]
    %v699 = vld [vmem:[#allocation12 + $0x18] sm:$0xff]
    %v700 = vld [vmem:[#allocation12 + $0x20] sm:$0xff]
    %v701 = vld [vmem:[#allocation12 + $0x28] sm:$0xff]
    %v702 = vld [vmem:[#allocation12 + $0x30] sm:$0xff]
    %v703 = vld [vmem:[#allocation12 + $0x38] sm:$0xff]
    %v704 = vld [vmem:[#allocation12 + $0x40] sm:$0xff]
    %v705 = vld [vmem:[#allocation12 + $0x48] sm:$0xff]
    %v706 = vld [vmem:[#allocation12 + $0x50] sm:$0xff]
    %v707 = vld [vmem:[#allocation12 + $0x58] sm:$0xff]
    %v708 = vld [vmem:[#allocation12 + $0x60] sm:$0xff]
    %v709 = vld [vmem:[#allocation12 + $0x68] sm:$0xff]
    %v710 = vld [vmem:[#allocation12 + $0x70] sm:$0xff]
    %v711 = vld [vmem:[#allocation12 + $0x78] sm:$0xff]
    %v712 = vld [vmem:[#allocation12 + $0x80] sm:$0xff]
    %v713 = vld [vmem:[#allocation12 + $0x88] sm:$0xff]
    %v714 = vld [vmem:[#allocation12 + $0x90] sm:$0xff]
    %v715 = vld [vmem:[#allocation12 + $0x98] sm:$0xff]
    %v716 = vld [vmem:[#allocation12 + $0xa0] sm:$0xff]
    %v717 = vld [vmem:[#allocation12 + $0xa8] sm:$0xff]
    %v718 = vld [vmem:[#allocation12 + $0xb0] sm:$0xff]
    %v719 = vld [vmem:[#allocation12 + $0xb8] sm:$0xff]
    %v720 = vld [vmem:[#allocation12 + $0xc0] sm:$0xff]
    %v721 = vld [vmem:[#allocation12 + $0xc8] sm:$0xff]
    %v722 = vld [vmem:[#allocation12 + $0xd0] sm:$0xff]
    %v723 = vld [vmem:[#allocation12 + $0xd8] sm:$0xff]
    %v724 = vld [vmem:[#allocation12 + $0xe0] sm:$0xff]
    %v725 = vld [vmem:[#allocation12 + $0xe8] sm:$0xff]
    %v726 = vld [vmem:[#allocation12 + $0xf0] sm:$0xff]
    %v727 = vld [vmem:[#allocation12 + $0xf8] sm:$0xff]
    %v728 = vld [vmem:[#allocation12 + $0x100] sm:$0xff]
    %v729 = vld [vmem:[#allocation12 + $0x108] sm:$0xff]
    %v730 = vld [vmem:[#allocation12 + $0x110] sm:$0xff]
    %v731 = vld [vmem:[#allocation12 + $0x118] sm:$0xff]
    %v732 = vld [vmem:[#allocation12 + $0x120] sm:$0xff]
    %v733 = vld [vmem:[#allocation12 + $0x128] sm:$0xff]
    %v734 = vld [vmem:[#allocation12 + $0x130] sm:$0xff]
    %v735 = vld [vmem:[#allocation12 + $0x138] sm:$0xff]
    %v736 = vld [vmem:[#allocation12 + $0x140] sm:$0xff]
    %v737 = vld [vmem:[#allocation12 + $0x148] sm:$0xff]
    %v738 = vld [vmem:[#allocation12 + $0x150] sm:$0xff]
    %v739 = vld [vmem:[#allocation12 + $0x158] sm:$0xff]
    %v740 = vld [vmem:[#allocation12 + $0x160] sm:$0xff]
    %v741 = vld [vmem:[#allocation12 + $0x168] sm:$0xff]
    %v742 = vld [vmem:[#allocation12 + $0x170] sm:$0xff]
    %v743 = vld [vmem:[#allocation12 + $0x178] sm:$0xff]
    %v744 = vld [vmem:[#allocation14] sm:$0xff]
    %v745 = vld [vmem:[#allocation14 + $0x8] sm:$0xff]
    %v746 = vld [vmem:[#allocation14 + $0x10] sm:$0xff]
    %v747 = vld [vmem:[#allocation14 + $0x18] sm:$0xff]
    %v748 = vld [vmem:[#allocation14 + $0x20] sm:$0xff]
    %v749 = vld [vmem:[#allocation14 + $0x28] sm:$0xff]
    %v750 = vld [vmem:[#allocation14 + $0x30] sm:$0xff]
    %v751 = vld [vmem:[#allocation14 + $0x38] sm:$0xff]
    %v752 = vld [vmem:[#allocation14 + $0x40] sm:$0xff]
    %v753 = vld [vmem:[#allocation14 + $0x48] sm:$0xff]
    %v754 = vld [vmem:[#allocation14 + $0x50] sm:$0xff]
    %v755 = vld [vmem:[#allocation14 + $0x58] sm:$0xff]
    %v756 = vld [vmem:[#allocation14 + $0x60] sm:$0xff]
    %v757 = vld [vmem:[#allocation14 + $0x68] sm:$0xff]
    %v758 = vld [vmem:[#allocation14 + $0x70] sm:$0xff]
    %v759 = vld [vmem:[#allocation14 + $0x78] sm:$0xff]
    %v760 = vld [vmem:[#allocation14 + $0x80] sm:$0xff]
    %v761 = vld [vmem:[#allocation14 + $0x88] sm:$0xff]
    %v762 = vld [vmem:[#allocation14 + $0x90] sm:$0xff]
    %v763 = vld [vmem:[#allocation14 + $0x98] sm:$0xff]
    %v764 = vld [vmem:[#allocation14 + $0xa0] sm:$0xff]
    %v765 = vld [vmem:[#allocation14 + $0xa8] sm:$0xff]
    %v766 = vld [vmem:[#allocation14 + $0xb0] sm:$0xff]
    %v767 = vld [vmem:[#allocation14 + $0xb8] sm:$0xff]
    %v768 = vld [vmem:[#allocation14 + $0xc0] sm:$0xff]
    %v769 = vld [vmem:[#allocation14 + $0xc8] sm:$0xff]
    %v770 = vld [vmem:[#allocation14 + $0xd0] sm:$0xff]
    %v771 = vld [vmem:[#allocation14 + $0xd8] sm:$0xff]
    %v772 = vld [vmem:[#allocation14 + $0xe0] sm:$0xff]
    %v773 = vld [vmem:[#allocation14 + $0xe8] sm:$0xff]
    %v774 = vld [vmem:[#allocation14 + $0xf0] sm:$0xff]
    %v775 = vld [vmem:[#allocation14 + $0xf8] sm:$0xff]
    %v776 = vld [vmem:[#allocation14 + $0x100] sm:$0xff]
    %v777 = vld [vmem:[#allocation14 + $0x108] sm:$0xff]
    %v778 = vld [vmem:[#allocation14 + $0x110] sm:$0xff]
    %v779 = vld [vmem:[#allocation14 + $0x118] sm:$0xff]
    %v780 = vld [vmem:[#allocation14 + $0x120] sm:$0xff]
    %v781 = vld [vmem:[#allocation14 + $0x128] sm:$0xff]
    %v782 = vld [vmem:[#allocation14 + $0x130] sm:$0xff]
    %v783 = vld [vmem:[#allocation14 + $0x138] sm:$0xff]
    %v784 = vld [vmem:[#allocation14 + $0x140] sm:$0xff]
    %v785 = vld [vmem:[#allocation14 + $0x148] sm:$0xff]
    %v786 = vld [vmem:[#allocation14 + $0x150] sm:$0xff]
    %v787 = vld [vmem:[#allocation14 + $0x158] sm:$0xff]
    %v788 = vld [vmem:[#allocation14 + $0x160] sm:$0xff]
    %v789 = vld [vmem:[#allocation14 + $0x168] sm:$0xff]
    %v790 = vld [vmem:[#allocation14 + $0x170] sm:$0xff]
    %v791 = vld [vmem:[#allocation14 + $0x178] sm:$0xff]
    %v792 = vld [vmem:[%s7] sm:$0x7]
    %v794 = vlaneseq
    %v795 = vshrl.u32 %v794, 7
    %v796 = vsub.s32 0, %v795
    %v797 = vrot.slane %v792, %v796
    %v798 = vlaneseq
    %v799 = vshrl.u32 %v798, 7
    %v800 = vsub.s32 1, %v799
    %v801 = vrot.slane %v792, %v800
    %v802 = vlaneseq
    %v803 = vshrl.u32 %v802, 7
    %v804 = vsub.s32 2, %v803
    %v805 = vrot.slane %v792, %v804
    %v809 = vld [vmem:[%s8] sm:$0x7]
    %v811 = vlaneseq
    %v812 = vshrl.u32 %v811, 7
    %v813 = vsub.s32 0, %v812
    %v814 = vrot.slane %v809, %v813
    %v815 = vlaneseq
    %v816 = vshrl.u32 %v815, 7
    %v817 = vsub.s32 1, %v816
    %v818 = vrot.slane %v809, %v817
    %v819 = vlaneseq
    %v820 = vshrl.u32 %v819, 7
    %v821 = vsub.s32 2, %v820
    %v822 = vrot.slane %v809, %v821
    %826 = vmatprep.subr.mxu0 %v742
    %827 = vmatpush1.msra.mxu0 %v741
    %828 = vmatprep.subr.mxu0 %v739
    %829 = vmatpush1.msra.mxu0 %v738
    %830 = vmatprep.subr.mxu0 %v736
    %831 = vmatpush1.msra.mxu0 %v735
    %832 = vmatprep.subr.mxu0 %v733
    %833 = vmatpush1.msra.mxu0 %v732
    %834 = vmatprep.subr.mxu0 %v730
    %835 = vmatpush1.msra.mxu0 %v729
    %836 = vmatprep.subr.mxu0 %v727
    %837 = vmatpush1.msra.mxu0 %v726
    %838 = vmatprep.subr.mxu0 %v724
    %839 = vmatpush1.msra.mxu0 %v723
    %840 = vmatprep.subr.mxu0 %v721
    %841 = vmatpush1.msra.mxu0 %v720
    %842 = vmatprep.subr.mxu0 %v718
    %843 = vmatpush1.msra.mxu0 %v717
    %844 = vmatprep.subr.mxu0 %v715
    %845 = vmatpush1.msra.mxu0 %v714
    %846 = vmatprep.subr.mxu0 %v712
    %847 = vmatpush1.msra.mxu0 %v711
    %848 = vmatprep.subr.mxu0 %v709
    %849 = vmatpush1.msra.mxu0 %v708
    %850 = vmatprep.subr.mxu0 %v706
    %851 = vmatpush1.msra.mxu0 %v705
    %852 = vmatprep.subr.mxu0 %v703
    %853 = vmatpush1.msra.mxu0 %v702
    %854 = vmatprep.subr.mxu0 %v700
    %855 = vmatpush1.msra.mxu0 %v699
    %856 = vmatprep.subr.mxu0 %v697
    %857 = vmatpush1.msra.mxu0 %v696
    %858 = vmatprep.subr.mxu0 0.0
    %859 = vmatpush2.msra.mxu0 0.0
    %860 = vmatprep.subr.mxu0 0.0
    %861 = vmatpush2.msra.mxu0 0.0
    %862 = vmatprep.subr.mxu0 0.0
    %863 = vmatpush2.msra.mxu0 0.0
    %864 = vmatprep.subr.mxu0 0.0
    %865 = vmatpush2.msra.mxu0 0.0
    %866 = vmatprep.subr.mxu0 0.0
    %867 = vmatpush2.msra.mxu0 0.0
    %868 = vmatprep.subr.mxu0 0.0
    %869 = vmatpush2.msra.mxu0 0.0
    %870 = vmatprep.subr.mxu0 0.0
    %871 = vmatpush2.msra.mxu0 0.0
    %872 = vmatprep.subr.mxu0 0.0
    %873 = vmatpush2.msra.mxu0 0.0
    %874 = vmatprep.subr.mxu0 0.0
    %875 = vmatpush2.msra.mxu0 0.0
    %876 = vmatprep.subr.mxu0 0.0
    %877 = vmatpush2.msra.mxu0 0.0
    %878 = vmatprep.subr.mxu0 0.0
    %879 = vmatpush2.msra.mxu0 0.0
    %880 = vmatprep.subr.mxu0 0.0
    %881 = vmatpush2.msra.mxu0 0.0
    %882 = vmatprep.subr.mxu0 0.0
    %883 = vmatpush2.msra.mxu0 0.0
    %884 = vmatprep.subr.mxu0 0.0
    %885 = vmatpush2.msra.mxu0 0.0
    %886 = vmatprep.subr.mxu0 0.0
    %887 = vmatpush2.msra.mxu0 0.0
    %888 = vmatprep.subr.mxu0 0.0
    %889 = vmatpush2.msra.mxu0 0.0
    %890 = vmatprep.mubr.f32.mxu0 0.0
    %891 = vmatmul.mubr.f32.gmra.mxu0 0.0
    %v892 = vpop.f32.mrf.mxu0
    %v893 = vadd.f32 %v797, %v892
    %v894 = vpop.f32.mrf.mxu0
    %v895 = vadd.f32 %v801, %v894
    %896 = vdwg.mxu0
    %897 = vmatprep.subr.mxu0 0.0
    %898 = vmatpush1.msra.mxu0 %v743
    %899 = vmatprep.subr.mxu0 0.0
    %900 = vmatpush1.msra.mxu0 %v740
    %901 = vmatprep.subr.mxu0 0.0
    %902 = vmatpush1.msra.mxu0 %v737
    %903 = vmatprep.subr.mxu0 0.0
    %904 = vmatpush1.msra.mxu0 %v734
    %905 = vmatprep.subr.mxu0 0.0
    %906 = vmatpush1.msra.mxu0 %v731
    %907 = vmatprep.subr.mxu0 0.0
    %908 = vmatpush1.msra.mxu0 %v728
    %909 = vmatprep.subr.mxu0 0.0
    %910 = vmatpush1.msra.mxu0 %v725
    %911 = vmatprep.subr.mxu0 0.0
    %912 = vmatpush1.msra.mxu0 %v722
    %913 = vmatprep.subr.mxu0 0.0
    %914 = vmatpush1.msra.mxu0 %v719
    %915 = vmatprep.subr.mxu0 0.0
    %916 = vmatpush1.msra.mxu0 %v716
    %917 = vmatprep.subr.mxu0 0.0
    %918 = vmatpush1.msra.mxu0 %v713
    %919 = vmatprep.subr.mxu0 0.0
    %920 = vmatpush1.msra.mxu0 %v710
    %921 = vmatprep.subr.mxu0 0.0
    %922 = vmatpush1.msra.mxu0 %v707
    %923 = vmatprep.subr.mxu0 0.0
    %924 = vmatpush1.msra.mxu0 %v704
    %925 = vmatprep.subr.mxu0 0.0
    %926 = vmatpush1.msra.mxu0 %v701
    %927 = vmatprep.subr.mxu0 0.0
    %928 = vmatpush1.msra.mxu0 %v698
    %929 = vmatprep.subr.mxu0 0.0
    %930 = vmatpush2.msra.mxu0 0.0
    %931 = vmatprep.subr.mxu0 0.0
    %932 = vmatpush2.msra.mxu0 0.0
    %933 = vmatprep.subr.mxu0 0.0
    %934 = vmatpush2.msra.mxu0 0.0
    %935 = vmatprep.subr.mxu0 0.0
    %936 = vmatpush2.msra.mxu0 0.0
    %937 = vmatprep.subr.mxu0 0.0
    %938 = vmatpush2.msra.mxu0 0.0
    %939 = vmatprep.subr.mxu0 0.0
    %940 = vmatpush2.msra.mxu0 0.0
    %941 = vmatprep.subr.mxu0 0.0
    %942 = vmatpush2.msra.mxu0 0.0
    %943 = vmatprep.subr.mxu0 0.0
    %944 = vmatpush2.msra.mxu0 0.0
    %945 = vmatprep.subr.mxu0 0.0
    %946 = vmatpush2.msra.mxu0 0.0
    %947 = vmatprep.subr.mxu0 0.0
    %948 = vmatpush2.msra.mxu0 0.0
    %949 = vmatprep.subr.mxu0 0.0
    %950 = vmatpush2.msra.mxu0 0.0
    %951 = vmatprep.subr.mxu0 0.0
    %952 = vmatpush2.msra.mxu0 0.0
    %953 = vmatprep.subr.mxu0 0.0
    %954 = vmatpush2.msra.mxu0 0.0
    %955 = vmatprep.subr.mxu0 0.0
    %956 = vmatpush2.msra.mxu0 0.0
    %957 = vmatprep.subr.mxu0 0.0
    %958 = vmatpush2.msra.mxu0 0.0
    %959 = vmatprep.subr.mxu0 0.0
    %960 = vmatpush2.msra.mxu0 0.0
    %961 = vmatprep.mubr.f32.mxu0 0.0
    %962 = vmatmul.mubr.f32.gmra.mxu0 0.0
    %v963 = vpop.f32.mrf.mxu0
    %v964 = vadd.f32 %v805, %v963
    %v965 = vpop.f32.mrf.mxu0
    %966 = vdwg.mxu0
    %967 = vmatprep.subr.mxu0 %v790
    %968 = vmatpush1.msra.mxu0 %v789
    %969 = vmatprep.subr.mxu0 %v787
    %970 = vmatpush1.msra.mxu0 %v786
    %971 = vmatprep.subr.mxu0 %v784
    %972 = vmatpush1.msra.mxu0 %v783
    %973 = vmatprep.subr.mxu0 %v781
    %974 = vmatpush1.msra.mxu0 %v780
    %975 = vmatprep.subr.mxu0 %v778
    %976 = vmatpush1.msra.mxu0 %v777
    %977 = vmatprep.subr.mxu0 %v775
    %978 = vmatpush1.msra.mxu0 %v774
    %979 = vmatprep.subr.mxu0 %v772
    %980 = vmatpush1.msra.mxu0 %v771
    %981 = vmatprep.subr.mxu0 %v769
    %982 = vmatpush1.msra.mxu0 %v768
    %983 = vmatprep.subr.mxu0 %v766
    %984 = vmatpush1.msra.mxu0 %v765
    %985 = vmatprep.subr.mxu0 %v763
    %986 = vmatpush1.msra.mxu0 %v762
    %987 = vmatprep.subr.mxu0 %v760
    %988 = vmatpush1.msra.mxu0 %v759
    %989 = vmatprep.subr.mxu0 %v757
    %990 = vmatpush1.msra.mxu0 %v756
    %991 = vmatprep.subr.mxu0 %v754
    %992 = vmatpush1.msra.mxu0 %v753
    %993 = vmatprep.subr.mxu0 %v751
    %994 = vmatpush1.msra.mxu0 %v750
    %995 = vmatprep.subr.mxu0 %v748
    %996 = vmatpush1.msra.mxu0 %v747
    %997 = vmatprep.subr.mxu0 %v745
    %998 = vmatpush1.msra.mxu0 %v744
    %999 = vmatprep.subr.mxu0 0.0
    %1000 = vmatpush2.msra.mxu0 0.0
    %1001 = vmatprep.subr.mxu0 0.0
    %1002 = vmatpush2.msra.mxu0 0.0
    %1003 = vmatprep.subr.mxu0 0.0
    %1004 = vmatpush2.msra.mxu0 0.0
    %1005 = vmatprep.subr.mxu0 0.0
    %1006 = vmatpush2.msra.mxu0 0.0
    %1007 = vmatprep.subr.mxu0 0.0
    %1008 = vmatpush2.msra.mxu0 0.0
    %1009 = vmatprep.subr.mxu0 0.0
    %1010 = vmatpush2.msra.mxu0 0.0
    %1011 = vmatprep.subr.mxu0 0.0
    %1012 = vmatpush2.msra.mxu0 0.0
    %1013 = vmatprep.subr.mxu0 0.0
    %1014 = vmatpush2.msra.mxu0 0.0
    %1015 = vmatprep.subr.mxu0 0.0
    %1016 = vmatpush2.msra.mxu0 0.0
    %1017 = vmatprep.subr.mxu0 0.0
    %1018 = vmatpush2.msra.mxu0 0.0
    %1019 = vmatprep.subr.mxu0 0.0
    %1020 = vmatpush2.msra.mxu0 0.0
    %1021 = vmatprep.subr.mxu0 0.0
    %1022 = vmatpush2.msra.mxu0 0.0
    %1023 = vmatprep.subr.mxu0 0.0
    %1024 = vmatpush2.msra.mxu0 0.0
    %1025 = vmatprep.subr.mxu0 0.0
    %1026 = vmatpush2.msra.mxu0 0.0
    %1027 = vmatprep.subr.mxu0 0.0
    %1028 = vmatpush2.msra.mxu0 0.0
    %1029 = vmatprep.subr.mxu0 0.0
    %1030 = vmatpush2.msra.mxu0 0.0
    %1031 = vmatprep.mubr.f32.mxu0 0.0
    %1032 = vmatmul.mubr.f32.gmra.mxu0 0.0
    %v1033 = vpop.f32.mrf.mxu0
    %v1034 = vadd.f32 %v814, %v1033
    %v1035 = vpop.f32.mrf.mxu0
    %v1036 = vadd.f32 %v818, %v1035
    %1037 = vdwg.mxu0
    %1038 = vmatprep.subr.mxu0 0.0
    %1039 = vmatpush1.msra.mxu0 %v791
    %1040 = vmatprep.subr.mxu0 0.0
    %1041 = vmatpush1.msra.mxu0 %v788
    %1042 = vmatprep.subr.mxu0 0.0
    %1043 = vmatpush1.msra.mxu0 %v785
    %1044 = vmatprep.subr.mxu0 0.0
    %1045 = vmatpush1.msra.mxu0 %v782
    %1046 = vmatprep.subr.mxu0 0.0
    %1047 = vmatpush1.msra.mxu0 %v779
    %1048 = vmatprep.subr.mxu0 0.0
    %1049 = vmatpush1.msra.mxu0 %v776
    %1050 = vmatprep.subr.mxu0 0.0
    %1051 = vmatpush1.msra.mxu0 %v773
    %1052 = vmatprep.subr.mxu0 0.0
    %1053 = vmatpush1.msra.mxu0 %v770
    %1054 = vmatprep.subr.mxu0 0.0
    %1055 = vmatpush1.msra.mxu0 %v767
    %1056 = vmatprep.subr.mxu0 0.0
    %1057 = vmatpush1.msra.mxu0 %v764
    %1058 = vmatprep.subr.mxu0 0.0
    %1059 = vmatpush1.msra.mxu0 %v761
    %1060 = vmatprep.subr.mxu0 0.0
    %1061 = vmatpush1.msra.mxu0 %v758
    %1062 = vmatprep.subr.mxu0 0.0
    %1063 = vmatpush1.msra.mxu0 %v755
    %1064 = vmatprep.subr.mxu0 0.0
    %1065 = vmatpush1.msra.mxu0 %v752
    %1066 = vmatprep.subr.mxu0 0.0
    %1067 = vmatpush1.msra.mxu0 %v749
    %1068 = vmatprep.subr.mxu0 0.0
    %1069 = vmatpush1.msra.mxu0 %v746
    %1070 = vmatprep.subr.mxu0 0.0
    %1071 = vmatpush2.msra.mxu0 0.0
    %1072 = vmatprep.subr.mxu0 0.0
    %1073 = vmatpush2.msra.mxu0 0.0
    %1074 = vmatprep.subr.mxu0 0.0
    %1075 = vmatpush2.msra.mxu0 0.0
    %1076 = vmatprep.subr.mxu0 0.0
    %1077 = vmatpush2.msra.mxu0 0.0
    %1078 = vmatprep.subr.mxu0 0.0
    %1079 = vmatpush2.msra.mxu0 0.0
    %1080 = vmatprep.subr.mxu0 0.0
    %1081 = vmatpush2.msra.mxu0 0.0
    %1082 = vmatprep.subr.mxu0 0.0
    %1083 = vmatpush2.msra.mxu0 0.0
    %1084 = vmatprep.subr.mxu0 0.0
    %1085 = vmatpush2.msra.mxu0 0.0
    %1086 = vmatprep.subr.mxu0 0.0
    %1087 = vmatpush2.msra.mxu0 0.0
    %1088 = vmatprep.subr.mxu0 0.0
    %1089 = vmatpush2.msra.mxu0 0.0
    %1090 = vmatprep.subr.mxu0 0.0
    %1091 = vmatpush2.msra.mxu0 0.0
    %1092 = vmatprep.subr.mxu0 0.0
    %1093 = vmatpush2.msra.mxu0 0.0
    %1094 = vmatprep.subr.mxu0 0.0
    %1095 = vmatpush2.msra.mxu0 0.0
    %1096 = vmatprep.subr.mxu0 0.0
    %1097 = vmatpush2.msra.mxu0 0.0
    %1098 = vmatprep.subr.mxu0 0.0
    %1099 = vmatpush2.msra.mxu0 0.0
    %1100 = vmatprep.subr.mxu0 0.0
    %1101 = vmatpush2.msra.mxu0 0.0
    %1102 = vmatprep.mubr.f32.mxu0 0.0
    %1103 = vmatmul.mubr.f32.gmra.mxu0 0.0
    %v1104 = vpop.f32.mrf.mxu0
    %v1105 = vadd.f32 %v822, %v1104
    %v1106 = vpop.f32.mrf.mxu0
    %1107 = vdwg.mxu0
    %v1108 = vld [vmem:[#allocation2] sm:$0xff]
    %v1109 = vld [vmem:[#allocation2 + $0x8] sm:$0xff]
    %v1110 = vld [vmem:[#allocation2 + $0x10] sm:$0xff]
    %v1111 = vadd.f32 %v1108, %v893
    %v1112 = vxor.u32 %v1111, 2147483648
    %v1113 = vmul.f32 %v1112, 1.442695
    %v1114 = vpow.pop %v1113
    %v1115 = vadd.f32 %v1114, 1.0
    %v1116 = vrcp.pop %v1115
    %v1117 = vmul.f32 1.0, %v1116
    %v1118 = vadd.f32 %v1109, %v895
    %v1119 = vxor.u32 %v1118, 2147483648
    %v1120 = vmul.f32 %v1119, 1.442695
    %v1121 = vpow.pop %v1120
    %v1122 = vadd.f32 %v1121, 1.0
    %v1123 = vrcp.pop %v1122
    %v1124 = vmul.f32 1.0, %v1123
    %v1125 = vmul.f32 %v1117, %v964
    %v1126 = vadd.f32 %v1110, %v1125
    %v1127 = vtanh.pop %v1126
    %v1128 = vsub.f32 1.0, %v1124
    %v1129 = vmul.f32 %v1128, %v1127
    %v1130 = vmul.f32 %v1124, 0.0
    %v1131 = vadd.f32 %v1129, %v1130
    %s1132 = scalar_lea.vmem [#allocation3], 168
    %v1133 = vld [vmem:[%s1132] sm:$0xff]
    %v1134 = vld [vmem:[%s1132 + $0x8] sm:$0xff]
    %v1135 = vld [vmem:[%s1132 + $0x10] sm:$0xff]
    %v1136 = vadd.f32 %v1133, %v1034
    %v1137 = vxor.u32 %v1136, 2147483648
    %v1138 = vmul.f32 %v1137, 1.442695
    %v1139 = vpow.pop %v1138
    %v1140 = vadd.f32 %v1139, 1.0
    %v1141 = vrcp.pop %v1140
    %v1142 = vmul.f32 1.0, %v1141
    %v1143 = vadd.f32 %v1134, %v1036
    %v1144 = vxor.u32 %v1143, 2147483648
    %v1145 = vmul.f32 %v1144, 1.442695
    %v1146 = vpow.pop %v1145
    %v1147 = vadd.f32 %v1146, 1.0
    %v1148 = vrcp.pop %v1147
    %v1149 = vmul.f32 1.0, %v1148
    %v1150 = vmul.f32 %v1142, %v1105
    %v1151 = vadd.f32 %v1135, %v1150
    %v1152 = vtanh.pop %v1151
    %v1153 = vsub.f32 1.0, %v1149
    %v1154 = vmul.f32 %v1153, %v1152
    %v1155 = vmul.f32 %v1149, 0.0
    %v1156 = vadd.f32 %v1154, %v1155
    %1157 = vst [vmem:[#allocation4] sm:$0xff] %v1131
    %s1158 = scalar_lea.vmem [#allocation5], 56
    %1159 = vst [vmem:[%s1158] sm:$0xff] %v1156
    %1160 = vmatprep.subr.mxu0 %v742
    %1161 = vmatpush1.msra.mxu0 %v741
    %1162 = vmatprep.subr.mxu0 %v739
    %1163 = vmatpush1.msra.mxu0 %v738
    %1164 = vmatprep.subr.mxu0 %v736
    %1165 = vmatpush1.msra.mxu0 %v735
    %1166 = vmatprep.subr.mxu0 %v733
    %1167 = vmatpush1.msra.mxu0 %v732
    %1168 = vmatprep.subr.mxu0 %v730
    %1169 = vmatpush1.msra.mxu0 %v729
    %1170 = vmatprep.subr.mxu0 %v727
    %1171 = vmatpush1.msra.mxu0 %v726
    %1172 = vmatprep.subr.mxu0 %v724
    %1173 = vmatpush1.msra.mxu0 %v723
    %1174 = vmatprep.subr.mxu0 %v721
    %1175 = vmatpush1.msra.mxu0 %v720
    %1176 = vmatprep.subr.mxu0 %v718
    %1177 = vmatpush1.msra.mxu0 %v717
    %1178 = vmatprep.subr.mxu0 %v715
    %1179 = vmatpush1.msra.mxu0 %v714
    %1180 = vmatprep.subr.mxu0 %v712
    %1181 = vmatpush1.msra.mxu0 %v711
    %1182 = vmatprep.subr.mxu0 %v709
    %1183 = vmatpush1.msra.mxu0 %v708
    %1184 = vmatprep.subr.mxu0 %v706
    %1185 = vmatpush1.msra.mxu0 %v705
    %1186 = vmatprep.subr.mxu0 %v703
    %1187 = vmatpush1.msra.mxu0 %v702
    %1188 = vmatprep.subr.mxu0 %v700
    %1189 = vmatpush1.msra.mxu0 %v699
    %1190 = vmatprep.subr.mxu0 %v697
    %1191 = vmatpush1.msra.mxu0 %v696
    %1192 = vmatprep.subr.mxu0 0.0
    %1193 = vmatpush2.msra.mxu0 0.0
    %1194 = vmatprep.subr.mxu0 0.0
    %1195 = vmatpush2.msra.mxu0 0.0
    %1196 = vmatprep.subr.mxu0 0.0
    %1197 = vmatpush2.msra.mxu0 0.0
    %1198 = vmatprep.subr.mxu0 0.0
    %1199 = vmatpush2.msra.mxu0 0.0
    %1200 = vmatprep.subr.mxu0 0.0
    %1201 = vmatpush2.msra.mxu0 0.0
    %1202 = vmatprep.subr.mxu0 0.0
    %1203 = vmatpush2.msra.mxu0 0.0
    %1204 = vmatprep.subr.mxu0 0.0
    %1205 = vmatpush2.msra.mxu0 0.0
    %1206 = vmatprep.subr.mxu0 0.0
    %1207 = vmatpush2.msra.mxu0 0.0
    %1208 = vmatprep.subr.mxu0 0.0
    %1209 = vmatpush2.msra.mxu0 0.0
    %1210 = vmatprep.subr.mxu0 0.0
    %1211 = vmatpush2.msra.mxu0 0.0
    %1212 = vmatprep.subr.mxu0 0.0
    %1213 = vmatpush2.msra.mxu0 0.0
    %1214 = vmatprep.subr.mxu0 0.0
    %1215 = vmatpush2.msra.mxu0 0.0
    %1216 = vmatprep.subr.mxu0 0.0
    %1217 = vmatpush2.msra.mxu0 0.0
    %1218 = vmatprep.subr.mxu0 0.0
    %1219 = vmatpush2.msra.mxu0 0.0
    %1220 = vmatprep.subr.mxu0 0.0
    %1221 = vmatpush2.msra.mxu0 0.0
    %1222 = vmatprep.subr.mxu0 0.0
    %1223 = vmatpush2.msra.mxu0 0.0
    %1224 = vmatprep.mubr.f32.mxu0 0.0
    %1225 = vmatmul.mubr.f32.gmra.mxu0 %v1131
    %v1226 = vpop.f32.mrf.mxu0
    %v1227 = vadd.f32 %v797, %v1226
    %v1228 = vpop.f32.mrf.mxu0
    %v1229 = vadd.f32 %v801, %v1228
    %1230 = vdwg.mxu0
    %1231 = vmatprep.subr.mxu0 0.0
    %1232 = vmatpush1.msra.mxu0 %v743
    %1233 = vmatprep.subr.mxu0 0.0
    %1234 = vmatpush1.msra.mxu0 %v740
    %1235 = vmatprep.subr.mxu0 0.0
    %1236 = vmatpush1.msra.mxu0 %v737
    %1237 = vmatprep.subr.mxu0 0.0
    %1238 = vmatpush1.msra.mxu0 %v734
    %1239 = vmatprep.subr.mxu0 0.0
    %1240 = vmatpush1.msra.mxu0 %v731
    %1241 = vmatprep.subr.mxu0 0.0
    %1242 = vmatpush1.msra.mxu0 %v728
    %1243 = vmatprep.subr.mxu0 0.0
    %1244 = vmatpush1.msra.mxu0 %v725
    %1245 = vmatprep.subr.mxu0 0.0
    %1246 = vmatpush1.msra.mxu0 %v722
    %1247 = vmatprep.subr.mxu0 0.0
    %1248 = vmatpush1.msra.mxu0 %v719
    %1249 = vmatprep.subr.mxu0 0.0
    %1250 = vmatpush1.msra.mxu0 %v716
    %1251 = vmatprep.subr.mxu0 0.0
    %1252 = vmatpush1.msra.mxu0 %v713
    %1253 = vmatprep.subr.mxu0 0.0
    %1254 = vmatpush1.msra.mxu0 %v710
    %1255 = vmatprep.subr.mxu0 0.0
    %1256 = vmatpush1.msra.mxu0 %v707
    %1257 = vmatprep.subr.mxu0 0.0
    %1258 = vmatpush1.msra.mxu0 %v704
    %1259 = vmatprep.subr.mxu0 0.0
    %1260 = vmatpush1.msra.mxu0 %v701
    %1261 = vmatprep.subr.mxu0 0.0
    %1262 = vmatpush1.msra.mxu0 %v698
    %1263 = vmatprep.subr.mxu0 0.0
    %1264 = vmatpush2.msra.mxu0 0.0
    %1265 = vmatprep.subr.mxu0 0.0
    %1266 = vmatpush2.msra.mxu0 0.0
    %1267 = vmatprep.subr.mxu0 0.0
    %1268 = vmatpush2.msra.mxu0 0.0
    %1269 = vmatprep.subr.mxu0 0.0
    %1270 = vmatpush2.msra.mxu0 0.0
    %1271 = vmatprep.subr.mxu0 0.0
    %1272 = vmatpush2.msra.mxu0 0.0
    %1273 = vmatprep.subr.mxu0 0.0
    %1274 = vmatpush2.msra.mxu0 0.0
    %1275 = vmatprep.subr.mxu0 0.0
    %1276 = vmatpush2.msra.mxu0 0.0
    %1277 = vmatprep.subr.mxu0 0.0
    %1278 = vmatpush2.msra.mxu0 0.0
    %1279 = vmatprep.subr.mxu0 0.0
    %1280 = vmatpush2.msra.mxu0 0.0
    %1281 = vmatprep.subr.mxu0 0.0
    %1282 = vmatpush2.msra.mxu0 0.0
    %1283 = vmatprep.subr.mxu0 0.0
    %1284 = vmatpush2.msra.mxu0 0.0
    %1285 = vmatprep.subr.mxu0 0.0
    %1286 = vmatpush2.msra.mxu0 0.0
    %1287 = vmatprep.subr.mxu0 0.0
    %1288 = vmatpush2.msra.mxu0 0.0
    %1289 = vmatprep.subr.mxu0 0.0
    %1290 = vmatpush2.msra.mxu0 0.0
    %1291 = vmatprep.subr.mxu0 0.0
    %1292 = vmatpush2.msra.mxu0 0.0
    %1293 = vmatprep.subr.mxu0 0.0
    %1294 = vmatpush2.msra.mxu0 0.0
    %1295 = vmatprep.mubr.f32.mxu0 0.0
    %1296 = vmatmul.mubr.f32.gmra.mxu0 %v1131
    %v1297 = vpop.f32.mrf.mxu0
    %v1298 = vadd.f32 %v805, %v1297
    %v1299 = vpop.f32.mrf.mxu0
    %1300 = vdwg.mxu0
    %1301 = vmatprep.subr.mxu0 %v790
    %1302 = vmatpush1.msra.mxu0 %v789
    %1303 = vmatprep.subr.mxu0 %v787
    %1304 = vmatpush1.msra.mxu0 %v786
    %1305 = vmatprep.subr.mxu0 %v784
    %1306 = vmatpush1.msra.mxu0 %v783
    %1307 = vmatprep.subr.mxu0 %v781
    %1308 = vmatpush1.msra.mxu0 %v780
    %1309 = vmatprep.subr.mxu0 %v778
    %1310 = vmatpush1.msra.mxu0 %v777
    %1311 = vmatprep.subr.mxu0 %v775
    %1312 = vmatpush1.msra.mxu0 %v774
    %1313 = vmatprep.subr.mxu0 %v772
    %1314 = vmatpush1.msra.mxu0 %v771
    %1315 = vmatprep.subr.mxu0 %v769
    %1316 = vmatpush1.msra.mxu0 %v768
    %1317 = vmatprep.subr.mxu0 %v766
    %1318 = vmatpush1.msra.mxu0 %v765
    %1319 = vmatprep.subr.mxu0 %v763
    %1320 = vmatpush1.msra.mxu0 %v762
    %1321 = vmatprep.subr.mxu0 %v760
    %1322 = vmatpush1.msra.mxu0 %v759
    %1323 = vmatprep.subr.mxu0 %v757
    %1324 = vmatpush1.msra.mxu0 %v756
    %1325 = vmatprep.subr.mxu0 %v754
    %1326 = vmatpush1.msra.mxu0 %v753
    %1327 = vmatprep.subr.mxu0 %v751
    %1328 = vmatpush1.msra.mxu0 %v750
    %1329 = vmatprep.subr.mxu0 %v748
    %1330 = vmatpush1.msra.mxu0 %v747
    %1331 = vmatprep.subr.mxu0 %v745
    %1332 = vmatpush1.msra.mxu0 %v744
    %1333 = vmatprep.subr.mxu0 0.0
    %1334 = vmatpush2.msra.mxu0 0.0
    %1335 = vmatprep.subr.mxu0 0.0
    %1336 = vmatpush2.msra.mxu0 0.0
    %1337 = vmatprep.subr.mxu0 0.0
    %1338 = vmatpush2.msra.mxu0 0.0
    %1339 = vmatprep.subr.mxu0 0.0
    %1340 = vmatpush2.msra.mxu0 0.0
    %1341 = vmatprep.subr.mxu0 0.0
    %1342 = vmatpush2.msra.mxu0 0.0
    %1343 = vmatprep.subr.mxu0 0.0
    %1344 = vmatpush2.msra.mxu0 0.0
    %1345 = vmatprep.subr.mxu0 0.0
    %1346 = vmatpush2.msra.mxu0 0.0
    %1347 = vmatprep.subr.mxu0 0.0
    %1348 = vmatpush2.msra.mxu0 0.0
    %1349 = vmatprep.subr.mxu0 0.0
    %1350 = vmatpush2.msra.mxu0 0.0
    %1351 = vmatprep.subr.mxu0 0.0
    %1352 = vmatpush2.msra.mxu0 0.0
    %1353 = vmatprep.subr.mxu0 0.0
    %1354 = vmatpush2.msra.mxu0 0.0
    %1355 = vmatprep.subr.mxu0 0.0
    %1356 = vmatpush2.msra.mxu0 0.0
    %1357 = vmatprep.subr.mxu0 0.0
    %1358 = vmatpush2.msra.mxu0 0.0
    %1359 = vmatprep.subr.mxu0 0.0
    %1360 = vmatpush2.msra.mxu0 0.0
    %1361 = vmatprep.subr.mxu0 0.0
    %1362 = vmatpush2.msra.mxu0 0.0
    %1363 = vmatprep.subr.mxu0 0.0
    %1364 = vmatpush2.msra.mxu0 0.0
    %1365 = vmatprep.mubr.f32.mxu0 0.0
    %1366 = vmatmul.mubr.f32.gmra.mxu0 %v1156
    %v1367 = vpop.f32.mrf.mxu0
    %v1368 = vadd.f32 %v814, %v1367
    %v1369 = vpop.f32.mrf.mxu0
    %v1370 = vadd.f32 %v818, %v1369
    %1371 = vdwg.mxu0
    %1372 = vmatprep.subr.mxu0 0.0
    %1373 = vmatpush1.msra.mxu0 %v791
    %1374 = vmatprep.subr.mxu0 0.0
    %1375 = vmatpush1.msra.mxu0 %v788
    %1376 = vmatprep.subr.mxu0 0.0
    %1377 = vmatpush1.msra.mxu0 %v785
    %1378 = vmatprep.subr.mxu0 0.0
    %1379 = vmatpush1.msra.mxu0 %v782
    %1380 = vmatprep.subr.mxu0 0.0
    %1381 = vmatpush1.msra.mxu0 %v779
    %1382 = vmatprep.subr.mxu0 0.0
    %1383 = vmatpush1.msra.mxu0 %v776
    %1384 = vmatprep.subr.mxu0 0.0
    %1385 = vmatpush1.msra.mxu0 %v773
    %1386 = vmatprep.subr.mxu0 0.0
    %1387 = vmatpush1.msra.mxu0 %v770
    %1388 = vmatprep.subr.mxu0 0.0
    %1389 = vmatpush1.msra.mxu0 %v767
    %1390 = vmatprep.subr.mxu0 0.0
    %1391 = vmatpush1.msra.mxu0 %v764
    %1392 = vmatprep.subr.mxu0 0.0
    %1393 = vmatpush1.msra.mxu0 %v761
    %1394 = vmatprep.subr.mxu0 0.0
    %1395 = vmatpush1.msra.mxu0 %v758
    %1396 = vmatprep.subr.mxu0 0.0
    %1397 = vmatpush1.msra.mxu0 %v755
    %1398 = vmatprep.subr.mxu0 0.0
    %1399 = vmatpush1.msra.mxu0 %v752
    %1400 = vmatprep.subr.mxu0 0.0
    %1401 = vmatpush1.msra.mxu0 %v749
    %1402 = vmatprep.subr.mxu0 0.0
    %1403 = vmatpush1.msra.mxu0 %v746
    %1404 = vmatprep.subr.mxu0 0.0
    %1405 = vmatpush2.msra.mxu0 0.0
    %1406 = vmatprep.subr.mxu0 0.0
    %1407 = vmatpush2.msra.mxu0 0.0
    %1408 = vmatprep.subr.mxu0 0.0
    %1409 = vmatpush2.msra.mxu0 0.0
    %1410 = vmatprep.subr.mxu0 0.0
    %1411 = vmatpush2.msra.mxu0 0.0
    %1412 = vmatprep.subr.mxu0 0.0
    %1413 = vmatpush2.msra.mxu0 0.0
    %1414 = vmatprep.subr.mxu0 0.0
    %1415 = vmatpush2.msra.mxu0 0.0
    %1416 = vmatprep.subr.mxu0 0.0
    %1417 = vmatpush2.msra.mxu0 0.0
    %1418 = vmatprep.subr.mxu0 0.0
    %1419 = vmatpush2.msra.mxu0 0.0
    %1420 = vmatprep.subr.mxu0 0.0
    %1421 = vmatpush2.msra.mxu0 0.0
    %1422 = vmatprep.subr.mxu0 0.0
    %1423 = vmatpush2.msra.mxu0 0.0
    %1424 = vmatprep.subr.mxu0 0.0
    %1425 = vmatpush2.msra.mxu0 0.0
    %1426 = vmatprep.subr.mxu0 0.0
    %1427 = vmatpush2.msra.mxu0 0.0
    %1428 = vmatprep.subr.mxu0 0.0
    %1429 = vmatpush2.msra.mxu0 0.0
    %1430 = vmatprep.subr.mxu0 0.0
    %1431 = vmatpush2.msra.mxu0 0.0
    %1432 = vmatprep.subr.mxu0 0.0
    %1433 = vmatpush2.msra.mxu0 0.0
    %1434 = vmatprep.subr.mxu0 0.0
    %1435 = vmatpush2.msra.mxu0 0.0
    %1436 = vmatprep.mubr.f32.mxu0 0.0
    %1437 = vmatmul.mubr.f32.gmra.mxu0 %v1156
    %v1438 = vpop.f32.mrf.mxu0
    %v1439 = vadd.f32 %v822, %v1438
    %v1440 = vpop.f32.mrf.mxu0
    %1441 = vdwg.mxu0
    %s1442 = scalar_lea.vmem [#allocation2], 24
    %v1443 = vld [vmem:[%s1442] sm:$0xff]
    %v1444 = vld [vmem:[%s1442 + $0x8] sm:$0xff]
    %v1445 = vld [vmem:[%s1442 + $0x10] sm:$0xff]
    %v1446 = vadd.f32 %v1443, %v1227
    %v1447 = vxor.u32 %v1446, 2147483648
    %v1448 = vmul.f32 %v1447, 1.442695
    %v1449 = vpow.pop %v1448
    %v1450 = vadd.f32 %v1449, 1.0
    %v1451 = vrcp.pop %v1450
    %v1452 = vmul.f32 1.0, %v1451
    %v1453 = vadd.f32 %v1444, %v1229
    %v1454 = vxor.u32 %v1453, 2147483648
    %v1455 = vmul.f32 %v1454, 1.442695
    %v1456 = vpow.pop %v1455
    %v1457 = vadd.f32 %v1456, 1.0
    %v1458 = vrcp.pop %v1457
    %v1459 = vmul.f32 1.0, %v1458
    %v1460 = vmul.f32 %v1452, %v1298
    %v1461 = vadd.f32 %v1445, %v1460
    %v1462 = vtanh.pop %v1461
    %v1463 = vsub.f32 1.0, %v1459
    %v1464 = vmul.f32 %v1463, %v1462
    %v1465 = vmul.f32 %v1459, %v1131
    %v1466 = vadd.f32 %v1464, %v1465
    %s1467 = scalar_lea.vmem [#allocation3], 144
    %v1468 = vld [vmem:[%s1467] sm:$0xff]
    %v1469 = vld [vmem:[%s1467 + $0x8] sm:$0xff]
    %v1470 = vld [vmem:[%s1467 + $0x10] sm:$0xff]
    %v1471 = vadd.f32 %v1468, %v1368
    %v1472 = vxor.u32 %v1471, 2147483648
    %v1473 = vmul.f32 %v1472, 1.442695
    %v1474 = vpow.pop %v1473
    %v1475 = vadd.f32 %v1474, 1.0
    %v1476 = vrcp.pop %v1475
    %v1477 = vmul.f32 1.0, %v1476
    %v1478 = vadd.f32 %v1469, %v1370
    %v1479 = vxor.u32 %v1478, 2147483648
    %v1480 = vmul.f32 %v1479, 1.442695
    %v1481 = vpow.pop %v1480
    %v1482 = vadd.f32 %v1481, 1.0
    %v1483 = vrcp.pop %v1482
    %v1484 = vmul.f32 1.0, %v1483
    %v1485 = vmul.f32 %v1477, %v1439
    %v1486 = vadd.f32 %v1470, %v1485
    %v1487 = vtanh.pop %v1486
    %v1488 = vsub.f32 1.0, %v1484
    %v1489 = vmul.f32 %v1488, %v1487
    %v1490 = vmul.f32 %v1484, %v1156
    %v1491 = vadd.f32 %v1489, %v1490
    %s1492 = scalar_lea.vmem [#allocation4], 8
    %1493 = vst [vmem:[%s1492] sm:$0xff] %v1466
    %s1494 = scalar_lea.vmem [#allocation5], 48
    %1495 = vst [vmem:[%s1494] sm:$0xff] %v1491
    %1496 = vmatprep.subr.mxu0 %v742
    %1497 = vmatpush1.msra.mxu0 %v741
    %1498 = vmatprep.subr.mxu0 %v739
    %1499 = vmatpush1.msra.mxu0 %v738
    %1500 = vmatprep.subr.mxu0 %v736
    %1501 = vmatpush1.msra.mxu0 %v735
    %1502 = vmatprep.subr.mxu0 %v733
    %1503 = vmatpush1.msra.mxu0 %v732
    %1504 = vmatprep.subr.mxu0 %v730
    %1505 = vmatpush1.msra.mxu0 %v729
    %1506 = vmatprep.subr.mxu0 %v727
    %1507 = vmatpush1.msra.mxu0 %v726
    %1508 = vmatprep.subr.mxu0 %v724
    %1509 = vmatpush1.msra.mxu0 %v723
    %1510 = vmatprep.subr.mxu0 %v721
    %1511 = vmatpush1.msra.mxu0 %v720
    %1512 = vmatprep.subr.mxu0 %v718
    %1513 = vmatpush1.msra.mxu0 %v717
    %1514 = vmatprep.subr.mxu0 %v715
    %1515 = vmatpush1.msra.mxu0 %v714
    %1516 = vmatprep.subr.mxu0 %v712
    %1517 = vmatpush1.msra.mxu0 %v711
    %1518 = vmatprep.subr.mxu0 %v709
    %1519 = vmatpush1.msra.mxu0 %v708
    %1520 = vmatprep.subr.mxu0 %v706
    %1521 = vmatpush1.msra.mxu0 %v705
    %1522 = vmatprep.subr.mxu0 %v703
    %1523 = vmatpush1.msra.mxu0 %v702
    %1524 = vmatprep.subr.mxu0 %v700
    %1525 = vmatpush1.msra.mxu0 %v699
    %1526 = vmatprep.subr.mxu0 %v697
    %1527 = vmatpush1.msra.mxu0 %v696
    %1528 = vmatprep.subr.mxu0 0.0
    %1529 = vmatpush2.msra.mxu0 0.0
    %1530 = vmatprep.subr.mxu0 0.0
    %1531 = vmatpush2.msra.mxu0 0.0
    %1532 = vmatprep.subr.mxu0 0.0
    %1533 = vmatpush2.msra.mxu0 0.0
    %1534 = vmatprep.subr.mxu0 0.0
    %1535 = vmatpush2.msra.mxu0 0.0
    %1536 = vmatprep.subr.mxu0 0.0
    %1537 = vmatpush2.msra.mxu0 0.0
    %1538 = vmatprep.subr.mxu0 0.0
    %1539 = vmatpush2.msra.mxu0 0.0
    %1540 = vmatprep.subr.mxu0 0.0
    %1541 = vmatpush2.msra.mxu0 0.0
    %1542 = vmatprep.subr.mxu0 0.0
    %1543 = vmatpush2.msra.mxu0 0.0
    %1544 = vmatprep.subr.mxu0 0.0
    %1545 = vmatpush2.msra.mxu0 0.0
    %1546 = vmatprep.subr.mxu0 0.0
    %1547 = vmatpush2.msra.mxu0 0.0
    %1548 = vmatprep.subr.mxu0 0.0
    %1549 = vmatpush2.msra.mxu0 0.0
    %1550 = vmatprep.subr.mxu0 0.0
    %1551 = vmatpush2.msra.mxu0 0.0
    %1552 = vmatprep.subr.mxu0 0.0
    %1553 = vmatpush2.msra.mxu0 0.0
    %1554 = vmatprep.subr.mxu0 0.0
    %1555 = vmatpush2.msra.mxu0 0.0
    %1556 = vmatprep.subr.mxu0 0.0
    %1557 = vmatpush2.msra.mxu0 0.0
    %1558 = vmatprep.subr.mxu0 0.0
    %1559 = vmatpush2.msra.mxu0 0.0
    %1560 = vmatprep.mubr.f32.mxu0 0.0
    %1561 = vmatmul.mubr.f32.gmra.mxu0 %v1466
    %v1562 = vpop.f32.mrf.mxu0
    %v1563 = vadd.f32 %v797, %v1562
    %v1564 = vpop.f32.mrf.mxu0
    %v1565 = vadd.f32 %v801, %v1564
    %1566 = vdwg.mxu0
    %1567 = vmatprep.subr.mxu0 0.0
    %1568 = vmatpush1.msra.mxu0 %v743
    %1569 = vmatprep.subr.mxu0 0.0
    %1570 = vmatpush1.msra.mxu0 %v740
    %1571 = vmatprep.subr.mxu0 0.0
    %1572 = vmatpush1.msra.mxu0 %v737
    %1573 = vmatprep.subr.mxu0 0.0
    %1574 = vmatpush1.msra.mxu0 %v734
    %1575 = vmatprep.subr.mxu0 0.0
    %1576 = vmatpush1.msra.mxu0 %v731
    %1577 = vmatprep.subr.mxu0 0.0
    %1578 = vmatpush1.msra.mxu0 %v728
    %1579 = vmatprep.subr.mxu0 0.0
    %1580 = vmatpush1.msra.mxu0 %v725
    %1581 = vmatprep.subr.mxu0 0.0
    %1582 = vmatpush1.msra.mxu0 %v722
    %1583 = vmatprep.subr.mxu0 0.0
    %1584 = vmatpush1.msra.mxu0 %v719
    %1585 = vmatprep.subr.mxu0 0.0
    %1586 = vmatpush1.msra.mxu0 %v716
    %1587 = vmatprep.subr.mxu0 0.0
    %1588 = vmatpush1.msra.mxu0 %v713
    %1589 = vmatprep.subr.mxu0 0.0
    %1590 = vmatpush1.msra.mxu0 %v710
    %1591 = vmatprep.subr.mxu0 0.0
    %1592 = vmatpush1.msra.mxu0 %v707
    %1593 = vmatprep.subr.mxu0 0.0
    %1594 = vmatpush1.msra.mxu0 %v704
    %1595 = vmatprep.subr.mxu0 0.0
    %1596 = vmatpush1.msra.mxu0 %v701
    %1597 = vmatprep.subr.mxu0 0.0
    %1598 = vmatpush1.msra.mxu0 %v698
    %1599 = vmatprep.subr.mxu0 0.0
    %1600 = vmatpush2.msra.mxu0 0.0
    %1601 = vmatprep.subr.mxu0 0.0
    %1602 = vmatpush2.msra.mxu0 0.0
    %1603 = vmatprep.subr.mxu0 0.0
    %1604 = vmatpush2.msra.mxu0 0.0
    %1605 = vmatprep.subr.mxu0 0.0
    %1606 = vmatpush2.msra.mxu0 0.0
    %1607 = vmatprep.subr.mxu0 0.0
    %1608 = vmatpush2.msra.mxu0 0.0
    %1609 = vmatprep.subr.mxu0 0.0
    %1610 = vmatpush2.msra.mxu0 0.0
    %1611 = vmatprep.subr.mxu0 0.0
    %1612 = vmatpush2.msra.mxu0 0.0
    %1613 = vmatprep.subr.mxu0 0.0
    %1614 = vmatpush2.msra.mxu0 0.0
    %1615 = vmatprep.subr.mxu0 0.0
    %1616 = vmatpush2.msra.mxu0 0.0
    %1617 = vmatprep.subr.mxu0 0.0
    %1618 = vmatpush2.msra.mxu0 0.0
    %1619 = vmatprep.subr.mxu0 0.0
    %1620 = vmatpush2.msra.mxu0 0.0
    %1621 = vmatprep.subr.mxu0 0.0
    %1622 = vmatpush2.msra.mxu0 0.0
    %1623 = vmatprep.subr.mxu0 0.0
    %1624 = vmatpush2.msra.mxu0 0.0
    %1625 = vmatprep.subr.mxu0 0.0
    %1626 = vmatpush2.msra.mxu0 0.0
    %1627 = vmatprep.subr.mxu0 0.0
    %1628 = vmatpush2.msra.mxu0 0.0
    %1629 = vmatprep.subr.mxu0 0.0
    %1630 = vmatpush2.msra.mxu0 0.0
    %1631 = vmatprep.mubr.f32.mxu0 0.0
    %1632 = vmatmul.mubr.f32.gmra.mxu0 %v1466
    %v1633 = vpop.f32.mrf.mxu0
    %v1634 = vadd.f32 %v805, %v1633
    %v1635 = vpop.f32.mrf.mxu0
    %1636 = vdwg.mxu0
    %1637 = vmatprep.subr.mxu0 %v790
    %1638 = vmatpush1.msra.mxu0 %v789
    %1639 = vmatprep.subr.mxu0 %v787
    %1640 = vmatpush1.msra.mxu0 %v786
    %1641 = vmatprep.subr.mxu0 %v784
    %1642 = vmatpush1.msra.mxu0 %v783
    %1643 = vmatprep.subr.mxu0 %v781
    %1644 = vmatpush1.msra.mxu0 %v780
    %1645 = vmatprep.subr.mxu0 %v778
    %1646 = vmatpush1.msra.mxu0 %v777
    %1647 = vmatprep.subr.mxu0 %v775
    %1648 = vmatpush1.msra.mxu0 %v774
    %1649 = vmatprep.subr.mxu0 %v772
    %1650 = vmatpush1.msra.mxu0 %v771
    %1651 = vmatprep.subr.mxu0 %v769
    %1652 = vmatpush1.msra.mxu0 %v768
    %1653 = vmatprep.subr.mxu0 %v766
    %1654 = vmatpush1.msra.mxu0 %v765
    %1655 = vmatprep.subr.mxu0 %v763
    %1656 = vmatpush1.msra.mxu0 %v762
    %1657 = vmatprep.subr.mxu0 %v760
    %1658 = vmatpush1.msra.mxu0 %v759
    %1659 = vmatprep.subr.mxu0 %v757
    %1660 = vmatpush1.msra.mxu0 %v756
    %1661 = vmatprep.subr.mxu0 %v754
    %1662 = vmatpush1.msra.mxu0 %v753
    %1663 = vmatprep.subr.mxu0 %v751
    %1664 = vmatpush1.msra.mxu0 %v750
    %1665 = vmatprep.subr.mxu0 %v748
    %1666 = vmatpush1.msra.mxu0 %v747
    %1667 = vmatprep.subr.mxu0 %v745
    %1668 = vmatpush1.msra.mxu0 %v744
    %1669 = vmatprep.subr.mxu0 0.0
    %1670 = vmatpush2.msra.mxu0 0.0
    %1671 = vmatprep.subr.mxu0 0.0
    %1672 = vmatpush2.msra.mxu0 0.0
    %1673 = vmatprep.subr.mxu0 0.0
    %1674 = vmatpush2.msra.mxu0 0.0
    %1675 = vmatprep.subr.mxu0 0.0
    %1676 = vmatpush2.msra.mxu0 0.0
    %1677 = vmatprep.subr.mxu0 0.0
    %1678 = vmatpush2.msra.mxu0 0.0
    %1679 = vmatprep.subr.mxu0 0.0
    %1680 = vmatpush2.msra.mxu0 0.0
    %1681 = vmatprep.subr.mxu0 0.0
    %1682 = vmatpush2.msra.mxu0 0.0
    %1683 = vmatprep.subr.mxu0 0.0
    %1684 = vmatpush2.msra.mxu0 0.0
    %1685 = vmatprep.subr.mxu0 0.0
    %1686 = vmatpush2.msra.mxu0 0.0
    %1687 = vmatprep.subr.mxu0 0.0
    %1688 = vmatpush2.msra.mxu0 0.0
    %1689 = vmatprep.subr.mxu0 0.0
    %1690 = vmatpush2.msra.mxu0 0.0
    %1691 = vmatprep.subr.mxu0 0.0
    %1692 = vmatpush2.msra.mxu0 0.0
    %1693 = vmatprep.subr.mxu0 0.0
    %1694 = vmatpush2.msra.mxu0 0.0
    %1695 = vmatprep.subr.mxu0 0.0
    %1696 = vmatpush2.msra.mxu0 0.0
    %1697 = vmatprep.subr.mxu0 0.0
    %1698 = vmatpush2.msra.mxu0 0.0
    %1699 = vmatprep.subr.mxu0 0.0
    %1700 = vmatpush2.msra.mxu0 0.0
    %1701 = vmatprep.mubr.f32.mxu0 0.0
    %1702 = vmatmul.mubr.f32.gmra.mxu0 %v1491
    %v1703 = vpop.f32.mrf.mxu0
    %v1704 = vadd.f32 %v814, %v1703
    %v1705 = vpop.f32.mrf.mxu0
    %v1706 = vadd.f32 %v818, %v1705
    %1707 = vdwg.mxu0
    %1708 = vmatprep.subr.mxu0 0.0
    %1709 = vmatpush1.msra.mxu0 %v791
    %1710 = vmatprep.subr.mxu0 0.0
    %1711 = vmatpush1.msra.mxu0 %v788
    %1712 = vmatprep.subr.mxu0 0.0
    %1713 = vmatpush1.msra.mxu0 %v785
    %1714 = vmatprep.subr.mxu0 0.0
    %1715 = vmatpush1.msra.mxu0 %v782
    %1716 = vmatprep.subr.mxu0 0.0
    %1717 = vmatpush1.msra.mxu0 %v779
    %1718 = vmatprep.subr.mxu0 0.0
    %1719 = vmatpush1.msra.mxu0 %v776
    %1720 = vmatprep.subr.mxu0 0.0
    %1721 = vmatpush1.msra.mxu0 %v773
    %1722 = vmatprep.subr.mxu0 0.0
    %1723 = vmatpush1.msra.mxu0 %v770
    %1724 = vmatprep.subr.mxu0 0.0
    %1725 = vmatpush1.msra.mxu0 %v767
    %1726 = vmatprep.subr.mxu0 0.0
    %1727 = vmatpush1.msra.mxu0 %v764
    %1728 = vmatprep.subr.mxu0 0.0
    %1729 = vmatpush1.msra.mxu0 %v761
    %1730 = vmatprep.subr.mxu0 0.0
    %1731 = vmatpush1.msra.mxu0 %v758
    %1732 = vmatprep.subr.mxu0 0.0
    %1733 = vmatpush1.msra.mxu0 %v755
    %1734 = vmatprep.subr.mxu0 0.0
    %1735 = vmatpush1.msra.mxu0 %v752
    %1736 = vmatprep.subr.mxu0 0.0
    %1737 = vmatpush1.msra.mxu0 %v749
    %1738 = vmatprep.subr.mxu0 0.0
    %1739 = vmatpush1.msra.mxu0 %v746
    %1740 = vmatprep.subr.mxu0 0.0
    %1741 = vmatpush2.msra.mxu0 0.0
    %1742 = vmatprep.subr.mxu0 0.0
    %1743 = vmatpush2.msra.mxu0 0.0
    %1744 = vmatprep.subr.mxu0 0.0
    %1745 = vmatpush2.msra.mxu0 0.0
    %1746 = vmatprep.subr.mxu0 0.0
    %1747 = vmatpush2.msra.mxu0 0.0
    %1748 = vmatprep.subr.mxu0 0.0
    %1749 = vmatpush2.msra.mxu0 0.0
    %1750 = vmatprep.subr.mxu0 0.0
    %1751 = vmatpush2.msra.mxu0 0.0
    %1752 = vmatprep.subr.mxu0 0.0
    %1753 = vmatpush2.msra.mxu0 0.0
    %1754 = vmatprep.subr.mxu0 0.0
    %1755 = vmatpush2.msra.mxu0 0.0
    %1756 = vmatprep.subr.mxu0 0.0
    %1757 = vmatpush2.msra.mxu0 0.0
    %1758 = vmatprep.subr.mxu0 0.0
    %1759 = vmatpush2.msra.mxu0 0.0
    %1760 = vmatprep.subr.mxu0 0.0
    %1761 = vmatpush2.msra.mxu0 0.0
    %1762 = vmatprep.subr.mxu0 0.0
    %1763 = vmatpush2.msra.mxu0 0.0
    %1764 = vmatprep.subr.mxu0 0.0
    %1765 = vmatpush2.msra.mxu0 0.0
    %1766 = vmatprep.subr.mxu0 0.0
    %1767 = vmatpush2.msra.mxu0 0.0
    %1768 = vmatprep.subr.mxu0 0.0
    %1769 = vmatpush2.msra.mxu0 0.0
    %1770 = vmatprep.subr.mxu0 0.0
    %1771 = vmatpush2.msra.mxu0 0.0
    %1772 = vmatprep.mubr.f32.mxu0 0.0
    %1773 = vmatmul.mubr.f32.gmra.mxu0 %v1491
    %v1774 = vpop.f32.mrf.mxu0
    %v1775 = vadd.f32 %v822, %v1774
    %v1776 = vpop.f32.mrf.mxu0
    %1777 = vdwg.mxu0
    %s1778 = scalar_lea.vmem [#allocation2], 48
    %v1779 = vld [vmem:[%s1778] sm:$0xff]
    %v1780 = vld [vmem:[%s1778 + $0x8] sm:$0xff]
    %v1781 = vld [vmem:[%s1778 + $0x10] sm:$0xff]
    %v1782 = vadd.f32 %v1779, %v1563
    %v1783 = vxor.u32 %v1782, 2147483648
    %v1784 = vmul.f32 %v1783, 1.442695
    %v1785 = vpow.pop %v1784
    %v1786 = vadd.f32 %v1785, 1.0
    %v1787 = vrcp.pop %v1786
    %v1788 = vmul.f32 1.0, %v1787
    %v1789 = vadd.f32 %v1780, %v1565
    %v1790 = vxor.u32 %v1789, 2147483648
    %v1791 = vmul.f32 %v1790, 1.442695
    %v1792 = vpow.pop %v1791
    %v1793 = vadd.f32 %v1792, 1.0
    %v1794 = vrcp.pop %v1793
    %v1795 = vmul.f32 1.0, %v1794
    %v1796 = vmul.f32 %v1788, %v1634
    %v1797 = vadd.f32 %v1781, %v1796
    %v1798 = vtanh.pop %v1797
    %v1799 = vsub.f32 1.0, %v1795
    %v1800 = vmul.f32 %v1799, %v1798
    %v1801 = vmul.f32 %v1795, %v1466
    %v1802 = vadd.f32 %v1800, %v1801
    %s1803 = scalar_lea.vmem [#allocation3], 120
    %v1804 = vld [vmem:[%s1803] sm:$0xff]
    %v1805 = vld [vmem:[%s1803 + $0x8] sm:$0xff]
    %v1806 = vld [vmem:[%s1803 + $0x10] sm:$0xff]
    %v1807 = vadd.f32 %v1804, %v1704
    %v1808 = vxor.u32 %v1807, 2147483648
    %v1809 = vmul.f32 %v1808, 1.442695
    %v1810 = vpow.pop %v1809
    %v1811 = vadd.f32 %v1810, 1.0
    %v1812 = vrcp.pop %v1811
    %v1813 = vmul.f32 1.0, %v1812
    %v1814 = vadd.f32 %v1805, %v1706
    %v1815 = vxor.u32 %v1814, 2147483648
    %v1816 = vmul.f32 %v1815, 1.442695
    %v1817 = vpow.pop %v1816
    %v1818 = vadd.f32 %v1817, 1.0
    %v1819 = vrcp.pop %v1818
    %v1820 = vmul.f32 1.0, %v1819
    %v1821 = vmul.f32 %v1813, %v1775
    %v1822 = vadd.f32 %v1806, %v1821
    %v1823 = vtanh.pop %v1822
    %v1824 = vsub.f32 1.0, %v1820
    %v1825 = vmul.f32 %v1824, %v1823
    %v1826 = vmul.f32 %v1820, %v1491
    %v1827 = vadd.f32 %v1825, %v1826
    %s1828 = scalar_lea.vmem [#allocation4], 16
    %1829 = vst [vmem:[%s1828] sm:$0xff] %v1802
    %s1830 = scalar_lea.vmem [#allocation5], 40
    %1831 = vst [vmem:[%s1830] sm:$0xff] %v1827
    %1832 = vmatprep.subr.mxu0 %v742
    %1833 = vmatpush1.msra.mxu0 %v741
    %1834 = vmatprep.subr.mxu0 %v739
    %1835 = vmatpush1.msra.mxu0 %v738
    %1836 = vmatprep.subr.mxu0 %v736
    %1837 = vmatpush1.msra.mxu0 %v735
    %1838 = vmatprep.subr.mxu0 %v733
    %1839 = vmatpush1.msra.mxu0 %v732
    %1840 = vmatprep.subr.mxu0 %v730
    %1841 = vmatpush1.msra.mxu0 %v729
    %1842 = vmatprep.subr.mxu0 %v727
    %1843 = vmatpush1.msra.mxu0 %v726
    %1844 = vmatprep.subr.mxu0 %v724
    %1845 = vmatpush1.msra.mxu0 %v723
    %1846 = vmatprep.subr.mxu0 %v721
    %1847 = vmatpush1.msra.mxu0 %v720
    %1848 = vmatprep.subr.mxu0 %v718
    %1849 = vmatpush1.msra.mxu0 %v717
    %1850 = vmatprep.subr.mxu0 %v715
    %1851 = vmatpush1.msra.mxu0 %v714
    %1852 = vmatprep.subr.mxu0 %v712
    %1853 = vmatpush1.msra.mxu0 %v711
    %1854 = vmatprep.subr.mxu0 %v709
    %1855 = vmatpush1.msra.mxu0 %v708
    %1856 = vmatprep.subr.mxu0 %v706
    %1857 = vmatpush1.msra.mxu0 %v705
    %1858 = vmatprep.subr.mxu0 %v703
    %1859 = vmatpush1.msra.mxu0 %v702
    %1860 = vmatprep.subr.mxu0 %v700
    %1861 = vmatpush1.msra.mxu0 %v699
    %1862 = vmatprep.subr.mxu0 %v697
    %1863 = vmatpush1.msra.mxu0 %v696
    %1864 = vmatprep.subr.mxu0 0.0
    %1865 = vmatpush2.msra.mxu0 0.0
    %1866 = vmatprep.subr.mxu0 0.0
    %1867 = vmatpush2.msra.mxu0 0.0
    %1868 = vmatprep.subr.mxu0 0.0
    %1869 = vmatpush2.msra.mxu0 0.0
    %1870 = vmatprep.subr.mxu0 0.0
    %1871 = vmatpush2.msra.mxu0 0.0
    %1872 = vmatprep.subr.mxu0 0.0
    %1873 = vmatpush2.msra.mxu0 0.0
    %1874 = vmatprep.subr.mxu0 0.0
    %1875 = vmatpush2.msra.mxu0 0.0
    %1876 = vmatprep.subr.mxu0 0.0
    %1877 = vmatpush2.msra.mxu0 0.0
    %1878 = vmatprep.subr.mxu0 0.0
    %1879 = vmatpush2.msra.mxu0 0.0
    %1880 = vmatprep.subr.mxu0 0.0
    %1881 = vmatpush2.msra.mxu0 0.0
    %1882 = vmatprep.subr.mxu0 0.0
    %1883 = vmatpush2.msra.mxu0 0.0
    %1884 = vmatprep.subr.mxu0 0.0
    %1885 = vmatpush2.msra.mxu0 0.0
    %1886 = vmatprep.subr.mxu0 0.0
    %1887 = vmatpush2.msra.mxu0 0.0
    %1888 = vmatprep.subr.mxu0 0.0
    %1889 = vmatpush2.msra.mxu0 0.0
    %1890 = vmatprep.subr.mxu0 0.0
    %1891 = vmatpush2.msra.mxu0 0.0
    %1892 = vmatprep.subr.mxu0 0.0
    %1893 = vmatpush2.msra.mxu0 0.0
    %1894 = vmatprep.subr.mxu0 0.0
    %1895 = vmatpush2.msra.mxu0 0.0
    %1896 = vmatprep.mubr.f32.mxu0 0.0
    %1897 = vmatmul.mubr.f32.gmra.mxu0 %v1802
    %v1898 = vpop.f32.mrf.mxu0
    %v1899 = vadd.f32 %v797, %v1898
    %v1900 = vpop.f32.mrf.mxu0
    %v1901 = vadd.f32 %v801, %v1900
    %1902 = vdwg.mxu0
    %1903 = vmatprep.subr.mxu0 0.0
    %1904 = vmatpush1.msra.mxu0 %v743
    %1905 = vmatprep.subr.mxu0 0.0
    %1906 = vmatpush1.msra.mxu0 %v740
    %1907 = vmatprep.subr.mxu0 0.0
    %1908 = vmatpush1.msra.mxu0 %v737
    %1909 = vmatprep.subr.mxu0 0.0
    %1910 = vmatpush1.msra.mxu0 %v734
    %1911 = vmatprep.subr.mxu0 0.0
    %1912 = vmatpush1.msra.mxu0 %v731
    %1913 = vmatprep.subr.mxu0 0.0
    %1914 = vmatpush1.msra.mxu0 %v728
    %1915 = vmatprep.subr.mxu0 0.0
    %1916 = vmatpush1.msra.mxu0 %v725
    %1917 = vmatprep.subr.mxu0 0.0
    %1918 = vmatpush1.msra.mxu0 %v722
    %1919 = vmatprep.subr.mxu0 0.0
    %1920 = vmatpush1.msra.mxu0 %v719
    %1921 = vmatprep.subr.mxu0 0.0
    %1922 = vmatpush1.msra.mxu0 %v716
    %1923 = vmatprep.subr.mxu0 0.0
    %1924 = vmatpush1.msra.mxu0 %v713
    %1925 = vmatprep.subr.mxu0 0.0
    %1926 = vmatpush1.msra.mxu0 %v710
    %1927 = vmatprep.subr.mxu0 0.0
    %1928 = vmatpush1.msra.mxu0 %v707
    %1929 = vmatprep.subr.mxu0 0.0
    %1930 = vmatpush1.msra.mxu0 %v704
    %1931 = vmatprep.subr.mxu0 0.0
    %1932 = vmatpush1.msra.mxu0 %v701
    %1933 = vmatprep.subr.mxu0 0.0
    %1934 = vmatpush1.msra.mxu0 %v698
    %1935 = vmatprep.subr.mxu0 0.0
    %1936 = vmatpush2.msra.mxu0 0.0
    %1937 = vmatprep.subr.mxu0 0.0
    %1938 = vmatpush2.msra.mxu0 0.0
    %1939 = vmatprep.subr.mxu0 0.0
    %1940 = vmatpush2.msra.mxu0 0.0
    %1941 = vmatprep.subr.mxu0 0.0
    %1942 = vmatpush2.msra.mxu0 0.0
    %1943 = vmatprep.subr.mxu0 0.0
    %1944 = vmatpush2.msra.mxu0 0.0
    %1945 = vmatprep.subr.mxu0 0.0
    %1946 = vmatpush2.msra.mxu0 0.0
    %1947 = vmatprep.subr.mxu0 0.0
    %1948 = vmatpush2.msra.mxu0 0.0
    %1949 = vmatprep.subr.mxu0 0.0
    %1950 = vmatpush2.msra.mxu0 0.0
    %1951 = vmatprep.subr.mxu0 0.0
    %1952 = vmatpush2.msra.mxu0 0.0
    %1953 = vmatprep.subr.mxu0 0.0
    %1954 = vmatpush2.msra.mxu0 0.0
    %1955 = vmatprep.subr.mxu0 0.0
    %1956 = vmatpush2.msra.mxu0 0.0
    %1957 = vmatprep.subr.mxu0 0.0
    %1958 = vmatpush2.msra.mxu0 0.0
    %1959 = vmatprep.subr.mxu0 0.0
    %1960 = vmatpush2.msra.mxu0 0.0
    %1961 = vmatprep.subr.mxu0 0.0
    %1962 = vmatpush2.msra.mxu0 0.0
    %1963 = vmatprep.subr.mxu0 0.0
    %1964 = vmatpush2.msra.mxu0 0.0
    %1965 = vmatprep.subr.mxu0 0.0
    %1966 = vmatpush2.msra.mxu0 0.0
    %1967 = vmatprep.mubr.f32.mxu0 0.0
    %1968 = vmatmul.mubr.f32.gmra.mxu0 %v1802
    %v1969 = vpop.f32.mrf.mxu0
    %v1970 = vadd.f32 %v805, %v1969
    %v1971 = vpop.f32.mrf.mxu0
    %1972 = vdwg.mxu0
    %1973 = vmatprep.subr.mxu0 %v790
    %1974 = vmatpush1.msra.mxu0 %v789
    %1975 = vmatprep.subr.mxu0 %v787
    %1976 = vmatpush1.msra.mxu0 %v786
    %1977 = vmatprep.subr.mxu0 %v784
    %1978 = vmatpush1.msra.mxu0 %v783
    %1979 = vmatprep.subr.mxu0 %v781
    %1980 = vmatpush1.msra.mxu0 %v780
    %1981 = vmatprep.subr.mxu0 %v778
    %1982 = vmatpush1.msra.mxu0 %v777
    %1983 = vmatprep.subr.mxu0 %v775
    %1984 = vmatpush1.msra.mxu0 %v774
    %1985 = vmatprep.subr.mxu0 %v772
    %1986 = vmatpush1.msra.mxu0 %v771
    %1987 = vmatprep.subr.mxu0 %v769
    %1988 = vmatpush1.msra.mxu0 %v768
    %1989 = vmatprep.subr.mxu0 %v766
    %1990 = vmatpush1.msra.mxu0 %v765
    %1991 = vmatprep.subr.mxu0 %v763
    %1992 = vmatpush1.msra.mxu0 %v762
    %1993 = vmatprep.subr.mxu0 %v760
    %1994 = vmatpush1.msra.mxu0 %v759
    %1995 = vmatprep.subr.mxu0 %v757
    %1996 = vmatpush1.msra.mxu0 %v756
    %1997 = vmatprep.subr.mxu0 %v754
    %1998 = vmatpush1.msra.mxu0 %v753
    %1999 = vmatprep.subr.mxu0 %v751
    %2000 = vmatpush1.msra.mxu0 %v750
    %2001 = vmatprep.subr.mxu0 %v748
    %2002 = vmatpush1.msra.mxu0 %v747
    %2003 = vmatprep.subr.mxu0 %v745
    %2004 = vmatpush1.msra.mxu0 %v744
    %2005 = vmatprep.subr.mxu0 0.0
    %2006 = vmatpush2.msra.mxu0 0.0
    %2007 = vmatprep.subr.mxu0 0.0
    %2008 = vmatpush2.msra.mxu0 0.0
    %2009 = vmatprep.subr.mxu0 0.0
    %2010 = vmatpush2.msra.mxu0 0.0
    %2011 = vmatprep.subr.mxu0 0.0
    %2012 = vmatpush2.msra.mxu0 0.0
    %2013 = vmatprep.subr.mxu0 0.0
    %2014 = vmatpush2.msra.mxu0 0.0
    %2015 = vmatprep.subr.mxu0 0.0
    %2016 = vmatpush2.msra.mxu0 0.0
    %2017 = vmatprep.subr.mxu0 0.0
    %2018 = vmatpush2.msra.mxu0 0.0
    %2019 = vmatprep.subr.mxu0 0.0
    %2020 = vmatpush2.msra.mxu0 0.0
    %2021 = vmatprep.subr.mxu0 0.0
    %2022 = vmatpush2.msra.mxu0 0.0
    %2023 = vmatprep.subr.mxu0 0.0
    %2024 = vmatpush2.msra.mxu0 0.0
    %2025 = vmatprep.subr.mxu0 0.0
    %2026 = vmatpush2.msra.mxu0 0.0
    %2027 = vmatprep.subr.mxu0 0.0
    %2028 = vmatpush2.msra.mxu0 0.0
    %2029 = vmatprep.subr.mxu0 0.0
    %2030 = vmatpush2.msra.mxu0 0.0
    %2031 = vmatprep.subr.mxu0 0.0
    %2032 = vmatpush2.msra.mxu0 0.0
    %2033 = vmatprep.subr.mxu0 0.0
    %2034 = vmatpush2.msra.mxu0 0.0
    %2035 = vmatprep.subr.mxu0 0.0
    %2036 = vmatpush2.msra.mxu0 0.0
    %2037 = vmatprep.mubr.f32.mxu0 0.0
    %2038 = vmatmul.mubr.f32.gmra.mxu0 %v1827
    %v2039 = vpop.f32.mrf.mxu0
    %v2040 = vadd.f32 %v814, %v2039
    %v2041 = vpop.f32.mrf.mxu0
    %v2042 = vadd.f32 %v818, %v2041
    %2043 = vdwg.mxu0
    %2044 = vmatprep.subr.mxu0 0.0
    %2045 = vmatpush1.msra.mxu0 %v791
    %2046 = vmatprep.subr.mxu0 0.0
    %2047 = vmatpush1.msra.mxu0 %v788
    %2048 = vmatprep.subr.mxu0 0.0
    %2049 = vmatpush1.msra.mxu0 %v785
    %2050 = vmatprep.subr.mxu0 0.0
    %2051 = vmatpush1.msra.mxu0 %v782
    %2052 = vmatprep.subr.mxu0 0.0
    %2053 = vmatpush1.msra.mxu0 %v779
    %2054 = vmatprep.subr.mxu0 0.0
    %2055 = vmatpush1.msra.mxu0 %v776
    %2056 = vmatprep.subr.mxu0 0.0
    %2057 = vmatpush1.msra.mxu0 %v773
    %2058 = vmatprep.subr.mxu0 0.0
    %2059 = vmatpush1.msra.mxu0 %v770
    %2060 = vmatprep.subr.mxu0 0.0
    %2061 = vmatpush1.msra.mxu0 %v767
    %2062 = vmatprep.subr.mxu0 0.0
    %2063 = vmatpush1.msra.mxu0 %v764
    %2064 = vmatprep.subr.mxu0 0.0
    %2065 = vmatpush1.msra.mxu0 %v761
    %2066 = vmatprep.subr.mxu0 0.0
    %2067 = vmatpush1.msra.mxu0 %v758
    %2068 = vmatprep.subr.mxu0 0.0
    %2069 = vmatpush1.msra.mxu0 %v755
    %2070 = vmatprep.subr.mxu0 0.0
    %2071 = vmatpush1.msra.mxu0 %v752
    %2072 = vmatprep.subr.mxu0 0.0
    %2073 = vmatpush1.msra.mxu0 %v749
    %2074 = vmatprep.subr.mxu0 0.0
    %2075 = vmatpush1.msra.mxu0 %v746
    %2076 = vmatprep.subr.mxu0 0.0
    %2077 = vmatpush2.msra.mxu0 0.0
    %2078 = vmatprep.subr.mxu0 0.0
    %2079 = vmatpush2.msra.mxu0 0.0
    %2080 = vmatprep.subr.mxu0 0.0
    %2081 = vmatpush2.msra.mxu0 0.0
    %2082 = vmatprep.subr.mxu0 0.0
    %2083 = vmatpush2.msra.mxu0 0.0
    %2084 = vmatprep.subr.mxu0 0.0
    %2085 = vmatpush2.msra.mxu0 0.0
    %2086 = vmatprep.subr.mxu0 0.0
    %2087 = vmatpush2.msra.mxu0 0.0
    %2088 = vmatprep.subr.mxu0 0.0
    %2089 = vmatpush2.msra.mxu0 0.0
    %2090 = vmatprep.subr.mxu0 0.0
    %2091 = vmatpush2.msra.mxu0 0.0
    %2092 = vmatprep.subr.mxu0 0.0
    %2093 = vmatpush2.msra.mxu0 0.0
    %2094 = vmatprep.subr.mxu0 0.0
    %2095 = vmatpush2.msra.mxu0 0.0
    %2096 = vmatprep.subr.mxu0 0.0
    %2097 = vmatpush2.msra.mxu0 0.0
    %2098 = vmatprep.subr.mxu0 0.0
    %2099 = vmatpush2.msra.mxu0 0.0
    %2100 = vmatprep.subr.mxu0 0.0
    %2101 = vmatpush2.msra.mxu0 0.0
    %2102 = vmatprep.subr.mxu0 0.0
    %2103 = vmatpush2.msra.mxu0 0.0
    %2104 = vmatprep.subr.mxu0 0.0
    %2105 = vmatpush2.msra.mxu0 0.0
    %2106 = vmatprep.subr.mxu0 0.0
    %2107 = vmatpush2.msra.mxu0 0.0
    %2108 = vmatprep.mubr.f32.mxu0 0.0
    %2109 = vmatmul.mubr.f32.gmra.mxu0 %v1827
    %v2110 = vpop.f32.mrf.mxu0
    %v2111 = vadd.f32 %v822, %v2110
    %v2112 = vpop.f32.mrf.mxu0
    %2113 = vdwg.mxu0
    %s2114 = scalar_lea.vmem [#allocation2], 72
    %v2115 = vld [vmem:[%s2114] sm:$0xff]
    %v2116 = vld [vmem:[%s2114 + $0x8] sm:$0xff]
    %v2117 = vld [vmem:[%s2114 + $0x10] sm:$0xff]
    %v2118 = vadd.f32 %v2115, %v1899
    %v2119 = vxor.u32 %v2118, 2147483648
    %v2120 = vmul.f32 %v2119, 1.442695
    %v2121 = vpow.pop %v2120
    %v2122 = vadd.f32 %v2121, 1.0
    %v2123 = vrcp.pop %v2122
    %v2124 = vmul.f32 1.0, %v2123
    %v2125 = vadd.f32 %v2116, %v1901
    %v2126 = vxor.u32 %v2125, 2147483648
    %v2127 = vmul.f32 %v2126, 1.442695
    %v2128 = vpow.pop %v2127
    %v2129 = vadd.f32 %v2128, 1.0
    %v2130 = vrcp.pop %v2129
    %v2131 = vmul.f32 1.0, %v2130
    %v2132 = vmul.f32 %v2124, %v1970
    %v2133 = vadd.f32 %v2117, %v2132
    %v2134 = vtanh.pop %v2133
    %v2135 = vsub.f32 1.0, %v2131
    %v2136 = vmul.f32 %v2135, %v2134
    %v2137 = vmul.f32 %v2131, %v1802
    %v2138 = vadd.f32 %v2136, %v2137
    %s2139 = scalar_lea.vmem [#allocation3], 96
    %v2140 = vld [vmem:[%s2139] sm:$0xff]
    %v2141 = vld [vmem:[%s2139 + $0x8] sm:$0xff]
    %v2142 = vld [vmem:[%s2139 + $0x10] sm:$0xff]
    %v2143 = vadd.f32 %v2140, %v2040
    %v2144 = vxor.u32 %v2143, 2147483648
    %v2145 = vmul.f32 %v2144, 1.442695
    %v2146 = vpow.pop %v2145
    %v2147 = vadd.f32 %v2146, 1.0
    %v2148 = vrcp.pop %v2147
    %v2149 = vmul.f32 1.0, %v2148
    %v2150 = vadd.f32 %v2141, %v2042
    %v2151 = vxor.u32 %v2150, 2147483648
    %v2152 = vmul.f32 %v2151, 1.442695
    %v2153 = vpow.pop %v2152
    %v2154 = vadd.f32 %v2153, 1.0
    %v2155 = vrcp.pop %v2154
    %v2156 = vmul.f32 1.0, %v2155
    %v2157 = vmul.f32 %v2149, %v2111
    %v2158 = vadd.f32 %v2142, %v2157
    %v2159 = vtanh.pop %v2158
    %v2160 = vsub.f32 1.0, %v2156
    %v2161 = vmul.f32 %v2160, %v2159
    %v2162 = vmul.f32 %v2156, %v1827
    %v2163 = vadd.f32 %v2161, %v2162
    %s2164 = scalar_lea.vmem [#allocation4], 24
    %2165 = vst [vmem:[%s2164] sm:$0xff] %v2138
    %s2166 = scalar_lea.vmem [#allocation5], 32
    %2167 = vst [vmem:[%s2166] sm:$0xff] %v2163
    %2168 = vmatprep.subr.mxu0 %v742
    %2169 = vmatpush1.msra.mxu0 %v741
    %2170 = vmatprep.subr.mxu0 %v739
    %2171 = vmatpush1.msra.mxu0 %v738
    %2172 = vmatprep.subr.mxu0 %v736
    %2173 = vmatpush1.msra.mxu0 %v735
    %2174 = vmatprep.subr.mxu0 %v733
    %2175 = vmatpush1.msra.mxu0 %v732
    %2176 = vmatprep.subr.mxu0 %v730
    %2177 = vmatpush1.msra.mxu0 %v729
    %2178 = vmatprep.subr.mxu0 %v727
    %2179 = vmatpush1.msra.mxu0 %v726
    %2180 = vmatprep.subr.mxu0 %v724
    %2181 = vmatpush1.msra.mxu0 %v723
    %2182 = vmatprep.subr.mxu0 %v721
    %2183 = vmatpush1.msra.mxu0 %v720
    %2184 = vmatprep.subr.mxu0 %v718
    %2185 = vmatpush1.msra.mxu0 %v717
    %2186 = vmatprep.subr.mxu0 %v715
    %2187 = vmatpush1.msra.mxu0 %v714
    %2188 = vmatprep.subr.mxu0 %v712
    %2189 = vmatpush1.msra.mxu0 %v711
    %2190 = vmatprep.subr.mxu0 %v709
    %2191 = vmatpush1.msra.mxu0 %v708
    %2192 = vmatprep.subr.mxu0 %v706
    %2193 = vmatpush1.msra.mxu0 %v705
    %2194 = vmatprep.subr.mxu0 %v703
    %2195 = vmatpush1.msra.mxu0 %v702
    %2196 = vmatprep.subr.mxu0 %v700
    %2197 = vmatpush1.msra.mxu0 %v699
    %2198 = vmatprep.subr.mxu0 %v697
    %2199 = vmatpush1.msra.mxu0 %v696
    %2200 = vmatprep.subr.mxu0 0.0
    %2201 = vmatpush2.msra.mxu0 0.0
    %2202 = vmatprep.subr.mxu0 0.0
    %2203 = vmatpush2.msra.mxu0 0.0
    %2204 = vmatprep.subr.mxu0 0.0
    %2205 = vmatpush2.msra.mxu0 0.0
    %2206 = vmatprep.subr.mxu0 0.0
    %2207 = vmatpush2.msra.mxu0 0.0
    %2208 = vmatprep.subr.mxu0 0.0
    %2209 = vmatpush2.msra.mxu0 0.0
    %2210 = vmatprep.subr.mxu0 0.0
    %2211 = vmatpush2.msra.mxu0 0.0
    %2212 = vmatprep.subr.mxu0 0.0
    %2213 = vmatpush2.msra.mxu0 0.0
    %2214 = vmatprep.subr.mxu0 0.0
    %2215 = vmatpush2.msra.mxu0 0.0
    %2216 = vmatprep.subr.mxu0 0.0
    %2217 = vmatpush2.msra.mxu0 0.0
    %2218 = vmatprep.subr.mxu0 0.0
    %2219 = vmatpush2.msra.mxu0 0.0
    %2220 = vmatprep.subr.mxu0 0.0
    %2221 = vmatpush2.msra.mxu0 0.0
    %2222 = vmatprep.subr.mxu0 0.0
    %2223 = vmatpush2.msra.mxu0 0.0
    %2224 = vmatprep.subr.mxu0 0.0
    %2225 = vmatpush2.msra.mxu0 0.0
    %2226 = vmatprep.subr.mxu0 0.0
    %2227 = vmatpush2.msra.mxu0 0.0
    %2228 = vmatprep.subr.mxu0 0.0
    %2229 = vmatpush2.msra.mxu0 0.0
    %2230 = vmatprep.subr.mxu0 0.0
    %2231 = vmatpush2.msra.mxu0 0.0
    %2232 = vmatprep.mubr.f32.mxu0 0.0
    %2233 = vmatmul.mubr.f32.gmra.mxu0 %v2138
    %v2234 = vpop.f32.mrf.mxu0
    %v2235 = vadd.f32 %v797, %v2234
    %v2236 = vpop.f32.mrf.mxu0
    %v2237 = vadd.f32 %v801, %v2236
    %2238 = vdwg.mxu0
    %2239 = vmatprep.subr.mxu0 0.0
    %2240 = vmatpush1.msra.mxu0 %v743
    %2241 = vmatprep.subr.mxu0 0.0
    %2242 = vmatpush1.msra.mxu0 %v740
    %2243 = vmatprep.subr.mxu0 0.0
    %2244 = vmatpush1.msra.mxu0 %v737
    %2245 = vmatprep.subr.mxu0 0.0
    %2246 = vmatpush1.msra.mxu0 %v734
    %2247 = vmatprep.subr.mxu0 0.0
    %2248 = vmatpush1.msra.mxu0 %v731
    %2249 = vmatprep.subr.mxu0 0.0
    %2250 = vmatpush1.msra.mxu0 %v728
    %2251 = vmatprep.subr.mxu0 0.0
    %2252 = vmatpush1.msra.mxu0 %v725
    %2253 = vmatprep.subr.mxu0 0.0
    %2254 = vmatpush1.msra.mxu0 %v722
    %2255 = vmatprep.subr.mxu0 0.0
    %2256 = vmatpush1.msra.mxu0 %v719
    %2257 = vmatprep.subr.mxu0 0.0
    %2258 = vmatpush1.msra.mxu0 %v716
    %2259 = vmatprep.subr.mxu0 0.0
    %2260 = vmatpush1.msra.mxu0 %v713
    %2261 = vmatprep.subr.mxu0 0.0
    %2262 = vmatpush1.msra.mxu0 %v710
    %2263 = vmatprep.subr.mxu0 0.0
    %2264 = vmatpush1.msra.mxu0 %v707
    %2265 = vmatprep.subr.mxu0 0.0
    %2266 = vmatpush1.msra.mxu0 %v704
    %2267 = vmatprep.subr.mxu0 0.0
    %2268 = vmatpush1.msra.mxu0 %v701
    %2269 = vmatprep.subr.mxu0 0.0
    %2270 = vmatpush1.msra.mxu0 %v698
    %2271 = vmatprep.subr.mxu0 0.0
    %2272 = vmatpush2.msra.mxu0 0.0
    %2273 = vmatprep.subr.mxu0 0.0
    %2274 = vmatpush2.msra.mxu0 0.0
    %2275 = vmatprep.subr.mxu0 0.0
    %2276 = vmatpush2.msra.mxu0 0.0
    %2277 = vmatprep.subr.mxu0 0.0
    %2278 = vmatpush2.msra.mxu0 0.0
    %2279 = vmatprep.subr.mxu0 0.0
    %2280 = vmatpush2.msra.mxu0 0.0
    %2281 = vmatprep.subr.mxu0 0.0
    %2282 = vmatpush2.msra.mxu0 0.0
    %2283 = vmatprep.subr.mxu0 0.0
    %2284 = vmatpush2.msra.mxu0 0.0
    %2285 = vmatprep.subr.mxu0 0.0
    %2286 = vmatpush2.msra.mxu0 0.0
    %2287 = vmatprep.subr.mxu0 0.0
    %2288 = vmatpush2.msra.mxu0 0.0
    %2289 = vmatprep.subr.mxu0 0.0
    %2290 = vmatpush2.msra.mxu0 0.0
    %2291 = vmatprep.subr.mxu0 0.0
    %2292 = vmatpush2.msra.mxu0 0.0
    %2293 = vmatprep.subr.mxu0 0.0
    %2294 = vmatpush2.msra.mxu0 0.0
    %2295 = vmatprep.subr.mxu0 0.0
    %2296 = vmatpush2.msra.mxu0 0.0
    %2297 = vmatprep.subr.mxu0 0.0
    %2298 = vmatpush2.msra.mxu0 0.0
    %2299 = vmatprep.subr.mxu0 0.0
    %2300 = vmatpush2.msra.mxu0 0.0
    %2301 = vmatprep.subr.mxu0 0.0
    %2302 = vmatpush2.msra.mxu0 0.0
    %2303 = vmatprep.mubr.f32.mxu0 0.0
    %2304 = vmatmul.mubr.f32.gmra.mxu0 %v2138
    %v2305 = vpop.f32.mrf.mxu0
    %v2306 = vadd.f32 %v805, %v2305
    %v2307 = vpop.f32.mrf.mxu0
    %2308 = vdwg.mxu0
    %2309 = vmatprep.subr.mxu0 %v790
    %2310 = vmatpush1.msra.mxu0 %v789
    %2311 = vmatprep.subr.mxu0 %v787
    %2312 = vmatpush1.msra.mxu0 %v786
    %2313 = vmatprep.subr.mxu0 %v784
    %2314 = vmatpush1.msra.mxu0 %v783
    %2315 = vmatprep.subr.mxu0 %v781
    %2316 = vmatpush1.msra.mxu0 %v780
    %2317 = vmatprep.subr.mxu0 %v778
    %2318 = vmatpush1.msra.mxu0 %v777
    %2319 = vmatprep.subr.mxu0 %v775
    %2320 = vmatpush1.msra.mxu0 %v774
    %2321 = vmatprep.subr.mxu0 %v772
    %2322 = vmatpush1.msra.mxu0 %v771
    %2323 = vmatprep.subr.mxu0 %v769
    %2324 = vmatpush1.msra.mxu0 %v768
    %2325 = vmatprep.subr.mxu0 %v766
    %2326 = vmatpush1.msra.mxu0 %v765
    %2327 = vmatprep.subr.mxu0 %v763
    %2328 = vmatpush1.msra.mxu0 %v762
    %2329 = vmatprep.subr.mxu0 %v760
    %2330 = vmatpush1.msra.mxu0 %v759
    %2331 = vmatprep.subr.mxu0 %v757
    %2332 = vmatpush1.msra.mxu0 %v756
    %2333 = vmatprep.subr.mxu0 %v754
    %2334 = vmatpush1.msra.mxu0 %v753
    %2335 = vmatprep.subr.mxu0 %v751
    %2336 = vmatpush1.msra.mxu0 %v750
    %2337 = vmatprep.subr.mxu0 %v748
    %2338 = vmatpush1.msra.mxu0 %v747
    %2339 = vmatprep.subr.mxu0 %v745
    %2340 = vmatpush1.msra.mxu0 %v744
    %2341 = vmatprep.subr.mxu0 0.0
    %2342 = vmatpush2.msra.mxu0 0.0
    %2343 = vmatprep.subr.mxu0 0.0
    %2344 = vmatpush2.msra.mxu0 0.0
    %2345 = vmatprep.subr.mxu0 0.0
    %2346 = vmatpush2.msra.mxu0 0.0
    %2347 = vmatprep.subr.mxu0 0.0
    %2348 = vmatpush2.msra.mxu0 0.0
    %2349 = vmatprep.subr.mxu0 0.0
    %2350 = vmatpush2.msra.mxu0 0.0
    %2351 = vmatprep.subr.mxu0 0.0
    %2352 = vmatpush2.msra.mxu0 0.0
    %2353 = vmatprep.subr.mxu0 0.0
    %2354 = vmatpush2.msra.mxu0 0.0
    %2355 = vmatprep.subr.mxu0 0.0
    %2356 = vmatpush2.msra.mxu0 0.0
    %2357 = vmatprep.subr.mxu0 0.0
    %2358 = vmatpush2.msra.mxu0 0.0
    %2359 = vmatprep.subr.mxu0 0.0
    %2360 = vmatpush2.msra.mxu0 0.0
    %2361 = vmatprep.subr.mxu0 0.0
    %2362 = vmatpush2.msra.mxu0 0.0
    %2363 = vmatprep.subr.mxu0 0.0
    %2364 = vmatpush2.msra.mxu0 0.0
    %2365 = vmatprep.subr.mxu0 0.0
    %2366 = vmatpush2.msra.mxu0 0.0
    %2367 = vmatprep.subr.mxu0 0.0
    %2368 = vmatpush2.msra.mxu0 0.0
    %2369 = vmatprep.subr.mxu0 0.0
    %2370 = vmatpush2.msra.mxu0 0.0
    %2371 = vmatprep.subr.mxu0 0.0
    %2372 = vmatpush2.msra.mxu0 0.0
    %2373 = vmatprep.mubr.f32.mxu0 0.0
    %2374 = vmatmul.mubr.f32.gmra.mxu0 %v2163
    %v2375 = vpop.f32.mrf.mxu0
    %v2376 = vadd.f32 %v814, %v2375
    %v2377 = vpop.f32.mrf.mxu0
    %v2378 = vadd.f32 %v818, %v2377
    %2379 = vdwg.mxu0
    %2380 = vmatprep.subr.mxu0 0.0
    %2381 = vmatpush1.msra.mxu0 %v791
    %2382 = vmatprep.subr.mxu0 0.0
    %2383 = vmatpush1.msra.mxu0 %v788
    %2384 = vmatprep.subr.mxu0 0.0
    %2385 = vmatpush1.msra.mxu0 %v785
    %2386 = vmatprep.subr.mxu0 0.0
    %2387 = vmatpush1.msra.mxu0 %v782
    %2388 = vmatprep.subr.mxu0 0.0
    %2389 = vmatpush1.msra.mxu0 %v779
    %2390 = vmatprep.subr.mxu0 0.0
    %2391 = vmatpush1.msra.mxu0 %v776
    %2392 = vmatprep.subr.mxu0 0.0
    %2393 = vmatpush1.msra.mxu0 %v773
    %2394 = vmatprep.subr.mxu0 0.0
    %2395 = vmatpush1.msra.mxu0 %v770
    %2396 = vmatprep.subr.mxu0 0.0
    %2397 = vmatpush1.msra.mxu0 %v767
    %2398 = vmatprep.subr.mxu0 0.0
    %2399 = vmatpush1.msra.mxu0 %v764
    %2400 = vmatprep.subr.mxu0 0.0
    %2401 = vmatpush1.msra.mxu0 %v761
    %2402 = vmatprep.subr.mxu0 0.0
    %2403 = vmatpush1.msra.mxu0 %v758
    %2404 = vmatprep.subr.mxu0 0.0
    %2405 = vmatpush1.msra.mxu0 %v755
    %2406 = vmatprep.subr.mxu0 0.0
    %2407 = vmatpush1.msra.mxu0 %v752
    %2408 = vmatprep.subr.mxu0 0.0
    %2409 = vmatpush1.msra.mxu0 %v749
    %2410 = vmatprep.subr.mxu0 0.0
    %2411 = vmatpush1.msra.mxu0 %v746
    %2412 = vmatprep.subr.mxu0 0.0
    %2413 = vmatpush2.msra.mxu0 0.0
    %2414 = vmatprep.subr.mxu0 0.0
    %2415 = vmatpush2.msra.mxu0 0.0
    %2416 = vmatprep.subr.mxu0 0.0
    %2417 = vmatpush2.msra.mxu0 0.0
    %2418 = vmatprep.subr.mxu0 0.0
    %2419 = vmatpush2.msra.mxu0 0.0
    %2420 = vmatprep.subr.mxu0 0.0
    %2421 = vmatpush2.msra.mxu0 0.0
    %2422 = vmatprep.subr.mxu0 0.0
    %2423 = vmatpush2.msra.mxu0 0.0
    %2424 = vmatprep.subr.mxu0 0.0
    %2425 = vmatpush2.msra.mxu0 0.0
    %2426 = vmatprep.subr.mxu0 0.0
    %2427 = vmatpush2.msra.mxu0 0.0
    %2428 = vmatprep.subr.mxu0 0.0
    %2429 = vmatpush2.msra.mxu0 0.0
    %2430 = vmatprep.subr.mxu0 0.0
    %2431 = vmatpush2.msra.mxu0 0.0
    %2432 = vmatprep.subr.mxu0 0.0
    %2433 = vmatpush2.msra.mxu0 0.0
    %2434 = vmatprep.subr.mxu0 0.0
    %2435 = vmatpush2.msra.mxu0 0.0
    %2436 = vmatprep.subr.mxu0 0.0
    %2437 = vmatpush2.msra.mxu0 0.0
    %2438 = vmatprep.subr.mxu0 0.0
    %2439 = vmatpush2.msra.mxu0 0.0
    %2440 = vmatprep.subr.mxu0 0.0
    %2441 = vmatpush2.msra.mxu0 0.0
    %2442 = vmatprep.subr.mxu0 0.0
    %2443 = vmatpush2.msra.mxu0 0.0
    %2444 = vmatprep.mubr.f32.mxu0 0.0
    %2445 = vmatmul.mubr.f32.gmra.mxu0 %v2163
    %v2446 = vpop.f32.mrf.mxu0
    %v2447 = vadd.f32 %v822, %v2446
    %v2448 = vpop.f32.mrf.mxu0
    %2449 = vdwg.mxu0
    %s2450 = scalar_lea.vmem [#allocation2], 96
    %v2451 = vld [vmem:[%s2450] sm:$0xff]
    %v2452 = vld [vmem:[%s2450 + $0x8] sm:$0xff]
    %v2453 = vld [vmem:[%s2450 + $0x10] sm:$0xff]
    %v2454 = vadd.f32 %v2451, %v2235
    %v2455 = vxor.u32 %v2454, 2147483648
    %v2456 = vmul.f32 %v2455, 1.442695
    %v2457 = vpow.pop %v2456
    %v2458 = vadd.f32 %v2457, 1.0
    %v2459 = vrcp.pop %v2458
    %v2460 = vmul.f32 1.0, %v2459
    %v2461 = vadd.f32 %v2452, %v2237
    %v2462 = vxor.u32 %v2461, 2147483648
    %v2463 = vmul.f32 %v2462, 1.442695
    %v2464 = vpow.pop %v2463
    %v2465 = vadd.f32 %v2464, 1.0
    %v2466 = vrcp.pop %v2465
    %v2467 = vmul.f32 1.0, %v2466
    %v2468 = vmul.f32 %v2460, %v2306
    %v2469 = vadd.f32 %v2453, %v2468
    %v2470 = vtanh.pop %v2469
    %v2471 = vsub.f32 1.0, %v2467
    %v2472 = vmul.f32 %v2471, %v2470
    %v2473 = vmul.f32 %v2467, %v2138
    %v2474 = vadd.f32 %v2472, %v2473
    %s2475 = scalar_lea.vmem [#allocation3], 72
    %v2476 = vld [vmem:[%s2475] sm:$0xff]
    %v2477 = vld [vmem:[%s2475 + $0x8] sm:$0xff]
    %v2478 = vld [vmem:[%s2475 + $0x10] sm:$0xff]
    %v2479 = vadd.f32 %v2476, %v2376
    %v2480 = vxor.u32 %v2479, 2147483648
    %v2481 = vmul.f32 %v2480, 1.442695
    %v2482 = vpow.pop %v2481
    %v2483 = vadd.f32 %v2482, 1.0
    %v2484 = vrcp.pop %v2483
    %v2485 = vmul.f32 1.0, %v2484
    %v2486 = vadd.f32 %v2477, %v2378
    %v2487 = vxor.u32 %v2486, 2147483648
    %v2488 = vmul.f32 %v2487, 1.442695
    %v2489 = vpow.pop %v2488
    %v2490 = vadd.f32 %v2489, 1.0
    %v2491 = vrcp.pop %v2490
    %v2492 = vmul.f32 1.0, %v2491
    %v2493 = vmul.f32 %v2485, %v2447
    %v2494 = vadd.f32 %v2478, %v2493
    %v2495 = vtanh.pop %v2494
    %v2496 = vsub.f32 1.0, %v2492
    %v2497 = vmul.f32 %v2496, %v2495
    %v2498 = vmul.f32 %v2492, %v2163
    %v2499 = vadd.f32 %v2497, %v2498
    %s2500 = scalar_lea.vmem [#allocation4], 32
    %2501 = vst [vmem:[%s2500] sm:$0xff] %v2474
    %s2502 = scalar_lea.vmem [#allocation5], 24
    %2503 = vst [vmem:[%s2502] sm:$0xff] %v2499
    %2504 = vmatprep.subr.mxu0 %v742
    %2505 = vmatpush1.msra.mxu0 %v741
    %2506 = vmatprep.subr.mxu0 %v739
    %2507 = vmatpush1.msra.mxu0 %v738
    %2508 = vmatprep.subr.mxu0 %v736
    %2509 = vmatpush1.msra.mxu0 %v735
    %2510 = vmatprep.subr.mxu0 %v733
    %2511 = vmatpush1.msra.mxu0 %v732
    %2512 = vmatprep.subr.mxu0 %v730
    %2513 = vmatpush1.msra.mxu0 %v729
    %2514 = vmatprep.subr.mxu0 %v727
    %2515 = vmatpush1.msra.mxu0 %v726
    %2516 = vmatprep.subr.mxu0 %v724
    %2517 = vmatpush1.msra.mxu0 %v723
    %2518 = vmatprep.subr.mxu0 %v721
    %2519 = vmatpush1.msra.mxu0 %v720
    %2520 = vmatprep.subr.mxu0 %v718
    %2521 = vmatpush1.msra.mxu0 %v717
    %2522 = vmatprep.subr.mxu0 %v715
    %2523 = vmatpush1.msra.mxu0 %v714
    %2524 = vmatprep.subr.mxu0 %v712
    %2525 = vmatpush1.msra.mxu0 %v711
    %2526 = vmatprep.subr.mxu0 %v709
    %2527 = vmatpush1.msra.mxu0 %v708
    %2528 = vmatprep.subr.mxu0 %v706
    %2529 = vmatpush1.msra.mxu0 %v705
    %2530 = vmatprep.subr.mxu0 %v703
    %2531 = vmatpush1.msra.mxu0 %v702
    %2532 = vmatprep.subr.mxu0 %v700
    %2533 = vmatpush1.msra.mxu0 %v699
    %2534 = vmatprep.subr.mxu0 %v697
    %2535 = vmatpush1.msra.mxu0 %v696
    %2536 = vmatprep.subr.mxu0 0.0
    %2537 = vmatpush2.msra.mxu0 0.0
    %2538 = vmatprep.subr.mxu0 0.0
    %2539 = vmatpush2.msra.mxu0 0.0
    %2540 = vmatprep.subr.mxu0 0.0
    %2541 = vmatpush2.msra.mxu0 0.0
    %2542 = vmatprep.subr.mxu0 0.0
    %2543 = vmatpush2.msra.mxu0 0.0
    %2544 = vmatprep.subr.mxu0 0.0
    %2545 = vmatpush2.msra.mxu0 0.0
    %2546 = vmatprep.subr.mxu0 0.0
    %2547 = vmatpush2.msra.mxu0 0.0
    %2548 = vmatprep.subr.mxu0 0.0
    %2549 = vmatpush2.msra.mxu0 0.0
    %2550 = vmatprep.subr.mxu0 0.0
    %2551 = vmatpush2.msra.mxu0 0.0
    %2552 = vmatprep.subr.mxu0 0.0
    %2553 = vmatpush2.msra.mxu0 0.0
    %2554 = vmatprep.subr.mxu0 0.0
    %2555 = vmatpush2.msra.mxu0 0.0
    %2556 = vmatprep.subr.mxu0 0.0
    %2557 = vmatpush2.msra.mxu0 0.0
    %2558 = vmatprep.subr.mxu0 0.0
    %2559 = vmatpush2.msra.mxu0 0.0
    %2560 = vmatprep.subr.mxu0 0.0
    %2561 = vmatpush2.msra.mxu0 0.0
    %2562 = vmatprep.subr.mxu0 0.0
    %2563 = vmatpush2.msra.mxu0 0.0
    %2564 = vmatprep.subr.mxu0 0.0
    %2565 = vmatpush2.msra.mxu0 0.0
    %2566 = vmatprep.subr.mxu0 0.0
    %2567 = vmatpush2.msra.mxu0 0.0
    %2568 = vmatprep.mubr.f32.mxu0 0.0
    %2569 = vmatmul.mubr.f32.gmra.mxu0 %v2474
    %v2570 = vpop.f32.mrf.mxu0
    %v2571 = vadd.f32 %v797, %v2570
    %v2572 = vpop.f32.mrf.mxu0
    %v2573 = vadd.f32 %v801, %v2572
    %2574 = vdwg.mxu0
    %2575 = vmatprep.subr.mxu0 0.0
    %2576 = vmatpush1.msra.mxu0 %v743
    %2577 = vmatprep.subr.mxu0 0.0
    %2578 = vmatpush1.msra.mxu0 %v740
    %2579 = vmatprep.subr.mxu0 0.0
    %2580 = vmatpush1.msra.mxu0 %v737
    %2581 = vmatprep.subr.mxu0 0.0
    %2582 = vmatpush1.msra.mxu0 %v734
    %2583 = vmatprep.subr.mxu0 0.0
    %2584 = vmatpush1.msra.mxu0 %v731
    %2585 = vmatprep.subr.mxu0 0.0
    %2586 = vmatpush1.msra.mxu0 %v728
    %2587 = vmatprep.subr.mxu0 0.0
    %2588 = vmatpush1.msra.mxu0 %v725
    %2589 = vmatprep.subr.mxu0 0.0
    %2590 = vmatpush1.msra.mxu0 %v722
    %2591 = vmatprep.subr.mxu0 0.0
    %2592 = vmatpush1.msra.mxu0 %v719
    %2593 = vmatprep.subr.mxu0 0.0
    %2594 = vmatpush1.msra.mxu0 %v716
    %2595 = vmatprep.subr.mxu0 0.0
    %2596 = vmatpush1.msra.mxu0 %v713
    %2597 = vmatprep.subr.mxu0 0.0
    %2598 = vmatpush1.msra.mxu0 %v710
    %2599 = vmatprep.subr.mxu0 0.0
    %2600 = vmatpush1.msra.mxu0 %v707
    %2601 = vmatprep.subr.mxu0 0.0
    %2602 = vmatpush1.msra.mxu0 %v704
    %2603 = vmatprep.subr.mxu0 0.0
    %2604 = vmatpush1.msra.mxu0 %v701
    %2605 = vmatprep.subr.mxu0 0.0
    %2606 = vmatpush1.msra.mxu0 %v698
    %2607 = vmatprep.subr.mxu0 0.0
    %2608 = vmatpush2.msra.mxu0 0.0
    %2609 = vmatprep.subr.mxu0 0.0
    %2610 = vmatpush2.msra.mxu0 0.0
    %2611 = vmatprep.subr.mxu0 0.0
    %2612 = vmatpush2.msra.mxu0 0.0
    %2613 = vmatprep.subr.mxu0 0.0
    %2614 = vmatpush2.msra.mxu0 0.0
    %2615 = vmatprep.subr.mxu0 0.0
    %2616 = vmatpush2.msra.mxu0 0.0
    %2617 = vmatprep.subr.mxu0 0.0
    %2618 = vmatpush2.msra.mxu0 0.0
    %2619 = vmatprep.subr.mxu0 0.0
    %2620 = vmatpush2.msra.mxu0 0.0
    %2621 = vmatprep.subr.mxu0 0.0
    %2622 = vmatpush2.msra.mxu0 0.0
    %2623 = vmatprep.subr.mxu0 0.0
    %2624 = vmatpush2.msra.mxu0 0.0
    %2625 = vmatprep.subr.mxu0 0.0
    %2626 = vmatpush2.msra.mxu0 0.0
    %2627 = vmatprep.subr.mxu0 0.0
    %2628 = vmatpush2.msra.mxu0 0.0
    %2629 = vmatprep.subr.mxu0 0.0
    %2630 = vmatpush2.msra.mxu0 0.0
    %2631 = vmatprep.subr.mxu0 0.0
    %2632 = vmatpush2.msra.mxu0 0.0
    %2633 = vmatprep.subr.mxu0 0.0
    %2634 = vmatpush2.msra.mxu0 0.0
    %2635 = vmatprep.subr.mxu0 0.0
    %2636 = vmatpush2.msra.mxu0 0.0
    %2637 = vmatprep.subr.mxu0 0.0
    %2638 = vmatpush2.msra.mxu0 0.0
    %2639 = vmatprep.mubr.f32.mxu0 0.0
    %2640 = vmatmul.mubr.f32.gmra.mxu0 %v2474
    %v2641 = vpop.f32.mrf.mxu0
    %v2642 = vadd.f32 %v805, %v2641
    %v2643 = vpop.f32.mrf.mxu0
    %2644 = vdwg.mxu0
    %2645 = vmatprep.subr.mxu0 %v790
    %2646 = vmatpush1.msra.mxu0 %v789
    %2647 = vmatprep.subr.mxu0 %v787
    %2648 = vmatpush1.msra.mxu0 %v786
    %2649 = vmatprep.subr.mxu0 %v784
    %2650 = vmatpush1.msra.mxu0 %v783
    %2651 = vmatprep.subr.mxu0 %v781
    %2652 = vmatpush1.msra.mxu0 %v780
    %2653 = vmatprep.subr.mxu0 %v778
    %2654 = vmatpush1.msra.mxu0 %v777
    %2655 = vmatprep.subr.mxu0 %v775
    %2656 = vmatpush1.msra.mxu0 %v774
    %2657 = vmatprep.subr.mxu0 %v772
    %2658 = vmatpush1.msra.mxu0 %v771
    %2659 = vmatprep.subr.mxu0 %v769
    %2660 = vmatpush1.msra.mxu0 %v768
    %2661 = vmatprep.subr.mxu0 %v766
    %2662 = vmatpush1.msra.mxu0 %v765
    %2663 = vmatprep.subr.mxu0 %v763
    %2664 = vmatpush1.msra.mxu0 %v762
    %2665 = vmatprep.subr.mxu0 %v760
    %2666 = vmatpush1.msra.mxu0 %v759
    %2667 = vmatprep.subr.mxu0 %v757
    %2668 = vmatpush1.msra.mxu0 %v756
    %2669 = vmatprep.subr.mxu0 %v754
    %2670 = vmatpush1.msra.mxu0 %v753
    %2671 = vmatprep.subr.mxu0 %v751
    %2672 = vmatpush1.msra.mxu0 %v750
    %2673 = vmatprep.subr.mxu0 %v748
    %2674 = vmatpush1.msra.mxu0 %v747
    %2675 = vmatprep.subr.mxu0 %v745
    %2676 = vmatpush1.msra.mxu0 %v744
    %2677 = vmatprep.subr.mxu0 0.0
    %2678 = vmatpush2.msra.mxu0 0.0
    %2679 = vmatprep.subr.mxu0 0.0
    %2680 = vmatpush2.msra.mxu0 0.0
    %2681 = vmatprep.subr.mxu0 0.0
    %2682 = vmatpush2.msra.mxu0 0.0
    %2683 = vmatprep.subr.mxu0 0.0
    %2684 = vmatpush2.msra.mxu0 0.0
    %2685 = vmatprep.subr.mxu0 0.0
    %2686 = vmatpush2.msra.mxu0 0.0
    %2687 = vmatprep.subr.mxu0 0.0
    %2688 = vmatpush2.msra.mxu0 0.0
    %2689 = vmatprep.subr.mxu0 0.0
    %2690 = vmatpush2.msra.mxu0 0.0
    %2691 = vmatprep.subr.mxu0 0.0
    %2692 = vmatpush2.msra.mxu0 0.0
    %2693 = vmatprep.subr.mxu0 0.0
    %2694 = vmatpush2.msra.mxu0 0.0
    %2695 = vmatprep.subr.mxu0 0.0
    %2696 = vmatpush2.msra.mxu0 0.0
    %2697 = vmatprep.subr.mxu0 0.0
    %2698 = vmatpush2.msra.mxu0 0.0
    %2699 = vmatprep.subr.mxu0 0.0
    %2700 = vmatpush2.msra.mxu0 0.0
    %2701 = vmatprep.subr.mxu0 0.0
    %2702 = vmatpush2.msra.mxu0 0.0
    %2703 = vmatprep.subr.mxu0 0.0
    %2704 = vmatpush2.msra.mxu0 0.0
    %2705 = vmatprep.subr.mxu0 0.0
    %2706 = vmatpush2.msra.mxu0 0.0
    %2707 = vmatprep.subr.mxu0 0.0
    %2708 = vmatpush2.msra.mxu0 0.0
    %2709 = vmatprep.mubr.f32.mxu0 0.0
    %2710 = vmatmul.mubr.f32.gmra.mxu0 %v2499
    %v2711 = vpop.f32.mrf.mxu0
    %v2712 = vadd.f32 %v814, %v2711
    %v2713 = vpop.f32.mrf.mxu0
    %v2714 = vadd.f32 %v818, %v2713
    %2715 = vdwg.mxu0
    %2716 = vmatprep.subr.mxu0 0.0
    %2717 = vmatpush1.msra.mxu0 %v791
    %2718 = vmatprep.subr.mxu0 0.0
    %2719 = vmatpush1.msra.mxu0 %v788
    %2720 = vmatprep.subr.mxu0 0.0
    %2721 = vmatpush1.msra.mxu0 %v785
    %2722 = vmatprep.subr.mxu0 0.0
    %2723 = vmatpush1.msra.mxu0 %v782
    %2724 = vmatprep.subr.mxu0 0.0
    %2725 = vmatpush1.msra.mxu0 %v779
    %2726 = vmatprep.subr.mxu0 0.0
    %2727 = vmatpush1.msra.mxu0 %v776
    %2728 = vmatprep.subr.mxu0 0.0
    %2729 = vmatpush1.msra.mxu0 %v773
    %2730 = vmatprep.subr.mxu0 0.0
    %2731 = vmatpush1.msra.mxu0 %v770
    %2732 = vmatprep.subr.mxu0 0.0
    %2733 = vmatpush1.msra.mxu0 %v767
    %2734 = vmatprep.subr.mxu0 0.0
    %2735 = vmatpush1.msra.mxu0 %v764
    %2736 = vmatprep.subr.mxu0 0.0
    %2737 = vmatpush1.msra.mxu0 %v761
    %2738 = vmatprep.subr.mxu0 0.0
    %2739 = vmatpush1.msra.mxu0 %v758
    %2740 = vmatprep.subr.mxu0 0.0
    %2741 = vmatpush1.msra.mxu0 %v755
    %2742 = vmatprep.subr.mxu0 0.0
    %2743 = vmatpush1.msra.mxu0 %v752
    %2744 = vmatprep.subr.mxu0 0.0
    %2745 = vmatpush1.msra.mxu0 %v749
    %2746 = vmatprep.subr.mxu0 0.0
    %2747 = vmatpush1.msra.mxu0 %v746
    %2748 = vmatprep.subr.mxu0 0.0
    %2749 = vmatpush2.msra.mxu0 0.0
    %2750 = vmatprep.subr.mxu0 0.0
    %2751 = vmatpush2.msra.mxu0 0.0
    %2752 = vmatprep.subr.mxu0 0.0
    %2753 = vmatpush2.msra.mxu0 0.0
    %2754 = vmatprep.subr.mxu0 0.0
    %2755 = vmatpush2.msra.mxu0 0.0
    %2756 = vmatprep.subr.mxu0 0.0
    %2757 = vmatpush2.msra.mxu0 0.0
    %2758 = vmatprep.subr.mxu0 0.0
    %2759 = vmatpush2.msra.mxu0 0.0
    %2760 = vmatprep.subr.mxu0 0.0
    %2761 = vmatpush2.msra.mxu0 0.0
    %2762 = vmatprep.subr.mxu0 0.0
    %2763 = vmatpush2.msra.mxu0 0.0
    %2764 = vmatprep.subr.mxu0 0.0
    %2765 = vmatpush2.msra.mxu0 0.0
    %2766 = vmatprep.subr.mxu0 0.0
    %2767 = vmatpush2.msra.mxu0 0.0
    %2768 = vmatprep.subr.mxu0 0.0
    %2769 = vmatpush2.msra.mxu0 0.0
    %2770 = vmatprep.subr.mxu0 0.0
    %2771 = vmatpush2.msra.mxu0 0.0
    %2772 = vmatprep.subr.mxu0 0.0
    %2773 = vmatpush2.msra.mxu0 0.0
    %2774 = vmatprep.subr.mxu0 0.0
    %2775 = vmatpush2.msra.mxu0 0.0
    %2776 = vmatprep.subr.mxu0 0.0
    %2777 = vmatpush2.msra.mxu0 0.0
    %2778 = vmatprep.subr.mxu0 0.0
    %2779 = vmatpush2.msra.mxu0 0.0
    %2780 = vmatprep.mubr.f32.mxu0 0.0
    %2781 = vmatmul.mubr.f32.gmra.mxu0 %v2499
    %v2782 = vpop.f32.mrf.mxu0
    %v2783 = vadd.f32 %v822, %v2782
    %v2784 = vpop.f32.mrf.mxu0
    %2785 = vdwg.mxu0
    %s2786 = scalar_lea.vmem [#allocation2], 120
    %v2787 = vld [vmem:[%s2786] sm:$0xff]
    %v2788 = vld [vmem:[%s2786 + $0x8] sm:$0xff]
    %v2789 = vld [vmem:[%s2786 + $0x10] sm:$0xff]
    %v2790 = vadd.f32 %v2787, %v2571
    %v2791 = vxor.u32 %v2790, 2147483648
    %v2792 = vmul.f32 %v2791, 1.442695
    %v2793 = vpow.pop %v2792
    %v2794 = vadd.f32 %v2793, 1.0
    %v2795 = vrcp.pop %v2794
    %v2796 = vmul.f32 1.0, %v2795
    %v2797 = vadd.f32 %v2788, %v2573
    %v2798 = vxor.u32 %v2797, 2147483648
    %v2799 = vmul.f32 %v2798, 1.442695
    %v2800 = vpow.pop %v2799
    %v2801 = vadd.f32 %v2800, 1.0
    %v2802 = vrcp.pop %v2801
    %v2803 = vmul.f32 1.0, %v2802
    %v2804 = vmul.f32 %v2796, %v2642
    %v2805 = vadd.f32 %v2789, %v2804
    %v2806 = vtanh.pop %v2805
    %v2807 = vsub.f32 1.0, %v2803
    %v2808 = vmul.f32 %v2807, %v2806
    %v2809 = vmul.f32 %v2803, %v2474
    %v2810 = vadd.f32 %v2808, %v2809
    %s2811 = scalar_lea.vmem [#allocation3], 48
    %v2812 = vld [vmem:[%s2811] sm:$0xff]
    %v2813 = vld [vmem:[%s2811 + $0x8] sm:$0xff]
    %v2814 = vld [vmem:[%s2811 + $0x10] sm:$0xff]
    %v2815 = vadd.f32 %v2812, %v2712
    %v2816 = vxor.u32 %v2815, 2147483648
    %v2817 = vmul.f32 %v2816, 1.442695
    %v2818 = vpow.pop %v2817
    %v2819 = vadd.f32 %v2818, 1.0
    %v2820 = vrcp.pop %v2819
    %v2821 = vmul.f32 1.0, %v2820
    %v2822 = vadd.f32 %v2813, %v2714
    %v2823 = vxor.u32 %v2822, 2147483648
    %v2824 = vmul.f32 %v2823, 1.442695
    %v2825 = vpow.pop %v2824
    %v2826 = vadd.f32 %v2825, 1.0
    %v2827 = vrcp.pop %v2826
    %v2828 = vmul.f32 1.0, %v2827
    %v2829 = vmul.f32 %v2821, %v2783
    %v2830 = vadd.f32 %v2814, %v2829
    %v2831 = vtanh.pop %v2830
    %v2832 = vsub.f32 1.0, %v2828
    %v2833 = vmul.f32 %v2832, %v2831
    %v2834 = vmul.f32 %v2828, %v2499
    %v2835 = vadd.f32 %v2833, %v2834
    %s2836 = scalar_lea.vmem [#allocation4], 40
    %2837 = vst [vmem:[%s2836] sm:$0xff] %v2810
    %s2838 = scalar_lea.vmem [#allocation5], 16
    %2839 = vst [vmem:[%s2838] sm:$0xff] %v2835
    %2840 = vmatprep.subr.mxu0 %v742
    %2841 = vmatpush1.msra.mxu0 %v741
    %2842 = vmatprep.subr.mxu0 %v739
    %2843 = vmatpush1.msra.mxu0 %v738
    %2844 = vmatprep.subr.mxu0 %v736
    %2845 = vmatpush1.msra.mxu0 %v735
    %2846 = vmatprep.subr.mxu0 %v733
    %2847 = vmatpush1.msra.mxu0 %v732
    %2848 = vmatprep.subr.mxu0 %v730
    %2849 = vmatpush1.msra.mxu0 %v729
    %2850 = vmatprep.subr.mxu0 %v727
    %2851 = vmatpush1.msra.mxu0 %v726
    %2852 = vmatprep.subr.mxu0 %v724
    %2853 = vmatpush1.msra.mxu0 %v723
    %2854 = vmatprep.subr.mxu0 %v721
    %2855 = vmatpush1.msra.mxu0 %v720
    %2856 = vmatprep.subr.mxu0 %v718
    %2857 = vmatpush1.msra.mxu0 %v717
    %2858 = vmatprep.subr.mxu0 %v715
    %2859 = vmatpush1.msra.mxu0 %v714
    %2860 = vmatprep.subr.mxu0 %v712
    %2861 = vmatpush1.msra.mxu0 %v711
    %2862 = vmatprep.subr.mxu0 %v709
    %2863 = vmatpush1.msra.mxu0 %v708
    %2864 = vmatprep.subr.mxu0 %v706
    %2865 = vmatpush1.msra.mxu0 %v705
    %2866 = vmatprep.subr.mxu0 %v703
    %2867 = vmatpush1.msra.mxu0 %v702
    %2868 = vmatprep.subr.mxu0 %v700
    %2869 = vmatpush1.msra.mxu0 %v699
    %2870 = vmatprep.subr.mxu0 %v697
    %2871 = vmatpush1.msra.mxu0 %v696
    %2872 = vmatprep.subr.mxu0 0.0
    %2873 = vmatpush2.msra.mxu0 0.0
    %2874 = vmatprep.subr.mxu0 0.0
    %2875 = vmatpush2.msra.mxu0 0.0
    %2876 = vmatprep.subr.mxu0 0.0
    %2877 = vmatpush2.msra.mxu0 0.0
    %2878 = vmatprep.subr.mxu0 0.0
    %2879 = vmatpush2.msra.mxu0 0.0
    %2880 = vmatprep.subr.mxu0 0.0
    %2881 = vmatpush2.msra.mxu0 0.0
    %2882 = vmatprep.subr.mxu0 0.0
    %2883 = vmatpush2.msra.mxu0 0.0
    %2884 = vmatprep.subr.mxu0 0.0
    %2885 = vmatpush2.msra.mxu0 0.0
    %2886 = vmatprep.subr.mxu0 0.0
    %2887 = vmatpush2.msra.mxu0 0.0
    %2888 = vmatprep.subr.mxu0 0.0
    %2889 = vmatpush2.msra.mxu0 0.0
    %2890 = vmatprep.subr.mxu0 0.0
    %2891 = vmatpush2.msra.mxu0 0.0
    %2892 = vmatprep.subr.mxu0 0.0
    %2893 = vmatpush2.msra.mxu0 0.0
    %2894 = vmatprep.subr.mxu0 0.0
    %2895 = vmatpush2.msra.mxu0 0.0
    %2896 = vmatprep.subr.mxu0 0.0
    %2897 = vmatpush2.msra.mxu0 0.0
    %2898 = vmatprep.subr.mxu0 0.0
    %2899 = vmatpush2.msra.mxu0 0.0
    %2900 = vmatprep.subr.mxu0 0.0
    %2901 = vmatpush2.msra.mxu0 0.0
    %2902 = vmatprep.subr.mxu0 0.0
    %2903 = vmatpush2.msra.mxu0 0.0
    %2904 = vmatprep.mubr.f32.mxu0 0.0
    %2905 = vmatmul.mubr.f32.gmra.mxu0 %v2810
    %v2906 = vpop.f32.mrf.mxu0
    %v2907 = vadd.f32 %v797, %v2906
    %v2908 = vpop.f32.mrf.mxu0
    %v2909 = vadd.f32 %v801, %v2908
    %2910 = vdwg.mxu0
    %2911 = vmatprep.subr.mxu0 0.0
    %2912 = vmatpush1.msra.mxu0 %v743
    %2913 = vmatprep.subr.mxu0 0.0
    %2914 = vmatpush1.msra.mxu0 %v740
    %2915 = vmatprep.subr.mxu0 0.0
    %2916 = vmatpush1.msra.mxu0 %v737
    %2917 = vmatprep.subr.mxu0 0.0
    %2918 = vmatpush1.msra.mxu0 %v734
    %2919 = vmatprep.subr.mxu0 0.0
    %2920 = vmatpush1.msra.mxu0 %v731
    %2921 = vmatprep.subr.mxu0 0.0
    %2922 = vmatpush1.msra.mxu0 %v728
    %2923 = vmatprep.subr.mxu0 0.0
    %2924 = vmatpush1.msra.mxu0 %v725
    %2925 = vmatprep.subr.mxu0 0.0
    %2926 = vmatpush1.msra.mxu0 %v722
    %2927 = vmatprep.subr.mxu0 0.0
    %2928 = vmatpush1.msra.mxu0 %v719
    %2929 = vmatprep.subr.mxu0 0.0
    %2930 = vmatpush1.msra.mxu0 %v716
    %2931 = vmatprep.subr.mxu0 0.0
    %2932 = vmatpush1.msra.mxu0 %v713
    %2933 = vmatprep.subr.mxu0 0.0
    %2934 = vmatpush1.msra.mxu0 %v710
    %2935 = vmatprep.subr.mxu0 0.0
    %2936 = vmatpush1.msra.mxu0 %v707
    %2937 = vmatprep.subr.mxu0 0.0
    %2938 = vmatpush1.msra.mxu0 %v704
    %2939 = vmatprep.subr.mxu0 0.0
    %2940 = vmatpush1.msra.mxu0 %v701
    %2941 = vmatprep.subr.mxu0 0.0
    %2942 = vmatpush1.msra.mxu0 %v698
    %2943 = vmatprep.subr.mxu0 0.0
    %2944 = vmatpush2.msra.mxu0 0.0
    %2945 = vmatprep.subr.mxu0 0.0
    %2946 = vmatpush2.msra.mxu0 0.0
    %2947 = vmatprep.subr.mxu0 0.0
    %2948 = vmatpush2.msra.mxu0 0.0
    %2949 = vmatprep.subr.mxu0 0.0
    %2950 = vmatpush2.msra.mxu0 0.0
    %2951 = vmatprep.subr.mxu0 0.0
    %2952 = vmatpush2.msra.mxu0 0.0
    %2953 = vmatprep.subr.mxu0 0.0
    %2954 = vmatpush2.msra.mxu0 0.0
    %2955 = vmatprep.subr.mxu0 0.0
    %2956 = vmatpush2.msra.mxu0 0.0
    %2957 = vmatprep.subr.mxu0 0.0
    %2958 = vmatpush2.msra.mxu0 0.0
    %2959 = vmatprep.subr.mxu0 0.0
    %2960 = vmatpush2.msra.mxu0 0.0
    %2961 = vmatprep.subr.mxu0 0.0
    %2962 = vmatpush2.msra.mxu0 0.0
    %2963 = vmatprep.subr.mxu0 0.0
    %2964 = vmatpush2.msra.mxu0 0.0
    %2965 = vmatprep.subr.mxu0 0.0
    %2966 = vmatpush2.msra.mxu0 0.0
    %2967 = vmatprep.subr.mxu0 0.0
    %2968 = vmatpush2.msra.mxu0 0.0
    %2969 = vmatprep.subr.mxu0 0.0
    %2970 = vmatpush2.msra.mxu0 0.0
    %2971 = vmatprep.subr.mxu0 0.0
    %2972 = vmatpush2.msra.mxu0 0.0
    %2973 = vmatprep.subr.mxu0 0.0
    %2974 = vmatpush2.msra.mxu0 0.0
    %2975 = vmatprep.mubr.f32.mxu0 0.0
    %2976 = vmatmul.mubr.f32.gmra.mxu0 %v2810
    %v2977 = vpop.f32.mrf.mxu0
    %v2978 = vadd.f32 %v805, %v2977
    %v2979 = vpop.f32.mrf.mxu0
    %2980 = vdwg.mxu0
    %2981 = vmatprep.subr.mxu0 %v790
    %2982 = vmatpush1.msra.mxu0 %v789
    %2983 = vmatprep.subr.mxu0 %v787
    %2984 = vmatpush1.msra.mxu0 %v786
    %2985 = vmatprep.subr.mxu0 %v784
    %2986 = vmatpush1.msra.mxu0 %v783
    %2987 = vmatprep.subr.mxu0 %v781
    %2988 = vmatpush1.msra.mxu0 %v780
    %2989 = vmatprep.subr.mxu0 %v778
    %2990 = vmatpush1.msra.mxu0 %v777
    %2991 = vmatprep.subr.mxu0 %v775
    %2992 = vmatpush1.msra.mxu0 %v774
    %2993 = vmatprep.subr.mxu0 %v772
    %2994 = vmatpush1.msra.mxu0 %v771
    %2995 = vmatprep.subr.mxu0 %v769
    %2996 = vmatpush1.msra.mxu0 %v768
    %2997 = vmatprep.subr.mxu0 %v766
    %2998 = vmatpush1.msra.mxu0 %v765
    %2999 = vmatprep.subr.mxu0 %v763
    %3000 = vmatpush1.msra.mxu0 %v762
    %3001 = vmatprep.subr.mxu0 %v760
    %3002 = vmatpush1.msra.mxu0 %v759
    %3003 = vmatprep.subr.mxu0 %v757
    %3004 = vmatpush1.msra.mxu0 %v756
    %3005 = vmatprep.subr.mxu0 %v754
    %3006 = vmatpush1.msra.mxu0 %v753
    %3007 = vmatprep.subr.mxu0 %v751
    %3008 = vmatpush1.msra.mxu0 %v750
    %3009 = vmatprep.subr.mxu0 %v748
    %3010 = vmatpush1.msra.mxu0 %v747
    %3011 = vmatprep.subr.mxu0 %v745
    %3012 = vmatpush1.msra.mxu0 %v744
    %3013 = vmatprep.subr.mxu0 0.0
    %3014 = vmatpush2.msra.mxu0 0.0
    %3015 = vmatprep.subr.mxu0 0.0
    %3016 = vmatpush2.msra.mxu0 0.0
    %3017 = vmatprep.subr.mxu0 0.0
    %3018 = vmatpush2.msra.mxu0 0.0
    %3019 = vmatprep.subr.mxu0 0.0
    %3020 = vmatpush2.msra.mxu0 0.0
    %3021 = vmatprep.subr.mxu0 0.0
    %3022 = vmatpush2.msra.mxu0 0.0
    %3023 = vmatprep.subr.mxu0 0.0
    %3024 = vmatpush2.msra.mxu0 0.0
    %3025 = vmatprep.subr.mxu0 0.0
    %3026 = vmatpush2.msra.mxu0 0.0
    %3027 = vmatprep.subr.mxu0 0.0
    %3028 = vmatpush2.msra.mxu0 0.0
    %3029 = vmatprep.subr.mxu0 0.0
    %3030 = vmatpush2.msra.mxu0 0.0
    %3031 = vmatprep.subr.mxu0 0.0
    %3032 = vmatpush2.msra.mxu0 0.0
    %3033 = vmatprep.subr.mxu0 0.0
    %3034 = vmatpush2.msra.mxu0 0.0
    %3035 = vmatprep.subr.mxu0 0.0
    %3036 = vmatpush2.msra.mxu0 0.0
    %3037 = vmatprep.subr.mxu0 0.0
    %3038 = vmatpush2.msra.mxu0 0.0
    %3039 = vmatprep.subr.mxu0 0.0
    %3040 = vmatpush2.msra.mxu0 0.0
    %3041 = vmatprep.subr.mxu0 0.0
    %3042 = vmatpush2.msra.mxu0 0.0
    %3043 = vmatprep.subr.mxu0 0.0
    %3044 = vmatpush2.msra.mxu0 0.0
    %3045 = vmatprep.mubr.f32.mxu0 0.0
    %3046 = vmatmul.mubr.f32.gmra.mxu0 %v2835
    %v3047 = vpop.f32.mrf.mxu0
    %v3048 = vadd.f32 %v814, %v3047
    %v3049 = vpop.f32.mrf.mxu0
    %v3050 = vadd.f32 %v818, %v3049
    %3051 = vdwg.mxu0
    %3052 = vmatprep.subr.mxu0 0.0
    %3053 = vmatpush1.msra.mxu0 %v791
    %3054 = vmatprep.subr.mxu0 0.0
    %3055 = vmatpush1.msra.mxu0 %v788
    %3056 = vmatprep.subr.mxu0 0.0
    %3057 = vmatpush1.msra.mxu0 %v785
    %3058 = vmatprep.subr.mxu0 0.0
    %3059 = vmatpush1.msra.mxu0 %v782
    %3060 = vmatprep.subr.mxu0 0.0
    %3061 = vmatpush1.msra.mxu0 %v779
    %3062 = vmatprep.subr.mxu0 0.0
    %3063 = vmatpush1.msra.mxu0 %v776
    %3064 = vmatprep.subr.mxu0 0.0
    %3065 = vmatpush1.msra.mxu0 %v773
    %3066 = vmatprep.subr.mxu0 0.0
    %3067 = vmatpush1.msra.mxu0 %v770
    %3068 = vmatprep.subr.mxu0 0.0
    %3069 = vmatpush1.msra.mxu0 %v767
    %3070 = vmatprep.subr.mxu0 0.0
    %3071 = vmatpush1.msra.mxu0 %v764
    %3072 = vmatprep.subr.mxu0 0.0
    %3073 = vmatpush1.msra.mxu0 %v761
    %3074 = vmatprep.subr.mxu0 0.0
    %3075 = vmatpush1.msra.mxu0 %v758
    %3076 = vmatprep.subr.mxu0 0.0
    %3077 = vmatpush1.msra.mxu0 %v755
    %3078 = vmatprep.subr.mxu0 0.0
    %3079 = vmatpush1.msra.mxu0 %v752
    %3080 = vmatprep.subr.mxu0 0.0
    %3081 = vmatpush1.msra.mxu0 %v749
    %3082 = vmatprep.subr.mxu0 0.0
    %3083 = vmatpush1.msra.mxu0 %v746
    %3084 = vmatprep.subr.mxu0 0.0
    %3085 = vmatpush2.msra.mxu0 0.0
    %3086 = vmatprep.subr.mxu0 0.0
    %3087 = vmatpush2.msra.mxu0 0.0
    %3088 = vmatprep.subr.mxu0 0.0
    %3089 = vmatpush2.msra.mxu0 0.0
    %3090 = vmatprep.subr.mxu0 0.0
    %3091 = vmatpush2.msra.mxu0 0.0
    %3092 = vmatprep.subr.mxu0 0.0
    %3093 = vmatpush2.msra.mxu0 0.0
    %3094 = vmatprep.subr.mxu0 0.0
    %3095 = vmatpush2.msra.mxu0 0.0
    %3096 = vmatprep.subr.mxu0 0.0
    %3097 = vmatpush2.msra.mxu0 0.0
    %3098 = vmatprep.subr.mxu0 0.0
    %3099 = vmatpush2.msra.mxu0 0.0
    %3100 = vmatprep.subr.mxu0 0.0
    %3101 = vmatpush2.msra.mxu0 0.0
    %3102 = vmatprep.subr.mxu0 0.0
    %3103 = vmatpush2.msra.mxu0 0.0
    %3104 = vmatprep.subr.mxu0 0.0
    %3105 = vmatpush2.msra.mxu0 0.0
    %3106 = vmatprep.subr.mxu0 0.0
    %3107 = vmatpush2.msra.mxu0 0.0
    %3108 = vmatprep.subr.mxu0 0.0
    %3109 = vmatpush2.msra.mxu0 0.0
    %3110 = vmatprep.subr.mxu0 0.0
    %3111 = vmatpush2.msra.mxu0 0.0
    %3112 = vmatprep.subr.mxu0 0.0
    %3113 = vmatpush2.msra.mxu0 0.0
    %3114 = vmatprep.subr.mxu0 0.0
    %3115 = vmatpush2.msra.mxu0 0.0
    %3116 = vmatprep.mubr.f32.mxu0 0.0
    %3117 = vmatmul.mubr.f32.gmra.mxu0 %v2835
    %v3118 = vpop.f32.mrf.mxu0
    %v3119 = vadd.f32 %v822, %v3118
    %v3120 = vpop.f32.mrf.mxu0
    %3121 = vdwg.mxu0
    %s3122 = scalar_lea.vmem [#allocation2], 144
    %v3123 = vld [vmem:[%s3122] sm:$0xff]
    %v3124 = vld [vmem:[%s3122 + $0x8] sm:$0xff]
    %v3125 = vld [vmem:[%s3122 + $0x10] sm:$0xff]
    %v3126 = vadd.f32 %v3123, %v2907
    %v3127 = vxor.u32 %v3126, 2147483648
    %v3128 = vmul.f32 %v3127, 1.442695
    %v3129 = vpow.pop %v3128
    %v3130 = vadd.f32 %v3129, 1.0
    %v3131 = vrcp.pop %v3130
    %v3132 = vmul.f32 1.0, %v3131
    %v3133 = vadd.f32 %v3124, %v2909
    %v3134 = vxor.u32 %v3133, 2147483648
    %v3135 = vmul.f32 %v3134, 1.442695
    %v3136 = vpow.pop %v3135
    %v3137 = vadd.f32 %v3136, 1.0
    %v3138 = vrcp.pop %v3137
    %v3139 = vmul.f32 1.0, %v3138
    %v3140 = vmul.f32 %v3132, %v2978
    %v3141 = vadd.f32 %v3125, %v3140
    %v3142 = vtanh.pop %v3141
    %v3143 = vsub.f32 1.0, %v3139
    %v3144 = vmul.f32 %v3143, %v3142
    %v3145 = vmul.f32 %v3139, %v2810
    %v3146 = vadd.f32 %v3144, %v3145
    %s3147 = scalar_lea.vmem [#allocation3], 24
    %v3148 = vld [vmem:[%s3147] sm:$0xff]
    %v3149 = vld [vmem:[%s3147 + $0x8] sm:$0xff]
    %v3150 = vld [vmem:[%s3147 + $0x10] sm:$0xff]
    %v3151 = vadd.f32 %v3148, %v3048
    %v3152 = vxor.u32 %v3151, 2147483648
    %v3153 = vmul.f32 %v3152, 1.442695
    %v3154 = vpow.pop %v3153
    %v3155 = vadd.f32 %v3154, 1.0
    %v3156 = vrcp.pop %v3155
    %v3157 = vmul.f32 1.0, %v3156
    %v3158 = vadd.f32 %v3149, %v3050
    %v3159 = vxor.u32 %v3158, 2147483648
    %v3160 = vmul.f32 %v3159, 1.442695
    %v3161 = vpow.pop %v3160
    %v3162 = vadd.f32 %v3161, 1.0
    %v3163 = vrcp.pop %v3162
    %v3164 = vmul.f32 1.0, %v3163
    %v3165 = vmul.f32 %v3157, %v3119
    %v3166 = vadd.f32 %v3150, %v3165
    %v3167 = vtanh.pop %v3166
    %v3168 = vsub.f32 1.0, %v3164
    %v3169 = vmul.f32 %v3168, %v3167
    %v3170 = vmul.f32 %v3164, %v2835
    %v3171 = vadd.f32 %v3169, %v3170
    %s3172 = scalar_lea.vmem [#allocation4], 48
    %3173 = vst [vmem:[%s3172] sm:$0xff] %v3146
    %s3174 = scalar_lea.vmem [#allocation5], 8
    %3175 = vst [vmem:[%s3174] sm:$0xff] %v3171
    %3176 = vmatprep.subr.mxu0 %v742
    %3177 = vmatpush1.msra.mxu0 %v741
    %3178 = vmatprep.subr.mxu0 %v739
    %3179 = vmatpush1.msra.mxu0 %v738
    %3180 = vmatprep.subr.mxu0 %v736
    %3181 = vmatpush1.msra.mxu0 %v735
    %3182 = vmatprep.subr.mxu0 %v733
    %3183 = vmatpush1.msra.mxu0 %v732
    %3184 = vmatprep.subr.mxu0 %v730
    %3185 = vmatpush1.msra.mxu0 %v729
    %3186 = vmatprep.subr.mxu0 %v727
    %3187 = vmatpush1.msra.mxu0 %v726
    %3188 = vmatprep.subr.mxu0 %v724
    %3189 = vmatpush1.msra.mxu0 %v723
    %3190 = vmatprep.subr.mxu0 %v721
    %3191 = vmatpush1.msra.mxu0 %v720
    %3192 = vmatprep.subr.mxu0 %v718
    %3193 = vmatpush1.msra.mxu0 %v717
    %3194 = vmatprep.subr.mxu0 %v715
    %3195 = vmatpush1.msra.mxu0 %v714
    %3196 = vmatprep.subr.mxu0 %v712
    %3197 = vmatpush1.msra.mxu0 %v711
    %3198 = vmatprep.subr.mxu0 %v709
    %3199 = vmatpush1.msra.mxu0 %v708
    %3200 = vmatprep.subr.mxu0 %v706
    %3201 = vmatpush1.msra.mxu0 %v705
    %3202 = vmatprep.subr.mxu0 %v703
    %3203 = vmatpush1.msra.mxu0 %v702
    %3204 = vmatprep.subr.mxu0 %v700
    %3205 = vmatpush1.msra.mxu0 %v699
    %3206 = vmatprep.subr.mxu0 %v697
    %3207 = vmatpush1.msra.mxu0 %v696
    %3208 = vmatprep.subr.mxu0 0.0
    %3209 = vmatpush2.msra.mxu0 0.0
    %3210 = vmatprep.subr.mxu0 0.0
    %3211 = vmatpush2.msra.mxu0 0.0
    %3212 = vmatprep.subr.mxu0 0.0
    %3213 = vmatpush2.msra.mxu0 0.0
    %3214 = vmatprep.subr.mxu0 0.0
    %3215 = vmatpush2.msra.mxu0 0.0
    %3216 = vmatprep.subr.mxu0 0.0
    %3217 = vmatpush2.msra.mxu0 0.0
    %3218 = vmatprep.subr.mxu0 0.0
    %3219 = vmatpush2.msra.mxu0 0.0
    %3220 = vmatprep.subr.mxu0 0.0
    %3221 = vmatpush2.msra.mxu0 0.0
    %3222 = vmatprep.subr.mxu0 0.0
    %3223 = vmatpush2.msra.mxu0 0.0
    %3224 = vmatprep.subr.mxu0 0.0
    %3225 = vmatpush2.msra.mxu0 0.0
    %3226 = vmatprep.subr.mxu0 0.0
    %3227 = vmatpush2.msra.mxu0 0.0
    %3228 = vmatprep.subr.mxu0 0.0
    %3229 = vmatpush2.msra.mxu0 0.0
    %3230 = vmatprep.subr.mxu0 0.0
    %3231 = vmatpush2.msra.mxu0 0.0
    %3232 = vmatprep.subr.mxu0 0.0
    %3233 = vmatpush2.msra.mxu0 0.0
    %3234 = vmatprep.subr.mxu0 0.0
    %3235 = vmatpush2.msra.mxu0 0.0
    %3236 = vmatprep.subr.mxu0 0.0
    %3237 = vmatpush2.msra.mxu0 0.0
    %3238 = vmatprep.subr.mxu0 0.0
    %3239 = vmatpush2.msra.mxu0 0.0
    %3240 = vmatprep.mubr.f32.mxu0 0.0
    %3241 = vmatmul.mubr.f32.gmra.mxu0 %v3146
    %v3242 = vpop.f32.mrf.mxu0
    %v3243 = vadd.f32 %v797, %v3242
    %v3244 = vpop.f32.mrf.mxu0
    %v3245 = vadd.f32 %v801, %v3244
    %3246 = vdwg.mxu0
    %3247 = vmatprep.subr.mxu0 0.0
    %3248 = vmatpush1.msra.mxu0 %v743
    %3249 = vmatprep.subr.mxu0 0.0
    %3250 = vmatpush1.msra.mxu0 %v740
    %3251 = vmatprep.subr.mxu0 0.0
    %3252 = vmatpush1.msra.mxu0 %v737
    %3253 = vmatprep.subr.mxu0 0.0
    %3254 = vmatpush1.msra.mxu0 %v734
    %3255 = vmatprep.subr.mxu0 0.0
    %3256 = vmatpush1.msra.mxu0 %v731
    %3257 = vmatprep.subr.mxu0 0.0
    %3258 = vmatpush1.msra.mxu0 %v728
    %3259 = vmatprep.subr.mxu0 0.0
    %3260 = vmatpush1.msra.mxu0 %v725
    %3261 = vmatprep.subr.mxu0 0.0
    %3262 = vmatpush1.msra.mxu0 %v722
    %3263 = vmatprep.subr.mxu0 0.0
    %3264 = vmatpush1.msra.mxu0 %v719
    %3265 = vmatprep.subr.mxu0 0.0
    %3266 = vmatpush1.msra.mxu0 %v716
    %3267 = vmatprep.subr.mxu0 0.0
    %3268 = vmatpush1.msra.mxu0 %v713
    %3269 = vmatprep.subr.mxu0 0.0
    %3270 = vmatpush1.msra.mxu0 %v710
    %3271 = vmatprep.subr.mxu0 0.0
    %3272 = vmatpush1.msra.mxu0 %v707
    %3273 = vmatprep.subr.mxu0 0.0
    %3274 = vmatpush1.msra.mxu0 %v704
    %3275 = vmatprep.subr.mxu0 0.0
    %3276 = vmatpush1.msra.mxu0 %v701
    %3277 = vmatprep.subr.mxu0 0.0
    %3278 = vmatpush1.msra.mxu0 %v698
    %3279 = vmatprep.subr.mxu0 0.0
    %3280 = vmatpush2.msra.mxu0 0.0
    %3281 = vmatprep.subr.mxu0 0.0
    %3282 = vmatpush2.msra.mxu0 0.0
    %3283 = vmatprep.subr.mxu0 0.0
    %3284 = vmatpush2.msra.mxu0 0.0
    %3285 = vmatprep.subr.mxu0 0.0
    %3286 = vmatpush2.msra.mxu0 0.0
    %3287 = vmatprep.subr.mxu0 0.0
    %3288 = vmatpush2.msra.mxu0 0.0
    %3289 = vmatprep.subr.mxu0 0.0
    %3290 = vmatpush2.msra.mxu0 0.0
    %3291 = vmatprep.subr.mxu0 0.0
    %3292 = vmatpush2.msra.mxu0 0.0
    %3293 = vmatprep.subr.mxu0 0.0
    %3294 = vmatpush2.msra.mxu0 0.0
    %3295 = vmatprep.subr.mxu0 0.0
    %3296 = vmatpush2.msra.mxu0 0.0
    %3297 = vmatprep.subr.mxu0 0.0
    %3298 = vmatpush2.msra.mxu0 0.0
    %3299 = vmatprep.subr.mxu0 0.0
    %3300 = vmatpush2.msra.mxu0 0.0
    %3301 = vmatprep.subr.mxu0 0.0
    %3302 = vmatpush2.msra.mxu0 0.0
    %3303 = vmatprep.subr.mxu0 0.0
    %3304 = vmatpush2.msra.mxu0 0.0
    %3305 = vmatprep.subr.mxu0 0.0
    %3306 = vmatpush2.msra.mxu0 0.0
    %3307 = vmatprep.subr.mxu0 0.0
    %3308 = vmatpush2.msra.mxu0 0.0
    %3309 = vmatprep.subr.mxu0 0.0
    %3310 = vmatpush2.msra.mxu0 0.0
    %3311 = vmatprep.mubr.f32.mxu0 0.0
    %3312 = vmatmul.mubr.f32.gmra.mxu0 %v3146
    %v3313 = vpop.f32.mrf.mxu0
    %v3314 = vadd.f32 %v805, %v3313
    %v3315 = vpop.f32.mrf.mxu0
    %3316 = vdwg.mxu0
    %3317 = vmatprep.subr.mxu0 %v790
    %3318 = vmatpush1.msra.mxu0 %v789
    %3319 = vmatprep.subr.mxu0 %v787
    %3320 = vmatpush1.msra.mxu0 %v786
    %3321 = vmatprep.subr.mxu0 %v784
    %3322 = vmatpush1.msra.mxu0 %v783
    %3323 = vmatprep.subr.mxu0 %v781
    %3324 = vmatpush1.msra.mxu0 %v780
    %3325 = vmatprep.subr.mxu0 %v778
    %3326 = vmatpush1.msra.mxu0 %v777
    %3327 = vmatprep.subr.mxu0 %v775
    %3328 = vmatpush1.msra.mxu0 %v774
    %3329 = vmatprep.subr.mxu0 %v772
    %3330 = vmatpush1.msra.mxu0 %v771
    %3331 = vmatprep.subr.mxu0 %v769
    %3332 = vmatpush1.msra.mxu0 %v768
    %3333 = vmatprep.subr.mxu0 %v766
    %3334 = vmatpush1.msra.mxu0 %v765
    %3335 = vmatprep.subr.mxu0 %v763
    %3336 = vmatpush1.msra.mxu0 %v762
    %3337 = vmatprep.subr.mxu0 %v760
    %3338 = vmatpush1.msra.mxu0 %v759
    %3339 = vmatprep.subr.mxu0 %v757
    %3340 = vmatpush1.msra.mxu0 %v756
    %3341 = vmatprep.subr.mxu0 %v754
    %3342 = vmatpush1.msra.mxu0 %v753
    %3343 = vmatprep.subr.mxu0 %v751
    %3344 = vmatpush1.msra.mxu0 %v750
    %3345 = vmatprep.subr.mxu0 %v748
    %3346 = vmatpush1.msra.mxu0 %v747
    %3347 = vmatprep.subr.mxu0 %v745
    %3348 = vmatpush1.msra.mxu0 %v744
    %3349 = vmatprep.subr.mxu0 0.0
    %3350 = vmatpush2.msra.mxu0 0.0
    %3351 = vmatprep.subr.mxu0 0.0
    %3352 = vmatpush2.msra.mxu0 0.0
    %3353 = vmatprep.subr.mxu0 0.0
    %3354 = vmatpush2.msra.mxu0 0.0
    %3355 = vmatprep.subr.mxu0 0.0
    %3356 = vmatpush2.msra.mxu0 0.0
    %3357 = vmatprep.subr.mxu0 0.0
    %3358 = vmatpush2.msra.mxu0 0.0
    %3359 = vmatprep.subr.mxu0 0.0
    %3360 = vmatpush2.msra.mxu0 0.0
    %3361 = vmatprep.subr.mxu0 0.0
    %3362 = vmatpush2.msra.mxu0 0.0
    %3363 = vmatprep.subr.mxu0 0.0
    %3364 = vmatpush2.msra.mxu0 0.0
    %3365 = vmatprep.subr.mxu0 0.0
    %3366 = vmatpush2.msra.mxu0 0.0
    %3367 = vmatprep.subr.mxu0 0.0
    %3368 = vmatpush2.msra.mxu0 0.0
    %3369 = vmatprep.subr.mxu0 0.0
    %3370 = vmatpush2.msra.mxu0 0.0
    %3371 = vmatprep.subr.mxu0 0.0
    %3372 = vmatpush2.msra.mxu0 0.0
    %3373 = vmatprep.subr.mxu0 0.0
    %3374 = vmatpush2.msra.mxu0 0.0
    %3375 = vmatprep.subr.mxu0 0.0
    %3376 = vmatpush2.msra.mxu0 0.0
    %3377 = vmatprep.subr.mxu0 0.0
    %3378 = vmatpush2.msra.mxu0 0.0
    %3379 = vmatprep.subr.mxu0 0.0
    %3380 = vmatpush2.msra.mxu0 0.0
    %3381 = vmatprep.mubr.f32.mxu0 0.0
    %3382 = vmatmul.mubr.f32.gmra.mxu0 %v3171
    %v3383 = vpop.f32.mrf.mxu0
    %v3384 = vadd.f32 %v814, %v3383
    %v3385 = vpop.f32.mrf.mxu0
    %v3386 = vadd.f32 %v818, %v3385
    %3387 = vdwg.mxu0
    %3388 = vmatprep.subr.mxu0 0.0
    %3389 = vmatpush1.msra.mxu0 %v791
    %3390 = vmatprep.subr.mxu0 0.0
    %3391 = vmatpush1.msra.mxu0 %v788
    %3392 = vmatprep.subr.mxu0 0.0
    %3393 = vmatpush1.msra.mxu0 %v785
    %3394 = vmatprep.subr.mxu0 0.0
    %3395 = vmatpush1.msra.mxu0 %v782
    %3396 = vmatprep.subr.mxu0 0.0
    %3397 = vmatpush1.msra.mxu0 %v779
    %3398 = vmatprep.subr.mxu0 0.0
    %3399 = vmatpush1.msra.mxu0 %v776
    %3400 = vmatprep.subr.mxu0 0.0
    %3401 = vmatpush1.msra.mxu0 %v773
    %3402 = vmatprep.subr.mxu0 0.0
    %3403 = vmatpush1.msra.mxu0 %v770
    %3404 = vmatprep.subr.mxu0 0.0
    %3405 = vmatpush1.msra.mxu0 %v767
    %3406 = vmatprep.subr.mxu0 0.0
    %3407 = vmatpush1.msra.mxu0 %v764
    %3408 = vmatprep.subr.mxu0 0.0
    %3409 = vmatpush1.msra.mxu0 %v761
    %3410 = vmatprep.subr.mxu0 0.0
    %3411 = vmatpush1.msra.mxu0 %v758
    %3412 = vmatprep.subr.mxu0 0.0
    %3413 = vmatpush1.msra.mxu0 %v755
    %3414 = vmatprep.subr.mxu0 0.0
    %3415 = vmatpush1.msra.mxu0 %v752
    %3416 = vmatprep.subr.mxu0 0.0
    %3417 = vmatpush1.msra.mxu0 %v749
    %3418 = vmatprep.subr.mxu0 0.0
    %3419 = vmatpush1.msra.mxu0 %v746
    %3420 = vmatprep.subr.mxu0 0.0
    %3421 = vmatpush2.msra.mxu0 0.0
    %3422 = vmatprep.subr.mxu0 0.0
    %3423 = vmatpush2.msra.mxu0 0.0
    %3424 = vmatprep.subr.mxu0 0.0
    %3425 = vmatpush2.msra.mxu0 0.0
    %3426 = vmatprep.subr.mxu0 0.0
    %3427 = vmatpush2.msra.mxu0 0.0
    %3428 = vmatprep.subr.mxu0 0.0
    %3429 = vmatpush2.msra.mxu0 0.0
    %3430 = vmatprep.subr.mxu0 0.0
    %3431 = vmatpush2.msra.mxu0 0.0
    %3432 = vmatprep.subr.mxu0 0.0
    %3433 = vmatpush2.msra.mxu0 0.0
    %3434 = vmatprep.subr.mxu0 0.0
    %3435 = vmatpush2.msra.mxu0 0.0
    %3436 = vmatprep.subr.mxu0 0.0
    %3437 = vmatpush2.msra.mxu0 0.0
    %3438 = vmatprep.subr.mxu0 0.0
    %3439 = vmatpush2.msra.mxu0 0.0
    %3440 = vmatprep.subr.mxu0 0.0
    %3441 = vmatpush2.msra.mxu0 0.0
    %3442 = vmatprep.subr.mxu0 0.0
    %3443 = vmatpush2.msra.mxu0 0.0
    %3444 = vmatprep.subr.mxu0 0.0
    %3445 = vmatpush2.msra.mxu0 0.0
    %3446 = vmatprep.subr.mxu0 0.0
    %3447 = vmatpush2.msra.mxu0 0.0
    %3448 = vmatprep.subr.mxu0 0.0
    %3449 = vmatpush2.msra.mxu0 0.0
    %3450 = vmatprep.subr.mxu0 0.0
    %3451 = vmatpush2.msra.mxu0 0.0
    %3452 = vmatprep.mubr.f32.mxu0 0.0
    %3453 = vmatmul.mubr.f32.gmra.mxu0 %v3171
    %v3454 = vpop.f32.mrf.mxu0
    %v3455 = vadd.f32 %v822, %v3454
    %v3456 = vpop.f32.mrf.mxu0
    %3457 = vdwg.mxu0
    %s3458 = scalar_lea.vmem [#allocation2], 168
    %v3459 = vld [vmem:[%s3458] sm:$0xff]
    %v3460 = vld [vmem:[%s3458 + $0x8] sm:$0xff]
    %v3461 = vld [vmem:[%s3458 + $0x10] sm:$0xff]
    %v3462 = vadd.f32 %v3459, %v3243
    %v3463 = vxor.u32 %v3462, 2147483648
    %v3464 = vmul.f32 %v3463, 1.442695
    %v3465 = vpow.pop %v3464
    %v3466 = vadd.f32 %v3465, 1.0
    %v3467 = vrcp.pop %v3466
    %v3468 = vmul.f32 1.0, %v3467
    %v3469 = vadd.f32 %v3460, %v3245
    %v3470 = vxor.u32 %v3469, 2147483648
    %v3471 = vmul.f32 %v3470, 1.442695
    %v3472 = vpow.pop %v3471
    %v3473 = vadd.f32 %v3472, 1.0
    %v3474 = vrcp.pop %v3473
    %v3475 = vmul.f32 1.0, %v3474
    %v3476 = vmul.f32 %v3468, %v3314
    %v3477 = vadd.f32 %v3461, %v3476
    %v3478 = vtanh.pop %v3477
    %v3479 = vsub.f32 1.0, %v3475
    %v3480 = vmul.f32 %v3479, %v3478
    %v3481 = vmul.f32 %v3475, %v3146
    %v3482 = vadd.f32 %v3480, %v3481
    %v3483 = vld [vmem:[#allocation3] sm:$0xff]
    %v3484 = vld [vmem:[#allocation3 + $0x8] sm:$0xff]
    %v3485 = vld [vmem:[#allocation3 + $0x10] sm:$0xff]
    %v3486 = vadd.f32 %v3483, %v3384
    %v3487 = vxor.u32 %v3486, 2147483648
    %v3488 = vmul.f32 %v3487, 1.442695
    %v3489 = vpow.pop %v3488
    %v3490 = vadd.f32 %v3489, 1.0
    %v3491 = vrcp.pop %v3490
    %v3492 = vmul.f32 1.0, %v3491
    %v3493 = vadd.f32 %v3484, %v3386
    %v3494 = vxor.u32 %v3493, 2147483648
    %v3495 = vmul.f32 %v3494, 1.442695
    %v3496 = vpow.pop %v3495
    %v3497 = vadd.f32 %v3496, 1.0
    %v3498 = vrcp.pop %v3497
    %v3499 = vmul.f32 1.0, %v3498
    %v3500 = vmul.f32 %v3492, %v3455
    %v3501 = vadd.f32 %v3485, %v3500
    %v3502 = vtanh.pop %v3501
    %v3503 = vsub.f32 1.0, %v3499
    %v3504 = vmul.f32 %v3503, %v3502
    %v3505 = vmul.f32 %v3499, %v3171
    %v3506 = vadd.f32 %v3504, %v3505
    %s3507 = scalar_lea.vmem [#allocation4], 56
    %3508 = vst [vmem:[%s3507] sm:$0xff] %v3482
    %3509 = vst [vmem:[#allocation5] sm:$0xff] %v3506
    %v3510 = vld [vmem:[#allocation4] sm:$0xff]
    %v3511 = vld [vmem:[#allocation4 + $0x8] sm:$0xff]
    %v3512 = vld [vmem:[#allocation4 + $0x10] sm:$0xff]
    %v3513 = vld [vmem:[#allocation4 + $0x18] sm:$0xff]
    %v3514 = vld [vmem:[#allocation4 + $0x20] sm:$0xff]
    %v3515 = vld [vmem:[#allocation4 + $0x28] sm:$0xff]
    %v3516 = vld [vmem:[#allocation4 + $0x30] sm:$0xff]
    %v3517 = vld [vmem:[#allocation4 + $0x38] sm:$0xff]
    %v3518 = vcombine.low %v3510, %v3512
    %v3519 = vcombine.high %v3510, %v3512
    %v3521 = vunpack.c.l.s4 1983009808
    %v3522 = vunpack.c.0.s8 %v3521
    %v3523 = vlaneseq
    %v3524 = vshrl.u32 %v3523, 7
    %v3525 = vsub.s32 %v3522, %v3524
    %v3526 = vrot.slane %v3518, %v3525
    %v3528 = vunpack.c.l.s4 1983009808
    %v3529 = vunpack.c.0.s8 %v3528
    %v3530 = vlaneseq
    %v3531 = vshrl.u32 %v3530, 7
    %v3532 = vsub.s32 %v3529, %v3531
    %v3533 = vrot.slane %v3519, %v3532
    %v3534 = vcombine.low %v3511, %v3513
    %v3535 = vcombine.high %v3511, %v3513
    %v3537 = vunpack.c.l.s4 1983009808
    %v3538 = vunpack.c.0.s8 %v3537
    %v3539 = vlaneseq
    %v3540 = vshrl.u32 %v3539, 7
    %v3541 = vsub.s32 %v3538, %v3540
    %v3542 = vrot.slane %v3534, %v3541
    %v3544 = vunpack.c.l.s4 1983009808
    %v3545 = vunpack.c.0.s8 %v3544
    %v3546 = vlaneseq
    %v3547 = vshrl.u32 %v3546, 7
    %v3548 = vsub.s32 %v3545, %v3547
    %v3549 = vrot.slane %v3535, %v3548
    %v3550 = vcombine.low %v3514, %v3516
    %v3551 = vcombine.high %v3514, %v3516
    %v3553 = vunpack.c.l.s4 1983009808
    %v3554 = vunpack.c.0.s8 %v3553
    %v3555 = vlaneseq
    %v3556 = vshrl.u32 %v3555, 7
    %v3557 = vsub.s32 %v3554, %v3556
    %v3558 = vrot.slane %v3550, %v3557
    %v3560 = vunpack.c.l.s4 1983009808
    %v3561 = vunpack.c.0.s8 %v3560
    %v3562 = vlaneseq
    %v3563 = vshrl.u32 %v3562, 7
    %v3564 = vsub.s32 %v3561, %v3563
    %v3565 = vrot.slane %v3551, %v3564
    %v3566 = vcombine.low %v3515, %v3517
    %v3567 = vcombine.high %v3515, %v3517
    %v3569 = vunpack.c.l.s4 1983009808
    %v3570 = vunpack.c.0.s8 %v3569
    %v3571 = vlaneseq
    %v3572 = vshrl.u32 %v3571, 7
    %v3573 = vsub.s32 %v3570, %v3572
    %v3574 = vrot.slane %v3566, %v3573
    %v3576 = vunpack.c.l.s4 1983009808
    %v3577 = vunpack.c.0.s8 %v3576
    %v3578 = vlaneseq
    %v3579 = vshrl.u32 %v3578, 7
    %v3580 = vsub.s32 %v3577, %v3579
    %v3581 = vrot.slane %v3567, %v3580
    %v3582 = vcombine.low %v3526, %v3542
    %v3583 = vcombine.high %v3526, %v3542
    %v3585 = vunpack.c.l.s4 1934713408
    %v3586 = vunpack.c.0.s8 %v3585
    %v3587 = vlaneseq
    %v3588 = vshrl.u32 %v3587, 7
    %v3589 = vsub.s32 %v3586, %v3588
    %v3590 = vrot.slane %v3582, %v3589
    %v3592 = vunpack.c.l.s4 1934713408
    %v3593 = vunpack.c.0.s8 %v3592
    %v3594 = vlaneseq
    %v3595 = vshrl.u32 %v3594, 7
    %v3596 = vsub.s32 %v3593, %v3595
    %v3597 = vrot.slane %v3583, %v3596
    %v3598 = vcombine.low %v3533, %v3549
    %v3599 = vcombine.high %v3533, %v3549
    %v3601 = vunpack.c.l.s4 1934713408
    %v3602 = vunpack.c.0.s8 %v3601
    %v3603 = vlaneseq
    %v3604 = vshrl.u32 %v3603, 7
    %v3605 = vsub.s32 %v3602, %v3604
    %v3606 = vrot.slane %v3598, %v3605
    %v3608 = vunpack.c.l.s4 1934713408
    %v3609 = vunpack.c.0.s8 %v3608
    %v3610 = vlaneseq
    %v3611 = vshrl.u32 %v3610, 7
    %v3612 = vsub.s32 %v3609, %v3611
    %v3613 = vrot.slane %v3599, %v3612
    %v3614 = vcombine.low %v3558, %v3574
    %v3615 = vcombine.high %v3558, %v3574
    %v3617 = vunpack.c.l.s4 1934713408
    %v3618 = vunpack.c.0.s8 %v3617
    %v3619 = vlaneseq
    %v3620 = vshrl.u32 %v3619, 7
    %v3621 = vsub.s32 %v3618, %v3620
    %v3622 = vrot.slane %v3614, %v3621
    %v3624 = vunpack.c.l.s4 1934713408
    %v3625 = vunpack.c.0.s8 %v3624
    %v3626 = vlaneseq
    %v3627 = vshrl.u32 %v3626, 7
    %v3628 = vsub.s32 %v3625, %v3627
    %v3629 = vrot.slane %v3615, %v3628
    %v3630 = vcombine.low %v3565, %v3581
    %v3631 = vcombine.high %v3565, %v3581
    %v3633 = vunpack.c.l.s4 1934713408
    %v3634 = vunpack.c.0.s8 %v3633
    %v3635 = vlaneseq
    %v3636 = vshrl.u32 %v3635, 7
    %v3637 = vsub.s32 %v3634, %v3636
    %v3638 = vrot.slane %v3630, %v3637
    %v3640 = vunpack.c.l.s4 1934713408
    %v3641 = vunpack.c.0.s8 %v3640
    %v3642 = vlaneseq
    %v3643 = vshrl.u32 %v3642, 7
    %v3644 = vsub.s32 %v3641, %v3643
    %v3645 = vrot.slane %v3631, %v3644
    %v3646 = vcombine.low %v3590, %v3622
    %v3647 = vcombine.high %v3590, %v3622
    %v3648 = vcombine.low %v3597, %v3629
    %v3649 = vcombine.high %v3597, %v3629
    %v3650 = vcombine.low %v3606, %v3638
    %v3651 = vcombine.high %v3606, %v3638
    %v3652 = vcombine.low %v3613, %v3645
    %v3653 = vcombine.high %v3613, %v3645
    %v3654 = vld [vmem:[#allocation5] sm:$0xff]
    %v3655 = vld [vmem:[#allocation5 + $0x8] sm:$0xff]
    %v3656 = vld [vmem:[#allocation5 + $0x10] sm:$0xff]
    %v3657 = vld [vmem:[#allocation5 + $0x18] sm:$0xff]
    %v3658 = vld [vmem:[#allocation5 + $0x20] sm:$0xff]
    %v3659 = vld [vmem:[#allocation5 + $0x28] sm:$0xff]
    %v3660 = vld [vmem:[#allocation5 + $0x30] sm:$0xff]
    %v3661 = vld [vmem:[#allocation5 + $0x38] sm:$0xff]
    %v3662 = vcombine.low %v3654, %v3656
    %v3663 = vcombine.high %v3654, %v3656
    %v3665 = vunpack.c.l.s4 1983009808
    %v3666 = vunpack.c.0.s8 %v3665
    %v3667 = vlaneseq
    %v3668 = vshrl.u32 %v3667, 7
    %v3669 = vsub.s32 %v3666, %v3668
    %v3670 = vrot.slane %v3662, %v3669
    %v3672 = vunpack.c.l.s4 1983009808
    %v3673 = vunpack.c.0.s8 %v3672
    %v3674 = vlaneseq
    %v3675 = vshrl.u32 %v3674, 7
    %v3676 = vsub.s32 %v3673, %v3675
    %v3677 = vrot.slane %v3663, %v3676
    %v3678 = vcombine.low %v3655, %v3657
    %v3679 = vcombine.high %v3655, %v3657
    %v3681 = vunpack.c.l.s4 1983009808
    %v3682 = vunpack.c.0.s8 %v3681
    %v3683 = vlaneseq
    %v3684 = vshrl.u32 %v3683, 7
    %v3685 = vsub.s32 %v3682, %v3684
    %v3686 = vrot.slane %v3678, %v3685
    %v3688 = vunpack.c.l.s4 1983009808
    %v3689 = vunpack.c.0.s8 %v3688
    %v3690 = vlaneseq
    %v3691 = vshrl.u32 %v3690, 7
    %v3692 = vsub.s32 %v3689, %v3691
    %v3693 = vrot.slane %v3679, %v3692
    %v3694 = vcombine.low %v3658, %v3660
    %v3695 = vcombine.high %v3658, %v3660
    %v3697 = vunpack.c.l.s4 1983009808
    %v3698 = vunpack.c.0.s8 %v3697
    %v3699 = vlaneseq
    %v3700 = vshrl.u32 %v3699, 7
    %v3701 = vsub.s32 %v3698, %v3700
    %v3702 = vrot.slane %v3694, %v3701
    %v3704 = vunpack.c.l.s4 1983009808
    %v3705 = vunpack.c.0.s8 %v3704
    %v3706 = vlaneseq
    %v3707 = vshrl.u32 %v3706, 7
    %v3708 = vsub.s32 %v3705, %v3707
    %v3709 = vrot.slane %v3695, %v3708
    %v3710 = vcombine.low %v3659, %v3661
    %v3711 = vcombine.high %v3659, %v3661
    %v3713 = vunpack.c.l.s4 1983009808
    %v3714 = vunpack.c.0.s8 %v3713
    %v3715 = vlaneseq
    %v3716 = vshrl.u32 %v3715, 7
    %v3717 = vsub.s32 %v3714, %v3716
    %v3718 = vrot.slane %v3710, %v3717
    %v3720 = vunpack.c.l.s4 1983009808
    %v3721 = vunpack.c.0.s8 %v3720
    %v3722 = vlaneseq
    %v3723 = vshrl.u32 %v3722, 7
    %v3724 = vsub.s32 %v3721, %v3723
    %v3725 = vrot.slane %v3711, %v3724
    %v3726 = vcombine.low %v3670, %v3686
    %v3727 = vcombine.high %v3670, %v3686
    %v3729 = vunpack.c.l.s4 1934713408
    %v3730 = vunpack.c.0.s8 %v3729
    %v3731 = vlaneseq
    %v3732 = vshrl.u32 %v3731, 7
    %v3733 = vsub.s32 %v3730, %v3732
    %v3734 = vrot.slane %v3726, %v3733
    %v3736 = vunpack.c.l.s4 1934713408
    %v3737 = vunpack.c.0.s8 %v3736
    %v3738 = vlaneseq
    %v3739 = vshrl.u32 %v3738, 7
    %v3740 = vsub.s32 %v3737, %v3739
    %v3741 = vrot.slane %v3727, %v3740
    %v3742 = vcombine.low %v3677, %v3693
    %v3743 = vcombine.high %v3677, %v3693
    %v3745 = vunpack.c.l.s4 1934713408
    %v3746 = vunpack.c.0.s8 %v3745
    %v3747 = vlaneseq
    %v3748 = vshrl.u32 %v3747, 7
    %v3749 = vsub.s32 %v3746, %v3748
    %v3750 = vrot.slane %v3742, %v3749
    %v3752 = vunpack.c.l.s4 1934713408
    %v3753 = vunpack.c.0.s8 %v3752
    %v3754 = vlaneseq
    %v3755 = vshrl.u32 %v3754, 7
    %v3756 = vsub.s32 %v3753, %v3755
    %v3757 = vrot.slane %v3743, %v3756
    %v3758 = vcombine.low %v3702, %v3718
    %v3759 = vcombine.high %v3702, %v3718
    %v3761 = vunpack.c.l.s4 1934713408
    %v3762 = vunpack.c.0.s8 %v3761
    %v3763 = vlaneseq
    %v3764 = vshrl.u32 %v3763, 7
    %v3765 = vsub.s32 %v3762, %v3764
    %v3766 = vrot.slane %v3758, %v3765
    %v3768 = vunpack.c.l.s4 1934713408
    %v3769 = vunpack.c.0.s8 %v3768
    %v3770 = vlaneseq
    %v3771 = vshrl.u32 %v3770, 7
    %v3772 = vsub.s32 %v3769, %v3771
    %v3773 = vrot.slane %v3759, %v3772
    %v3774 = vcombine.low %v3709, %v3725
    %v3775 = vcombine.high %v3709, %v3725
    %v3777 = vunpack.c.l.s4 1934713408
    %v3778 = vunpack.c.0.s8 %v3777
    %v3779 = vlaneseq
    %v3780 = vshrl.u32 %v3779, 7
    %v3781 = vsub.s32 %v3778, %v3780
    %v3782 = vrot.slane %v3774, %v3781
    %v3784 = vunpack.c.l.s4 1934713408
    %v3785 = vunpack.c.0.s8 %v3784
    %v3786 = vlaneseq
    %v3787 = vshrl.u32 %v3786, 7
    %v3788 = vsub.s32 %v3785, %v3787
    %v3789 = vrot.slane %v3775, %v3788
    %v3790 = vcombine.low %v3734, %v3766
    %v3791 = vcombine.high %v3734, %v3766
    %v3792 = vcombine.low %v3741, %v3773
    %v3793 = vcombine.high %v3741, %v3773
    %v3794 = vcombine.low %v3750, %v3782
    %v3795 = vcombine.high %v3750, %v3782
    %v3796 = vcombine.low %v3757, %v3789
    %v3797 = vcombine.high %v3757, %v3789
    %v3798 = vlaneseq
    %v3799 = vshrl.u32 %v3798, 7
    %v3800 = vsub.s32 0, %v3799
    %v3801 = vrot.slane %v3482, %v3800
    %3803 = vbcast.lane.b32.xlu0 %v3801, 256
    %v3804 = vpop.permute.xlu0 %3803
    %s3806 = sor.u32 256, 8
    %3807 = vbcast.lane.b32.xlu0 %v3801, %s3806
    %v3808 = vpop.permute.xlu0 %3807
    %s3810 = sor.u32 256, 16
    %3811 = vbcast.lane.b32.xlu0 %v3801, %s3810
    %v3812 = vpop.permute.xlu0 %3811
    %s3814 = sor.u32 256, 24
    %3815 = vbcast.lane.b32.xlu0 %v3801, %s3814
    %v3816 = vpop.permute.xlu0 %3815
    %s3818 = sor.u32 256, 32
    %3819 = vbcast.lane.b32.xlu0 %v3801, %s3818
    %v3820 = vpop.permute.xlu0 %3819
    %s3822 = sor.u32 256, 40
    %3823 = vbcast.lane.b32.xlu0 %v3801, %s3822
    %v3824 = vpop.permute.xlu0 %3823
    %s3826 = sor.u32 256, 48
    %3827 = vbcast.lane.b32.xlu0 %v3801, %s3826
    %v3828 = vpop.permute.xlu0 %3827
    %s3830 = sor.u32 256, 56
    %3831 = vbcast.lane.b32.xlu0 %v3801, %s3830
    %v3832 = vpop.permute.xlu0 %3831
    %s3834 = sor.u32 256, 64
    %3835 = vbcast.lane.b32.xlu0 %v3801, %s3834
    %v3836 = vpop.permute.xlu0 %3835
    %s3838 = sor.u32 256, 72
    %3839 = vbcast.lane.b32.xlu0 %v3801, %s3838
    %v3840 = vpop.permute.xlu0 %3839
    %s3842 = sor.u32 256, 80
    %3843 = vbcast.lane.b32.xlu0 %v3801, %s3842
    %v3844 = vpop.permute.xlu0 %3843
    %s3846 = sor.u32 256, 88
    %3847 = vbcast.lane.b32.xlu0 %v3801, %s3846
    %v3848 = vpop.permute.xlu0 %3847
    %s3850 = sor.u32 256, 96
    %3851 = vbcast.lane.b32.xlu0 %v3801, %s3850
    %v3852 = vpop.permute.xlu0 %3851
    %s3854 = sor.u32 256, 104
    %3855 = vbcast.lane.b32.xlu0 %v3801, %s3854
    %v3856 = vpop.permute.xlu0 %3855
    %s3858 = sor.u32 256, 112
    %3859 = vbcast.lane.b32.xlu0 %v3801, %s3858
    %v3860 = vpop.permute.xlu0 %3859
    %s3862 = sor.u32 256, 120
    %3863 = vbcast.lane.b32.xlu0 %v3801, %s3862
    %v3864 = vpop.permute.xlu0 %3863
    %v3865 = vlaneseq
    %v3866 = vshrl.u32 %v3865, 7
    %v3867 = vsub.s32 1, %v3866
    %v3868 = vrot.slane %v3482, %v3867
    %3870 = vbcast.lane.b32.xlu0 %v3868, 256
    %v3871 = vpop.permute.xlu0 %3870
    %s3873 = sor.u32 256, 8
    %3874 = vbcast.lane.b32.xlu0 %v3868, %s3873
    %v3875 = vpop.permute.xlu0 %3874
    %s3877 = sor.u32 256, 16
    %3878 = vbcast.lane.b32.xlu0 %v3868, %s3877
    %v3879 = vpop.permute.xlu0 %3878
    %s3881 = sor.u32 256, 24
    %3882 = vbcast.lane.b32.xlu0 %v3868, %s3881
    %v3883 = vpop.permute.xlu0 %3882
    %s3885 = sor.u32 256, 32
    %3886 = vbcast.lane.b32.xlu0 %v3868, %s3885
    %v3887 = vpop.permute.xlu0 %3886
    %s3889 = sor.u32 256, 40
    %3890 = vbcast.lane.b32.xlu0 %v3868, %s3889
    %v3891 = vpop.permute.xlu0 %3890
    %s3893 = sor.u32 256, 48
    %3894 = vbcast.lane.b32.xlu0 %v3868, %s3893
    %v3895 = vpop.permute.xlu0 %3894
    %s3897 = sor.u32 256, 56
    %3898 = vbcast.lane.b32.xlu0 %v3868, %s3897
    %v3899 = vpop.permute.xlu0 %3898
    %s3901 = sor.u32 256, 64
    %3902 = vbcast.lane.b32.xlu0 %v3868, %s3901
    %v3903 = vpop.permute.xlu0 %3902
    %s3905 = sor.u32 256, 72
    %3906 = vbcast.lane.b32.xlu0 %v3868, %s3905
    %v3907 = vpop.permute.xlu0 %3906
    %s3909 = sor.u32 256, 80
    %3910 = vbcast.lane.b32.xlu0 %v3868, %s3909
    %v3911 = vpop.permute.xlu0 %3910
    %s3913 = sor.u32 256, 88
    %3914 = vbcast.lane.b32.xlu0 %v3868, %s3913
    %v3915 = vpop.permute.xlu0 %3914
    %s3917 = sor.u32 256, 96
    %3918 = vbcast.lane.b32.xlu0 %v3868, %s3917
    %v3919 = vpop.permute.xlu0 %3918
    %s3921 = sor.u32 256, 104
    %3922 = vbcast.lane.b32.xlu0 %v3868, %s3921
    %v3923 = vpop.permute.xlu0 %3922
    %s3925 = sor.u32 256, 112
    %3926 = vbcast.lane.b32.xlu0 %v3868, %s3925
    %v3927 = vpop.permute.xlu0 %3926
    %s3929 = sor.u32 256, 120
    %3930 = vbcast.lane.b32.xlu0 %v3868, %s3929
    %v3931 = vpop.permute.xlu0 %3930
    %v3932 = vlaneseq
    %v3933 = vshrl.u32 %v3932, 7
    %v3934 = vsub.s32 2, %v3933
    %v3935 = vrot.slane %v3482, %v3934
    %3937 = vbcast.lane.b32.xlu0 %v3935, 256
    %v3938 = vpop.permute.xlu0 %3937
    %s3940 = sor.u32 256, 8
    %3941 = vbcast.lane.b32.xlu0 %v3935, %s3940
    %v3942 = vpop.permute.xlu0 %3941
    %s3944 = sor.u32 256, 16
    %3945 = vbcast.lane.b32.xlu0 %v3935, %s3944
    %v3946 = vpop.permute.xlu0 %3945
    %s3948 = sor.u32 256, 24
    %3949 = vbcast.lane.b32.xlu0 %v3935, %s3948
    %v3950 = vpop.permute.xlu0 %3949
    %s3952 = sor.u32 256, 32
    %3953 = vbcast.lane.b32.xlu0 %v3935, %s3952
    %v3954 = vpop.permute.xlu0 %3953
    %s3956 = sor.u32 256, 40
    %3957 = vbcast.lane.b32.xlu0 %v3935, %s3956
    %v3958 = vpop.permute.xlu0 %3957
    %s3960 = sor.u32 256, 48
    %3961 = vbcast.lane.b32.xlu0 %v3935, %s3960
    %v3962 = vpop.permute.xlu0 %3961
    %s3964 = sor.u32 256, 56
    %3965 = vbcast.lane.b32.xlu0 %v3935, %s3964
    %v3966 = vpop.permute.xlu0 %3965
    %s3968 = sor.u32 256, 64
    %3969 = vbcast.lane.b32.xlu0 %v3935, %s3968
    %v3970 = vpop.permute.xlu0 %3969
    %s3972 = sor.u32 256, 72
    %3973 = vbcast.lane.b32.xlu0 %v3935, %s3972
    %v3974 = vpop.permute.xlu0 %3973
    %s3976 = sor.u32 256, 80
    %3977 = vbcast.lane.b32.xlu0 %v3935, %s3976
    %v3978 = vpop.permute.xlu0 %3977
    %s3980 = sor.u32 256, 88
    %3981 = vbcast.lane.b32.xlu0 %v3935, %s3980
    %v3982 = vpop.permute.xlu0 %3981
    %s3984 = sor.u32 256, 96
    %3985 = vbcast.lane.b32.xlu0 %v3935, %s3984
    %v3986 = vpop.permute.xlu0 %3985
    %s3988 = sor.u32 256, 104
    %3989 = vbcast.lane.b32.xlu0 %v3935, %s3988
    %v3990 = vpop.permute.xlu0 %3989
    %s3992 = sor.u32 256, 112
    %3993 = vbcast.lane.b32.xlu0 %v3935, %s3992
    %v3994 = vpop.permute.xlu0 %3993
    %s3996 = sor.u32 256, 120
    %3997 = vbcast.lane.b32.xlu0 %v3935, %s3996
    %v3998 = vpop.permute.xlu0 %3997
    %v3999 = vlaneseq
    %v4000 = vshrl.u32 %v3999, 7
    %v4001 = vsub.s32 3, %v4000
    %v4002 = vrot.slane %v3482, %v4001
    %4004 = vbcast.lane.b32.xlu0 %v4002, 256
    %v4005 = vpop.permute.xlu0 %4004
    %s4007 = sor.u32 256, 8
    %4008 = vbcast.lane.b32.xlu0 %v4002, %s4007
    %v4009 = vpop.permute.xlu0 %4008
    %s4011 = sor.u32 256, 16
    %4012 = vbcast.lane.b32.xlu0 %v4002, %s4011
    %v4013 = vpop.permute.xlu0 %4012
    %s4015 = sor.u32 256, 24
    %4016 = vbcast.lane.b32.xlu0 %v4002, %s4015
    %v4017 = vpop.permute.xlu0 %4016
    %s4019 = sor.u32 256, 32
    %4020 = vbcast.lane.b32.xlu0 %v4002, %s4019
    %v4021 = vpop.permute.xlu0 %4020
    %s4023 = sor.u32 256, 40
    %4024 = vbcast.lane.b32.xlu0 %v4002, %s4023
    %v4025 = vpop.permute.xlu0 %4024
    %s4027 = sor.u32 256, 48
    %4028 = vbcast.lane.b32.xlu0 %v4002, %s4027
    %v4029 = vpop.permute.xlu0 %4028
    %s4031 = sor.u32 256, 56
    %4032 = vbcast.lane.b32.xlu0 %v4002, %s4031
    %v4033 = vpop.permute.xlu0 %4032
    %s4035 = sor.u32 256, 64
    %4036 = vbcast.lane.b32.xlu0 %v4002, %s4035
    %v4037 = vpop.permute.xlu0 %4036
    %s4039 = sor.u32 256, 72
    %4040 = vbcast.lane.b32.xlu0 %v4002, %s4039
    %v4041 = vpop.permute.xlu0 %4040
    %s4043 = sor.u32 256, 80
    %4044 = vbcast.lane.b32.xlu0 %v4002, %s4043
    %v4045 = vpop.permute.xlu0 %4044
    %s4047 = sor.u32 256, 88
    %4048 = vbcast.lane.b32.xlu0 %v4002, %s4047
    %v4049 = vpop.permute.xlu0 %4048
    %s4051 = sor.u32 256, 96
    %4052 = vbcast.lane.b32.xlu0 %v4002, %s4051
    %v4053 = vpop.permute.xlu0 %4052
    %s4055 = sor.u32 256, 104
    %4056 = vbcast.lane.b32.xlu0 %v4002, %s4055
    %v4057 = vpop.permute.xlu0 %4056
    %s4059 = sor.u32 256, 112
    %4060 = vbcast.lane.b32.xlu0 %v4002, %s4059
    %v4061 = vpop.permute.xlu0 %4060
    %s4063 = sor.u32 256, 120
    %4064 = vbcast.lane.b32.xlu0 %v4002, %s4063
    %v4065 = vpop.permute.xlu0 %4064
    %v4066 = vlaneseq
    %v4067 = vshrl.u32 %v4066, 7
    %v4068 = vsub.s32 4, %v4067
    %v4069 = vrot.slane %v3482, %v4068
    %4071 = vbcast.lane.b32.xlu0 %v4069, 256
    %v4072 = vpop.permute.xlu0 %4071
    %s4074 = sor.u32 256, 8
    %4075 = vbcast.lane.b32.xlu0 %v4069, %s4074
    %v4076 = vpop.permute.xlu0 %4075
    %s4078 = sor.u32 256, 16
    %4079 = vbcast.lane.b32.xlu0 %v4069, %s4078
    %v4080 = vpop.permute.xlu0 %4079
    %s4082 = sor.u32 256, 24
    %4083 = vbcast.lane.b32.xlu0 %v4069, %s4082
    %v4084 = vpop.permute.xlu0 %4083
    %s4086 = sor.u32 256, 32
    %4087 = vbcast.lane.b32.xlu0 %v4069, %s4086
    %v4088 = vpop.permute.xlu0 %4087
    %s4090 = sor.u32 256, 40
    %4091 = vbcast.lane.b32.xlu0 %v4069, %s4090
    %v4092 = vpop.permute.xlu0 %4091
    %s4094 = sor.u32 256, 48
    %4095 = vbcast.lane.b32.xlu0 %v4069, %s4094
    %v4096 = vpop.permute.xlu0 %4095
    %s4098 = sor.u32 256, 56
    %4099 = vbcast.lane.b32.xlu0 %v4069, %s4098
    %v4100 = vpop.permute.xlu0 %4099
    %s4102 = sor.u32 256, 64
    %4103 = vbcast.lane.b32.xlu0 %v4069, %s4102
    %v4104 = vpop.permute.xlu0 %4103
    %s4106 = sor.u32 256, 72
    %4107 = vbcast.lane.b32.xlu0 %v4069, %s4106
    %v4108 = vpop.permute.xlu0 %4107
    %s4110 = sor.u32 256, 80
    %4111 = vbcast.lane.b32.xlu0 %v4069, %s4110
    %v4112 = vpop.permute.xlu0 %4111
    %s4114 = sor.u32 256, 88
    %4115 = vbcast.lane.b32.xlu0 %v4069, %s4114
    %v4116 = vpop.permute.xlu0 %4115
    %s4118 = sor.u32 256, 96
    %4119 = vbcast.lane.b32.xlu0 %v4069, %s4118
    %v4120 = vpop.permute.xlu0 %4119
    %s4122 = sor.u32 256, 104
    %4123 = vbcast.lane.b32.xlu0 %v4069, %s4122
    %v4124 = vpop.permute.xlu0 %4123
    %s4126 = sor.u32 256, 112
    %4127 = vbcast.lane.b32.xlu0 %v4069, %s4126
    %v4128 = vpop.permute.xlu0 %4127
    %s4130 = sor.u32 256, 120
    %4131 = vbcast.lane.b32.xlu0 %v4069, %s4130
    %v4132 = vpop.permute.xlu0 %4131
    %v4133 = vlaneseq
    %v4134 = vshrl.u32 %v4133, 7
    %v4135 = vsub.s32 5, %v4134
    %v4136 = vrot.slane %v3482, %v4135
    %4138 = vbcast.lane.b32.xlu0 %v4136, 256
    %v4139 = vpop.permute.xlu0 %4138
    %s4141 = sor.u32 256, 8
    %4142 = vbcast.lane.b32.xlu0 %v4136, %s4141
    %v4143 = vpop.permute.xlu0 %4142
    %s4145 = sor.u32 256, 16
    %4146 = vbcast.lane.b32.xlu0 %v4136, %s4145
    %v4147 = vpop.permute.xlu0 %4146
    %s4149 = sor.u32 256, 24
    %4150 = vbcast.lane.b32.xlu0 %v4136, %s4149
    %v4151 = vpop.permute.xlu0 %4150
    %s4153 = sor.u32 256, 32
    %4154 = vbcast.lane.b32.xlu0 %v4136, %s4153
    %v4155 = vpop.permute.xlu0 %4154
    %s4157 = sor.u32 256, 40
    %4158 = vbcast.lane.b32.xlu0 %v4136, %s4157
    %v4159 = vpop.permute.xlu0 %4158
    %s4161 = sor.u32 256, 48
    %4162 = vbcast.lane.b32.xlu0 %v4136, %s4161
    %v4163 = vpop.permute.xlu0 %4162
    %s4165 = sor.u32 256, 56
    %4166 = vbcast.lane.b32.xlu0 %v4136, %s4165
    %v4167 = vpop.permute.xlu0 %4166
    %s4169 = sor.u32 256, 64
    %4170 = vbcast.lane.b32.xlu0 %v4136, %s4169
    %v4171 = vpop.permute.xlu0 %4170
    %s4173 = sor.u32 256, 72
    %4174 = vbcast.lane.b32.xlu0 %v4136, %s4173
    %v4175 = vpop.permute.xlu0 %4174
    %s4177 = sor.u32 256, 80
    %4178 = vbcast.lane.b32.xlu0 %v4136, %s4177
    %v4179 = vpop.permute.xlu0 %4178
    %s4181 = sor.u32 256, 88
    %4182 = vbcast.lane.b32.xlu0 %v4136, %s4181
    %v4183 = vpop.permute.xlu0 %4182
    %s4185 = sor.u32 256, 96
    %4186 = vbcast.lane.b32.xlu0 %v4136, %s4185
    %v4187 = vpop.permute.xlu0 %4186
    %s4189 = sor.u32 256, 104
    %4190 = vbcast.lane.b32.xlu0 %v4136, %s4189
    %v4191 = vpop.permute.xlu0 %4190
    %s4193 = sor.u32 256, 112
    %4194 = vbcast.lane.b32.xlu0 %v4136, %s4193
    %v4195 = vpop.permute.xlu0 %4194
    %s4197 = sor.u32 256, 120
    %4198 = vbcast.lane.b32.xlu0 %v4136, %s4197
    %v4199 = vpop.permute.xlu0 %4198
    %v4200 = vlaneseq
    %v4201 = vshrl.u32 %v4200, 7
    %v4202 = vsub.s32 6, %v4201
    %v4203 = vrot.slane %v3482, %v4202
    %4205 = vbcast.lane.b32.xlu0 %v4203, 256
    %v4206 = vpop.permute.xlu0 %4205
    %s4208 = sor.u32 256, 8
    %4209 = vbcast.lane.b32.xlu0 %v4203, %s4208
    %v4210 = vpop.permute.xlu0 %4209
    %s4212 = sor.u32 256, 16
    %4213 = vbcast.lane.b32.xlu0 %v4203, %s4212
    %v4214 = vpop.permute.xlu0 %4213
    %s4216 = sor.u32 256, 24
    %4217 = vbcast.lane.b32.xlu0 %v4203, %s4216
    %v4218 = vpop.permute.xlu0 %4217
    %s4220 = sor.u32 256, 32
    %4221 = vbcast.lane.b32.xlu0 %v4203, %s4220
    %v4222 = vpop.permute.xlu0 %4221
    %s4224 = sor.u32 256, 40
    %4225 = vbcast.lane.b32.xlu0 %v4203, %s4224
    %v4226 = vpop.permute.xlu0 %4225
    %s4228 = sor.u32 256, 48
    %4229 = vbcast.lane.b32.xlu0 %v4203, %s4228
    %v4230 = vpop.permute.xlu0 %4229
    %s4232 = sor.u32 256, 56
    %4233 = vbcast.lane.b32.xlu0 %v4203, %s4232
    %v4234 = vpop.permute.xlu0 %4233
    %s4236 = sor.u32 256, 64
    %4237 = vbcast.lane.b32.xlu0 %v4203, %s4236
    %v4238 = vpop.permute.xlu0 %4237
    %s4240 = sor.u32 256, 72
    %4241 = vbcast.lane.b32.xlu0 %v4203, %s4240
    %v4242 = vpop.permute.xlu0 %4241
    %s4244 = sor.u32 256, 80
    %4245 = vbcast.lane.b32.xlu0 %v4203, %s4244
    %v4246 = vpop.permute.xlu0 %4245
    %s4248 = sor.u32 256, 88
    %4249 = vbcast.lane.b32.xlu0 %v4203, %s4248
    %v4250 = vpop.permute.xlu0 %4249
    %s4252 = sor.u32 256, 96
    %4253 = vbcast.lane.b32.xlu0 %v4203, %s4252
    %v4254 = vpop.permute.xlu0 %4253
    %s4256 = sor.u32 256, 104
    %4257 = vbcast.lane.b32.xlu0 %v4203, %s4256
    %v4258 = vpop.permute.xlu0 %4257
    %s4260 = sor.u32 256, 112
    %4261 = vbcast.lane.b32.xlu0 %v4203, %s4260
    %v4262 = vpop.permute.xlu0 %4261
    %s4264 = sor.u32 256, 120
    %4265 = vbcast.lane.b32.xlu0 %v4203, %s4264
    %v4266 = vpop.permute.xlu0 %4265
    %v4267 = vlaneseq
    %v4268 = vshrl.u32 %v4267, 7
    %v4269 = vsub.s32 7, %v4268
    %v4270 = vrot.slane %v3482, %v4269
    %4272 = vbcast.lane.b32.xlu0 %v4270, 256
    %v4273 = vpop.permute.xlu0 %4272
    %s4275 = sor.u32 256, 8
    %4276 = vbcast.lane.b32.xlu0 %v4270, %s4275
    %v4277 = vpop.permute.xlu0 %4276
    %s4279 = sor.u32 256, 16
    %4280 = vbcast.lane.b32.xlu0 %v4270, %s4279
    %v4281 = vpop.permute.xlu0 %4280
    %s4283 = sor.u32 256, 24
    %4284 = vbcast.lane.b32.xlu0 %v4270, %s4283
    %v4285 = vpop.permute.xlu0 %4284
    %s4287 = sor.u32 256, 32
    %4288 = vbcast.lane.b32.xlu0 %v4270, %s4287
    %v4289 = vpop.permute.xlu0 %4288
    %s4291 = sor.u32 256, 40
    %4292 = vbcast.lane.b32.xlu0 %v4270, %s4291
    %v4293 = vpop.permute.xlu0 %4292
    %s4295 = sor.u32 256, 48
    %4296 = vbcast.lane.b32.xlu0 %v4270, %s4295
    %v4297 = vpop.permute.xlu0 %4296
    %s4299 = sor.u32 256, 56
    %4300 = vbcast.lane.b32.xlu0 %v4270, %s4299
    %v4301 = vpop.permute.xlu0 %4300
    %s4303 = sor.u32 256, 64
    %4304 = vbcast.lane.b32.xlu0 %v4270, %s4303
    %v4305 = vpop.permute.xlu0 %4304
    %s4307 = sor.u32 256, 72
    %4308 = vbcast.lane.b32.xlu0 %v4270, %s4307
    %v4309 = vpop.permute.xlu0 %4308
    %s4311 = sor.u32 256, 80
    %4312 = vbcast.lane.b32.xlu0 %v4270, %s4311
    %v4313 = vpop.permute.xlu0 %4312
    %s4315 = sor.u32 256, 88
    %4316 = vbcast.lane.b32.xlu0 %v4270, %s4315
    %v4317 = vpop.permute.xlu0 %4316
    %s4319 = sor.u32 256, 96
    %4320 = vbcast.lane.b32.xlu0 %v4270, %s4319
    %v4321 = vpop.permute.xlu0 %4320
    %s4323 = sor.u32 256, 104
    %4324 = vbcast.lane.b32.xlu0 %v4270, %s4323
    %v4325 = vpop.permute.xlu0 %4324
    %s4327 = sor.u32 256, 112
    %4328 = vbcast.lane.b32.xlu0 %v4270, %s4327
    %v4329 = vpop.permute.xlu0 %4328
    %s4331 = sor.u32 256, 120
    %4332 = vbcast.lane.b32.xlu0 %v4270, %s4331
    %v4333 = vpop.permute.xlu0 %4332
    %v4334 = vlaneseq
    %v4335 = vshrl.u32 %v4334, 7
    %v4336 = vsub.s32 0, %v4335
    %v4337 = vrot.slane %v3506, %v4336
    %4339 = vbcast.lane.b32.xlu0 %v4337, 256
    %v4340 = vpop.permute.xlu0 %4339
    %s4342 = sor.u32 256, 8
    %4343 = vbcast.lane.b32.xlu0 %v4337, %s4342
    %v4344 = vpop.permute.xlu0 %4343
    %s4346 = sor.u32 256, 16
    %4347 = vbcast.lane.b32.xlu0 %v4337, %s4346
    %v4348 = vpop.permute.xlu0 %4347
    %s4350 = sor.u32 256, 24
    %4351 = vbcast.lane.b32.xlu0 %v4337, %s4350
    %v4352 = vpop.permute.xlu0 %4351
    %s4354 = sor.u32 256, 32
    %4355 = vbcast.lane.b32.xlu0 %v4337, %s4354
    %v4356 = vpop.permute.xlu0 %4355
    %s4358 = sor.u32 256, 40
    %4359 = vbcast.lane.b32.xlu0 %v4337, %s4358
    %v4360 = vpop.permute.xlu0 %4359
    %s4362 = sor.u32 256, 48
    %4363 = vbcast.lane.b32.xlu0 %v4337, %s4362
    %v4364 = vpop.permute.xlu0 %4363
    %s4366 = sor.u32 256, 56
    %4367 = vbcast.lane.b32.xlu0 %v4337, %s4366
    %v4368 = vpop.permute.xlu0 %4367
    %s4370 = sor.u32 256, 64
    %4371 = vbcast.lane.b32.xlu0 %v4337, %s4370
    %v4372 = vpop.permute.xlu0 %4371
    %s4374 = sor.u32 256, 72
    %4375 = vbcast.lane.b32.xlu0 %v4337, %s4374
    %v4376 = vpop.permute.xlu0 %4375
    %s4378 = sor.u32 256, 80
    %4379 = vbcast.lane.b32.xlu0 %v4337, %s4378
    %v4380 = vpop.permute.xlu0 %4379
    %s4382 = sor.u32 256, 88
    %4383 = vbcast.lane.b32.xlu0 %v4337, %s4382
    %v4384 = vpop.permute.xlu0 %4383
    %s4386 = sor.u32 256, 96
    %4387 = vbcast.lane.b32.xlu0 %v4337, %s4386
    %v4388 = vpop.permute.xlu0 %4387
    %s4390 = sor.u32 256, 104
    %4391 = vbcast.lane.b32.xlu0 %v4337, %s4390
    %v4392 = vpop.permute.xlu0 %4391
    %s4394 = sor.u32 256, 112
    %4395 = vbcast.lane.b32.xlu0 %v4337, %s4394
    %v4396 = vpop.permute.xlu0 %4395
    %s4398 = sor.u32 256, 120
    %4399 = vbcast.lane.b32.xlu0 %v4337, %s4398
    %v4400 = vpop.permute.xlu0 %4399
    %v4401 = vlaneseq
    %v4402 = vshrl.u32 %v4401, 7
    %v4403 = vsub.s32 1, %v4402
    %v4404 = vrot.slane %v3506, %v4403
    %4406 = vbcast.lane.b32.xlu0 %v4404, 256
    %v4407 = vpop.permute.xlu0 %4406
    %s4409 = sor.u32 256, 8
    %4410 = vbcast.lane.b32.xlu0 %v4404, %s4409
    %v4411 = vpop.permute.xlu0 %4410
    %s4413 = sor.u32 256, 16
    %4414 = vbcast.lane.b32.xlu0 %v4404, %s4413
    %v4415 = vpop.permute.xlu0 %4414
    %s4417 = sor.u32 256, 24
    %4418 = vbcast.lane.b32.xlu0 %v4404, %s4417
    %v4419 = vpop.permute.xlu0 %4418
    %s4421 = sor.u32 256, 32
    %4422 = vbcast.lane.b32.xlu0 %v4404, %s4421
    %v4423 = vpop.permute.xlu0 %4422
    %s4425 = sor.u32 256, 40
    %4426 = vbcast.lane.b32.xlu0 %v4404, %s4425
    %v4427 = vpop.permute.xlu0 %4426
    %s4429 = sor.u32 256, 48
    %4430 = vbcast.lane.b32.xlu0 %v4404, %s4429
    %v4431 = vpop.permute.xlu0 %4430
    %s4433 = sor.u32 256, 56
    %4434 = vbcast.lane.b32.xlu0 %v4404, %s4433
    %v4435 = vpop.permute.xlu0 %4434
    %s4437 = sor.u32 256, 64
    %4438 = vbcast.lane.b32.xlu0 %v4404, %s4437
    %v4439 = vpop.permute.xlu0 %4438
    %s4441 = sor.u32 256, 72
    %4442 = vbcast.lane.b32.xlu0 %v4404, %s4441
    %v4443 = vpop.permute.xlu0 %4442
    %s4445 = sor.u32 256, 80
    %4446 = vbcast.lane.b32.xlu0 %v4404, %s4445
    %v4447 = vpop.permute.xlu0 %4446
    %s4449 = sor.u32 256, 88
    %4450 = vbcast.lane.b32.xlu0 %v4404, %s4449
    %v4451 = vpop.permute.xlu0 %4450
    %s4453 = sor.u32 256, 96
    %4454 = vbcast.lane.b32.xlu0 %v4404, %s4453
    %v4455 = vpop.permute.xlu0 %4454
    %s4457 = sor.u32 256, 104
    %4458 = vbcast.lane.b32.xlu0 %v4404, %s4457
    %v4459 = vpop.permute.xlu0 %4458
    %s4461 = sor.u32 256, 112
    %4462 = vbcast.lane.b32.xlu0 %v4404, %s4461
    %v4463 = vpop.permute.xlu0 %4462
    %s4465 = sor.u32 256, 120
    %4466 = vbcast.lane.b32.xlu0 %v4404, %s4465
    %v4467 = vpop.permute.xlu0 %4466
    %v4468 = vlaneseq
    %v4469 = vshrl.u32 %v4468, 7
    %v4470 = vsub.s32 2, %v4469
    %v4471 = vrot.slane %v3506, %v4470
    %4473 = vbcast.lane.b32.xlu0 %v4471, 256
    %v4474 = vpop.permute.xlu0 %4473
    %s4476 = sor.u32 256, 8
    %4477 = vbcast.lane.b32.xlu0 %v4471, %s4476
    %v4478 = vpop.permute.xlu0 %4477
    %s4480 = sor.u32 256, 16
    %4481 = vbcast.lane.b32.xlu0 %v4471, %s4480
    %v4482 = vpop.permute.xlu0 %4481
    %s4484 = sor.u32 256, 24
    %4485 = vbcast.lane.b32.xlu0 %v4471, %s4484
    %v4486 = vpop.permute.xlu0 %4485
    %s4488 = sor.u32 256, 32
    %4489 = vbcast.lane.b32.xlu0 %v4471, %s4488
    %v4490 = vpop.permute.xlu0 %4489
    %s4492 = sor.u32 256, 40
    %4493 = vbcast.lane.b32.xlu0 %v4471, %s4492
    %v4494 = vpop.permute.xlu0 %4493
    %s4496 = sor.u32 256, 48
    %4497 = vbcast.lane.b32.xlu0 %v4471, %s4496
    %v4498 = vpop.permute.xlu0 %4497
    %s4500 = sor.u32 256, 56
    %4501 = vbcast.lane.b32.xlu0 %v4471, %s4500
    %v4502 = vpop.permute.xlu0 %4501
    %s4504 = sor.u32 256, 64
    %4505 = vbcast.lane.b32.xlu0 %v4471, %s4504
    %v4506 = vpop.permute.xlu0 %4505
    %s4508 = sor.u32 256, 72
    %4509 = vbcast.lane.b32.xlu0 %v4471, %s4508
    %v4510 = vpop.permute.xlu0 %4509
    %s4512 = sor.u32 256, 80
    %4513 = vbcast.lane.b32.xlu0 %v4471, %s4512
    %v4514 = vpop.permute.xlu0 %4513
    %s4516 = sor.u32 256, 88
    %4517 = vbcast.lane.b32.xlu0 %v4471, %s4516
    %v4518 = vpop.permute.xlu0 %4517
    %s4520 = sor.u32 256, 96
    %4521 = vbcast.lane.b32.xlu0 %v4471, %s4520
    %v4522 = vpop.permute.xlu0 %4521
    %s4524 = sor.u32 256, 104
    %4525 = vbcast.lane.b32.xlu0 %v4471, %s4524
    %v4526 = vpop.permute.xlu0 %4525
    %s4528 = sor.u32 256, 112
    %4529 = vbcast.lane.b32.xlu0 %v4471, %s4528
    %v4530 = vpop.permute.xlu0 %4529
    %s4532 = sor.u32 256, 120
    %4533 = vbcast.lane.b32.xlu0 %v4471, %s4532
    %v4534 = vpop.permute.xlu0 %4533
    %v4535 = vlaneseq
    %v4536 = vshrl.u32 %v4535, 7
    %v4537 = vsub.s32 3, %v4536
    %v4538 = vrot.slane %v3506, %v4537
    %4540 = vbcast.lane.b32.xlu0 %v4538, 256
    %v4541 = vpop.permute.xlu0 %4540
    %s4543 = sor.u32 256, 8
    %4544 = vbcast.lane.b32.xlu0 %v4538, %s4543
    %v4545 = vpop.permute.xlu0 %4544
    %s4547 = sor.u32 256, 16
    %4548 = vbcast.lane.b32.xlu0 %v4538, %s4547
    %v4549 = vpop.permute.xlu0 %4548
    %s4551 = sor.u32 256, 24
    %4552 = vbcast.lane.b32.xlu0 %v4538, %s4551
    %v4553 = vpop.permute.xlu0 %4552
    %s4555 = sor.u32 256, 32
    %4556 = vbcast.lane.b32.xlu0 %v4538, %s4555
    %v4557 = vpop.permute.xlu0 %4556
    %s4559 = sor.u32 256, 40
    %4560 = vbcast.lane.b32.xlu0 %v4538, %s4559
    %v4561 = vpop.permute.xlu0 %4560
    %s4563 = sor.u32 256, 48
    %4564 = vbcast.lane.b32.xlu0 %v4538, %s4563
    %v4565 = vpop.permute.xlu0 %4564
    %s4567 = sor.u32 256, 56
    %4568 = vbcast.lane.b32.xlu0 %v4538, %s4567
    %v4569 = vpop.permute.xlu0 %4568
    %s4571 = sor.u32 256, 64
    %4572 = vbcast.lane.b32.xlu0 %v4538, %s4571
    %v4573 = vpop.permute.xlu0 %4572
    %s4575 = sor.u32 256, 72
    %4576 = vbcast.lane.b32.xlu0 %v4538, %s4575
    %v4577 = vpop.permute.xlu0 %4576
    %s4579 = sor.u32 256, 80
    %4580 = vbcast.lane.b32.xlu0 %v4538, %s4579
    %v4581 = vpop.permute.xlu0 %4580
    %s4583 = sor.u32 256, 88
    %4584 = vbcast.lane.b32.xlu0 %v4538, %s4583
    %v4585 = vpop.permute.xlu0 %4584
    %s4587 = sor.u32 256, 96
    %4588 = vbcast.lane.b32.xlu0 %v4538, %s4587
    %v4589 = vpop.permute.xlu0 %4588
    %s4591 = sor.u32 256, 104
    %4592 = vbcast.lane.b32.xlu0 %v4538, %s4591
    %v4593 = vpop.permute.xlu0 %4592
    %s4595 = sor.u32 256, 112
    %4596 = vbcast.lane.b32.xlu0 %v4538, %s4595
    %v4597 = vpop.permute.xlu0 %4596
    %s4599 = sor.u32 256, 120
    %4600 = vbcast.lane.b32.xlu0 %v4538, %s4599
    %v4601 = vpop.permute.xlu0 %4600
    %v4602 = vlaneseq
    %v4603 = vshrl.u32 %v4602, 7
    %v4604 = vsub.s32 4, %v4603
    %v4605 = vrot.slane %v3506, %v4604
    %4607 = vbcast.lane.b32.xlu0 %v4605, 256
    %v4608 = vpop.permute.xlu0 %4607
    %s4610 = sor.u32 256, 8
    %4611 = vbcast.lane.b32.xlu0 %v4605, %s4610
    %v4612 = vpop.permute.xlu0 %4611
    %s4614 = sor.u32 256, 16
    %4615 = vbcast.lane.b32.xlu0 %v4605, %s4614
    %v4616 = vpop.permute.xlu0 %4615
    %s4618 = sor.u32 256, 24
    %4619 = vbcast.lane.b32.xlu0 %v4605, %s4618
    %v4620 = vpop.permute.xlu0 %4619
    %s4622 = sor.u32 256, 32
    %4623 = vbcast.lane.b32.xlu0 %v4605, %s4622
    %v4624 = vpop.permute.xlu0 %4623
    %s4626 = sor.u32 256, 40
    %4627 = vbcast.lane.b32.xlu0 %v4605, %s4626
    %v4628 = vpop.permute.xlu0 %4627
    %s4630 = sor.u32 256, 48
    %4631 = vbcast.lane.b32.xlu0 %v4605, %s4630
    %v4632 = vpop.permute.xlu0 %4631
    %s4634 = sor.u32 256, 56
    %4635 = vbcast.lane.b32.xlu0 %v4605, %s4634
    %v4636 = vpop.permute.xlu0 %4635
    %s4638 = sor.u32 256, 64
    %4639 = vbcast.lane.b32.xlu0 %v4605, %s4638
    %v4640 = vpop.permute.xlu0 %4639
    %s4642 = sor.u32 256, 72
    %4643 = vbcast.lane.b32.xlu0 %v4605, %s4642
    %v4644 = vpop.permute.xlu0 %4643
    %s4646 = sor.u32 256, 80
    %4647 = vbcast.lane.b32.xlu0 %v4605, %s4646
    %v4648 = vpop.permute.xlu0 %4647
    %s4650 = sor.u32 256, 88
    %4651 = vbcast.lane.b32.xlu0 %v4605, %s4650
    %v4652 = vpop.permute.xlu0 %4651
    %s4654 = sor.u32 256, 96
    %4655 = vbcast.lane.b32.xlu0 %v4605, %s4654
    %v4656 = vpop.permute.xlu0 %4655
    %s4658 = sor.u32 256, 104
    %4659 = vbcast.lane.b32.xlu0 %v4605, %s4658
    %v4660 = vpop.permute.xlu0 %4659
    %s4662 = sor.u32 256, 112
    %4663 = vbcast.lane.b32.xlu0 %v4605, %s4662
    %v4664 = vpop.permute.xlu0 %4663
    %s4666 = sor.u32 256, 120
    %4667 = vbcast.lane.b32.xlu0 %v4605, %s4666
    %v4668 = vpop.permute.xlu0 %4667
    %v4669 = vlaneseq
    %v4670 = vshrl.u32 %v4669, 7
    %v4671 = vsub.s32 5, %v4670
    %v4672 = vrot.slane %v3506, %v4671
    %4674 = vbcast.lane.b32.xlu0 %v4672, 256
    %v4675 = vpop.permute.xlu0 %4674
    %s4677 = sor.u32 256, 8
    %4678 = vbcast.lane.b32.xlu0 %v4672, %s4677
    %v4679 = vpop.permute.xlu0 %4678
    %s4681 = sor.u32 256, 16
    %4682 = vbcast.lane.b32.xlu0 %v4672, %s4681
    %v4683 = vpop.permute.xlu0 %4682
    %s4685 = sor.u32 256, 24
    %4686 = vbcast.lane.b32.xlu0 %v4672, %s4685
    %v4687 = vpop.permute.xlu0 %4686
    %s4689 = sor.u32 256, 32
    %4690 = vbcast.lane.b32.xlu0 %v4672, %s4689
    %v4691 = vpop.permute.xlu0 %4690
    %s4693 = sor.u32 256, 40
    %4694 = vbcast.lane.b32.xlu0 %v4672, %s4693
    %v4695 = vpop.permute.xlu0 %4694
    %s4697 = sor.u32 256, 48
    %4698 = vbcast.lane.b32.xlu0 %v4672, %s4697
    %v4699 = vpop.permute.xlu0 %4698
    %s4701 = sor.u32 256, 56
    %4702 = vbcast.lane.b32.xlu0 %v4672, %s4701
    %v4703 = vpop.permute.xlu0 %4702
    %s4705 = sor.u32 256, 64
    %4706 = vbcast.lane.b32.xlu0 %v4672, %s4705
    %v4707 = vpop.permute.xlu0 %4706
    %s4709 = sor.u32 256, 72
    %4710 = vbcast.lane.b32.xlu0 %v4672, %s4709
    %v4711 = vpop.permute.xlu0 %4710
    %s4713 = sor.u32 256, 80
    %4714 = vbcast.lane.b32.xlu0 %v4672, %s4713
    %v4715 = vpop.permute.xlu0 %4714
    %s4717 = sor.u32 256, 88
    %4718 = vbcast.lane.b32.xlu0 %v4672, %s4717
    %v4719 = vpop.permute.xlu0 %4718
    %s4721 = sor.u32 256, 96
    %4722 = vbcast.lane.b32.xlu0 %v4672, %s4721
    %v4723 = vpop.permute.xlu0 %4722
    %s4725 = sor.u32 256, 104
    %4726 = vbcast.lane.b32.xlu0 %v4672, %s4725
    %v4727 = vpop.permute.xlu0 %4726
    %s4729 = sor.u32 256, 112
    %4730 = vbcast.lane.b32.xlu0 %v4672, %s4729
    %v4731 = vpop.permute.xlu0 %4730
    %s4733 = sor.u32 256, 120
    %4734 = vbcast.lane.b32.xlu0 %v4672, %s4733
    %v4735 = vpop.permute.xlu0 %4734
    %v4736 = vlaneseq
    %v4737 = vshrl.u32 %v4736, 7
    %v4738 = vsub.s32 6, %v4737
    %v4739 = vrot.slane %v3506, %v4738
    %4741 = vbcast.lane.b32.xlu0 %v4739, 256
    %v4742 = vpop.permute.xlu0 %4741
    %s4744 = sor.u32 256, 8
    %4745 = vbcast.lane.b32.xlu0 %v4739, %s4744
    %v4746 = vpop.permute.xlu0 %4745
    %s4748 = sor.u32 256, 16
    %4749 = vbcast.lane.b32.xlu0 %v4739, %s4748
    %v4750 = vpop.permute.xlu0 %4749
    %s4752 = sor.u32 256, 24
    %4753 = vbcast.lane.b32.xlu0 %v4739, %s4752
    %v4754 = vpop.permute.xlu0 %4753
    %s4756 = sor.u32 256, 32
    %4757 = vbcast.lane.b32.xlu0 %v4739, %s4756
    %v4758 = vpop.permute.xlu0 %4757
    %s4760 = sor.u32 256, 40
    %4761 = vbcast.lane.b32.xlu0 %v4739, %s4760
    %v4762 = vpop.permute.xlu0 %4761
    %s4764 = sor.u32 256, 48
    %4765 = vbcast.lane.b32.xlu0 %v4739, %s4764
    %v4766 = vpop.permute.xlu0 %4765
    %s4768 = sor.u32 256, 56
    %4769 = vbcast.lane.b32.xlu0 %v4739, %s4768
    %v4770 = vpop.permute.xlu0 %4769
    %s4772 = sor.u32 256, 64
    %4773 = vbcast.lane.b32.xlu0 %v4739, %s4772
    %v4774 = vpop.permute.xlu0 %4773
    %s4776 = sor.u32 256, 72
    %4777 = vbcast.lane.b32.xlu0 %v4739, %s4776
    %v4778 = vpop.permute.xlu0 %4777
    %s4780 = sor.u32 256, 80
    %4781 = vbcast.lane.b32.xlu0 %v4739, %s4780
    %v4782 = vpop.permute.xlu0 %4781
    %s4784 = sor.u32 256, 88
    %4785 = vbcast.lane.b32.xlu0 %v4739, %s4784
    %v4786 = vpop.permute.xlu0 %4785
    %s4788 = sor.u32 256, 96
    %4789 = vbcast.lane.b32.xlu0 %v4739, %s4788
    %v4790 = vpop.permute.xlu0 %4789
    %s4792 = sor.u32 256, 104
    %4793 = vbcast.lane.b32.xlu0 %v4739, %s4792
    %v4794 = vpop.permute.xlu0 %4793
    %s4796 = sor.u32 256, 112
    %4797 = vbcast.lane.b32.xlu0 %v4739, %s4796
    %v4798 = vpop.permute.xlu0 %4797
    %s4800 = sor.u32 256, 120
    %4801 = vbcast.lane.b32.xlu0 %v4739, %s4800
    %v4802 = vpop.permute.xlu0 %4801
    %v4803 = vlaneseq
    %v4804 = vshrl.u32 %v4803, 7
    %v4805 = vsub.s32 7, %v4804
    %v4806 = vrot.slane %v3506, %v4805
    %4808 = vbcast.lane.b32.xlu0 %v4806, 256
    %v4809 = vpop.permute.xlu0 %4808
    %s4811 = sor.u32 256, 8
    %4812 = vbcast.lane.b32.xlu0 %v4806, %s4811
    %v4813 = vpop.permute.xlu0 %4812
    %s4815 = sor.u32 256, 16
    %4816 = vbcast.lane.b32.xlu0 %v4806, %s4815
    %v4817 = vpop.permute.xlu0 %4816
    %s4819 = sor.u32 256, 24
    %4820 = vbcast.lane.b32.xlu0 %v4806, %s4819
    %v4821 = vpop.permute.xlu0 %4820
    %s4823 = sor.u32 256, 32
    %4824 = vbcast.lane.b32.xlu0 %v4806, %s4823
    %v4825 = vpop.permute.xlu0 %4824
    %s4827 = sor.u32 256, 40
    %4828 = vbcast.lane.b32.xlu0 %v4806, %s4827
    %v4829 = vpop.permute.xlu0 %4828
    %s4831 = sor.u32 256, 48
    %4832 = vbcast.lane.b32.xlu0 %v4806, %s4831
    %v4833 = vpop.permute.xlu0 %4832
    %s4835 = sor.u32 256, 56
    %4836 = vbcast.lane.b32.xlu0 %v4806, %s4835
    %v4837 = vpop.permute.xlu0 %4836
    %s4839 = sor.u32 256, 64
    %4840 = vbcast.lane.b32.xlu0 %v4806, %s4839
    %v4841 = vpop.permute.xlu0 %4840
    %s4843 = sor.u32 256, 72
    %4844 = vbcast.lane.b32.xlu0 %v4806, %s4843
    %v4845 = vpop.permute.xlu0 %4844
    %s4847 = sor.u32 256, 80
    %4848 = vbcast.lane.b32.xlu0 %v4806, %s4847
    %v4849 = vpop.permute.xlu0 %4848
    %s4851 = sor.u32 256, 88
    %4852 = vbcast.lane.b32.xlu0 %v4806, %s4851
    %v4853 = vpop.permute.xlu0 %4852
    %s4855 = sor.u32 256, 96
    %4856 = vbcast.lane.b32.xlu0 %v4806, %s4855
    %v4857 = vpop.permute.xlu0 %4856
    %s4859 = sor.u32 256, 104
    %4860 = vbcast.lane.b32.xlu0 %v4806, %s4859
    %v4861 = vpop.permute.xlu0 %4860
    %s4863 = sor.u32 256, 112
    %4864 = vbcast.lane.b32.xlu0 %v4806, %s4863
    %v4865 = vpop.permute.xlu0 %4864
    %s4867 = sor.u32 256, 120
    %4868 = vbcast.lane.b32.xlu0 %v4806, %s4867
    %v4869 = vpop.permute.xlu0 %4868
    %4870 = vmatprep.subr.mxu0 0.0
    %4871 = vmatpush1.msra.mxu0 %v4400
    %4872 = vmatprep.subr.mxu0 0.0
    %4873 = vmatpush1.msra.mxu0 %v4396
    %4874 = vmatprep.subr.mxu0 0.0
    %4875 = vmatpush1.msra.mxu0 %v4392
    %4876 = vmatprep.subr.mxu0 0.0
    %4877 = vmatpush1.msra.mxu0 %v4388
    %4878 = vmatprep.subr.mxu0 0.0
    %4879 = vmatpush1.msra.mxu0 %v4384
    %4880 = vmatprep.subr.mxu0 0.0
    %4881 = vmatpush1.msra.mxu0 %v4380
    %4882 = vmatprep.subr.mxu0 0.0
    %4883 = vmatpush1.msra.mxu0 %v4376
    %4884 = vmatprep.subr.mxu0 0.0
    %4885 = vmatpush1.msra.mxu0 %v4372
    %4886 = vmatprep.subr.mxu0 0.0
    %4887 = vmatpush1.msra.mxu0 %v4368
    %4888 = vmatprep.subr.mxu0 0.0
    %4889 = vmatpush1.msra.mxu0 %v4364
    %4890 = vmatprep.subr.mxu0 0.0
    %4891 = vmatpush1.msra.mxu0 %v4360
    %4892 = vmatprep.subr.mxu0 0.0
    %4893 = vmatpush1.msra.mxu0 %v4356
    %4894 = vmatprep.subr.mxu0 0.0
    %4895 = vmatpush1.msra.mxu0 %v4352
    %4896 = vmatprep.subr.mxu0 0.0
    %4897 = vmatpush1.msra.mxu0 %v4348
    %4898 = vmatprep.subr.mxu0 0.0
    %4899 = vmatpush1.msra.mxu0 %v4344
    %4900 = vmatprep.subr.mxu0 0.0
    %4901 = vmatpush1.msra.mxu0 %v4340
    %4902 = vmatprep.subr.mxu0 0.0
    %4903 = vmatpush2.msra.mxu0 0.0
    %4904 = vmatprep.subr.mxu0 0.0
    %4905 = vmatpush2.msra.mxu0 0.0
    %4906 = vmatprep.subr.mxu0 0.0
    %4907 = vmatpush2.msra.mxu0 0.0
    %4908 = vmatprep.subr.mxu0 0.0
    %4909 = vmatpush2.msra.mxu0 0.0
    %4910 = vmatprep.subr.mxu0 0.0
    %4911 = vmatpush2.msra.mxu0 0.0
    %4912 = vmatprep.subr.mxu0 0.0
    %4913 = vmatpush2.msra.mxu0 0.0
    %4914 = vmatprep.subr.mxu0 0.0
    %4915 = vmatpush2.msra.mxu0 0.0
    %4916 = vmatprep.subr.mxu0 0.0
    %4917 = vmatpush2.msra.mxu0 0.0
    %4918 = vmatprep.subr.mxu0 0.0
    %4919 = vmatpush2.msra.mxu0 0.0
    %4920 = vmatprep.subr.mxu0 0.0
    %4921 = vmatpush2.msra.mxu0 0.0
    %4922 = vmatprep.subr.mxu0 0.0
    %4923 = vmatpush2.msra.mxu0 0.0
    %4924 = vmatprep.subr.mxu0 0.0
    %4925 = vmatpush2.msra.mxu0 0.0
    %4926 = vmatprep.subr.mxu0 0.0
    %4927 = vmatpush2.msra.mxu0 0.0
    %4928 = vmatprep.subr.mxu0 0.0
    %4929 = vmatpush2.msra.mxu0 0.0
    %4930 = vmatprep.subr.mxu0 0.0
    %4931 = vmatpush2.msra.mxu0 0.0
    %4932 = vmatprep.subr.mxu0 0.0
    %4933 = vmatpush2.msra.mxu0 0.0
    %4934 = vmatprep.mubr.f32.mxu0 0.0
    %4935 = vmatmul.mubr.f32.gmra.mxu0 %v3790
    %v4936 = vpop.f32.mrf.mxu0
    %v4937 = vadd.f32 0.0, %v4936
    %v4938 = vpop.f32.mrf.mxu0
    %4939 = vdwg.mxu0
    %4940 = vmatprep.subr.mxu0 0.0
    %4941 = vmatpush1.msra.mxu0 %v4467
    %4942 = vmatprep.subr.mxu0 0.0
    %4943 = vmatpush1.msra.mxu0 %v4463
    %4944 = vmatprep.subr.mxu0 0.0
    %4945 = vmatpush1.msra.mxu0 %v4459
    %4946 = vmatprep.subr.mxu0 0.0
    %4947 = vmatpush1.msra.mxu0 %v4455
    %4948 = vmatprep.subr.mxu0 0.0
    %4949 = vmatpush1.msra.mxu0 %v4451
    %4950 = vmatprep.subr.mxu0 0.0
    %4951 = vmatpush1.msra.mxu0 %v4447
    %4952 = vmatprep.subr.mxu0 0.0
    %4953 = vmatpush1.msra.mxu0 %v4443
    %4954 = vmatprep.subr.mxu0 0.0
    %4955 = vmatpush1.msra.mxu0 %v4439
    %4956 = vmatprep.subr.mxu0 0.0
    %4957 = vmatpush1.msra.mxu0 %v4435
    %4958 = vmatprep.subr.mxu0 0.0
    %4959 = vmatpush1.msra.mxu0 %v4431
    %4960 = vmatprep.subr.mxu0 0.0
    %4961 = vmatpush1.msra.mxu0 %v4427
    %4962 = vmatprep.subr.mxu0 0.0
    %4963 = vmatpush1.msra.mxu0 %v4423
    %4964 = vmatprep.subr.mxu0 0.0
    %4965 = vmatpush1.msra.mxu0 %v4419
    %4966 = vmatprep.subr.mxu0 0.0
    %4967 = vmatpush1.msra.mxu0 %v4415
    %4968 = vmatprep.subr.mxu0 0.0
    %4969 = vmatpush1.msra.mxu0 %v4411
    %4970 = vmatprep.subr.mxu0 0.0
    %4971 = vmatpush1.msra.mxu0 %v4407
    %4972 = vmatprep.subr.mxu0 0.0
    %4973 = vmatpush2.msra.mxu0 0.0
    %4974 = vmatprep.subr.mxu0 0.0
    %4975 = vmatpush2.msra.mxu0 0.0
    %4976 = vmatprep.subr.mxu0 0.0
    %4977 = vmatpush2.msra.mxu0 0.0
    %4978 = vmatprep.subr.mxu0 0.0
    %4979 = vmatpush2.msra.mxu0 0.0
    %4980 = vmatprep.subr.mxu0 0.0
    %4981 = vmatpush2.msra.mxu0 0.0
    %4982 = vmatprep.subr.mxu0 0.0
    %4983 = vmatpush2.msra.mxu0 0.0
    %4984 = vmatprep.subr.mxu0 0.0
    %4985 = vmatpush2.msra.mxu0 0.0
    %4986 = vmatprep.subr.mxu0 0.0
    %4987 = vmatpush2.msra.mxu0 0.0
    %4988 = vmatprep.subr.mxu0 0.0
    %4989 = vmatpush2.msra.mxu0 0.0
    %4990 = vmatprep.subr.mxu0 0.0
    %4991 = vmatpush2.msra.mxu0 0.0
    %4992 = vmatprep.subr.mxu0 0.0
    %4993 = vmatpush2.msra.mxu0 0.0
    %4994 = vmatprep.subr.mxu0 0.0
    %4995 = vmatpush2.msra.mxu0 0.0
    %4996 = vmatprep.subr.mxu0 0.0
    %4997 = vmatpush2.msra.mxu0 0.0
    %4998 = vmatprep.subr.mxu0 0.0
    %4999 = vmatpush2.msra.mxu0 0.0
    %5000 = vmatprep.subr.mxu0 0.0
    %5001 = vmatpush2.msra.mxu0 0.0
    %5002 = vmatprep.subr.mxu0 0.0
    %5003 = vmatpush2.msra.mxu0 0.0
    %5004 = vmatprep.mubr.f32.mxu0 0.0
    %5005 = vmatmul.mubr.f32.gmra.mxu0 %v3791
    %v5006 = vpop.f32.mrf.mxu0
    %v5007 = vadd.f32 0.0, %v5006
    %v5008 = vpop.f32.mrf.mxu0
    %5009 = vdwg.mxu0
    %5010 = vmatprep.subr.mxu0 0.0
    %5011 = vmatpush1.msra.mxu0 %v4534
    %5012 = vmatprep.subr.mxu0 0.0
    %5013 = vmatpush1.msra.mxu0 %v4530
    %5014 = vmatprep.subr.mxu0 0.0
    %5015 = vmatpush1.msra.mxu0 %v4526
    %5016 = vmatprep.subr.mxu0 0.0
    %5017 = vmatpush1.msra.mxu0 %v4522
    %5018 = vmatprep.subr.mxu0 0.0
    %5019 = vmatpush1.msra.mxu0 %v4518
    %5020 = vmatprep.subr.mxu0 0.0
    %5021 = vmatpush1.msra.mxu0 %v4514
    %5022 = vmatprep.subr.mxu0 0.0
    %5023 = vmatpush1.msra.mxu0 %v4510
    %5024 = vmatprep.subr.mxu0 0.0
    %5025 = vmatpush1.msra.mxu0 %v4506
    %5026 = vmatprep.subr.mxu0 0.0
    %5027 = vmatpush1.msra.mxu0 %v4502
    %5028 = vmatprep.subr.mxu0 0.0
    %5029 = vmatpush1.msra.mxu0 %v4498
    %5030 = vmatprep.subr.mxu0 0.0
    %5031 = vmatpush1.msra.mxu0 %v4494
    %5032 = vmatprep.subr.mxu0 0.0
    %5033 = vmatpush1.msra.mxu0 %v4490
    %5034 = vmatprep.subr.mxu0 0.0
    %5035 = vmatpush1.msra.mxu0 %v4486
    %5036 = vmatprep.subr.mxu0 0.0
    %5037 = vmatpush1.msra.mxu0 %v4482
    %5038 = vmatprep.subr.mxu0 0.0
    %5039 = vmatpush1.msra.mxu0 %v4478
    %5040 = vmatprep.subr.mxu0 0.0
    %5041 = vmatpush1.msra.mxu0 %v4474
    %5042 = vmatprep.subr.mxu0 0.0
    %5043 = vmatpush2.msra.mxu0 0.0
    %5044 = vmatprep.subr.mxu0 0.0
    %5045 = vmatpush2.msra.mxu0 0.0
    %5046 = vmatprep.subr.mxu0 0.0
    %5047 = vmatpush2.msra.mxu0 0.0
    %5048 = vmatprep.subr.mxu0 0.0
    %5049 = vmatpush2.msra.mxu0 0.0
    %5050 = vmatprep.subr.mxu0 0.0
    %5051 = vmatpush2.msra.mxu0 0.0
    %5052 = vmatprep.subr.mxu0 0.0
    %5053 = vmatpush2.msra.mxu0 0.0
    %5054 = vmatprep.subr.mxu0 0.0
    %5055 = vmatpush2.msra.mxu0 0.0
    %5056 = vmatprep.subr.mxu0 0.0
    %5057 = vmatpush2.msra.mxu0 0.0
    %5058 = vmatprep.subr.mxu0 0.0
    %5059 = vmatpush2.msra.mxu0 0.0
    %5060 = vmatprep.subr.mxu0 0.0
    %5061 = vmatpush2.msra.mxu0 0.0
    %5062 = vmatprep.subr.mxu0 0.0
    %5063 = vmatpush2.msra.mxu0 0.0
    %5064 = vmatprep.subr.mxu0 0.0
    %5065 = vmatpush2.msra.mxu0 0.0
    %5066 = vmatprep.subr.mxu0 0.0
    %5067 = vmatpush2.msra.mxu0 0.0
    %5068 = vmatprep.subr.mxu0 0.0
    %5069 = vmatpush2.msra.mxu0 0.0
    %5070 = vmatprep.subr.mxu0 0.0
    %5071 = vmatpush2.msra.mxu0 0.0
    %5072 = vmatprep.subr.mxu0 0.0
    %5073 = vmatpush2.msra.mxu0 0.0
    %5074 = vmatprep.mubr.f32.mxu0 0.0
    %5075 = vmatmul.mubr.f32.gmra.mxu0 %v3792
    %v5076 = vpop.f32.mrf.mxu0
    %v5077 = vadd.f32 0.0, %v5076
    %v5078 = vpop.f32.mrf.mxu0
    %5079 = vdwg.mxu0
    %5080 = vmatprep.subr.mxu0 0.0
    %5081 = vmatpush1.msra.mxu0 %v4601
    %5082 = vmatprep.subr.mxu0 0.0
    %5083 = vmatpush1.msra.mxu0 %v4597
    %5084 = vmatprep.subr.mxu0 0.0
    %5085 = vmatpush1.msra.mxu0 %v4593
    %5086 = vmatprep.subr.mxu0 0.0
    %5087 = vmatpush1.msra.mxu0 %v4589
    %5088 = vmatprep.subr.mxu0 0.0
    %5089 = vmatpush1.msra.mxu0 %v4585
    %5090 = vmatprep.subr.mxu0 0.0
    %5091 = vmatpush1.msra.mxu0 %v4581
    %5092 = vmatprep.subr.mxu0 0.0
    %5093 = vmatpush1.msra.mxu0 %v4577
    %5094 = vmatprep.subr.mxu0 0.0
    %5095 = vmatpush1.msra.mxu0 %v4573
    %5096 = vmatprep.subr.mxu0 0.0
    %5097 = vmatpush1.msra.mxu0 %v4569
    %5098 = vmatprep.subr.mxu0 0.0
    %5099 = vmatpush1.msra.mxu0 %v4565
    %5100 = vmatprep.subr.mxu0 0.0
    %5101 = vmatpush1.msra.mxu0 %v4561
    %5102 = vmatprep.subr.mxu0 0.0
    %5103 = vmatpush1.msra.mxu0 %v4557
    %5104 = vmatprep.subr.mxu0 0.0
    %5105 = vmatpush1.msra.mxu0 %v4553
    %5106 = vmatprep.subr.mxu0 0.0
    %5107 = vmatpush1.msra.mxu0 %v4549
    %5108 = vmatprep.subr.mxu0 0.0
    %5109 = vmatpush1.msra.mxu0 %v4545
    %5110 = vmatprep.subr.mxu0 0.0
    %5111 = vmatpush1.msra.mxu0 %v4541
    %5112 = vmatprep.subr.mxu0 0.0
    %5113 = vmatpush2.msra.mxu0 0.0
    %5114 = vmatprep.subr.mxu0 0.0
    %5115 = vmatpush2.msra.mxu0 0.0
    %5116 = vmatprep.subr.mxu0 0.0
    %5117 = vmatpush2.msra.mxu0 0.0
    %5118 = vmatprep.subr.mxu0 0.0
    %5119 = vmatpush2.msra.mxu0 0.0
    %5120 = vmatprep.subr.mxu0 0.0
    %5121 = vmatpush2.msra.mxu0 0.0
    %5122 = vmatprep.subr.mxu0 0.0
    %5123 = vmatpush2.msra.mxu0 0.0
    %5124 = vmatprep.subr.mxu0 0.0
    %5125 = vmatpush2.msra.mxu0 0.0
    %5126 = vmatprep.subr.mxu0 0.0
    %5127 = vmatpush2.msra.mxu0 0.0
    %5128 = vmatprep.subr.mxu0 0.0
    %5129 = vmatpush2.msra.mxu0 0.0
    %5130 = vmatprep.subr.mxu0 0.0
    %5131 = vmatpush2.msra.mxu0 0.0
    %5132 = vmatprep.subr.mxu0 0.0
    %5133 = vmatpush2.msra.mxu0 0.0
    %5134 = vmatprep.subr.mxu0 0.0
    %5135 = vmatpush2.msra.mxu0 0.0
    %5136 = vmatprep.subr.mxu0 0.0
    %5137 = vmatpush2.msra.mxu0 0.0
    %5138 = vmatprep.subr.mxu0 0.0
    %5139 = vmatpush2.msra.mxu0 0.0
    %5140 = vmatprep.subr.mxu0 0.0
    %5141 = vmatpush2.msra.mxu0 0.0
    %5142 = vmatprep.subr.mxu0 0.0
    %5143 = vmatpush2.msra.mxu0 0.0
    %5144 = vmatprep.mubr.f32.mxu0 0.0
    %5145 = vmatmul.mubr.f32.gmra.mxu0 %v3793
    %v5146 = vpop.f32.mrf.mxu0
    %v5147 = vadd.f32 0.0, %v5146
    %v5148 = vpop.f32.mrf.mxu0
    %5149 = vdwg.mxu0
    %5150 = vmatprep.subr.mxu0 0.0
    %5151 = vmatpush1.msra.mxu0 %v4668
    %5152 = vmatprep.subr.mxu0 0.0
    %5153 = vmatpush1.msra.mxu0 %v4664
    %5154 = vmatprep.subr.mxu0 0.0
    %5155 = vmatpush1.msra.mxu0 %v4660
    %5156 = vmatprep.subr.mxu0 0.0
    %5157 = vmatpush1.msra.mxu0 %v4656
    %5158 = vmatprep.subr.mxu0 0.0
    %5159 = vmatpush1.msra.mxu0 %v4652
    %5160 = vmatprep.subr.mxu0 0.0
    %5161 = vmatpush1.msra.mxu0 %v4648
    %5162 = vmatprep.subr.mxu0 0.0
    %5163 = vmatpush1.msra.mxu0 %v4644
    %5164 = vmatprep.subr.mxu0 0.0
    %5165 = vmatpush1.msra.mxu0 %v4640
    %5166 = vmatprep.subr.mxu0 0.0
    %5167 = vmatpush1.msra.mxu0 %v4636
    %5168 = vmatprep.subr.mxu0 0.0
    %5169 = vmatpush1.msra.mxu0 %v4632
    %5170 = vmatprep.subr.mxu0 0.0
    %5171 = vmatpush1.msra.mxu0 %v4628
    %5172 = vmatprep.subr.mxu0 0.0
    %5173 = vmatpush1.msra.mxu0 %v4624
    %5174 = vmatprep.subr.mxu0 0.0
    %5175 = vmatpush1.msra.mxu0 %v4620
    %5176 = vmatprep.subr.mxu0 0.0
    %5177 = vmatpush1.msra.mxu0 %v4616
    %5178 = vmatprep.subr.mxu0 0.0
    %5179 = vmatpush1.msra.mxu0 %v4612
    %5180 = vmatprep.subr.mxu0 0.0
    %5181 = vmatpush1.msra.mxu0 %v4608
    %5182 = vmatprep.subr.mxu0 0.0
    %5183 = vmatpush2.msra.mxu0 0.0
    %5184 = vmatprep.subr.mxu0 0.0
    %5185 = vmatpush2.msra.mxu0 0.0
    %5186 = vmatprep.subr.mxu0 0.0
    %5187 = vmatpush2.msra.mxu0 0.0
    %5188 = vmatprep.subr.mxu0 0.0
    %5189 = vmatpush2.msra.mxu0 0.0
    %5190 = vmatprep.subr.mxu0 0.0
    %5191 = vmatpush2.msra.mxu0 0.0
    %5192 = vmatprep.subr.mxu0 0.0
    %5193 = vmatpush2.msra.mxu0 0.0
    %5194 = vmatprep.subr.mxu0 0.0
    %5195 = vmatpush2.msra.mxu0 0.0
    %5196 = vmatprep.subr.mxu0 0.0
    %5197 = vmatpush2.msra.mxu0 0.0
    %5198 = vmatprep.subr.mxu0 0.0
    %5199 = vmatpush2.msra.mxu0 0.0
    %5200 = vmatprep.subr.mxu0 0.0
    %5201 = vmatpush2.msra.mxu0 0.0
    %5202 = vmatprep.subr.mxu0 0.0
    %5203 = vmatpush2.msra.mxu0 0.0
    %5204 = vmatprep.subr.mxu0 0.0
    %5205 = vmatpush2.msra.mxu0 0.0
    %5206 = vmatprep.subr.mxu0 0.0
    %5207 = vmatpush2.msra.mxu0 0.0
    %5208 = vmatprep.subr.mxu0 0.0
    %5209 = vmatpush2.msra.mxu0 0.0
    %5210 = vmatprep.subr.mxu0 0.0
    %5211 = vmatpush2.msra.mxu0 0.0
    %5212 = vmatprep.subr.mxu0 0.0
    %5213 = vmatpush2.msra.mxu0 0.0
    %5214 = vmatprep.mubr.f32.mxu0 0.0
    %5215 = vmatmul.mubr.f32.gmra.mxu0 %v3794
    %v5216 = vpop.f32.mrf.mxu0
    %v5217 = vadd.f32 0.0, %v5216
    %v5218 = vpop.f32.mrf.mxu0
    %5219 = vdwg.mxu0
    %5220 = vmatprep.subr.mxu0 0.0
    %5221 = vmatpush1.msra.mxu0 %v4735
    %5222 = vmatprep.subr.mxu0 0.0
    %5223 = vmatpush1.msra.mxu0 %v4731
    %5224 = vmatprep.subr.mxu0 0.0
    %5225 = vmatpush1.msra.mxu0 %v4727
    %5226 = vmatprep.subr.mxu0 0.0
    %5227 = vmatpush1.msra.mxu0 %v4723
    %5228 = vmatprep.subr.mxu0 0.0
    %5229 = vmatpush1.msra.mxu0 %v4719
    %5230 = vmatprep.subr.mxu0 0.0
    %5231 = vmatpush1.msra.mxu0 %v4715
    %5232 = vmatprep.subr.mxu0 0.0
    %5233 = vmatpush1.msra.mxu0 %v4711
    %5234 = vmatprep.subr.mxu0 0.0
    %5235 = vmatpush1.msra.mxu0 %v4707
    %5236 = vmatprep.subr.mxu0 0.0
    %5237 = vmatpush1.msra.mxu0 %v4703
    %5238 = vmatprep.subr.mxu0 0.0
    %5239 = vmatpush1.msra.mxu0 %v4699
    %5240 = vmatprep.subr.mxu0 0.0
    %5241 = vmatpush1.msra.mxu0 %v4695
    %5242 = vmatprep.subr.mxu0 0.0
    %5243 = vmatpush1.msra.mxu0 %v4691
    %5244 = vmatprep.subr.mxu0 0.0
    %5245 = vmatpush1.msra.mxu0 %v4687
    %5246 = vmatprep.subr.mxu0 0.0
    %5247 = vmatpush1.msra.mxu0 %v4683
    %5248 = vmatprep.subr.mxu0 0.0
    %5249 = vmatpush1.msra.mxu0 %v4679
    %5250 = vmatprep.subr.mxu0 0.0
    %5251 = vmatpush1.msra.mxu0 %v4675
    %5252 = vmatprep.subr.mxu0 0.0
    %5253 = vmatpush2.msra.mxu0 0.0
    %5254 = vmatprep.subr.mxu0 0.0
    %5255 = vmatpush2.msra.mxu0 0.0
    %5256 = vmatprep.subr.mxu0 0.0
    %5257 = vmatpush2.msra.mxu0 0.0
    %5258 = vmatprep.subr.mxu0 0.0
    %5259 = vmatpush2.msra.mxu0 0.0
    %5260 = vmatprep.subr.mxu0 0.0
    %5261 = vmatpush2.msra.mxu0 0.0
    %5262 = vmatprep.subr.mxu0 0.0
    %5263 = vmatpush2.msra.mxu0 0.0
    %5264 = vmatprep.subr.mxu0 0.0
    %5265 = vmatpush2.msra.mxu0 0.0
    %5266 = vmatprep.subr.mxu0 0.0
    %5267 = vmatpush2.msra.mxu0 0.0
    %5268 = vmatprep.subr.mxu0 0.0
    %5269 = vmatpush2.msra.mxu0 0.0
    %5270 = vmatprep.subr.mxu0 0.0
    %5271 = vmatpush2.msra.mxu0 0.0
    %5272 = vmatprep.subr.mxu0 0.0
    %5273 = vmatpush2.msra.mxu0 0.0
    %5274 = vmatprep.subr.mxu0 0.0
    %5275 = vmatpush2.msra.mxu0 0.0
    %5276 = vmatprep.subr.mxu0 0.0
    %5277 = vmatpush2.msra.mxu0 0.0
    %5278 = vmatprep.subr.mxu0 0.0
    %5279 = vmatpush2.msra.mxu0 0.0
    %5280 = vmatprep.subr.mxu0 0.0
    %5281 = vmatpush2.msra.mxu0 0.0
    %5282 = vmatprep.subr.mxu0 0.0
    %5283 = vmatpush2.msra.mxu0 0.0
    %5284 = vmatprep.mubr.f32.mxu0 0.0
    %5285 = vmatmul.mubr.f32.gmra.mxu0 %v3795
    %v5286 = vpop.f32.mrf.mxu0
    %v5287 = vadd.f32 0.0, %v5286
    %v5288 = vpop.f32.mrf.mxu0
    %5289 = vdwg.mxu0
    %5290 = vmatprep.subr.mxu0 0.0
    %5291 = vmatpush1.msra.mxu0 %v4802
    %5292 = vmatprep.subr.mxu0 0.0
    %5293 = vmatpush1.msra.mxu0 %v4798
    %5294 = vmatprep.subr.mxu0 0.0
    %5295 = vmatpush1.msra.mxu0 %v4794
    %5296 = vmatprep.subr.mxu0 0.0
    %5297 = vmatpush1.msra.mxu0 %v4790
    %5298 = vmatprep.subr.mxu0 0.0
    %5299 = vmatpush1.msra.mxu0 %v4786
    %5300 = vmatprep.subr.mxu0 0.0
    %5301 = vmatpush1.msra.mxu0 %v4782
    %5302 = vmatprep.subr.mxu0 0.0
    %5303 = vmatpush1.msra.mxu0 %v4778
    %5304 = vmatprep.subr.mxu0 0.0
    %5305 = vmatpush1.msra.mxu0 %v4774
    %5306 = vmatprep.subr.mxu0 0.0
    %5307 = vmatpush1.msra.mxu0 %v4770
    %5308 = vmatprep.subr.mxu0 0.0
    %5309 = vmatpush1.msra.mxu0 %v4766
    %5310 = vmatprep.subr.mxu0 0.0
    %5311 = vmatpush1.msra.mxu0 %v4762
    %5312 = vmatprep.subr.mxu0 0.0
    %5313 = vmatpush1.msra.mxu0 %v4758
    %5314 = vmatprep.subr.mxu0 0.0
    %5315 = vmatpush1.msra.mxu0 %v4754
    %5316 = vmatprep.subr.mxu0 0.0
    %5317 = vmatpush1.msra.mxu0 %v4750
    %5318 = vmatprep.subr.mxu0 0.0
    %5319 = vmatpush1.msra.mxu0 %v4746
    %5320 = vmatprep.subr.mxu0 0.0
    %5321 = vmatpush1.msra.mxu0 %v4742
    %5322 = vmatprep.subr.mxu0 0.0
    %5323 = vmatpush2.msra.mxu0 0.0
    %5324 = vmatprep.subr.mxu0 0.0
    %5325 = vmatpush2.msra.mxu0 0.0
    %5326 = vmatprep.subr.mxu0 0.0
    %5327 = vmatpush2.msra.mxu0 0.0
    %5328 = vmatprep.subr.mxu0 0.0
    %5329 = vmatpush2.msra.mxu0 0.0
    %5330 = vmatprep.subr.mxu0 0.0
    %5331 = vmatpush2.msra.mxu0 0.0
    %5332 = vmatprep.subr.mxu0 0.0
    %5333 = vmatpush2.msra.mxu0 0.0
    %5334 = vmatprep.subr.mxu0 0.0
    %5335 = vmatpush2.msra.mxu0 0.0
    %5336 = vmatprep.subr.mxu0 0.0
    %5337 = vmatpush2.msra.mxu0 0.0
    %5338 = vmatprep.subr.mxu0 0.0
    %5339 = vmatpush2.msra.mxu0 0.0
    %5340 = vmatprep.subr.mxu0 0.0
    %5341 = vmatpush2.msra.mxu0 0.0
    %5342 = vmatprep.subr.mxu0 0.0
    %5343 = vmatpush2.msra.mxu0 0.0
    %5344 = vmatprep.subr.mxu0 0.0
    %5345 = vmatpush2.msra.mxu0 0.0
    %5346 = vmatprep.subr.mxu0 0.0
    %5347 = vmatpush2.msra.mxu0 0.0
    %5348 = vmatprep.subr.mxu0 0.0
    %5349 = vmatpush2.msra.mxu0 0.0
    %5350 = vmatprep.subr.mxu0 0.0
    %5351 = vmatpush2.msra.mxu0 0.0
    %5352 = vmatprep.subr.mxu0 0.0
    %5353 = vmatpush2.msra.mxu0 0.0
    %5354 = vmatprep.mubr.f32.mxu0 0.0
    %5355 = vmatmul.mubr.f32.gmra.mxu0 %v3796
    %v5356 = vpop.f32.mrf.mxu0
    %v5357 = vadd.f32 0.0, %v5356
    %v5358 = vpop.f32.mrf.mxu0
    %5359 = vdwg.mxu0
    %5360 = vmatprep.subr.mxu0 0.0
    %5361 = vmatpush1.msra.mxu0 %v4869
    %5362 = vmatprep.subr.mxu0 0.0
    %5363 = vmatpush1.msra.mxu0 %v4865
    %5364 = vmatprep.subr.mxu0 0.0
    %5365 = vmatpush1.msra.mxu0 %v4861
    %5366 = vmatprep.subr.mxu0 0.0
    %5367 = vmatpush1.msra.mxu0 %v4857
    %5368 = vmatprep.subr.mxu0 0.0
    %5369 = vmatpush1.msra.mxu0 %v4853
    %5370 = vmatprep.subr.mxu0 0.0
    %5371 = vmatpush1.msra.mxu0 %v4849
    %5372 = vmatprep.subr.mxu0 0.0
    %5373 = vmatpush1.msra.mxu0 %v4845
    %5374 = vmatprep.subr.mxu0 0.0
    %5375 = vmatpush1.msra.mxu0 %v4841
    %5376 = vmatprep.subr.mxu0 0.0
    %5377 = vmatpush1.msra.mxu0 %v4837
    %5378 = vmatprep.subr.mxu0 0.0
    %5379 = vmatpush1.msra.mxu0 %v4833
    %5380 = vmatprep.subr.mxu0 0.0
    %5381 = vmatpush1.msra.mxu0 %v4829
    %5382 = vmatprep.subr.mxu0 0.0
    %5383 = vmatpush1.msra.mxu0 %v4825
    %5384 = vmatprep.subr.mxu0 0.0
    %5385 = vmatpush1.msra.mxu0 %v4821
    %5386 = vmatprep.subr.mxu0 0.0
    %5387 = vmatpush1.msra.mxu0 %v4817
    %5388 = vmatprep.subr.mxu0 0.0
    %5389 = vmatpush1.msra.mxu0 %v4813
    %5390 = vmatprep.subr.mxu0 0.0
    %5391 = vmatpush1.msra.mxu0 %v4809
    %5392 = vmatprep.subr.mxu0 0.0
    %5393 = vmatpush2.msra.mxu0 0.0
    %5394 = vmatprep.subr.mxu0 0.0
    %5395 = vmatpush2.msra.mxu0 0.0
    %5396 = vmatprep.subr.mxu0 0.0
    %5397 = vmatpush2.msra.mxu0 0.0
    %5398 = vmatprep.subr.mxu0 0.0
    %5399 = vmatpush2.msra.mxu0 0.0
    %5400 = vmatprep.subr.mxu0 0.0
    %5401 = vmatpush2.msra.mxu0 0.0
    %5402 = vmatprep.subr.mxu0 0.0
    %5403 = vmatpush2.msra.mxu0 0.0
    %5404 = vmatprep.subr.mxu0 0.0
    %5405 = vmatpush2.msra.mxu0 0.0
    %5406 = vmatprep.subr.mxu0 0.0
    %5407 = vmatpush2.msra.mxu0 0.0
    %5408 = vmatprep.subr.mxu0 0.0
    %5409 = vmatpush2.msra.mxu0 0.0
    %5410 = vmatprep.subr.mxu0 0.0
    %5411 = vmatpush2.msra.mxu0 0.0
    %5412 = vmatprep.subr.mxu0 0.0
    %5413 = vmatpush2.msra.mxu0 0.0
    %5414 = vmatprep.subr.mxu0 0.0
    %5415 = vmatpush2.msra.mxu0 0.0
    %5416 = vmatprep.subr.mxu0 0.0
    %5417 = vmatpush2.msra.mxu0 0.0
    %5418 = vmatprep.subr.mxu0 0.0
    %5419 = vmatpush2.msra.mxu0 0.0
    %5420 = vmatprep.subr.mxu0 0.0
    %5421 = vmatpush2.msra.mxu0 0.0
    %5422 = vmatprep.subr.mxu0 0.0
    %5423 = vmatpush2.msra.mxu0 0.0
    %5424 = vmatprep.mubr.f32.mxu0 0.0
    %5425 = vmatmul.mubr.f32.gmra.mxu0 %v3797
    %v5426 = vpop.f32.mrf.mxu0
    %v5427 = vadd.f32 0.0, %v5426
    %v5428 = vpop.f32.mrf.mxu0
    %5429 = vdwg.mxu0
    %5430 = vmatprep.subr.mxu0 0.0
    %5431 = vmatpush1.msra.mxu0 %v3864
    %5432 = vmatprep.subr.mxu0 0.0
    %5433 = vmatpush1.msra.mxu0 %v3860
    %5434 = vmatprep.subr.mxu0 0.0
    %5435 = vmatpush1.msra.mxu0 %v3856
    %5436 = vmatprep.subr.mxu0 0.0
    %5437 = vmatpush1.msra.mxu0 %v3852
    %5438 = vmatprep.subr.mxu0 0.0
    %5439 = vmatpush1.msra.mxu0 %v3848
    %5440 = vmatprep.subr.mxu0 0.0
    %5441 = vmatpush1.msra.mxu0 %v3844
    %5442 = vmatprep.subr.mxu0 0.0
    %5443 = vmatpush1.msra.mxu0 %v3840
    %5444 = vmatprep.subr.mxu0 0.0
    %5445 = vmatpush1.msra.mxu0 %v3836
    %5446 = vmatprep.subr.mxu0 0.0
    %5447 = vmatpush1.msra.mxu0 %v3832
    %5448 = vmatprep.subr.mxu0 0.0
    %5449 = vmatpush1.msra.mxu0 %v3828
    %5450 = vmatprep.subr.mxu0 0.0
    %5451 = vmatpush1.msra.mxu0 %v3824
    %5452 = vmatprep.subr.mxu0 0.0
    %5453 = vmatpush1.msra.mxu0 %v3820
    %5454 = vmatprep.subr.mxu0 0.0
    %5455 = vmatpush1.msra.mxu0 %v3816
    %5456 = vmatprep.subr.mxu0 0.0
    %5457 = vmatpush1.msra.mxu0 %v3812
    %5458 = vmatprep.subr.mxu0 0.0
    %5459 = vmatpush1.msra.mxu0 %v3808
    %5460 = vmatprep.subr.mxu0 0.0
    %5461 = vmatpush1.msra.mxu0 %v3804
    %5462 = vmatprep.subr.mxu0 0.0
    %5463 = vmatpush2.msra.mxu0 0.0
    %5464 = vmatprep.subr.mxu0 0.0
    %5465 = vmatpush2.msra.mxu0 0.0
    %5466 = vmatprep.subr.mxu0 0.0
    %5467 = vmatpush2.msra.mxu0 0.0
    %5468 = vmatprep.subr.mxu0 0.0
    %5469 = vmatpush2.msra.mxu0 0.0
    %5470 = vmatprep.subr.mxu0 0.0
    %5471 = vmatpush2.msra.mxu0 0.0
    %5472 = vmatprep.subr.mxu0 0.0
    %5473 = vmatpush2.msra.mxu0 0.0
    %5474 = vmatprep.subr.mxu0 0.0
    %5475 = vmatpush2.msra.mxu0 0.0
    %5476 = vmatprep.subr.mxu0 0.0
    %5477 = vmatpush2.msra.mxu0 0.0
    %5478 = vmatprep.subr.mxu0 0.0
    %5479 = vmatpush2.msra.mxu0 0.0
    %5480 = vmatprep.subr.mxu0 0.0
    %5481 = vmatpush2.msra.mxu0 0.0
    %5482 = vmatprep.subr.mxu0 0.0
    %5483 = vmatpush2.msra.mxu0 0.0
    %5484 = vmatprep.subr.mxu0 0.0
    %5485 = vmatpush2.msra.mxu0 0.0
    %5486 = vmatprep.subr.mxu0 0.0
    %5487 = vmatpush2.msra.mxu0 0.0
    %5488 = vmatprep.subr.mxu0 0.0
    %5489 = vmatpush2.msra.mxu0 0.0
    %5490 = vmatprep.subr.mxu0 0.0
    %5491 = vmatpush2.msra.mxu0 0.0
    %5492 = vmatprep.subr.mxu0 0.0
    %5493 = vmatpush2.msra.mxu0 0.0
    %5494 = vmatprep.mubr.f32.mxu0 0.0
    %5495 = vmatmul.mubr.f32.gmra.mxu0 %v3646
    %v5496 = vpop.f32.mrf.mxu0
    %v5497 = vadd.f32 %v4937, %v5496
    %v5498 = vpop.f32.mrf.mxu0
    %5499 = vdwg.mxu0
    %5500 = vmatprep.subr.mxu0 0.0
    %5501 = vmatpush1.msra.mxu0 %v3931
    %5502 = vmatprep.subr.mxu0 0.0
    %5503 = vmatpush1.msra.mxu0 %v3927
    %5504 = vmatprep.subr.mxu0 0.0
    %5505 = vmatpush1.msra.mxu0 %v3923
    %5506 = vmatprep.subr.mxu0 0.0
    %5507 = vmatpush1.msra.mxu0 %v3919
    %5508 = vmatprep.subr.mxu0 0.0
    %5509 = vmatpush1.msra.mxu0 %v3915
    %5510 = vmatprep.subr.mxu0 0.0
    %5511 = vmatpush1.msra.mxu0 %v3911
    %5512 = vmatprep.subr.mxu0 0.0
    %5513 = vmatpush1.msra.mxu0 %v3907
    %5514 = vmatprep.subr.mxu0 0.0
    %5515 = vmatpush1.msra.mxu0 %v3903
    %5516 = vmatprep.subr.mxu0 0.0
    %5517 = vmatpush1.msra.mxu0 %v3899
    %5518 = vmatprep.subr.mxu0 0.0
    %5519 = vmatpush1.msra.mxu0 %v3895
    %5520 = vmatprep.subr.mxu0 0.0
    %5521 = vmatpush1.msra.mxu0 %v3891
    %5522 = vmatprep.subr.mxu0 0.0
    %5523 = vmatpush1.msra.mxu0 %v3887
    %5524 = vmatprep.subr.mxu0 0.0
    %5525 = vmatpush1.msra.mxu0 %v3883
    %5526 = vmatprep.subr.mxu0 0.0
    %5527 = vmatpush1.msra.mxu0 %v3879
    %5528 = vmatprep.subr.mxu0 0.0
    %5529 = vmatpush1.msra.mxu0 %v3875
    %5530 = vmatprep.subr.mxu0 0.0
    %5531 = vmatpush1.msra.mxu0 %v3871
    %5532 = vmatprep.subr.mxu0 0.0
    %5533 = vmatpush2.msra.mxu0 0.0
    %5534 = vmatprep.subr.mxu0 0.0
    %5535 = vmatpush2.msra.mxu0 0.0
    %5536 = vmatprep.subr.mxu0 0.0
    %5537 = vmatpush2.msra.mxu0 0.0
    %5538 = vmatprep.subr.mxu0 0.0
    %5539 = vmatpush2.msra.mxu0 0.0
    %5540 = vmatprep.subr.mxu0 0.0
    %5541 = vmatpush2.msra.mxu0 0.0
    %5542 = vmatprep.subr.mxu0 0.0
    %5543 = vmatpush2.msra.mxu0 0.0
    %5544 = vmatprep.subr.mxu0 0.0
    %5545 = vmatpush2.msra.mxu0 0.0
    %5546 = vmatprep.subr.mxu0 0.0
    %5547 = vmatpush2.msra.mxu0 0.0
    %5548 = vmatprep.subr.mxu0 0.0
    %5549 = vmatpush2.msra.mxu0 0.0
    %5550 = vmatprep.subr.mxu0 0.0
    %5551 = vmatpush2.msra.mxu0 0.0
    %5552 = vmatprep.subr.mxu0 0.0
    %5553 = vmatpush2.msra.mxu0 0.0
    %5554 = vmatprep.subr.mxu0 0.0
    %5555 = vmatpush2.msra.mxu0 0.0
    %5556 = vmatprep.subr.mxu0 0.0
    %5557 = vmatpush2.msra.mxu0 0.0
    %5558 = vmatprep.subr.mxu0 0.0
    %5559 = vmatpush2.msra.mxu0 0.0
    %5560 = vmatprep.subr.mxu0 0.0
    %5561 = vmatpush2.msra.mxu0 0.0
    %5562 = vmatprep.subr.mxu0 0.0
    %5563 = vmatpush2.msra.mxu0 0.0
    %5564 = vmatprep.mubr.f32.mxu0 0.0
    %5565 = vmatmul.mubr.f32.gmra.mxu0 %v3647
    %v5566 = vpop.f32.mrf.mxu0
    %v5567 = vadd.f32 %v5007, %v5566
    %v5568 = vpop.f32.mrf.mxu0
    %5569 = vdwg.mxu0
    %5570 = vmatprep.subr.mxu0 0.0
    %5571 = vmatpush1.msra.mxu0 %v3998
    %5572 = vmatprep.subr.mxu0 0.0
    %5573 = vmatpush1.msra.mxu0 %v3994
    %5574 = vmatprep.subr.mxu0 0.0
    %5575 = vmatpush1.msra.mxu0 %v3990
    %5576 = vmatprep.subr.mxu0 0.0
    %5577 = vmatpush1.msra.mxu0 %v3986
    %5578 = vmatprep.subr.mxu0 0.0
    %5579 = vmatpush1.msra.mxu0 %v3982
    %5580 = vmatprep.subr.mxu0 0.0
    %5581 = vmatpush1.msra.mxu0 %v3978
    %5582 = vmatprep.subr.mxu0 0.0
    %5583 = vmatpush1.msra.mxu0 %v3974
    %5584 = vmatprep.subr.mxu0 0.0
    %5585 = vmatpush1.msra.mxu0 %v3970
    %5586 = vmatprep.subr.mxu0 0.0
    %5587 = vmatpush1.msra.mxu0 %v3966
    %5588 = vmatprep.subr.mxu0 0.0
    %5589 = vmatpush1.msra.mxu0 %v3962
    %5590 = vmatprep.subr.mxu0 0.0
    %5591 = vmatpush1.msra.mxu0 %v3958
    %5592 = vmatprep.subr.mxu0 0.0
    %5593 = vmatpush1.msra.mxu0 %v3954
    %5594 = vmatprep.subr.mxu0 0.0
    %5595 = vmatpush1.msra.mxu0 %v3950
    %5596 = vmatprep.subr.mxu0 0.0
    %5597 = vmatpush1.msra.mxu0 %v3946
    %5598 = vmatprep.subr.mxu0 0.0
    %5599 = vmatpush1.msra.mxu0 %v3942
    %5600 = vmatprep.subr.mxu0 0.0
    %5601 = vmatpush1.msra.mxu0 %v3938
    %5602 = vmatprep.subr.mxu0 0.0
    %5603 = vmatpush2.msra.mxu0 0.0
    %5604 = vmatprep.subr.mxu0 0.0
    %5605 = vmatpush2.msra.mxu0 0.0
    %5606 = vmatprep.subr.mxu0 0.0
    %5607 = vmatpush2.msra.mxu0 0.0
    %5608 = vmatprep.subr.mxu0 0.0
    %5609 = vmatpush2.msra.mxu0 0.0
    %5610 = vmatprep.subr.mxu0 0.0
    %5611 = vmatpush2.msra.mxu0 0.0
    %5612 = vmatprep.subr.mxu0 0.0
    %5613 = vmatpush2.msra.mxu0 0.0
    %5614 = vmatprep.subr.mxu0 0.0
    %5615 = vmatpush2.msra.mxu0 0.0
    %5616 = vmatprep.subr.mxu0 0.0
    %5617 = vmatpush2.msra.mxu0 0.0
    %5618 = vmatprep.subr.mxu0 0.0
    %5619 = vmatpush2.msra.mxu0 0.0
    %5620 = vmatprep.subr.mxu0 0.0
    %5621 = vmatpush2.msra.mxu0 0.0
    %5622 = vmatprep.subr.mxu0 0.0
    %5623 = vmatpush2.msra.mxu0 0.0
    %5624 = vmatprep.subr.mxu0 0.0
    %5625 = vmatpush2.msra.mxu0 0.0
    %5626 = vmatprep.subr.mxu0 0.0
    %5627 = vmatpush2.msra.mxu0 0.0
    %5628 = vmatprep.subr.mxu0 0.0
    %5629 = vmatpush2.msra.mxu0 0.0
    %5630 = vmatprep.subr.mxu0 0.0
    %5631 = vmatpush2.msra.mxu0 0.0
    %5632 = vmatprep.subr.mxu0 0.0
    %5633 = vmatpush2.msra.mxu0 0.0
    %5634 = vmatprep.mubr.f32.mxu0 0.0
    %5635 = vmatmul.mubr.f32.gmra.mxu0 %v3648
    %v5636 = vpop.f32.mrf.mxu0
    %v5637 = vadd.f32 %v5077, %v5636
    %v5638 = vpop.f32.mrf.mxu0
    %5639 = vdwg.mxu0
    %5640 = vmatprep.subr.mxu0 0.0
    %5641 = vmatpush1.msra.mxu0 %v4065
    %5642 = vmatprep.subr.mxu0 0.0
    %5643 = vmatpush1.msra.mxu0 %v4061
    %5644 = vmatprep.subr.mxu0 0.0
    %5645 = vmatpush1.msra.mxu0 %v4057
    %5646 = vmatprep.subr.mxu0 0.0
    %5647 = vmatpush1.msra.mxu0 %v4053
    %5648 = vmatprep.subr.mxu0 0.0
    %5649 = vmatpush1.msra.mxu0 %v4049
    %5650 = vmatprep.subr.mxu0 0.0
    %5651 = vmatpush1.msra.mxu0 %v4045
    %5652 = vmatprep.subr.mxu0 0.0
    %5653 = vmatpush1.msra.mxu0 %v4041
    %5654 = vmatprep.subr.mxu0 0.0
    %5655 = vmatpush1.msra.mxu0 %v4037
    %5656 = vmatprep.subr.mxu0 0.0
    %5657 = vmatpush1.msra.mxu0 %v4033
    %5658 = vmatprep.subr.mxu0 0.0
    %5659 = vmatpush1.msra.mxu0 %v4029
    %5660 = vmatprep.subr.mxu0 0.0
    %5661 = vmatpush1.msra.mxu0 %v4025
    %5662 = vmatprep.subr.mxu0 0.0
    %5663 = vmatpush1.msra.mxu0 %v4021
    %5664 = vmatprep.subr.mxu0 0.0
    %5665 = vmatpush1.msra.mxu0 %v4017
    %5666 = vmatprep.subr.mxu0 0.0
    %5667 = vmatpush1.msra.mxu0 %v4013
    %5668 = vmatprep.subr.mxu0 0.0
    %5669 = vmatpush1.msra.mxu0 %v4009
    %5670 = vmatprep.subr.mxu0 0.0
    %5671 = vmatpush1.msra.mxu0 %v4005
    %5672 = vmatprep.subr.mxu0 0.0
    %5673 = vmatpush2.msra.mxu0 0.0
    %5674 = vmatprep.subr.mxu0 0.0
    %5675 = vmatpush2.msra.mxu0 0.0
    %5676 = vmatprep.subr.mxu0 0.0
    %5677 = vmatpush2.msra.mxu0 0.0
    %5678 = vmatprep.subr.mxu0 0.0
    %5679 = vmatpush2.msra.mxu0 0.0
    %5680 = vmatprep.subr.mxu0 0.0
    %5681 = vmatpush2.msra.mxu0 0.0
    %5682 = vmatprep.subr.mxu0 0.0
    %5683 = vmatpush2.msra.mxu0 0.0
    %5684 = vmatprep.subr.mxu0 0.0
    %5685 = vmatpush2.msra.mxu0 0.0
    %5686 = vmatprep.subr.mxu0 0.0
    %5687 = vmatpush2.msra.mxu0 0.0
    %5688 = vmatprep.subr.mxu0 0.0
    %5689 = vmatpush2.msra.mxu0 0.0
    %5690 = vmatprep.subr.mxu0 0.0
    %5691 = vmatpush2.msra.mxu0 0.0
    %5692 = vmatprep.subr.mxu0 0.0
    %5693 = vmatpush2.msra.mxu0 0.0
    %5694 = vmatprep.subr.mxu0 0.0
    %5695 = vmatpush2.msra.mxu0 0.0
    %5696 = vmatprep.subr.mxu0 0.0
    %5697 = vmatpush2.msra.mxu0 0.0
    %5698 = vmatprep.subr.mxu0 0.0
    %5699 = vmatpush2.msra.mxu0 0.0
    %5700 = vmatprep.subr.mxu0 0.0
    %5701 = vmatpush2.msra.mxu0 0.0
    %5702 = vmatprep.subr.mxu0 0.0
    %5703 = vmatpush2.msra.mxu0 0.0
    %5704 = vmatprep.mubr.f32.mxu0 0.0
    %5705 = vmatmul.mubr.f32.gmra.mxu0 %v3649
    %v5706 = vpop.f32.mrf.mxu0
    %v5707 = vadd.f32 %v5147, %v5706
    %v5708 = vpop.f32.mrf.mxu0
    %5709 = vdwg.mxu0
    %5710 = vmatprep.subr.mxu0 0.0
    %5711 = vmatpush1.msra.mxu0 %v4132
    %5712 = vmatprep.subr.mxu0 0.0
    %5713 = vmatpush1.msra.mxu0 %v4128
    %5714 = vmatprep.subr.mxu0 0.0
    %5715 = vmatpush1.msra.mxu0 %v4124
    %5716 = vmatprep.subr.mxu0 0.0
    %5717 = vmatpush1.msra.mxu0 %v4120
    %5718 = vmatprep.subr.mxu0 0.0
    %5719 = vmatpush1.msra.mxu0 %v4116
    %5720 = vmatprep.subr.mxu0 0.0
    %5721 = vmatpush1.msra.mxu0 %v4112
    %5722 = vmatprep.subr.mxu0 0.0
    %5723 = vmatpush1.msra.mxu0 %v4108
    %5724 = vmatprep.subr.mxu0 0.0
    %5725 = vmatpush1.msra.mxu0 %v4104
    %5726 = vmatprep.subr.mxu0 0.0
    %5727 = vmatpush1.msra.mxu0 %v4100
    %5728 = vmatprep.subr.mxu0 0.0
    %5729 = vmatpush1.msra.mxu0 %v4096
    %5730 = vmatprep.subr.mxu0 0.0
    %5731 = vmatpush1.msra.mxu0 %v4092
    %5732 = vmatprep.subr.mxu0 0.0
    %5733 = vmatpush1.msra.mxu0 %v4088
    %5734 = vmatprep.subr.mxu0 0.0
    %5735 = vmatpush1.msra.mxu0 %v4084
    %5736 = vmatprep.subr.mxu0 0.0
    %5737 = vmatpush1.msra.mxu0 %v4080
    %5738 = vmatprep.subr.mxu0 0.0
    %5739 = vmatpush1.msra.mxu0 %v4076
    %5740 = vmatprep.subr.mxu0 0.0
    %5741 = vmatpush1.msra.mxu0 %v4072
    %5742 = vmatprep.subr.mxu0 0.0
    %5743 = vmatpush2.msra.mxu0 0.0
    %5744 = vmatprep.subr.mxu0 0.0
    %5745 = vmatpush2.msra.mxu0 0.0
    %5746 = vmatprep.subr.mxu0 0.0
    %5747 = vmatpush2.msra.mxu0 0.0
    %5748 = vmatprep.subr.mxu0 0.0
    %5749 = vmatpush2.msra.mxu0 0.0
    %5750 = vmatprep.subr.mxu0 0.0
    %5751 = vmatpush2.msra.mxu0 0.0
    %5752 = vmatprep.subr.mxu0 0.0
    %5753 = vmatpush2.msra.mxu0 0.0
    %5754 = vmatprep.subr.mxu0 0.0
    %5755 = vmatpush2.msra.mxu0 0.0
    %5756 = vmatprep.subr.mxu0 0.0
    %5757 = vmatpush2.msra.mxu0 0.0
    %5758 = vmatprep.subr.mxu0 0.0
    %5759 = vmatpush2.msra.mxu0 0.0
    %5760 = vmatprep.subr.mxu0 0.0
    %5761 = vmatpush2.msra.mxu0 0.0
    %5762 = vmatprep.subr.mxu0 0.0
    %5763 = vmatpush2.msra.mxu0 0.0
    %5764 = vmatprep.subr.mxu0 0.0
    %5765 = vmatpush2.msra.mxu0 0.0
    %5766 = vmatprep.subr.mxu0 0.0
    %5767 = vmatpush2.msra.mxu0 0.0
    %5768 = vmatprep.subr.mxu0 0.0
    %5769 = vmatpush2.msra.mxu0 0.0
    %5770 = vmatprep.subr.mxu0 0.0
    %5771 = vmatpush2.msra.mxu0 0.0
    %5772 = vmatprep.subr.mxu0 0.0
    %5773 = vmatpush2.msra.mxu0 0.0
    %5774 = vmatprep.mubr.f32.mxu0 0.0
    %5775 = vmatmul.mubr.f32.gmra.mxu0 %v3650
    %v5776 = vpop.f32.mrf.mxu0
    %v5777 = vadd.f32 %v5217, %v5776
    %v5778 = vpop.f32.mrf.mxu0
    %5779 = vdwg.mxu0
    %5780 = vmatprep.subr.mxu0 0.0
    %5781 = vmatpush1.msra.mxu0 %v4199
    %5782 = vmatprep.subr.mxu0 0.0
    %5783 = vmatpush1.msra.mxu0 %v4195
    %5784 = vmatprep.subr.mxu0 0.0
    %5785 = vmatpush1.msra.mxu0 %v4191
    %5786 = vmatprep.subr.mxu0 0.0
    %5787 = vmatpush1.msra.mxu0 %v4187
    %5788 = vmatprep.subr.mxu0 0.0
    %5789 = vmatpush1.msra.mxu0 %v4183
    %5790 = vmatprep.subr.mxu0 0.0
    %5791 = vmatpush1.msra.mxu0 %v4179
    %5792 = vmatprep.subr.mxu0 0.0
    %5793 = vmatpush1.msra.mxu0 %v4175
    %5794 = vmatprep.subr.mxu0 0.0
    %5795 = vmatpush1.msra.mxu0 %v4171
    %5796 = vmatprep.subr.mxu0 0.0
    %5797 = vmatpush1.msra.mxu0 %v4167
    %5798 = vmatprep.subr.mxu0 0.0
    %5799 = vmatpush1.msra.mxu0 %v4163
    %5800 = vmatprep.subr.mxu0 0.0
    %5801 = vmatpush1.msra.mxu0 %v4159
    %5802 = vmatprep.subr.mxu0 0.0
    %5803 = vmatpush1.msra.mxu0 %v4155
    %5804 = vmatprep.subr.mxu0 0.0
    %5805 = vmatpush1.msra.mxu0 %v4151
    %5806 = vmatprep.subr.mxu0 0.0
    %5807 = vmatpush1.msra.mxu0 %v4147
    %5808 = vmatprep.subr.mxu0 0.0
    %5809 = vmatpush1.msra.mxu0 %v4143
    %5810 = vmatprep.subr.mxu0 0.0
    %5811 = vmatpush1.msra.mxu0 %v4139
    %5812 = vmatprep.subr.mxu0 0.0
    %5813 = vmatpush2.msra.mxu0 0.0
    %5814 = vmatprep.subr.mxu0 0.0
    %5815 = vmatpush2.msra.mxu0 0.0
    %5816 = vmatprep.subr.mxu0 0.0
    %5817 = vmatpush2.msra.mxu0 0.0
    %5818 = vmatprep.subr.mxu0 0.0
    %5819 = vmatpush2.msra.mxu0 0.0
    %5820 = vmatprep.subr.mxu0 0.0
    %5821 = vmatpush2.msra.mxu0 0.0
    %5822 = vmatprep.subr.mxu0 0.0
    %5823 = vmatpush2.msra.mxu0 0.0
    %5824 = vmatprep.subr.mxu0 0.0
    %5825 = vmatpush2.msra.mxu0 0.0
    %5826 = vmatprep.subr.mxu0 0.0
    %5827 = vmatpush2.msra.mxu0 0.0
    %5828 = vmatprep.subr.mxu0 0.0
    %5829 = vmatpush2.msra.mxu0 0.0
    %5830 = vmatprep.subr.mxu0 0.0
    %5831 = vmatpush2.msra.mxu0 0.0
    %5832 = vmatprep.subr.mxu0 0.0
    %5833 = vmatpush2.msra.mxu0 0.0
    %5834 = vmatprep.subr.mxu0 0.0
    %5835 = vmatpush2.msra.mxu0 0.0
    %5836 = vmatprep.subr.mxu0 0.0
    %5837 = vmatpush2.msra.mxu0 0.0
    %5838 = vmatprep.subr.mxu0 0.0
    %5839 = vmatpush2.msra.mxu0 0.0
    %5840 = vmatprep.subr.mxu0 0.0
    %5841 = vmatpush2.msra.mxu0 0.0
    %5842 = vmatprep.subr.mxu0 0.0
    %5843 = vmatpush2.msra.mxu0 0.0
    %5844 = vmatprep.mubr.f32.mxu0 0.0
    %5845 = vmatmul.mubr.f32.gmra.mxu0 %v3651
    %v5846 = vpop.f32.mrf.mxu0
    %v5847 = vadd.f32 %v5287, %v5846
    %v5848 = vpop.f32.mrf.mxu0
    %5849 = vdwg.mxu0
    %5850 = vmatprep.subr.mxu0 0.0
    %5851 = vmatpush1.msra.mxu0 %v4266
    %5852 = vmatprep.subr.mxu0 0.0
    %5853 = vmatpush1.msra.mxu0 %v4262
    %5854 = vmatprep.subr.mxu0 0.0
    %5855 = vmatpush1.msra.mxu0 %v4258
    %5856 = vmatprep.subr.mxu0 0.0
    %5857 = vmatpush1.msra.mxu0 %v4254
    %5858 = vmatprep.subr.mxu0 0.0
    %5859 = vmatpush1.msra.mxu0 %v4250
    %5860 = vmatprep.subr.mxu0 0.0
    %5861 = vmatpush1.msra.mxu0 %v4246
    %5862 = vmatprep.subr.mxu0 0.0
    %5863 = vmatpush1.msra.mxu0 %v4242
    %5864 = vmatprep.subr.mxu0 0.0
    %5865 = vmatpush1.msra.mxu0 %v4238
    %5866 = vmatprep.subr.mxu0 0.0
    %5867 = vmatpush1.msra.mxu0 %v4234
    %5868 = vmatprep.subr.mxu0 0.0
    %5869 = vmatpush1.msra.mxu0 %v4230
    %5870 = vmatprep.subr.mxu0 0.0
    %5871 = vmatpush1.msra.mxu0 %v4226
    %5872 = vmatprep.subr.mxu0 0.0
    %5873 = vmatpush1.msra.mxu0 %v4222
    %5874 = vmatprep.subr.mxu0 0.0
    %5875 = vmatpush1.msra.mxu0 %v4218
    %5876 = vmatprep.subr.mxu0 0.0
    %5877 = vmatpush1.msra.mxu0 %v4214
    %5878 = vmatprep.subr.mxu0 0.0
    %5879 = vmatpush1.msra.mxu0 %v4210
    %5880 = vmatprep.subr.mxu0 0.0
    %5881 = vmatpush1.msra.mxu0 %v4206
    %5882 = vmatprep.subr.mxu0 0.0
    %5883 = vmatpush2.msra.mxu0 0.0
    %5884 = vmatprep.subr.mxu0 0.0
    %5885 = vmatpush2.msra.mxu0 0.0
    %5886 = vmatprep.subr.mxu0 0.0
    %5887 = vmatpush2.msra.mxu0 0.0
    %5888 = vmatprep.subr.mxu0 0.0
    %5889 = vmatpush2.msra.mxu0 0.0
    %5890 = vmatprep.subr.mxu0 0.0
    %5891 = vmatpush2.msra.mxu0 0.0
    %5892 = vmatprep.subr.mxu0 0.0
    %5893 = vmatpush2.msra.mxu0 0.0
    %5894 = vmatprep.subr.mxu0 0.0
    %5895 = vmatpush2.msra.mxu0 0.0
    %5896 = vmatprep.subr.mxu0 0.0
    %5897 = vmatpush2.msra.mxu0 0.0
    %5898 = vmatprep.subr.mxu0 0.0
    %5899 = vmatpush2.msra.mxu0 0.0
    %5900 = vmatprep.subr.mxu0 0.0
    %5901 = vmatpush2.msra.mxu0 0.0
    %5902 = vmatprep.subr.mxu0 0.0
    %5903 = vmatpush2.msra.mxu0 0.0
    %5904 = vmatprep.subr.mxu0 0.0
    %5905 = vmatpush2.msra.mxu0 0.0
    %5906 = vmatprep.subr.mxu0 0.0
    %5907 = vmatpush2.msra.mxu0 0.0
    %5908 = vmatprep.subr.mxu0 0.0
    %5909 = vmatpush2.msra.mxu0 0.0
    %5910 = vmatprep.subr.mxu0 0.0
    %5911 = vmatpush2.msra.mxu0 0.0
    %5912 = vmatprep.subr.mxu0 0.0
    %5913 = vmatpush2.msra.mxu0 0.0
    %5914 = vmatprep.mubr.f32.mxu0 0.0
    %5915 = vmatmul.mubr.f32.gmra.mxu0 %v3652
    %v5916 = vpop.f32.mrf.mxu0
    %v5917 = vadd.f32 %v5357, %v5916
    %v5918 = vpop.f32.mrf.mxu0
    %5919 = vdwg.mxu0
    %5920 = vmatprep.subr.mxu0 0.0
    %5921 = vmatpush1.msra.mxu0 %v4333
    %5922 = vmatprep.subr.mxu0 0.0
    %5923 = vmatpush1.msra.mxu0 %v4329
    %5924 = vmatprep.subr.mxu0 0.0
    %5925 = vmatpush1.msra.mxu0 %v4325
    %5926 = vmatprep.subr.mxu0 0.0
    %5927 = vmatpush1.msra.mxu0 %v4321
    %5928 = vmatprep.subr.mxu0 0.0
    %5929 = vmatpush1.msra.mxu0 %v4317
    %5930 = vmatprep.subr.mxu0 0.0
    %5931 = vmatpush1.msra.mxu0 %v4313
    %5932 = vmatprep.subr.mxu0 0.0
    %5933 = vmatpush1.msra.mxu0 %v4309
    %5934 = vmatprep.subr.mxu0 0.0
    %5935 = vmatpush1.msra.mxu0 %v4305
    %5936 = vmatprep.subr.mxu0 0.0
    %5937 = vmatpush1.msra.mxu0 %v4301
    %5938 = vmatprep.subr.mxu0 0.0
    %5939 = vmatpush1.msra.mxu0 %v4297
    %5940 = vmatprep.subr.mxu0 0.0
    %5941 = vmatpush1.msra.mxu0 %v4293
    %5942 = vmatprep.subr.mxu0 0.0
    %5943 = vmatpush1.msra.mxu0 %v4289
    %5944 = vmatprep.subr.mxu0 0.0
    %5945 = vmatpush1.msra.mxu0 %v4285
    %5946 = vmatprep.subr.mxu0 0.0
    %5947 = vmatpush1.msra.mxu0 %v4281
    %5948 = vmatprep.subr.mxu0 0.0
    %5949 = vmatpush1.msra.mxu0 %v4277
    %5950 = vmatprep.subr.mxu0 0.0
    %5951 = vmatpush1.msra.mxu0 %v4273
    %5952 = vmatprep.subr.mxu0 0.0
    %5953 = vmatpush2.msra.mxu0 0.0
    %5954 = vmatprep.subr.mxu0 0.0
    %5955 = vmatpush2.msra.mxu0 0.0
    %5956 = vmatprep.subr.mxu0 0.0
    %5957 = vmatpush2.msra.mxu0 0.0
    %5958 = vmatprep.subr.mxu0 0.0
    %5959 = vmatpush2.msra.mxu0 0.0
    %5960 = vmatprep.subr.mxu0 0.0
    %5961 = vmatpush2.msra.mxu0 0.0
    %5962 = vmatprep.subr.mxu0 0.0
    %5963 = vmatpush2.msra.mxu0 0.0
    %5964 = vmatprep.subr.mxu0 0.0
    %5965 = vmatpush2.msra.mxu0 0.0
    %5966 = vmatprep.subr.mxu0 0.0
    %5967 = vmatpush2.msra.mxu0 0.0
    %5968 = vmatprep.subr.mxu0 0.0
    %5969 = vmatpush2.msra.mxu0 0.0
    %5970 = vmatprep.subr.mxu0 0.0
    %5971 = vmatpush2.msra.mxu0 0.0
    %5972 = vmatprep.subr.mxu0 0.0
    %5973 = vmatpush2.msra.mxu0 0.0
    %5974 = vmatprep.subr.mxu0 0.0
    %5975 = vmatpush2.msra.mxu0 0.0
    %5976 = vmatprep.subr.mxu0 0.0
    %5977 = vmatpush2.msra.mxu0 0.0
    %5978 = vmatprep.subr.mxu0 0.0
    %5979 = vmatpush2.msra.mxu0 0.0
    %5980 = vmatprep.subr.mxu0 0.0
    %5981 = vmatpush2.msra.mxu0 0.0
    %5982 = vmatprep.subr.mxu0 0.0
    %5983 = vmatpush2.msra.mxu0 0.0
    %5984 = vmatprep.mubr.f32.mxu0 0.0
    %5985 = vmatmul.mubr.f32.gmra.mxu0 %v3653
    %v5986 = vpop.f32.mrf.mxu0
    %v5987 = vadd.f32 %v5427, %v5986
    %v5988 = vpop.f32.mrf.mxu0
    %5989 = vdwg.mxu0
    %5998 = vset.pattern.permute.xlu0 0
    %5999 = vperm.xlu0 %5998, %v5497
    %v6000 = vpop.permute.xlu0 %5999
    %6001 = vset.pattern.permute.xlu0 0
    %6002 = vperm.xlu0 %6001, %v5567
    %v6003 = vpop.permute.xlu0 %6002
    %6004 = vset.pattern.permute.xlu0 0
    %6005 = vperm.xlu0 %6004, %v5637
    %v6006 = vpop.permute.xlu0 %6005
    %6007 = vset.pattern.permute.xlu0 0
    %6008 = vperm.xlu0 %6007, %v5707
    %v6009 = vpop.permute.xlu0 %6008
    %6010 = vset.pattern.permute.xlu0 0
    %6011 = vperm.xlu0 %6010, %v5777
    %v6012 = vpop.permute.xlu0 %6011
    %6013 = vset.pattern.permute.xlu0 0
    %6014 = vperm.xlu0 %6013, %v5847
    %v6015 = vpop.permute.xlu0 %6014
    %6016 = vset.pattern.permute.xlu0 0
    %6017 = vperm.xlu0 %6016, %v5917
    %v6018 = vpop.permute.xlu0 %6017
    %6019 = vset.pattern.permute.xlu0 0
    %6020 = vperm.xlu0 %6019, %v5987
    %v6021 = vpop.permute.xlu0 %6020
    %v6022 = vlaneseq
    %v6023 = vand.u32 %v6022, 127
    %v6024 = vlaneseq
    %v6025 = vshrl.u32 %v6024, 7
    %v6026 = vsub.s32 %v6023, %v6025
    %v6027 = vrot.slane %v6000, %v6026
    %v6028 = vlaneseq
    %v6029 = vshrl.u32 %v6028, 7
    %v6030 = vsub.s32 %v6023, %v6029
    %v6031 = vrot.slane %v6003, %v6030
    %v6032 = vlaneseq
    %v6033 = vshrl.u32 %v6032, 7
    %v6034 = vsub.s32 %v6023, %v6033
    %v6035 = vrot.slane %v6006, %v6034
    %v6036 = vlaneseq
    %v6037 = vshrl.u32 %v6036, 7
    %v6038 = vsub.s32 %v6023, %v6037
    %v6039 = vrot.slane %v6009, %v6038
    %v6040 = vlaneseq
    %v6041 = vshrl.u32 %v6040, 7
    %v6042 = vsub.s32 %v6023, %v6041
    %v6043 = vrot.slane %v6012, %v6042
    %v6044 = vlaneseq
    %v6045 = vshrl.u32 %v6044, 7
    %v6046 = vsub.s32 %v6023, %v6045
    %v6047 = vrot.slane %v6015, %v6046
    %v6048 = vlaneseq
    %v6049 = vshrl.u32 %v6048, 7
    %v6050 = vsub.s32 %v6023, %v6049
    %v6051 = vrot.slane %v6018, %v6050
    %v6052 = vlaneseq
    %v6053 = vshrl.u32 %v6052, 7
    %v6054 = vsub.s32 %v6023, %v6053
    %v6055 = vrot.slane %v6021, %v6054
    %vm6056 = vcmask 1041409
    %v6057 = vsel %vm6056, %v6031, %v6027
    %vm6058 = vcmask 1042434
    %v6059 = vsel %vm6058, %v6035, %v6057
    %vm6060 = vcmask 1043459
    %v6061 = vsel %vm6060, %v6039, %v6059
    %vm6062 = vcmask 1044484
    %v6063 = vsel %vm6062, %v6043, %v6061
    %vm6064 = vcmask 1045509
    %v6065 = vsel %vm6064, %v6047, %v6063
    %vm6066 = vcmask 1046534
    %v6067 = vsel %vm6066, %v6051, %v6065
    %vm6068 = vcmask 1047559
    %v6069 = vsel %vm6068, %v6055, %v6067
    %vm6071 = vcmask 64512
    %v6072 = vsel %vm6071, %v6069, -inf
    %6073 = vmax.xlane.f32.xlu0 %v6072
    %v6074 = vpop.xlane.xlu0 %6073
    %v6076 = vlaneseq
    %v6077 = vshrl.u32 %v6076, 7
    %v6078 = vsub.s32 0, %v6077
    %v6079 = vrot.slane %v6074, %v6078
    %v6080 = vlaneseq
    %v6081 = vshrl.u32 %v6080, 7
    %v6082 = vsub.s32 1, %v6081
    %v6083 = vrot.slane %v6074, %v6082
    %v6084 = vlaneseq
    %v6085 = vshrl.u32 %v6084, 7
    %v6086 = vsub.s32 2, %v6085
    %v6087 = vrot.slane %v6074, %v6086
    %v6088 = vlaneseq
    %v6089 = vshrl.u32 %v6088, 7
    %v6090 = vsub.s32 3, %v6089
    %v6091 = vrot.slane %v6074, %v6090
    %v6092 = vlaneseq
    %v6093 = vshrl.u32 %v6092, 7
    %v6094 = vsub.s32 4, %v6093
    %v6095 = vrot.slane %v6074, %v6094
    %v6096 = vlaneseq
    %v6097 = vshrl.u32 %v6096, 7
    %v6098 = vsub.s32 5, %v6097
    %v6099 = vrot.slane %v6074, %v6098
    %v6100 = vlaneseq
    %v6101 = vshrl.u32 %v6100, 7
    %v6102 = vsub.s32 6, %v6101
    %v6103 = vrot.slane %v6074, %v6102
    %v6104 = vlaneseq
    %v6105 = vshrl.u32 %v6104, 7
    %v6106 = vsub.s32 7, %v6105
    %v6107 = vrot.slane %v6074, %v6106
    %v6116 = vsub.f32 %v5497, %v6079
    %v6117 = vsub.f32 %v5567, %v6083
    %v6118 = vsub.f32 %v5637, %v6087
    %v6119 = vsub.f32 %v5707, %v6091
    %v6120 = vsub.f32 %v5777, %v6095
    %v6121 = vsub.f32 %v5847, %v6099
    %v6122 = vsub.f32 %v5917, %v6103
    %v6123 = vsub.f32 %v5987, %v6107
    %v6124 = vmul.f32 %v6116, 1.442695
    %v6125 = vpow.pop %v6124
    %v6126 = vmul.f32 %v6117, 1.442695
    %v6127 = vpow.pop %v6126
    %v6128 = vmul.f32 %v6118, 1.442695
    %v6129 = vpow.pop %v6128
    %v6130 = vmul.f32 %v6119, 1.442695
    %v6131 = vpow.pop %v6130
    %v6132 = vmul.f32 %v6120, 1.442695
    %v6133 = vpow.pop %v6132
    %v6134 = vmul.f32 %v6121, 1.442695
    %v6135 = vpow.pop %v6134
    %v6136 = vmul.f32 %v6122, 1.442695
    %v6137 = vpow.pop %v6136
    %v6138 = vmul.f32 %v6123, 1.442695
    %v6139 = vpow.pop %v6138
    %6148 = vset.pattern.permute.xlu0 0
    %6149 = vperm.xlu0 %6148, %v6125
    %v6150 = vpop.permute.xlu0 %6149
    %6151 = vset.pattern.permute.xlu0 0
    %6152 = vperm.xlu0 %6151, %v6127
    %v6153 = vpop.permute.xlu0 %6152
    %6154 = vset.pattern.permute.xlu0 0
    %6155 = vperm.xlu0 %6154, %v6129
    %v6156 = vpop.permute.xlu0 %6155
    %6157 = vset.pattern.permute.xlu0 0
    %6158 = vperm.xlu0 %6157, %v6131
    %v6159 = vpop.permute.xlu0 %6158
    %6160 = vset.pattern.permute.xlu0 0
    %6161 = vperm.xlu0 %6160, %v6133
    %v6162 = vpop.permute.xlu0 %6161
    %6163 = vset.pattern.permute.xlu0 0
    %6164 = vperm.xlu0 %6163, %v6135
    %v6165 = vpop.permute.xlu0 %6164
    %6166 = vset.pattern.permute.xlu0 0
    %6167 = vperm.xlu0 %6166, %v6137
    %v6168 = vpop.permute.xlu0 %6167
    %6169 = vset.pattern.permute.xlu0 0
    %6170 = vperm.xlu0 %6169, %v6139
    %v6171 = vpop.permute.xlu0 %6170
    %v6172 = vlaneseq
    %v6173 = vshrl.u32 %v6172, 7
    %v6174 = vsub.s32 %v6023, %v6173
    %v6175 = vrot.slane %v6150, %v6174
    %v6176 = vlaneseq
    %v6177 = vshrl.u32 %v6176, 7
    %v6178 = vsub.s32 %v6023, %v6177
    %v6179 = vrot.slane %v6153, %v6178
    %v6180 = vlaneseq
    %v6181 = vshrl.u32 %v6180, 7
    %v6182 = vsub.s32 %v6023, %v6181
    %v6183 = vrot.slane %v6156, %v6182
    %v6184 = vlaneseq
    %v6185 = vshrl.u32 %v6184, 7
    %v6186 = vsub.s32 %v6023, %v6185
    %v6187 = vrot.slane %v6159, %v6186
    %v6188 = vlaneseq
    %v6189 = vshrl.u32 %v6188, 7
    %v6190 = vsub.s32 %v6023, %v6189
    %v6191 = vrot.slane %v6162, %v6190
    %v6192 = vlaneseq
    %v6193 = vshrl.u32 %v6192, 7
    %v6194 = vsub.s32 %v6023, %v6193
    %v6195 = vrot.slane %v6165, %v6194
    %v6196 = vlaneseq
    %v6197 = vshrl.u32 %v6196, 7
    %v6198 = vsub.s32 %v6023, %v6197
    %v6199 = vrot.slane %v6168, %v6198
    %v6200 = vlaneseq
    %v6201 = vshrl.u32 %v6200, 7
    %v6202 = vsub.s32 %v6023, %v6201
    %v6203 = vrot.slane %v6171, %v6202
    %v6204 = vsel %vm6056, %v6179, %v6175
    %v6205 = vsel %vm6058, %v6183, %v6204
    %v6206 = vsel %vm6060, %v6187, %v6205
    %v6207 = vsel %vm6062, %v6191, %v6206
    %v6208 = vsel %vm6064, %v6195, %v6207
    %v6209 = vsel %vm6066, %v6199, %v6208
    %v6210 = vsel %vm6068, %v6203, %v6209
    %v6212 = vsel %vm6071, %v6210, 0.0
    %6213 = vadd.xlane.f32.xlu0 %v6212
    %v6214 = vpop.xlane.xlu0 %6213
    %v6215 = vrcp.pop %v6214
    %v6217 = vlaneseq
    %v6218 = vshrl.u32 %v6217, 7
    %v6219 = vsub.s32 0, %v6218
    %v6220 = vrot.slane %v6215, %v6219
    %v6221 = vlaneseq
    %v6222 = vshrl.u32 %v6221, 7
    %v6223 = vsub.s32 1, %v6222
    %v6224 = vrot.slane %v6215, %v6223
    %v6225 = vlaneseq
    %v6226 = vshrl.u32 %v6225, 7
    %v6227 = vsub.s32 2, %v6226
    %v6228 = vrot.slane %v6215, %v6227
    %v6229 = vlaneseq
    %v6230 = vshrl.u32 %v6229, 7
    %v6231 = vsub.s32 3, %v6230
    %v6232 = vrot.slane %v6215, %v6231
    %v6233 = vlaneseq
    %v6234 = vshrl.u32 %v6233, 7
    %v6235 = vsub.s32 4, %v6234
    %v6236 = vrot.slane %v6215, %v6235
    %v6237 = vlaneseq
    %v6238 = vshrl.u32 %v6237, 7
    %v6239 = vsub.s32 5, %v6238
    %v6240 = vrot.slane %v6215, %v6239
    %v6241 = vlaneseq
    %v6242 = vshrl.u32 %v6241, 7
    %v6243 = vsub.s32 6, %v6242
    %v6244 = vrot.slane %v6215, %v6243
    %v6245 = vlaneseq
    %v6246 = vshrl.u32 %v6245, 7
    %v6247 = vsub.s32 7, %v6246
    %v6248 = vrot.slane %v6215, %v6247
    %v6257 = vmul.f32 %v6125, %v6220
    %v6258 = vmul.f32 %v6127, %v6224
    %v6259 = vmul.f32 %v6129, %v6228
    %v6260 = vmul.f32 %v6131, %v6232
    %v6261 = vmul.f32 %v6133, %v6236
    %v6262 = vmul.f32 %v6135, %v6240
    %v6263 = vmul.f32 %v6137, %v6244
    %v6264 = vmul.f32 %v6139, %v6248
    %6266 = vset.pattern.permute.xlu0 0
    %6267 = vperm.xlu0 %6266, %v6257
    %v6268 = vpop.permute.xlu0 %6267
    %v6269 = vlaneseq
    %v6270 = vshrl.u32 %v6269, 7
    %v6271 = vsub.s32 %v6023, %v6270
    %v6272 = vrot.slane %v6268, %v6271
    %v6273 = vsel %vm6071, %v6272, 0
    %6275 = vmatprep.subr.mxu0 0.0
    %6276 = vmatpush1.msra.mxu0 0.0
    %6277 = vmatprep.subr.mxu0 0.0
    %6278 = vmatpush1.msra.mxu0 0.0
    %6279 = vmatprep.subr.mxu0 0.0
    %6280 = vmatpush1.msra.mxu0 0.0
    %6281 = vmatprep.subr.mxu0 0.0
    %6282 = vmatpush1.msra.mxu0 0.0
    %6283 = vmatprep.subr.mxu0 0.0
    %6284 = vmatpush1.msra.mxu0 0.0
    %6285 = vmatprep.subr.mxu0 0.0
    %6286 = vmatpush1.msra.mxu0 0.0
    %6287 = vmatprep.subr.mxu0 0.0
    %6288 = vmatpush1.msra.mxu0 0.0
    %6289 = vmatprep.subr.mxu0 0.0
    %6290 = vmatpush1.msra.mxu0 0.0
    %6291 = vmatprep.subr.mxu0 0.0
    %6292 = vmatpush1.msra.mxu0 0.0
    %6293 = vmatprep.subr.mxu0 0.0
    %6294 = vmatpush1.msra.mxu0 0.0
    %6295 = vmatprep.subr.mxu0 0.0
    %6296 = vmatpush1.msra.mxu0 0.0
    %6297 = vmatprep.subr.mxu0 0.0
    %6298 = vmatpush1.msra.mxu0 0.0
    %6299 = vmatprep.subr.mxu0 0.0
    %6300 = vmatpush1.msra.mxu0 0.0
    %6301 = vmatprep.subr.mxu0 0.0
    %6302 = vmatpush1.msra.mxu0 0.0
    %6303 = vmatprep.subr.mxu0 0.0
    %6304 = vmatpush1.msra.mxu0 0.0
    %6305 = vmatprep.subr.mxu0 0.0
    %6306 = vmatpush1.msra.mxu0 %v3646
    %6307 = vmatprep.subr.mxu0 0.0
    %6308 = vmatpush2.msra.mxu0 0.0
    %6309 = vmatprep.subr.mxu0 0.0
    %6310 = vmatpush2.msra.mxu0 0.0
    %6311 = vmatprep.subr.mxu0 0.0
    %6312 = vmatpush2.msra.mxu0 0.0
    %6313 = vmatprep.subr.mxu0 0.0
    %6314 = vmatpush2.msra.mxu0 0.0
    %6315 = vmatprep.subr.mxu0 0.0
    %6316 = vmatpush2.msra.mxu0 0.0
    %6317 = vmatprep.subr.mxu0 0.0
    %6318 = vmatpush2.msra.mxu0 0.0
    %6319 = vmatprep.subr.mxu0 0.0
    %6320 = vmatpush2.msra.mxu0 0.0
    %6321 = vmatprep.subr.mxu0 0.0
    %6322 = vmatpush2.msra.mxu0 0.0
    %6323 = vmatprep.subr.mxu0 0.0
    %6324 = vmatpush2.msra.mxu0 0.0
    %6325 = vmatprep.subr.mxu0 0.0
    %6326 = vmatpush2.msra.mxu0 0.0
    %6327 = vmatprep.subr.mxu0 0.0
    %6328 = vmatpush2.msra.mxu0 0.0
    %6329 = vmatprep.subr.mxu0 0.0
    %6330 = vmatpush2.msra.mxu0 0.0
    %6331 = vmatprep.subr.mxu0 0.0
    %6332 = vmatpush2.msra.mxu0 0.0
    %6333 = vmatprep.subr.mxu0 0.0
    %6334 = vmatpush2.msra.mxu0 0.0
    %6335 = vmatprep.subr.mxu0 0.0
    %6336 = vmatpush2.msra.mxu0 0.0
    %6337 = vmatprep.subr.mxu0 0.0
    %6338 = vmatpush2.msra.mxu0 0.0
    %6339 = vmatprep.mubr.f32.mxu0 0.0
    %6340 = vmatmul.mubr.f32.gmra.mxu0 %v6273
    %v6341 = vpop.f32.mrf.mxu0
    %v6342 = vadd.f32 0.0, %v6341
    %v6343 = vpop.f32.mrf.mxu0
    %6344 = vdwg.mxu0
    %6346 = vset.pattern.permute.xlu0 0
    %6347 = vperm.xlu0 %6346, %v6258
    %v6348 = vpop.permute.xlu0 %6347
    %v6349 = vlaneseq
    %v6350 = vshrl.u32 %v6349, 7
    %v6351 = vsub.s32 %v6023, %v6350
    %v6352 = vrot.slane %v6348, %v6351
    %v6353 = vsel %vm6071, %v6352, 0
    %6355 = vmatprep.subr.mxu0 0.0
    %6356 = vmatpush1.msra.mxu0 0.0
    %6357 = vmatprep.subr.mxu0 0.0
    %6358 = vmatpush1.msra.mxu0 0.0
    %6359 = vmatprep.subr.mxu0 0.0
    %6360 = vmatpush1.msra.mxu0 0.0
    %6361 = vmatprep.subr.mxu0 0.0
    %6362 = vmatpush1.msra.mxu0 0.0
    %6363 = vmatprep.subr.mxu0 0.0
    %6364 = vmatpush1.msra.mxu0 0.0
    %6365 = vmatprep.subr.mxu0 0.0
    %6366 = vmatpush1.msra.mxu0 0.0
    %6367 = vmatprep.subr.mxu0 0.0
    %6368 = vmatpush1.msra.mxu0 0.0
    %6369 = vmatprep.subr.mxu0 0.0
    %6370 = vmatpush1.msra.mxu0 0.0
    %6371 = vmatprep.subr.mxu0 0.0
    %6372 = vmatpush1.msra.mxu0 0.0
    %6373 = vmatprep.subr.mxu0 0.0
    %6374 = vmatpush1.msra.mxu0 0.0
    %6375 = vmatprep.subr.mxu0 0.0
    %6376 = vmatpush1.msra.mxu0 0.0
    %6377 = vmatprep.subr.mxu0 0.0
    %6378 = vmatpush1.msra.mxu0 0.0
    %6379 = vmatprep.subr.mxu0 0.0
    %6380 = vmatpush1.msra.mxu0 0.0
    %6381 = vmatprep.subr.mxu0 0.0
    %6382 = vmatpush1.msra.mxu0 0.0
    %6383 = vmatprep.subr.mxu0 0.0
    %6384 = vmatpush1.msra.mxu0 0.0
    %6385 = vmatprep.subr.mxu0 0.0
    %6386 = vmatpush1.msra.mxu0 %v3647
    %6387 = vmatprep.subr.mxu0 0.0
    %6388 = vmatpush2.msra.mxu0 0.0
    %6389 = vmatprep.subr.mxu0 0.0
    %6390 = vmatpush2.msra.mxu0 0.0
    %6391 = vmatprep.subr.mxu0 0.0
    %6392 = vmatpush2.msra.mxu0 0.0
    %6393 = vmatprep.subr.mxu0 0.0
    %6394 = vmatpush2.msra.mxu0 0.0
    %6395 = vmatprep.subr.mxu0 0.0
    %6396 = vmatpush2.msra.mxu0 0.0
    %6397 = vmatprep.subr.mxu0 0.0
    %6398 = vmatpush2.msra.mxu0 0.0
    %6399 = vmatprep.subr.mxu0 0.0
    %6400 = vmatpush2.msra.mxu0 0.0
    %6401 = vmatprep.subr.mxu0 0.0
    %6402 = vmatpush2.msra.mxu0 0.0
    %6403 = vmatprep.subr.mxu0 0.0
    %6404 = vmatpush2.msra.mxu0 0.0
    %6405 = vmatprep.subr.mxu0 0.0
    %6406 = vmatpush2.msra.mxu0 0.0
    %6407 = vmatprep.subr.mxu0 0.0
    %6408 = vmatpush2.msra.mxu0 0.0
    %6409 = vmatprep.subr.mxu0 0.0
    %6410 = vmatpush2.msra.mxu0 0.0
    %6411 = vmatprep.subr.mxu0 0.0
    %6412 = vmatpush2.msra.mxu0 0.0
    %6413 = vmatprep.subr.mxu0 0.0
    %6414 = vmatpush2.msra.mxu0 0.0
    %6415 = vmatprep.subr.mxu0 0.0
    %6416 = vmatpush2.msra.mxu0 0.0
    %6417 = vmatprep.subr.mxu0 0.0
    %6418 = vmatpush2.msra.mxu0 0.0
    %6419 = vmatprep.mubr.f32.mxu0 0.0
    %6420 = vmatmul.mubr.f32.gmra.mxu0 %v6353
    %v6421 = vpop.f32.mrf.mxu0
    %v6422 = vadd.f32 0.0, %v6421
    %v6423 = vpop.f32.mrf.mxu0
    %6424 = vdwg.mxu0
    %6426 = vset.pattern.permute.xlu0 0
    %6427 = vperm.xlu0 %6426, %v6259
    %v6428 = vpop.permute.xlu0 %6427
    %v6429 = vlaneseq
    %v6430 = vshrl.u32 %v6429, 7
    %v6431 = vsub.s32 %v6023, %v6430
    %v6432 = vrot.slane %v6428, %v6431
    %v6433 = vsel %vm6071, %v6432, 0
    %6435 = vmatprep.subr.mxu0 0.0
    %6436 = vmatpush1.msra.mxu0 0.0
    %6437 = vmatprep.subr.mxu0 0.0
    %6438 = vmatpush1.msra.mxu0 0.0
    %6439 = vmatprep.subr.mxu0 0.0
    %6440 = vmatpush1.msra.mxu0 0.0
    %6441 = vmatprep.subr.mxu0 0.0
    %6442 = vmatpush1.msra.mxu0 0.0
    %6443 = vmatprep.subr.mxu0 0.0
    %6444 = vmatpush1.msra.mxu0 0.0
    %6445 = vmatprep.subr.mxu0 0.0
    %6446 = vmatpush1.msra.mxu0 0.0
    %6447 = vmatprep.subr.mxu0 0.0
    %6448 = vmatpush1.msra.mxu0 0.0
    %6449 = vmatprep.subr.mxu0 0.0
    %6450 = vmatpush1.msra.mxu0 0.0
    %6451 = vmatprep.subr.mxu0 0.0
    %6452 = vmatpush1.msra.mxu0 0.0
    %6453 = vmatprep.subr.mxu0 0.0
    %6454 = vmatpush1.msra.mxu0 0.0
    %6455 = vmatprep.subr.mxu0 0.0
    %6456 = vmatpush1.msra.mxu0 0.0
    %6457 = vmatprep.subr.mxu0 0.0
    %6458 = vmatpush1.msra.mxu0 0.0
    %6459 = vmatprep.subr.mxu0 0.0
    %6460 = vmatpush1.msra.mxu0 0.0
    %6461 = vmatprep.subr.mxu0 0.0
    %6462 = vmatpush1.msra.mxu0 0.0
    %6463 = vmatprep.subr.mxu0 0.0
    %6464 = vmatpush1.msra.mxu0 0.0
    %6465 = vmatprep.subr.mxu0 0.0
    %6466 = vmatpush1.msra.mxu0 %v3648
    %6467 = vmatprep.subr.mxu0 0.0
    %6468 = vmatpush2.msra.mxu0 0.0
    %6469 = vmatprep.subr.mxu0 0.0
    %6470 = vmatpush2.msra.mxu0 0.0
    %6471 = vmatprep.subr.mxu0 0.0
    %6472 = vmatpush2.msra.mxu0 0.0
    %6473 = vmatprep.subr.mxu0 0.0
    %6474 = vmatpush2.msra.mxu0 0.0
    %6475 = vmatprep.subr.mxu0 0.0
    %6476 = vmatpush2.msra.mxu0 0.0
    %6477 = vmatprep.subr.mxu0 0.0
    %6478 = vmatpush2.msra.mxu0 0.0
    %6479 = vmatprep.subr.mxu0 0.0
    %6480 = vmatpush2.msra.mxu0 0.0
    %6481 = vmatprep.subr.mxu0 0.0
    %6482 = vmatpush2.msra.mxu0 0.0
    %6483 = vmatprep.subr.mxu0 0.0
    %6484 = vmatpush2.msra.mxu0 0.0
    %6485 = vmatprep.subr.mxu0 0.0
    %6486 = vmatpush2.msra.mxu0 0.0
    %6487 = vmatprep.subr.mxu0 0.0
    %6488 = vmatpush2.msra.mxu0 0.0
    %6489 = vmatprep.subr.mxu0 0.0
    %6490 = vmatpush2.msra.mxu0 0.0
    %6491 = vmatprep.subr.mxu0 0.0
    %6492 = vmatpush2.msra.mxu0 0.0
    %6493 = vmatprep.subr.mxu0 0.0
    %6494 = vmatpush2.msra.mxu0 0.0
    %6495 = vmatprep.subr.mxu0 0.0
    %6496 = vmatpush2.msra.mxu0 0.0
    %6497 = vmatprep.subr.mxu0 0.0
    %6498 = vmatpush2.msra.mxu0 0.0
    %6499 = vmatprep.mubr.f32.mxu0 0.0
    %6500 = vmatmul.mubr.f32.gmra.mxu0 %v6433
    %v6501 = vpop.f32.mrf.mxu0
    %v6502 = vadd.f32 0.0, %v6501
    %v6503 = vpop.f32.mrf.mxu0
    %6504 = vdwg.mxu0
    %6506 = vset.pattern.permute.xlu0 0
    %6507 = vperm.xlu0 %6506, %v6260
    %v6508 = vpop.permute.xlu0 %6507
    %v6509 = vlaneseq
    %v6510 = vshrl.u32 %v6509, 7
    %v6511 = vsub.s32 %v6023, %v6510
    %v6512 = vrot.slane %v6508, %v6511
    %v6513 = vsel %vm6071, %v6512, 0
    %6515 = vmatprep.subr.mxu0 0.0
    %6516 = vmatpush1.msra.mxu0 0.0
    %6517 = vmatprep.subr.mxu0 0.0
    %6518 = vmatpush1.msra.mxu0 0.0
    %6519 = vmatprep.subr.mxu0 0.0
    %6520 = vmatpush1.msra.mxu0 0.0
    %6521 = vmatprep.subr.mxu0 0.0
    %6522 = vmatpush1.msra.mxu0 0.0
    %6523 = vmatprep.subr.mxu0 0.0
    %6524 = vmatpush1.msra.mxu0 0.0
    %6525 = vmatprep.subr.mxu0 0.0
    %6526 = vmatpush1.msra.mxu0 0.0
    %6527 = vmatprep.subr.mxu0 0.0
    %6528 = vmatpush1.msra.mxu0 0.0
    %6529 = vmatprep.subr.mxu0 0.0
    %6530 = vmatpush1.msra.mxu0 0.0
    %6531 = vmatprep.subr.mxu0 0.0
    %6532 = vmatpush1.msra.mxu0 0.0
    %6533 = vmatprep.subr.mxu0 0.0
    %6534 = vmatpush1.msra.mxu0 0.0
    %6535 = vmatprep.subr.mxu0 0.0
    %6536 = vmatpush1.msra.mxu0 0.0
    %6537 = vmatprep.subr.mxu0 0.0
    %6538 = vmatpush1.msra.mxu0 0.0
    %6539 = vmatprep.subr.mxu0 0.0
    %6540 = vmatpush1.msra.mxu0 0.0
    %6541 = vmatprep.subr.mxu0 0.0
    %6542 = vmatpush1.msra.mxu0 0.0
    %6543 = vmatprep.subr.mxu0 0.0
    %6544 = vmatpush1.msra.mxu0 0.0
    %6545 = vmatprep.subr.mxu0 0.0
    %6546 = vmatpush1.msra.mxu0 %v3649
    %6547 = vmatprep.subr.mxu0 0.0
    %6548 = vmatpush2.msra.mxu0 0.0
    %6549 = vmatprep.subr.mxu0 0.0
    %6550 = vmatpush2.msra.mxu0 0.0
    %6551 = vmatprep.subr.mxu0 0.0
    %6552 = vmatpush2.msra.mxu0 0.0
    %6553 = vmatprep.subr.mxu0 0.0
    %6554 = vmatpush2.msra.mxu0 0.0
    %6555 = vmatprep.subr.mxu0 0.0
    %6556 = vmatpush2.msra.mxu0 0.0
    %6557 = vmatprep.subr.mxu0 0.0
    %6558 = vmatpush2.msra.mxu0 0.0
    %6559 = vmatprep.subr.mxu0 0.0
    %6560 = vmatpush2.msra.mxu0 0.0
    %6561 = vmatprep.subr.mxu0 0.0
    %6562 = vmatpush2.msra.mxu0 0.0
    %6563 = vmatprep.subr.mxu0 0.0
    %6564 = vmatpush2.msra.mxu0 0.0
    %6565 = vmatprep.subr.mxu0 0.0
    %6566 = vmatpush2.msra.mxu0 0.0
    %6567 = vmatprep.subr.mxu0 0.0
    %6568 = vmatpush2.msra.mxu0 0.0
    %6569 = vmatprep.subr.mxu0 0.0
    %6570 = vmatpush2.msra.mxu0 0.0
    %6571 = vmatprep.subr.mxu0 0.0
    %6572 = vmatpush2.msra.mxu0 0.0
    %6573 = vmatprep.subr.mxu0 0.0
    %6574 = vmatpush2.msra.mxu0 0.0
    %6575 = vmatprep.subr.mxu0 0.0
    %6576 = vmatpush2.msra.mxu0 0.0
    %6577 = vmatprep.subr.mxu0 0.0
    %6578 = vmatpush2.msra.mxu0 0.0
    %6579 = vmatprep.mubr.f32.mxu0 0.0
    %6580 = vmatmul.mubr.f32.gmra.mxu0 %v6513
    %v6581 = vpop.f32.mrf.mxu0
    %v6582 = vadd.f32 0.0, %v6581
    %v6583 = vpop.f32.mrf.mxu0
    %6584 = vdwg.mxu0
    %6586 = vset.pattern.permute.xlu0 0
    %6587 = vperm.xlu0 %6586, %v6261
    %v6588 = vpop.permute.xlu0 %6587
    %v6589 = vlaneseq
    %v6590 = vshrl.u32 %v6589, 7
    %v6591 = vsub.s32 %v6023, %v6590
    %v6592 = vrot.slane %v6588, %v6591
    %v6593 = vsel %vm6071, %v6592, 0
    %6595 = vmatprep.subr.mxu0 0.0
    %6596 = vmatpush1.msra.mxu0 0.0
    %6597 = vmatprep.subr.mxu0 0.0
    %6598 = vmatpush1.msra.mxu0 0.0
    %6599 = vmatprep.subr.mxu0 0.0
    %6600 = vmatpush1.msra.mxu0 0.0
    %6601 = vmatprep.subr.mxu0 0.0
    %6602 = vmatpush1.msra.mxu0 0.0
    %6603 = vmatprep.subr.mxu0 0.0
    %6604 = vmatpush1.msra.mxu0 0.0
    %6605 = vmatprep.subr.mxu0 0.0
    %6606 = vmatpush1.msra.mxu0 0.0
    %6607 = vmatprep.subr.mxu0 0.0
    %6608 = vmatpush1.msra.mxu0 0.0
    %6609 = vmatprep.subr.mxu0 0.0
    %6610 = vmatpush1.msra.mxu0 0.0
    %6611 = vmatprep.subr.mxu0 0.0
    %6612 = vmatpush1.msra.mxu0 0.0
    %6613 = vmatprep.subr.mxu0 0.0
    %6614 = vmatpush1.msra.mxu0 0.0
    %6615 = vmatprep.subr.mxu0 0.0
    %6616 = vmatpush1.msra.mxu0 0.0
    %6617 = vmatprep.subr.mxu0 0.0
    %6618 = vmatpush1.msra.mxu0 0.0
    %6619 = vmatprep.subr.mxu0 0.0
    %6620 = vmatpush1.msra.mxu0 0.0
    %6621 = vmatprep.subr.mxu0 0.0
    %6622 = vmatpush1.msra.mxu0 0.0
    %6623 = vmatprep.subr.mxu0 0.0
    %6624 = vmatpush1.msra.mxu0 0.0
    %6625 = vmatprep.subr.mxu0 0.0
    %6626 = vmatpush1.msra.mxu0 %v3650
    %6627 = vmatprep.subr.mxu0 0.0
    %6628 = vmatpush2.msra.mxu0 0.0
    %6629 = vmatprep.subr.mxu0 0.0
    %6630 = vmatpush2.msra.mxu0 0.0
    %6631 = vmatprep.subr.mxu0 0.0
    %6632 = vmatpush2.msra.mxu0 0.0
    %6633 = vmatprep.subr.mxu0 0.0
    %6634 = vmatpush2.msra.mxu0 0.0
    %6635 = vmatprep.subr.mxu0 0.0
    %6636 = vmatpush2.msra.mxu0 0.0
    %6637 = vmatprep.subr.mxu0 0.0
    %6638 = vmatpush2.msra.mxu0 0.0
    %6639 = vmatprep.subr.mxu0 0.0
    %6640 = vmatpush2.msra.mxu0 0.0
    %6641 = vmatprep.subr.mxu0 0.0
    %6642 = vmatpush2.msra.mxu0 0.0
    %6643 = vmatprep.subr.mxu0 0.0
    %6644 = vmatpush2.msra.mxu0 0.0
    %6645 = vmatprep.subr.mxu0 0.0
    %6646 = vmatpush2.msra.mxu0 0.0
    %6647 = vmatprep.subr.mxu0 0.0
    %6648 = vmatpush2.msra.mxu0 0.0
    %6649 = vmatprep.subr.mxu0 0.0
    %6650 = vmatpush2.msra.mxu0 0.0
    %6651 = vmatprep.subr.mxu0 0.0
    %6652 = vmatpush2.msra.mxu0 0.0
    %6653 = vmatprep.subr.mxu0 0.0
    %6654 = vmatpush2.msra.mxu0 0.0
    %6655 = vmatprep.subr.mxu0 0.0
    %6656 = vmatpush2.msra.mxu0 0.0
    %6657 = vmatprep.subr.mxu0 0.0
    %6658 = vmatpush2.msra.mxu0 0.0
    %6659 = vmatprep.mubr.f32.mxu0 0.0
    %6660 = vmatmul.mubr.f32.gmra.mxu0 %v6593
    %v6661 = vpop.f32.mrf.mxu0
    %v6662 = vadd.f32 0.0, %v6661
    %v6663 = vpop.f32.mrf.mxu0
    %6664 = vdwg.mxu0
    %6666 = vset.pattern.permute.xlu0 0
    %6667 = vperm.xlu0 %6666, %v6262
    %v6668 = vpop.permute.xlu0 %6667
    %v6669 = vlaneseq
    %v6670 = vshrl.u32 %v6669, 7
    %v6671 = vsub.s32 %v6023, %v6670
    %v6672 = vrot.slane %v6668, %v6671
    %v6673 = vsel %vm6071, %v6672, 0
    %6675 = vmatprep.subr.mxu0 0.0
    %6676 = vmatpush1.msra.mxu0 0.0
    %6677 = vmatprep.subr.mxu0 0.0
    %6678 = vmatpush1.msra.mxu0 0.0
    %6679 = vmatprep.subr.mxu0 0.0
    %6680 = vmatpush1.msra.mxu0 0.0
    %6681 = vmatprep.subr.mxu0 0.0
    %6682 = vmatpush1.msra.mxu0 0.0
    %6683 = vmatprep.subr.mxu0 0.0
    %6684 = vmatpush1.msra.mxu0 0.0
    %6685 = vmatprep.subr.mxu0 0.0
    %6686 = vmatpush1.msra.mxu0 0.0
    %6687 = vmatprep.subr.mxu0 0.0
    %6688 = vmatpush1.msra.mxu0 0.0
    %6689 = vmatprep.subr.mxu0 0.0
    %6690 = vmatpush1.msra.mxu0 0.0
    %6691 = vmatprep.subr.mxu0 0.0
    %6692 = vmatpush1.msra.mxu0 0.0
    %6693 = vmatprep.subr.mxu0 0.0
    %6694 = vmatpush1.msra.mxu0 0.0
    %6695 = vmatprep.subr.mxu0 0.0
    %6696 = vmatpush1.msra.mxu0 0.0
    %6697 = vmatprep.subr.mxu0 0.0
    %6698 = vmatpush1.msra.mxu0 0.0
    %6699 = vmatprep.subr.mxu0 0.0
    %6700 = vmatpush1.msra.mxu0 0.0
    %6701 = vmatprep.subr.mxu0 0.0
    %6702 = vmatpush1.msra.mxu0 0.0
    %6703 = vmatprep.subr.mxu0 0.0
    %6704 = vmatpush1.msra.mxu0 0.0
    %6705 = vmatprep.subr.mxu0 0.0
    %6706 = vmatpush1.msra.mxu0 %v3651
    %6707 = vmatprep.subr.mxu0 0.0
    %6708 = vmatpush2.msra.mxu0 0.0
    %6709 = vmatprep.subr.mxu0 0.0
    %6710 = vmatpush2.msra.mxu0 0.0
    %6711 = vmatprep.subr.mxu0 0.0
    %6712 = vmatpush2.msra.mxu0 0.0
    %6713 = vmatprep.subr.mxu0 0.0
    %6714 = vmatpush2.msra.mxu0 0.0
    %6715 = vmatprep.subr.mxu0 0.0
    %6716 = vmatpush2.msra.mxu0 0.0
    %6717 = vmatprep.subr.mxu0 0.0
    %6718 = vmatpush2.msra.mxu0 0.0
    %6719 = vmatprep.subr.mxu0 0.0
    %6720 = vmatpush2.msra.mxu0 0.0
    %6721 = vmatprep.subr.mxu0 0.0
    %6722 = vmatpush2.msra.mxu0 0.0
    %6723 = vmatprep.subr.mxu0 0.0
    %6724 = vmatpush2.msra.mxu0 0.0
    %6725 = vmatprep.subr.mxu0 0.0
    %6726 = vmatpush2.msra.mxu0 0.0
    %6727 = vmatprep.subr.mxu0 0.0
    %6728 = vmatpush2.msra.mxu0 0.0
    %6729 = vmatprep.subr.mxu0 0.0
    %6730 = vmatpush2.msra.mxu0 0.0
    %6731 = vmatprep.subr.mxu0 0.0
    %6732 = vmatpush2.msra.mxu0 0.0
    %6733 = vmatprep.subr.mxu0 0.0
    %6734 = vmatpush2.msra.mxu0 0.0
    %6735 = vmatprep.subr.mxu0 0.0
    %6736 = vmatpush2.msra.mxu0 0.0
    %6737 = vmatprep.subr.mxu0 0.0
    %6738 = vmatpush2.msra.mxu0 0.0
    %6739 = vmatprep.mubr.f32.mxu0 0.0
    %6740 = vmatmul.mubr.f32.gmra.mxu0 %v6673
    %v6741 = vpop.f32.mrf.mxu0
    %v6742 = vadd.f32 0.0, %v6741
    %v6743 = vpop.f32.mrf.mxu0
    %6744 = vdwg.mxu0
    %6746 = vset.pattern.permute.xlu0 0
    %6747 = vperm.xlu0 %6746, %v6263
    %v6748 = vpop.permute.xlu0 %6747
    %v6749 = vlaneseq
    %v6750 = vshrl.u32 %v6749, 7
    %v6751 = vsub.s32 %v6023, %v6750
    %v6752 = vrot.slane %v6748, %v6751
    %v6753 = vsel %vm6071, %v6752, 0
    %6755 = vmatprep.subr.mxu0 0.0
    %6756 = vmatpush1.msra.mxu0 0.0
    %6757 = vmatprep.subr.mxu0 0.0
    %6758 = vmatpush1.msra.mxu0 0.0
    %6759 = vmatprep.subr.mxu0 0.0
    %6760 = vmatpush1.msra.mxu0 0.0
    %6761 = vmatprep.subr.mxu0 0.0
    %6762 = vmatpush1.msra.mxu0 0.0
    %6763 = vmatprep.subr.mxu0 0.0
    %6764 = vmatpush1.msra.mxu0 0.0
    %6765 = vmatprep.subr.mxu0 0.0
    %6766 = vmatpush1.msra.mxu0 0.0
    %6767 = vmatprep.subr.mxu0 0.0
    %6768 = vmatpush1.msra.mxu0 0.0
    %6769 = vmatprep.subr.mxu0 0.0
    %6770 = vmatpush1.msra.mxu0 0.0
    %6771 = vmatprep.subr.mxu0 0.0
    %6772 = vmatpush1.msra.mxu0 0.0
    %6773 = vmatprep.subr.mxu0 0.0
    %6774 = vmatpush1.msra.mxu0 0.0
    %6775 = vmatprep.subr.mxu0 0.0
    %6776 = vmatpush1.msra.mxu0 0.0
    %6777 = vmatprep.subr.mxu0 0.0
    %6778 = vmatpush1.msra.mxu0 0.0
    %6779 = vmatprep.subr.mxu0 0.0
    %6780 = vmatpush1.msra.mxu0 0.0
    %6781 = vmatprep.subr.mxu0 0.0
    %6782 = vmatpush1.msra.mxu0 0.0
    %6783 = vmatprep.subr.mxu0 0.0
    %6784 = vmatpush1.msra.mxu0 0.0
    %6785 = vmatprep.subr.mxu0 0.0
    %6786 = vmatpush1.msra.mxu0 %v3652
    %6787 = vmatprep.subr.mxu0 0.0
    %6788 = vmatpush2.msra.mxu0 0.0
    %6789 = vmatprep.subr.mxu0 0.0
    %6790 = vmatpush2.msra.mxu0 0.0
    %6791 = vmatprep.subr.mxu0 0.0
    %6792 = vmatpush2.msra.mxu0 0.0
    %6793 = vmatprep.subr.mxu0 0.0
    %6794 = vmatpush2.msra.mxu0 0.0
    %6795 = vmatprep.subr.mxu0 0.0
    %6796 = vmatpush2.msra.mxu0 0.0
    %6797 = vmatprep.subr.mxu0 0.0
    %6798 = vmatpush2.msra.mxu0 0.0
    %6799 = vmatprep.subr.mxu0 0.0
    %6800 = vmatpush2.msra.mxu0 0.0
    %6801 = vmatprep.subr.mxu0 0.0
    %6802 = vmatpush2.msra.mxu0 0.0
    %6803 = vmatprep.subr.mxu0 0.0
    %6804 = vmatpush2.msra.mxu0 0.0
    %6805 = vmatprep.subr.mxu0 0.0
    %6806 = vmatpush2.msra.mxu0 0.0
    %6807 = vmatprep.subr.mxu0 0.0
    %6808 = vmatpush2.msra.mxu0 0.0
    %6809 = vmatprep.subr.mxu0 0.0
    %6810 = vmatpush2.msra.mxu0 0.0
    %6811 = vmatprep.subr.mxu0 0.0
    %6812 = vmatpush2.msra.mxu0 0.0
    %6813 = vmatprep.subr.mxu0 0.0
    %6814 = vmatpush2.msra.mxu0 0.0
    %6815 = vmatprep.subr.mxu0 0.0
    %6816 = vmatpush2.msra.mxu0 0.0
    %6817 = vmatprep.subr.mxu0 0.0
    %6818 = vmatpush2.msra.mxu0 0.0
    %6819 = vmatprep.mubr.f32.mxu0 0.0
    %6820 = vmatmul.mubr.f32.gmra.mxu0 %v6753
    %v6821 = vpop.f32.mrf.mxu0
    %v6822 = vadd.f32 0.0, %v6821
    %v6823 = vpop.f32.mrf.mxu0
    %6824 = vdwg.mxu0
    %6826 = vset.pattern.permute.xlu0 0
    %6827 = vperm.xlu0 %6826, %v6264
    %v6828 = vpop.permute.xlu0 %6827
    %v6829 = vlaneseq
    %v6830 = vshrl.u32 %v6829, 7
    %v6831 = vsub.s32 %v6023, %v6830
    %v6832 = vrot.slane %v6828, %v6831
    %v6833 = vsel %vm6071, %v6832, 0
    %6835 = vmatprep.subr.mxu0 0.0
    %6836 = vmatpush1.msra.mxu0 0.0
    %6837 = vmatprep.subr.mxu0 0.0
    %6838 = vmatpush1.msra.mxu0 0.0
    %6839 = vmatprep.subr.mxu0 0.0
    %6840 = vmatpush1.msra.mxu0 0.0
    %6841 = vmatprep.subr.mxu0 0.0
    %6842 = vmatpush1.msra.mxu0 0.0
    %6843 = vmatprep.subr.mxu0 0.0
    %6844 = vmatpush1.msra.mxu0 0.0
    %6845 = vmatprep.subr.mxu0 0.0
    %6846 = vmatpush1.msra.mxu0 0.0
    %6847 = vmatprep.subr.mxu0 0.0
    %6848 = vmatpush1.msra.mxu0 0.0
    %6849 = vmatprep.subr.mxu0 0.0
    %6850 = vmatpush1.msra.mxu0 0.0
    %6851 = vmatprep.subr.mxu0 0.0
    %6852 = vmatpush1.msra.mxu0 0.0
    %6853 = vmatprep.subr.mxu0 0.0
    %6854 = vmatpush1.msra.mxu0 0.0
    %6855 = vmatprep.subr.mxu0 0.0
    %6856 = vmatpush1.msra.mxu0 0.0
    %6857 = vmatprep.subr.mxu0 0.0
    %6858 = vmatpush1.msra.mxu0 0.0
    %6859 = vmatprep.subr.mxu0 0.0
    %6860 = vmatpush1.msra.mxu0 0.0
    %6861 = vmatprep.subr.mxu0 0.0
    %6862 = vmatpush1.msra.mxu0 0.0
    %6863 = vmatprep.subr.mxu0 0.0
    %6864 = vmatpush1.msra.mxu0 0.0
    %6865 = vmatprep.subr.mxu0 0.0
    %6866 = vmatpush1.msra.mxu0 %v3653
    %6867 = vmatprep.subr.mxu0 0.0
    %6868 = vmatpush2.msra.mxu0 0.0
    %6869 = vmatprep.subr.mxu0 0.0
    %6870 = vmatpush2.msra.mxu0 0.0
    %6871 = vmatprep.subr.mxu0 0.0
    %6872 = vmatpush2.msra.mxu0 0.0
    %6873 = vmatprep.subr.mxu0 0.0
    %6874 = vmatpush2.msra.mxu0 0.0
    %6875 = vmatprep.subr.mxu0 0.0
    %6876 = vmatpush2.msra.mxu0 0.0
    %6877 = vmatprep.subr.mxu0 0.0
    %6878 = vmatpush2.msra.mxu0 0.0
    %6879 = vmatprep.subr.mxu0 0.0
    %6880 = vmatpush2.msra.mxu0 0.0
    %6881 = vmatprep.subr.mxu0 0.0
    %6882 = vmatpush2.msra.mxu0 0.0
    %6883 = vmatprep.subr.mxu0 0.0
    %6884 = vmatpush2.msra.mxu0 0.0
    %6885 = vmatprep.subr.mxu0 0.0
    %6886 = vmatpush2.msra.mxu0 0.0
    %6887 = vmatprep.subr.mxu0 0.0
    %6888 = vmatpush2.msra.mxu0 0.0
    %6889 = vmatprep.subr.mxu0 0.0
    %6890 = vmatpush2.msra.mxu0 0.0
    %6891 = vmatprep.subr.mxu0 0.0
    %6892 = vmatpush2.msra.mxu0 0.0
    %6893 = vmatprep.subr.mxu0 0.0
    %6894 = vmatpush2.msra.mxu0 0.0
    %6895 = vmatprep.subr.mxu0 0.0
    %6896 = vmatpush2.msra.mxu0 0.0
    %6897 = vmatprep.subr.mxu0 0.0
    %6898 = vmatpush2.msra.mxu0 0.0
    %6899 = vmatprep.mubr.f32.mxu0 0.0
    %6900 = vmatmul.mubr.f32.gmra.mxu0 %v6833
    %v6901 = vpop.f32.mrf.mxu0
    %v6902 = vadd.f32 0.0, %v6901
    %v6903 = vpop.f32.mrf.mxu0
    %6904 = vdwg.mxu0
    %6905 = vmatprep.subr.mxu0 0.0
    %6906 = vmatpush1.msra.mxu0 0.0
    %6907 = vmatprep.subr.mxu0 0.0
    %6908 = vmatpush1.msra.mxu0 0.0
    %6909 = vmatprep.subr.mxu0 0.0
    %6910 = vmatpush1.msra.mxu0 0.0
    %6911 = vmatprep.subr.mxu0 0.0
    %6912 = vmatpush1.msra.mxu0 0.0
    %6913 = vmatprep.subr.mxu0 0.0
    %6914 = vmatpush1.msra.mxu0 0.0
    %6915 = vmatprep.subr.mxu0 0.0
    %6916 = vmatpush1.msra.mxu0 0.0
    %6917 = vmatprep.subr.mxu0 0.0
    %6918 = vmatpush1.msra.mxu0 0.0
    %6919 = vmatprep.subr.mxu0 0.0
    %6920 = vmatpush1.msra.mxu0 0.0
    %6921 = vmatprep.subr.mxu0 0.0
    %6922 = vmatpush1.msra.mxu0 0.0
    %6923 = vmatprep.subr.mxu0 0.0
    %6924 = vmatpush1.msra.mxu0 0.0
    %6925 = vmatprep.subr.mxu0 0.0
    %6926 = vmatpush1.msra.mxu0 0.0
    %6927 = vmatprep.subr.mxu0 0.0
    %6928 = vmatpush1.msra.mxu0 0.0
    %6929 = vmatprep.subr.mxu0 0.0
    %6930 = vmatpush1.msra.mxu0 0.0
    %6931 = vmatprep.subr.mxu0 0.0
    %6932 = vmatpush1.msra.mxu0 0.0
    %6933 = vmatprep.subr.mxu0 0.0
    %6934 = vmatpush1.msra.mxu0 0.0
    %6935 = vmatprep.subr.mxu0 0.0
    %6936 = vmatpush1.msra.mxu0 %v3790
    %6937 = vmatprep.subr.mxu0 0.0
    %6938 = vmatpush2.msra.mxu0 0.0
    %6939 = vmatprep.subr.mxu0 0.0
    %6940 = vmatpush2.msra.mxu0 0.0
    %6941 = vmatprep.subr.mxu0 0.0
    %6942 = vmatpush2.msra.mxu0 0.0
    %6943 = vmatprep.subr.mxu0 0.0
    %6944 = vmatpush2.msra.mxu0 0.0
    %6945 = vmatprep.subr.mxu0 0.0
    %6946 = vmatpush2.msra.mxu0 0.0
    %6947 = vmatprep.subr.mxu0 0.0
    %6948 = vmatpush2.msra.mxu0 0.0
    %6949 = vmatprep.subr.mxu0 0.0
    %6950 = vmatpush2.msra.mxu0 0.0
    %6951 = vmatprep.subr.mxu0 0.0
    %6952 = vmatpush2.msra.mxu0 0.0
    %6953 = vmatprep.subr.mxu0 0.0
    %6954 = vmatpush2.msra.mxu0 0.0
    %6955 = vmatprep.subr.mxu0 0.0
    %6956 = vmatpush2.msra.mxu0 0.0
    %6957 = vmatprep.subr.mxu0 0.0
    %6958 = vmatpush2.msra.mxu0 0.0
    %6959 = vmatprep.subr.mxu0 0.0
    %6960 = vmatpush2.msra.mxu0 0.0
    %6961 = vmatprep.subr.mxu0 0.0
    %6962 = vmatpush2.msra.mxu0 0.0
    %6963 = vmatprep.subr.mxu0 0.0
    %6964 = vmatpush2.msra.mxu0 0.0
    %6965 = vmatprep.subr.mxu0 0.0
    %6966 = vmatpush2.msra.mxu0 0.0
    %6967 = vmatprep.subr.mxu0 0.0
    %6968 = vmatpush2.msra.mxu0 0.0
    %6969 = vmatprep.mubr.f32.mxu0 0.0
    %6970 = vmatmul.mubr.f32.gmra.mxu0 %v6273
    %v6971 = vpop.f32.mrf.mxu0
    %v6972 = vadd.f32 0.0, %v6971
    %v6973 = vpop.f32.mrf.mxu0
    %6974 = vdwg.mxu0
    %6975 = vmatprep.subr.mxu0 0.0
    %6976 = vmatpush1.msra.mxu0 0.0
    %6977 = vmatprep.subr.mxu0 0.0
    %6978 = vmatpush1.msra.mxu0 0.0
    %6979 = vmatprep.subr.mxu0 0.0
    %6980 = vmatpush1.msra.mxu0 0.0
    %6981 = vmatprep.subr.mxu0 0.0
    %6982 = vmatpush1.msra.mxu0 0.0
    %6983 = vmatprep.subr.mxu0 0.0
    %6984 = vmatpush1.msra.mxu0 0.0
    %6985 = vmatprep.subr.mxu0 0.0
    %6986 = vmatpush1.msra.mxu0 0.0
    %6987 = vmatprep.subr.mxu0 0.0
    %6988 = vmatpush1.msra.mxu0 0.0
    %6989 = vmatprep.subr.mxu0 0.0
    %6990 = vmatpush1.msra.mxu0 0.0
    %6991 = vmatprep.subr.mxu0 0.0
    %6992 = vmatpush1.msra.mxu0 0.0
    %6993 = vmatprep.subr.mxu0 0.0
    %6994 = vmatpush1.msra.mxu0 0.0
    %6995 = vmatprep.subr.mxu0 0.0
    %6996 = vmatpush1.msra.mxu0 0.0
    %6997 = vmatprep.subr.mxu0 0.0
    %6998 = vmatpush1.msra.mxu0 0.0
    %6999 = vmatprep.subr.mxu0 0.0
    %7000 = vmatpush1.msra.mxu0 0.0
    %7001 = vmatprep.subr.mxu0 0.0
    %7002 = vmatpush1.msra.mxu0 0.0
    %7003 = vmatprep.subr.mxu0 0.0
    %7004 = vmatpush1.msra.mxu0 0.0
    %7005 = vmatprep.subr.mxu0 0.0
    %7006 = vmatpush1.msra.mxu0 %v3791
    %7007 = vmatprep.subr.mxu0 0.0
    %7008 = vmatpush2.msra.mxu0 0.0
    %7009 = vmatprep.subr.mxu0 0.0
    %7010 = vmatpush2.msra.mxu0 0.0
    %7011 = vmatprep.subr.mxu0 0.0
    %7012 = vmatpush2.msra.mxu0 0.0
    %7013 = vmatprep.subr.mxu0 0.0
    %7014 = vmatpush2.msra.mxu0 0.0
    %7015 = vmatprep.subr.mxu0 0.0
    %7016 = vmatpush2.msra.mxu0 0.0
    %7017 = vmatprep.subr.mxu0 0.0
    %7018 = vmatpush2.msra.mxu0 0.0
    %7019 = vmatprep.subr.mxu0 0.0
    %7020 = vmatpush2.msra.mxu0 0.0
    %7021 = vmatprep.subr.mxu0 0.0
    %7022 = vmatpush2.msra.mxu0 0.0
    %7023 = vmatprep.subr.mxu0 0.0
    %7024 = vmatpush2.msra.mxu0 0.0
    %7025 = vmatprep.subr.mxu0 0.0
    %7026 = vmatpush2.msra.mxu0 0.0
    %7027 = vmatprep.subr.mxu0 0.0
    %7028 = vmatpush2.msra.mxu0 0.0
    %7029 = vmatprep.subr.mxu0 0.0
    %7030 = vmatpush2.msra.mxu0 0.0
    %7031 = vmatprep.subr.mxu0 0.0
    %7032 = vmatpush2.msra.mxu0 0.0
    %7033 = vmatprep.subr.mxu0 0.0
    %7034 = vmatpush2.msra.mxu0 0.0
    %7035 = vmatprep.subr.mxu0 0.0
    %7036 = vmatpush2.msra.mxu0 0.0
    %7037 = vmatprep.subr.mxu0 0.0
    %7038 = vmatpush2.msra.mxu0 0.0
    %7039 = vmatprep.mubr.f32.mxu0 0.0
    %7040 = vmatmul.mubr.f32.gmra.mxu0 %v6353
    %v7041 = vpop.f32.mrf.mxu0
    %v7042 = vadd.f32 0.0, %v7041
    %v7043 = vpop.f32.mrf.mxu0
    %7044 = vdwg.mxu0
    %7045 = vmatprep.subr.mxu0 0.0
    %7046 = vmatpush1.msra.mxu0 0.0
    %7047 = vmatprep.subr.mxu0 0.0
    %7048 = vmatpush1.msra.mxu0 0.0
    %7049 = vmatprep.subr.mxu0 0.0
    %7050 = vmatpush1.msra.mxu0 0.0
    %7051 = vmatprep.subr.mxu0 0.0
    %7052 = vmatpush1.msra.mxu0 0.0
    %7053 = vmatprep.subr.mxu0 0.0
    %7054 = vmatpush1.msra.mxu0 0.0
    %7055 = vmatprep.subr.mxu0 0.0
    %7056 = vmatpush1.msra.mxu0 0.0
    %7057 = vmatprep.subr.mxu0 0.0
    %7058 = vmatpush1.msra.mxu0 0.0
    %7059 = vmatprep.subr.mxu0 0.0
    %7060 = vmatpush1.msra.mxu0 0.0
    %7061 = vmatprep.subr.mxu0 0.0
    %7062 = vmatpush1.msra.mxu0 0.0
    %7063 = vmatprep.subr.mxu0 0.0
    %7064 = vmatpush1.msra.mxu0 0.0
    %7065 = vmatprep.subr.mxu0 0.0
    %7066 = vmatpush1.msra.mxu0 0.0
    %7067 = vmatprep.subr.mxu0 0.0
    %7068 = vmatpush1.msra.mxu0 0.0
    %7069 = vmatprep.subr.mxu0 0.0
    %7070 = vmatpush1.msra.mxu0 0.0
    %7071 = vmatprep.subr.mxu0 0.0
    %7072 = vmatpush1.msra.mxu0 0.0
    %7073 = vmatprep.subr.mxu0 0.0
    %7074 = vmatpush1.msra.mxu0 0.0
    %7075 = vmatprep.subr.mxu0 0.0
    %7076 = vmatpush1.msra.mxu0 %v3792
    %7077 = vmatprep.subr.mxu0 0.0
    %7078 = vmatpush2.msra.mxu0 0.0
    %7079 = vmatprep.subr.mxu0 0.0
    %7080 = vmatpush2.msra.mxu0 0.0
    %7081 = vmatprep.subr.mxu0 0.0
    %7082 = vmatpush2.msra.mxu0 0.0
    %7083 = vmatprep.subr.mxu0 0.0
    %7084 = vmatpush2.msra.mxu0 0.0
    %7085 = vmatprep.subr.mxu0 0.0
    %7086 = vmatpush2.msra.mxu0 0.0
    %7087 = vmatprep.subr.mxu0 0.0
    %7088 = vmatpush2.msra.mxu0 0.0
    %7089 = vmatprep.subr.mxu0 0.0
    %7090 = vmatpush2.msra.mxu0 0.0
    %7091 = vmatprep.subr.mxu0 0.0
    %7092 = vmatpush2.msra.mxu0 0.0
    %7093 = vmatprep.subr.mxu0 0.0
    %7094 = vmatpush2.msra.mxu0 0.0
    %7095 = vmatprep.subr.mxu0 0.0
    %7096 = vmatpush2.msra.mxu0 0.0
    %7097 = vmatprep.subr.mxu0 0.0
    %7098 = vmatpush2.msra.mxu0 0.0
    %7099 = vmatprep.subr.mxu0 0.0
    %7100 = vmatpush2.msra.mxu0 0.0
    %7101 = vmatprep.subr.mxu0 0.0
    %7102 = vmatpush2.msra.mxu0 0.0
    %7103 = vmatprep.subr.mxu0 0.0
    %7104 = vmatpush2.msra.mxu0 0.0
    %7105 = vmatprep.subr.mxu0 0.0
    %7106 = vmatpush2.msra.mxu0 0.0
    %7107 = vmatprep.subr.mxu0 0.0
    %7108 = vmatpush2.msra.mxu0 0.0
    %7109 = vmatprep.mubr.f32.mxu0 0.0
    %7110 = vmatmul.mubr.f32.gmra.mxu0 %v6433
    %v7111 = vpop.f32.mrf.mxu0
    %v7112 = vadd.f32 0.0, %v7111
    %v7113 = vpop.f32.mrf.mxu0
    %7114 = vdwg.mxu0
    %7115 = vmatprep.subr.mxu0 0.0
    %7116 = vmatpush1.msra.mxu0 0.0
    %7117 = vmatprep.subr.mxu0 0.0
    %7118 = vmatpush1.msra.mxu0 0.0
    %7119 = vmatprep.subr.mxu0 0.0
    %7120 = vmatpush1.msra.mxu0 0.0
    %7121 = vmatprep.subr.mxu0 0.0
    %7122 = vmatpush1.msra.mxu0 0.0
    %7123 = vmatprep.subr.mxu0 0.0
    %7124 = vmatpush1.msra.mxu0 0.0
    %7125 = vmatprep.subr.mxu0 0.0
    %7126 = vmatpush1.msra.mxu0 0.0
    %7127 = vmatprep.subr.mxu0 0.0
    %7128 = vmatpush1.msra.mxu0 0.0
    %7129 = vmatprep.subr.mxu0 0.0
    %7130 = vmatpush1.msra.mxu0 0.0
    %7131 = vmatprep.subr.mxu0 0.0
    %7132 = vmatpush1.msra.mxu0 0.0
    %7133 = vmatprep.subr.mxu0 0.0
    %7134 = vmatpush1.msra.mxu0 0.0
    %7135 = vmatprep.subr.mxu0 0.0
    %7136 = vmatpush1.msra.mxu0 0.0
    %7137 = vmatprep.subr.mxu0 0.0
    %7138 = vmatpush1.msra.mxu0 0.0
    %7139 = vmatprep.subr.mxu0 0.0
    %7140 = vmatpush1.msra.mxu0 0.0
    %7141 = vmatprep.subr.mxu0 0.0
    %7142 = vmatpush1.msra.mxu0 0.0
    %7143 = vmatprep.subr.mxu0 0.0
    %7144 = vmatpush1.msra.mxu0 0.0
    %7145 = vmatprep.subr.mxu0 0.0
    %7146 = vmatpush1.msra.mxu0 %v3793
    %7147 = vmatprep.subr.mxu0 0.0
    %7148 = vmatpush2.msra.mxu0 0.0
    %7149 = vmatprep.subr.mxu0 0.0
    %7150 = vmatpush2.msra.mxu0 0.0
    %7151 = vmatprep.subr.mxu0 0.0
    %7152 = vmatpush2.msra.mxu0 0.0
    %7153 = vmatprep.subr.mxu0 0.0
    %7154 = vmatpush2.msra.mxu0 0.0
    %7155 = vmatprep.subr.mxu0 0.0
    %7156 = vmatpush2.msra.mxu0 0.0
    %7157 = vmatprep.subr.mxu0 0.0
    %7158 = vmatpush2.msra.mxu0 0.0
    %7159 = vmatprep.subr.mxu0 0.0
    %7160 = vmatpush2.msra.mxu0 0.0
    %7161 = vmatprep.subr.mxu0 0.0
    %7162 = vmatpush2.msra.mxu0 0.0
    %7163 = vmatprep.subr.mxu0 0.0
    %7164 = vmatpush2.msra.mxu0 0.0
    %7165 = vmatprep.subr.mxu0 0.0
    %7166 = vmatpush2.msra.mxu0 0.0
    %7167 = vmatprep.subr.mxu0 0.0
    %7168 = vmatpush2.msra.mxu0 0.0
    %7169 = vmatprep.subr.mxu0 0.0
    %7170 = vmatpush2.msra.mxu0 0.0
    %7171 = vmatprep.subr.mxu0 0.0
    %7172 = vmatpush2.msra.mxu0 0.0
    %7173 = vmatprep.subr.mxu0 0.0
    %7174 = vmatpush2.msra.mxu0 0.0
    %7175 = vmatprep.subr.mxu0 0.0
    %7176 = vmatpush2.msra.mxu0 0.0
    %7177 = vmatprep.subr.mxu0 0.0
    %7178 = vmatpush2.msra.mxu0 0.0
    %7179 = vmatprep.mubr.f32.mxu0 0.0
    %7180 = vmatmul.mubr.f32.gmra.mxu0 %v6513
    %v7181 = vpop.f32.mrf.mxu0
    %v7182 = vadd.f32 0.0, %v7181
    %v7183 = vpop.f32.mrf.mxu0
    %7184 = vdwg.mxu0
    %7185 = vmatprep.subr.mxu0 0.0
    %7186 = vmatpush1.msra.mxu0 0.0
    %7187 = vmatprep.subr.mxu0 0.0
    %7188 = vmatpush1.msra.mxu0 0.0
    %7189 = vmatprep.subr.mxu0 0.0
    %7190 = vmatpush1.msra.mxu0 0.0
    %7191 = vmatprep.subr.mxu0 0.0
    %7192 = vmatpush1.msra.mxu0 0.0
    %7193 = vmatprep.subr.mxu0 0.0
    %7194 = vmatpush1.msra.mxu0 0.0
    %7195 = vmatprep.subr.mxu0 0.0
    %7196 = vmatpush1.msra.mxu0 0.0
    %7197 = vmatprep.subr.mxu0 0.0
    %7198 = vmatpush1.msra.mxu0 0.0
    %7199 = vmatprep.subr.mxu0 0.0
    %7200 = vmatpush1.msra.mxu0 0.0
    %7201 = vmatprep.subr.mxu0 0.0
    %7202 = vmatpush1.msra.mxu0 0.0
    %7203 = vmatprep.subr.mxu0 0.0
    %7204 = vmatpush1.msra.mxu0 0.0
    %7205 = vmatprep.subr.mxu0 0.0
    %7206 = vmatpush1.msra.mxu0 0.0
    %7207 = vmatprep.subr.mxu0 0.0
    %7208 = vmatpush1.msra.mxu0 0.0
    %7209 = vmatprep.subr.mxu0 0.0
    %7210 = vmatpush1.msra.mxu0 0.0
    %7211 = vmatprep.subr.mxu0 0.0
    %7212 = vmatpush1.msra.mxu0 0.0
    %7213 = vmatprep.subr.mxu0 0.0
    %7214 = vmatpush1.msra.mxu0 0.0
    %7215 = vmatprep.subr.mxu0 0.0
    %7216 = vmatpush1.msra.mxu0 %v3794
    %7217 = vmatprep.subr.mxu0 0.0
    %7218 = vmatpush2.msra.mxu0 0.0
    %7219 = vmatprep.subr.mxu0 0.0
    %7220 = vmatpush2.msra.mxu0 0.0
    %7221 = vmatprep.subr.mxu0 0.0
    %7222 = vmatpush2.msra.mxu0 0.0
    %7223 = vmatprep.subr.mxu0 0.0
    %7224 = vmatpush2.msra.mxu0 0.0
    %7225 = vmatprep.subr.mxu0 0.0
    %7226 = vmatpush2.msra.mxu0 0.0
    %7227 = vmatprep.subr.mxu0 0.0
    %7228 = vmatpush2.msra.mxu0 0.0
    %7229 = vmatprep.subr.mxu0 0.0
    %7230 = vmatpush2.msra.mxu0 0.0
    %7231 = vmatprep.subr.mxu0 0.0
    %7232 = vmatpush2.msra.mxu0 0.0
    %7233 = vmatprep.subr.mxu0 0.0
    %7234 = vmatpush2.msra.mxu0 0.0
    %7235 = vmatprep.subr.mxu0 0.0
    %7236 = vmatpush2.msra.mxu0 0.0
    %7237 = vmatprep.subr.mxu0 0.0
    %7238 = vmatpush2.msra.mxu0 0.0
    %7239 = vmatprep.subr.mxu0 0.0
    %7240 = vmatpush2.msra.mxu0 0.0
    %7241 = vmatprep.subr.mxu0 0.0
    %7242 = vmatpush2.msra.mxu0 0.0
    %7243 = vmatprep.subr.mxu0 0.0
    %7244 = vmatpush2.msra.mxu0 0.0
    %7245 = vmatprep.subr.mxu0 0.0
    %7246 = vmatpush2.msra.mxu0 0.0
    %7247 = vmatprep.subr.mxu0 0.0
    %7248 = vmatpush2.msra.mxu0 0.0
    %7249 = vmatprep.mubr.f32.mxu0 0.0
    %7250 = vmatmul.mubr.f32.gmra.mxu0 %v6593
    %v7251 = vpop.f32.mrf.mxu0
    %v7252 = vadd.f32 0.0, %v7251
    %v7253 = vpop.f32.mrf.mxu0
    %7254 = vdwg.mxu0
    %7255 = vmatprep.subr.mxu0 0.0
    %7256 = vmatpush1.msra.mxu0 0.0
    %7257 = vmatprep.subr.mxu0 0.0
    %7258 = vmatpush1.msra.mxu0 0.0
    %7259 = vmatprep.subr.mxu0 0.0
    %7260 = vmatpush1.msra.mxu0 0.0
    %7261 = vmatprep.subr.mxu0 0.0
    %7262 = vmatpush1.msra.mxu0 0.0
    %7263 = vmatprep.subr.mxu0 0.0
    %7264 = vmatpush1.msra.mxu0 0.0
    %7265 = vmatprep.subr.mxu0 0.0
    %7266 = vmatpush1.msra.mxu0 0.0
    %7267 = vmatprep.subr.mxu0 0.0
    %7268 = vmatpush1.msra.mxu0 0.0
    %7269 = vmatprep.subr.mxu0 0.0
    %7270 = vmatpush1.msra.mxu0 0.0
    %7271 = vmatprep.subr.mxu0 0.0
    %7272 = vmatpush1.msra.mxu0 0.0
    %7273 = vmatprep.subr.mxu0 0.0
    %7274 = vmatpush1.msra.mxu0 0.0
    %7275 = vmatprep.subr.mxu0 0.0
    %7276 = vmatpush1.msra.mxu0 0.0
    %7277 = vmatprep.subr.mxu0 0.0
    %7278 = vmatpush1.msra.mxu0 0.0
    %7279 = vmatprep.subr.mxu0 0.0
    %7280 = vmatpush1.msra.mxu0 0.0
    %7281 = vmatprep.subr.mxu0 0.0
    %7282 = vmatpush1.msra.mxu0 0.0
    %7283 = vmatprep.subr.mxu0 0.0
    %7284 = vmatpush1.msra.mxu0 0.0
    %7285 = vmatprep.subr.mxu0 0.0
    %7286 = vmatpush1.msra.mxu0 %v3795
    %7287 = vmatprep.subr.mxu0 0.0
    %7288 = vmatpush2.msra.mxu0 0.0
    %7289 = vmatprep.subr.mxu0 0.0
    %7290 = vmatpush2.msra.mxu0 0.0
    %7291 = vmatprep.subr.mxu0 0.0
    %7292 = vmatpush2.msra.mxu0 0.0
    %7293 = vmatprep.subr.mxu0 0.0
    %7294 = vmatpush2.msra.mxu0 0.0
    %7295 = vmatprep.subr.mxu0 0.0
    %7296 = vmatpush2.msra.mxu0 0.0
    %7297 = vmatprep.subr.mxu0 0.0
    %7298 = vmatpush2.msra.mxu0 0.0
    %7299 = vmatprep.subr.mxu0 0.0
    %7300 = vmatpush2.msra.mxu0 0.0
    %7301 = vmatprep.subr.mxu0 0.0
    %7302 = vmatpush2.msra.mxu0 0.0
    %7303 = vmatprep.subr.mxu0 0.0
    %7304 = vmatpush2.msra.mxu0 0.0
    %7305 = vmatprep.subr.mxu0 0.0
    %7306 = vmatpush2.msra.mxu0 0.0
    %7307 = vmatprep.subr.mxu0 0.0
    %7308 = vmatpush2.msra.mxu0 0.0
    %7309 = vmatprep.subr.mxu0 0.0
    %7310 = vmatpush2.msra.mxu0 0.0
    %7311 = vmatprep.subr.mxu0 0.0
    %7312 = vmatpush2.msra.mxu0 0.0
    %7313 = vmatprep.subr.mxu0 0.0
    %7314 = vmatpush2.msra.mxu0 0.0
    %7315 = vmatprep.subr.mxu0 0.0
    %7316 = vmatpush2.msra.mxu0 0.0
    %7317 = vmatprep.subr.mxu0 0.0
    %7318 = vmatpush2.msra.mxu0 0.0
    %7319 = vmatprep.mubr.f32.mxu0 0.0
    %7320 = vmatmul.mubr.f32.gmra.mxu0 %v6673
    %v7321 = vpop.f32.mrf.mxu0
    %v7322 = vadd.f32 0.0, %v7321
    %v7323 = vpop.f32.mrf.mxu0
    %7324 = vdwg.mxu0
    %7325 = vmatprep.subr.mxu0 0.0
    %7326 = vmatpush1.msra.mxu0 0.0
    %7327 = vmatprep.subr.mxu0 0.0
    %7328 = vmatpush1.msra.mxu0 0.0
    %7329 = vmatprep.subr.mxu0 0.0
    %7330 = vmatpush1.msra.mxu0 0.0
    %7331 = vmatprep.subr.mxu0 0.0
    %7332 = vmatpush1.msra.mxu0 0.0
    %7333 = vmatprep.subr.mxu0 0.0
    %7334 = vmatpush1.msra.mxu0 0.0
    %7335 = vmatprep.subr.mxu0 0.0
    %7336 = vmatpush1.msra.mxu0 0.0
    %7337 = vmatprep.subr.mxu0 0.0
    %7338 = vmatpush1.msra.mxu0 0.0
    %7339 = vmatprep.subr.mxu0 0.0
    %7340 = vmatpush1.msra.mxu0 0.0
    %7341 = vmatprep.subr.mxu0 0.0
    %7342 = vmatpush1.msra.mxu0 0.0
    %7343 = vmatprep.subr.mxu0 0.0
    %7344 = vmatpush1.msra.mxu0 0.0
    %7345 = vmatprep.subr.mxu0 0.0
    %7346 = vmatpush1.msra.mxu0 0.0
    %7347 = vmatprep.subr.mxu0 0.0
    %7348 = vmatpush1.msra.mxu0 0.0
    %7349 = vmatprep.subr.mxu0 0.0
    %7350 = vmatpush1.msra.mxu0 0.0
    %7351 = vmatprep.subr.mxu0 0.0
    %7352 = vmatpush1.msra.mxu0 0.0
    %7353 = vmatprep.subr.mxu0 0.0
    %7354 = vmatpush1.msra.mxu0 0.0
    %7355 = vmatprep.subr.mxu0 0.0
    %7356 = vmatpush1.msra.mxu0 %v3796
    %7357 = vmatprep.subr.mxu0 0.0
    %7358 = vmatpush2.msra.mxu0 0.0
    %7359 = vmatprep.subr.mxu0 0.0
    %7360 = vmatpush2.msra.mxu0 0.0
    %7361 = vmatprep.subr.mxu0 0.0
    %7362 = vmatpush2.msra.mxu0 0.0
    %7363 = vmatprep.subr.mxu0 0.0
    %7364 = vmatpush2.msra.mxu0 0.0
    %7365 = vmatprep.subr.mxu0 0.0
    %7366 = vmatpush2.msra.mxu0 0.0
    %7367 = vmatprep.subr.mxu0 0.0
    %7368 = vmatpush2.msra.mxu0 0.0
    %7369 = vmatprep.subr.mxu0 0.0
    %7370 = vmatpush2.msra.mxu0 0.0
    %7371 = vmatprep.subr.mxu0 0.0
    %7372 = vmatpush2.msra.mxu0 0.0
    %7373 = vmatprep.subr.mxu0 0.0
    %7374 = vmatpush2.msra.mxu0 0.0
    %7375 = vmatprep.subr.mxu0 0.0
    %7376 = vmatpush2.msra.mxu0 0.0
    %7377 = vmatprep.subr.mxu0 0.0
    %7378 = vmatpush2.msra.mxu0 0.0
    %7379 = vmatprep.subr.mxu0 0.0
    %7380 = vmatpush2.msra.mxu0 0.0
    %7381 = vmatprep.subr.mxu0 0.0
    %7382 = vmatpush2.msra.mxu0 0.0
    %7383 = vmatprep.subr.mxu0 0.0
    %7384 = vmatpush2.msra.mxu0 0.0
    %7385 = vmatprep.subr.mxu0 0.0
    %7386 = vmatpush2.msra.mxu0 0.0
    %7387 = vmatprep.subr.mxu0 0.0
    %7388 = vmatpush2.msra.mxu0 0.0
    %7389 = vmatprep.mubr.f32.mxu0 0.0
    %7390 = vmatmul.mubr.f32.gmra.mxu0 %v6753
    %v7391 = vpop.f32.mrf.mxu0
    %v7392 = vadd.f32 0.0, %v7391
    %v7393 = vpop.f32.mrf.mxu0
    %7394 = vdwg.mxu0
    %7395 = vmatprep.subr.mxu0 0.0
    %7396 = vmatpush1.msra.mxu0 0.0
    %7397 = vmatprep.subr.mxu0 0.0
    %7398 = vmatpush1.msra.mxu0 0.0
    %7399 = vmatprep.subr.mxu0 0.0
    %7400 = vmatpush1.msra.mxu0 0.0
    %7401 = vmatprep.subr.mxu0 0.0
    %7402 = vmatpush1.msra.mxu0 0.0
    %7403 = vmatprep.subr.mxu0 0.0
    %7404 = vmatpush1.msra.mxu0 0.0
    %7405 = vmatprep.subr.mxu0 0.0
    %7406 = vmatpush1.msra.mxu0 0.0
    %7407 = vmatprep.subr.mxu0 0.0
    %7408 = vmatpush1.msra.mxu0 0.0
    %7409 = vmatprep.subr.mxu0 0.0
    %7410 = vmatpush1.msra.mxu0 0.0
    %7411 = vmatprep.subr.mxu0 0.0
    %7412 = vmatpush1.msra.mxu0 0.0
    %7413 = vmatprep.subr.mxu0 0.0
    %7414 = vmatpush1.msra.mxu0 0.0
    %7415 = vmatprep.subr.mxu0 0.0
    %7416 = vmatpush1.msra.mxu0 0.0
    %7417 = vmatprep.subr.mxu0 0.0
    %7418 = vmatpush1.msra.mxu0 0.0
    %7419 = vmatprep.subr.mxu0 0.0
    %7420 = vmatpush1.msra.mxu0 0.0
    %7421 = vmatprep.subr.mxu0 0.0
    %7422 = vmatpush1.msra.mxu0 0.0
    %7423 = vmatprep.subr.mxu0 0.0
    %7424 = vmatpush1.msra.mxu0 0.0
    %7425 = vmatprep.subr.mxu0 0.0
    %7426 = vmatpush1.msra.mxu0 %v3797
    %7427 = vmatprep.subr.mxu0 0.0
    %7428 = vmatpush2.msra.mxu0 0.0
    %7429 = vmatprep.subr.mxu0 0.0
    %7430 = vmatpush2.msra.mxu0 0.0
    %7431 = vmatprep.subr.mxu0 0.0
    %7432 = vmatpush2.msra.mxu0 0.0
    %7433 = vmatprep.subr.mxu0 0.0
    %7434 = vmatpush2.msra.mxu0 0.0
    %7435 = vmatprep.subr.mxu0 0.0
    %7436 = vmatpush2.msra.mxu0 0.0
    %7437 = vmatprep.subr.mxu0 0.0
    %7438 = vmatpush2.msra.mxu0 0.0
    %7439 = vmatprep.subr.mxu0 0.0
    %7440 = vmatpush2.msra.mxu0 0.0
    %7441 = vmatprep.subr.mxu0 0.0
    %7442 = vmatpush2.msra.mxu0 0.0
    %7443 = vmatprep.subr.mxu0 0.0
    %7444 = vmatpush2.msra.mxu0 0.0
    %7445 = vmatprep.subr.mxu0 0.0
    %7446 = vmatpush2.msra.mxu0 0.0
    %7447 = vmatprep.subr.mxu0 0.0
    %7448 = vmatpush2.msra.mxu0 0.0
    %7449 = vmatprep.subr.mxu0 0.0
    %7450 = vmatpush2.msra.mxu0 0.0
    %7451 = vmatprep.subr.mxu0 0.0
    %7452 = vmatpush2.msra.mxu0 0.0
    %7453 = vmatprep.subr.mxu0 0.0
    %7454 = vmatpush2.msra.mxu0 0.0
    %7455 = vmatprep.subr.mxu0 0.0
    %7456 = vmatpush2.msra.mxu0 0.0
    %7457 = vmatprep.subr.mxu0 0.0
    %7458 = vmatpush2.msra.mxu0 0.0
    %7459 = vmatprep.mubr.f32.mxu0 0.0
    %7460 = vmatmul.mubr.f32.gmra.mxu0 %v6833
    %v7461 = vpop.f32.mrf.mxu0
    %v7462 = vadd.f32 0.0, %v7461
    %v7463 = vpop.f32.mrf.mxu0
    %7464 = vdwg.mxu0
    %v7473 = vrot.slane %v6422, 7
    %v7474 = vsel %vm6056, %v7473, %v6342
    %v7475 = vrot.slane %v6502, 6
    %v7476 = vsel %vm6058, %v7475, %v7474
    %v7477 = vrot.slane %v6582, 5
    %v7478 = vsel %vm6060, %v7477, %v7476
    %v7479 = vrot.slane %v6662, 4
    %v7480 = vsel %vm6062, %v7479, %v7478
    %v7481 = vrot.slane %v6742, 3
    %v7482 = vsel %vm6064, %v7481, %v7480
    %v7483 = vrot.slane %v6822, 2
    %v7484 = vsel %vm6066, %v7483, %v7482
    %v7485 = vrot.slane %v6902, 1
    %v7486 = vsel %vm6068, %v7485, %v7484
    %v7496 = vrot.slane %v7042, 7
    %v7497 = vsel %vm6056, %v7496, %v6972
    %v7498 = vrot.slane %v7112, 6
    %v7499 = vsel %vm6058, %v7498, %v7497
    %v7500 = vrot.slane %v7182, 5
    %v7501 = vsel %vm6060, %v7500, %v7499
    %v7502 = vrot.slane %v7252, 4
    %v7503 = vsel %vm6062, %v7502, %v7501
    %v7504 = vrot.slane %v7322, 3
    %v7505 = vsel %vm6064, %v7504, %v7503
    %v7506 = vrot.slane %v7392, 2
    %v7507 = vsel %vm6066, %v7506, %v7505
    %v7508 = vrot.slane %v7462, 1
    %v7509 = vsel %vm6068, %v7508, %v7507
    %v7511 = vld [vmem:[#allocation15] sm:$0xff]
    %v7512 = vld [vmem:[#allocation15 + $0x8] sm:$0xff]
    %v7513 = vld [vmem:[#allocation15 + $0x10] sm:$0xff]
    %v7514 = vld [vmem:[#allocation15 + $0x18] sm:$0xff]
    %v7515 = vld [vmem:[#allocation15 + $0x20] sm:$0xff]
    %v7516 = vld [vmem:[#allocation15 + $0x28] sm:$0xff]
    %v7517 = vld [vmem:[#allocation15 + $0x30] sm:$0xff]
    %v7518 = vld [vmem:[#allocation15 + $0x38] sm:$0xff]
    %v7519 = vld [vmem:[#allocation15 + $0x40] sm:$0xff]
    %v7520 = vld [vmem:[#allocation15 + $0x48] sm:$0xff]
    %v7521 = vld [vmem:[#allocation15 + $0x50] sm:$0xff]
    %v7522 = vld [vmem:[#allocation15 + $0x58] sm:$0xff]
    %v7523 = vld [vmem:[#allocation15 + $0x60] sm:$0xff]
    %v7524 = vld [vmem:[#allocation15 + $0x68] sm:$0xff]
    %v7525 = vld [vmem:[#allocation15 + $0x70] sm:$0xff]
    %v7526 = vld [vmem:[#allocation15 + $0x78] sm:$0xff]
    %v7527 = vld [vmem:[#allocation15 + $0x80] sm:$0xff]
    %v7528 = vld [vmem:[#allocation15 + $0x88] sm:$0xff]
    %v7529 = vld [vmem:[#allocation15 + $0x90] sm:$0xff]
    %v7530 = vld [vmem:[#allocation15 + $0x98] sm:$0xff]
    %v7531 = vld [vmem:[#allocation15 + $0xa0] sm:$0xff]
    %v7532 = vld [vmem:[#allocation15 + $0xa8] sm:$0xff]
    %v7533 = vld [vmem:[#allocation15 + $0xb0] sm:$0xff]
    %v7534 = vld [vmem:[#allocation15 + $0xb8] sm:$0xff]
    %v7535 = vld [vmem:[#allocation15 + $0xc0] sm:$0xff]
    %v7536 = vld [vmem:[#allocation15 + $0xc8] sm:$0xff]
    %v7537 = vld [vmem:[#allocation15 + $0xd0] sm:$0xff]
    %v7538 = vld [vmem:[#allocation15 + $0xd8] sm:$0xff]
    %v7539 = vld [vmem:[#allocation15 + $0xe0] sm:$0xff]
    %v7540 = vld [vmem:[#allocation15 + $0xe8] sm:$0xff]
    %v7541 = vld [vmem:[#allocation15 + $0xf0] sm:$0xff]
    %v7542 = vld [vmem:[#allocation15 + $0xf8] sm:$0xff]
    %v7543 = vld [vmem:[#allocation15 + $0x100] sm:$0xff]
    %v7544 = vld [vmem:[#allocation15 + $0x108] sm:$0xff]
    %v7545 = vld [vmem:[#allocation15 + $0x110] sm:$0xff]
    %v7546 = vld [vmem:[#allocation15 + $0x118] sm:$0xff]
    %v7547 = vld [vmem:[#allocation15 + $0x120] sm:$0xff]
    %v7548 = vld [vmem:[#allocation15 + $0x128] sm:$0xff]
    %v7549 = vld [vmem:[#allocation15 + $0x130] sm:$0xff]
    %v7550 = vld [vmem:[#allocation15 + $0x138] sm:$0xff]
    %v7551 = vld [vmem:[#allocation15 + $0x140] sm:$0xff]
    %v7552 = vld [vmem:[#allocation15 + $0x148] sm:$0xff]
    %v7553 = vld [vmem:[#allocation15 + $0x150] sm:$0xff]
    %v7554 = vld [vmem:[#allocation15 + $0x158] sm:$0xff]
    %v7555 = vld [vmem:[#allocation15 + $0x160] sm:$0xff]
    %v7556 = vld [vmem:[#allocation15 + $0x168] sm:$0xff]
    %v7557 = vld [vmem:[#allocation15 + $0x170] sm:$0xff]
    %v7558 = vld [vmem:[#allocation15 + $0x178] sm:$0xff]
    %v7559 = vld [vmem:[#allocation15 + $0x180] sm:$0xff]
    %v7560 = vld [vmem:[#allocation15 + $0x188] sm:$0xff]
    %v7561 = vld [vmem:[#allocation15 + $0x190] sm:$0xff]
    %v7562 = vld [vmem:[#allocation15 + $0x198] sm:$0xff]
    %v7563 = vld [vmem:[#allocation15 + $0x1a0] sm:$0xff]
    %v7564 = vld [vmem:[#allocation15 + $0x1a8] sm:$0xff]
    %v7565 = vld [vmem:[#allocation15 + $0x1b0] sm:$0xff]
    %v7566 = vld [vmem:[#allocation15 + $0x1b8] sm:$0xff]
    %v7567 = vld [vmem:[#allocation15 + $0x1c0] sm:$0xff]
    %v7568 = vld [vmem:[#allocation15 + $0x1c8] sm:$0xff]
    %v7569 = vld [vmem:[#allocation15 + $0x1d0] sm:$0xff]
    %v7570 = vld [vmem:[#allocation15 + $0x1d8] sm:$0xff]
    %v7571 = vld [vmem:[#allocation15 + $0x1e0] sm:$0xff]
    %v7572 = vld [vmem:[#allocation15 + $0x1e8] sm:$0xff]
    %v7573 = vld [vmem:[#allocation15 + $0x1f0] sm:$0xff]
    %v7574 = vld [vmem:[#allocation15 + $0x1f8] sm:$0xff]
    %v7575 = vld [vmem:[%s10] sm:$0x1]
    %v7577 = vlaneseq
    %v7578 = vshrl.u32 %v7577, 7
    %v7579 = vsub.s32 0, %v7578
    %v7580 = vrot.slane %v7575, %v7579
    %7582 = vmatprep.subr.mxu0 0.0
    %7583 = vmatpush1.msra.mxu0 %v7526
    %7584 = vmatprep.subr.mxu0 0.0
    %7585 = vmatpush1.msra.mxu0 %v7525
    %7586 = vmatprep.subr.mxu0 0.0
    %7587 = vmatpush1.msra.mxu0 %v7524
    %7588 = vmatprep.subr.mxu0 0.0
    %7589 = vmatpush1.msra.mxu0 %v7523
    %7590 = vmatprep.subr.mxu0 0.0
    %7591 = vmatpush1.msra.mxu0 %v7522
    %7592 = vmatprep.subr.mxu0 0.0
    %7593 = vmatpush1.msra.mxu0 %v7521
    %7594 = vmatprep.subr.mxu0 0.0
    %7595 = vmatpush1.msra.mxu0 %v7520
    %7596 = vmatprep.subr.mxu0 0.0
    %7597 = vmatpush1.msra.mxu0 %v7519
    %7598 = vmatprep.subr.mxu0 0.0
    %7599 = vmatpush1.msra.mxu0 %v7518
    %7600 = vmatprep.subr.mxu0 0.0
    %7601 = vmatpush1.msra.mxu0 %v7517
    %7602 = vmatprep.subr.mxu0 0.0
    %7603 = vmatpush1.msra.mxu0 %v7516
    %7604 = vmatprep.subr.mxu0 0.0
    %7605 = vmatpush1.msra.mxu0 %v7515
    %7606 = vmatprep.subr.mxu0 0.0
    %7607 = vmatpush1.msra.mxu0 %v7514
    %7608 = vmatprep.subr.mxu0 0.0
    %7609 = vmatpush1.msra.mxu0 %v7513
    %7610 = vmatprep.subr.mxu0 0.0
    %7611 = vmatpush1.msra.mxu0 %v7512
    %7612 = vmatprep.subr.mxu0 0.0
    %7613 = vmatpush1.msra.mxu0 %v7511
    %7614 = vmatprep.subr.mxu0 0.0
    %7615 = vmatpush2.msra.mxu0 %v7542
    %7616 = vmatprep.subr.mxu0 0.0
    %7617 = vmatpush2.msra.mxu0 %v7541
    %7618 = vmatprep.subr.mxu0 0.0
    %7619 = vmatpush2.msra.mxu0 %v7540
    %7620 = vmatprep.subr.mxu0 0.0
    %7621 = vmatpush2.msra.mxu0 %v7539
    %7622 = vmatprep.subr.mxu0 0.0
    %7623 = vmatpush2.msra.mxu0 %v7538
    %7624 = vmatprep.subr.mxu0 0.0
    %7625 = vmatpush2.msra.mxu0 %v7537
    %7626 = vmatprep.subr.mxu0 0.0
    %7627 = vmatpush2.msra.mxu0 %v7536
    %7628 = vmatprep.subr.mxu0 0.0
    %7629 = vmatpush2.msra.mxu0 %v7535
    %7630 = vmatprep.subr.mxu0 0.0
    %7631 = vmatpush2.msra.mxu0 %v7534
    %7632 = vmatprep.subr.mxu0 0.0
    %7633 = vmatpush2.msra.mxu0 %v7533
    %7634 = vmatprep.subr.mxu0 0.0
    %7635 = vmatpush2.msra.mxu0 %v7532
    %7636 = vmatprep.subr.mxu0 0.0
    %7637 = vmatpush2.msra.mxu0 %v7531
    %7638 = vmatprep.subr.mxu0 0.0
    %7639 = vmatpush2.msra.mxu0 %v7530
    %7640 = vmatprep.subr.mxu0 0.0
    %7641 = vmatpush2.msra.mxu0 %v7529
    %7642 = vmatprep.subr.mxu0 0.0
    %7643 = vmatpush2.msra.mxu0 %v7528
    %7644 = vmatprep.subr.mxu0 0.0
    %7645 = vmatpush2.msra.mxu0 %v7527
    %7646 = vmatprep.mubr.f32.mxu0 %v3506
    %7647 = vmatmul.mubr.f32.gmra.mxu0 %v3482
    %v7648 = vpop.f32.mrf.mxu0
    %v7649 = vadd.f32 %v7580, %v7648
    %v7650 = vpop.f32.mrf.mxu0
    %7651 = vdwg.mxu0
    %7652 = vmatprep.subr.mxu0 0.0
    %7653 = vmatpush1.msra.mxu0 %v7558
    %7654 = vmatprep.subr.mxu0 0.0
    %7655 = vmatpush1.msra.mxu0 %v7557
    %7656 = vmatprep.subr.mxu0 0.0
    %7657 = vmatpush1.msra.mxu0 %v7556
    %7658 = vmatprep.subr.mxu0 0.0
    %7659 = vmatpush1.msra.mxu0 %v7555
    %7660 = vmatprep.subr.mxu0 0.0
    %7661 = vmatpush1.msra.mxu0 %v7554
    %7662 = vmatprep.subr.mxu0 0.0
    %7663 = vmatpush1.msra.mxu0 %v7553
    %7664 = vmatprep.subr.mxu0 0.0
    %7665 = vmatpush1.msra.mxu0 %v7552
    %7666 = vmatprep.subr.mxu0 0.0
    %7667 = vmatpush1.msra.mxu0 %v7551
    %7668 = vmatprep.subr.mxu0 0.0
    %7669 = vmatpush1.msra.mxu0 %v7550
    %7670 = vmatprep.subr.mxu0 0.0
    %7671 = vmatpush1.msra.mxu0 %v7549
    %7672 = vmatprep.subr.mxu0 0.0
    %7673 = vmatpush1.msra.mxu0 %v7548
    %7674 = vmatprep.subr.mxu0 0.0
    %7675 = vmatpush1.msra.mxu0 %v7547
    %7676 = vmatprep.subr.mxu0 0.0
    %7677 = vmatpush1.msra.mxu0 %v7546
    %7678 = vmatprep.subr.mxu0 0.0
    %7679 = vmatpush1.msra.mxu0 %v7545
    %7680 = vmatprep.subr.mxu0 0.0
    %7681 = vmatpush1.msra.mxu0 %v7544
    %7682 = vmatprep.subr.mxu0 0.0
    %7683 = vmatpush1.msra.mxu0 %v7543
    %7684 = vmatprep.subr.mxu0 0.0
    %7685 = vmatpush2.msra.mxu0 %v7574
    %7686 = vmatprep.subr.mxu0 0.0
    %7687 = vmatpush2.msra.mxu0 %v7573
    %7688 = vmatprep.subr.mxu0 0.0
    %7689 = vmatpush2.msra.mxu0 %v7572
    %7690 = vmatprep.subr.mxu0 0.0
    %7691 = vmatpush2.msra.mxu0 %v7571
    %7692 = vmatprep.subr.mxu0 0.0
    %7693 = vmatpush2.msra.mxu0 %v7570
    %7694 = vmatprep.subr.mxu0 0.0
    %7695 = vmatpush2.msra.mxu0 %v7569
    %7696 = vmatprep.subr.mxu0 0.0
    %7697 = vmatpush2.msra.mxu0 %v7568
    %7698 = vmatprep.subr.mxu0 0.0
    %7699 = vmatpush2.msra.mxu0 %v7567
    %7700 = vmatprep.subr.mxu0 0.0
    %7701 = vmatpush2.msra.mxu0 %v7566
    %7702 = vmatprep.subr.mxu0 0.0
    %7703 = vmatpush2.msra.mxu0 %v7565
    %7704 = vmatprep.subr.mxu0 0.0
    %7705 = vmatpush2.msra.mxu0 %v7564
    %7706 = vmatprep.subr.mxu0 0.0
    %7707 = vmatpush2.msra.mxu0 %v7563
    %7708 = vmatprep.subr.mxu0 0.0
    %7709 = vmatpush2.msra.mxu0 %v7562
    %7710 = vmatprep.subr.mxu0 0.0
    %7711 = vmatpush2.msra.mxu0 %v7561
    %7712 = vmatprep.subr.mxu0 0.0
    %7713 = vmatpush2.msra.mxu0 %v7560
    %7714 = vmatprep.subr.mxu0 0.0
    %7715 = vmatpush2.msra.mxu0 %v7559
    %7716 = vmatprep.mubr.f32.mxu0 %v7509
    %7717 = vmatmul.mubr.f32.gmra.mxu0 %v7486
    %v7718 = vpop.f32.mrf.mxu0
    %v7719 = vadd.f32 %v7649, %v7718
    %v7720 = vpop.f32.mrf.mxu0
    %7721 = vdwg.mxu0
    %v7722 = vxor.u32 %v7719, 2147483648
    %v7723 = vmul.f32 %v7722, 1.442695
    %v7724 = vpow.pop %v7723
    %v7725 = vadd.f32 %v7724, 1.0
    %v7726 = vrcp.pop %v7725
    %v7727 = vmul.f32 1.0, %v7726
    %7728 = vst [vmem:[#allocation17] sm:$0xff] %v7727
    // Predicated region
    $region70: #{tpu_custom_call.1} parent=1 // pred_check
      _
    $region71: #{tpu_custom_call.1} parent=1 // pred_check_branch
      %7730 = sbr.rel (0) target = $region73
    $region72: #{tpu_custom_call.1} parent=1 // pred_region
      %s7732 = ssub.s32 128, 128
      %7733 = vsyncadd [#allocation8], %s7732
      %s7735 = sshll.u32 [#allocation17], 4
      %s7736 = int_to_ptr.vmem [resolvable:$true] %s7735
      %7738 = dma.vmem_to_hbm [thread:$0]  %s7736, 128, %s11, [#allocation8]
    $region73: #{tpu_custom_call.1} parent=1 // pred_fallthru
      _
    // Predicated region
    $region74: #{tpu_custom_call.1} parent=1 // pred_check
      _
    $region75: #{tpu_custom_call.1} parent=1 // pred_check_branch
      %7740 = sbr.rel (0) target = $region77
    $region76: #{tpu_custom_call.1} parent=1 // pred_region
      %7741 = dma.done [#allocation8], 128
    $region77: #{tpu_custom_call.1} parent=1 // pred_fallthru
      _
    %7742 = vsyncpa [#allocation7], 1
    %7743 = vsyncpa [#allocation10], 1
    %7744 = vsyncpa [#allocation13], 1
    %7745 = vsyncpa [#allocation16], 1
    %7746 = vsyncpa [#allocation8], 1

</llo_original>
